<compile_context>
chip_gen: v7x
topology: tpu7x:2x2x1
jax: 0.10.0
libtpu: 0.0.40
codegen_flags: <defaults>
</compile_context>

<pallas_src>
import jax
import jax.numpy as jnp
from jax.experimental import pallas as pl
from jax.experimental.pallas import tpu as pltpu


# ---------------------------------------------------------------------------
# Pallas kernel: the whole DAInsHead forward for one row-tile of x.
# ---------------------------------------------------------------------------
def _da_ins_head_kernel(x_ref, w1_ref, b1_ref, w2_ref, b2_ref, w3_ref, b3_ref,
                        o_ref):
    # fc1 + ReLU   (dropout = identity in eval mode). x arrives as f32 and is
    # cast to bf16 here (VPU cast hides under the MXU work).
    x = x_ref[...].astype(jnp.bfloat16)
    h = jnp.dot(x, w1_ref[...], preferred_element_type=jnp.float32)
    h = jnp.maximum(h + b1_ref[...], 0.0)

    # fc2 + ReLU   (dropout = identity in eval mode)
    h = jnp.dot(h.astype(jnp.bfloat16), w2_ref[...],
                preferred_element_type=jnp.float32)
    h = jnp.maximum(h + b2_ref[...], 0.0)

    # fc3: Linear(1024, 1) as an NT matmul  w3 (1,1024) . h (tm,1024)^T ->
    # (1, tm): the result is already lane-major, so the output store is a
    # dense unmasked row (no masked (tm,1) column stores, no XLU relayout).
    y = jnp.einsum("ok,nk->on", w3_ref[...], h.astype(jnp.bfloat16),
                   preferred_element_type=jnp.float32)
    o_ref[0] = (y + b3_ref[...]).astype(o_ref.dtype)


# ---------------------------------------------------------------------------
# Wrapper
# ---------------------------------------------------------------------------
def _choose_row_tile(n_rows):
    """Row-tile heuristic.

    N <= 512: single tile / single grid step (weight-DMA-bound regime; on v7x
    splitting would duplicate the w1/w2 DMA into both cores' private VMEM).
    N  > 512: ~512-row tiles, balanced and rounded to a multiple of 8, which
    always yields >= 2 grid steps so v7x megacore splits the batch.
    """
    if n_rows <= 512:
        return n_rows
    n_tiles = pl.cdiv(n_rows, 512)                       # >= 2
    return min(512, 8 * pl.cdiv(pl.cdiv(n_rows, n_tiles), 8))


def da_ins_head_forward(x, params, tm=None):
    """Forward of DAInsHead in eval mode. x: (N, in_channels) float32."""
    N, D = x.shape
    H = params["b1"].shape[1]                            # 1024
    tm = _choose_row_tile(N) if tm is None else tm
    grid = pl.cdiv(N, tm)   # no zero-pad; boundary garbage rows sliced below

    flops = 2 * N * (D * H + H * H + H)
    bytes_accessed = (N * D * 4                          # x (f32 in)
                      + (D * H + H * H + H) * 2          # bf16 weights
                      + (2 * H + 1) * 4                  # f32 biases
                      + N * 4)                           # output

    out = pl.pallas_call(
        _da_ins_head_kernel,
        out_shape=jax.ShapeDtypeStruct((grid, 1, tm), jnp.float32),
        grid_spec=pltpu.PrefetchScalarGridSpec(
            num_scalar_prefetch=0,
            grid=(grid,),
            in_specs=[
                pl.BlockSpec((tm, D), lambda i: (i, 0)),   # x row tile (f32)
                # Grid-invariant operands (constant index_map) below; they are
                # fetched once and could be single-buffered for extra VMEM
                # headroom (pipeline_mode=pl.Buffered(1)).
                pl.BlockSpec((D, H), lambda i: (0, 0)),    # w1 (bf16)
                pl.BlockSpec((1, H), lambda i: (0, 0)),    # b1 (f32)
                pl.BlockSpec((H, H), lambda i: (0, 0)),    # w2 (bf16)
                pl.BlockSpec((1, H), lambda i: (0, 0)),    # b2 (f32)
                pl.BlockSpec((1, H), lambda i: (0, 0)),    # w3 row (bf16)
                pl.BlockSpec((1, 1), lambda i: (0, 0)),    # b3 (f32)
            ],
            out_specs=pl.BlockSpec((1, 1, tm), lambda i: (i, 0, 0)),
        ),
        compiler_params=pltpu.CompilerParams(
            dimension_semantics=("parallel",),
            # Headroom for in_channels up to 2048 with tm=512 on v5e's 16 MiB
            # default scoped VMEM; well under every generation's physical VMEM.
            vmem_limit_bytes=48 * 1024 * 1024,
        ),
        cost_estimate=pl.CostEstimate(flops=flops, transcendentals=0,
                                      bytes_accessed=bytes_accessed),
    )(x, params["w1"], params["b1"], params["w2"], params["b2"],
      params["w3"], params["b3"])

    # (grid, 1, tm) lane-dense rows -> (N, 1) column; boundary garbage dropped.
    return out.reshape(-1)[:N].reshape(N, 1)


def init_params(key, in_channels):
    """PyTorch init: normal(std=0.01) for fc1/fc2, std=0.05 for fc3, zero bias.

    Layout transforms (weights transposed to (in, out), fc3 kept as a (1,1024)
    row) and the bf16 casts of the MXU operands are done once here, NOT per
    forward call.  Returns (kernel_params, full_precision_reference_weights).
    """
    k1, k2, k3 = jax.random.split(key, 3)
    w1 = 0.01 * jax.random.normal(k1, (in_channels, 1024), jnp.float32)
    w2 = 0.01 * jax.random.normal(k2, (1024, 1024), jnp.float32)
    w3 = 0.05 * jax.random.normal(k3, (1024, 1), jnp.float32)
    # TODO(synk): on v7x the w1/w2 casts could be fp8 with per-channel scales
    # (2x MXU peak, half the weight DMA); needs accuracy validation.
    params = {
        "w1": w1.astype(jnp.bfloat16),
        "b1": jnp.zeros((1, 1024), jnp.float32),
        "w2": w2.astype(jnp.bfloat16),
        "b2": jnp.zeros((1, 1024), jnp.float32),
        "w3": w3.reshape(1, 1024).astype(jnp.bfloat16),
        "b3": jnp.zeros((1, 1), jnp.float32),
    }
    full = {"w1": w1, "w2": w2, "w3": w3}
    return params, full


def reference_forward(x, full):
    """Pure-JAX f32 reference (eval mode: dropout = identity, biases = 0)."""
    h = jnp.maximum(x @ full["w1"], 0.0)
    h = jnp.maximum(h @ full["w2"], 0.0)
    return h @ full["w3"]


if __name__ == "__main__":
    key = jax.random.PRNGKey(0)
    kp, kx_small, kx_large = jax.random.split(key, 3)

    D = 128   # in_channels (small demo); hidden width 1024 fixed by the module
    params, full = init_params(kp, D)
    fwd = jax.jit(da_ins_head_forward)

    # Two ROI-batch sizes: a small one (single tile, N not a multiple of 8)
    # and a larger one exercising the multi-tile grid + uneven boundary block.
    for n_rois, kx in ((200, kx_small), (700, kx_large)):
        x = jax.random.normal(kx, (n_rois, D), jnp.float32)
        out = jax.block_until_ready(fwd(x, params))
        assert out.shape == (n_rois, 1) and out.dtype == jnp.float32

        ref = reference_forward(x, full)
        err = float(jnp.max(jnp.abs(out - ref)))
        # bf16 MXU operands with f32 accumulation: tolerance is intentional.
        assert jnp.allclose(out, ref, atol=5e-3, rtol=5e-2), err

    # TODO(synk): dropout is implemented with eval semantics (identity);
    # training-mode dropout would need pltpu.prng_seed / prng_random_bits.
    print("KERNEL_OK")
</pallas_src>

<mosaic_0001>
module attributes {stable_mosaic.version = 11 : i64} {
  func.func @_da_ins_head_kernel(%arg0: i32, %arg1: memref<200x128xf32, #tpu.memory_space<vmem>>, %arg2: memref<128x1024xbf16, #tpu.memory_space<vmem>>, %arg3: memref<1x1024xf32, #tpu.memory_space<vmem>>, %arg4: memref<1024x1024xbf16, #tpu.memory_space<vmem>>, %arg5: memref<1x1024xf32, #tpu.memory_space<vmem>>, %arg6: memref<1x1024xbf16, #tpu.memory_space<vmem>>, %arg7: memref<1x1xf32, #tpu.memory_space<vmem>>, %arg8: memref<1x1x200xf32, #tpu.memory_space<vmem>>) attributes {dimension_semantics = [#tpu.dimension_semantics<parallel>], iteration_bounds = array<i64: 1>, scalar_prefetch = 0 : i64, scratch_operands = 0 : i64, tpu.core_type = #tpu.core_type<tc>, window_params = [{transform_indices = @transform_0, window_bounds = array<i64: 200, 128>}, {pipeline_mode = #tpu.pipeline_mode<synchronous>, transform_indices = @transform_1, window_bounds = array<i64: 128, 1024>}, {pipeline_mode = #tpu.pipeline_mode<synchronous>, transform_indices = @transform_2, window_bounds = array<i64: 1, 1024>}, {pipeline_mode = #tpu.pipeline_mode<synchronous>, transform_indices = @transform_3, window_bounds = array<i64: 1024, 1024>}, {pipeline_mode = #tpu.pipeline_mode<synchronous>, transform_indices = @transform_4, window_bounds = array<i64: 1, 1024>}, {pipeline_mode = #tpu.pipeline_mode<synchronous>, transform_indices = @transform_5, window_bounds = array<i64: 1, 1024>}, {pipeline_mode = #tpu.pipeline_mode<synchronous>, transform_indices = @transform_6, window_bounds = array<i64: 1, 1>}, {transform_indices = @transform_7, window_bounds = array<i64: 1, 1, 200>}]} {
    %c0 = arith.constant 0 : index
    %c0_0 = arith.constant 0 : index
    %0 = vector.load %arg1[%c0, %c0_0] : memref<200x128xf32, #tpu.memory_space<vmem>>, vector<200x128xf32>
    %1 = arith.truncf %0 : vector<200x128xf32> to vector<200x128xbf16>
    %c0_1 = arith.constant 0 : index
    %c0_2 = arith.constant 0 : index
    %2 = vector.load %arg2[%c0_1, %c0_2] : memref<128x1024xbf16, #tpu.memory_space<vmem>>, vector<128x1024xbf16>
    %cst = arith.constant dense<0.000000e+00> : vector<200x1024xf32>
    %3 = tpu.matmul %1, %2, %cst {dimension_numbers = #tpu.dot_dimension_numbers<[1], [0], [0], [1], [0, 0, 1, 1], [], []>} : vector<200x128xbf16>, vector<128x1024xbf16>, vector<200x1024xf32> -> vector<200x1024xf32>
    %c0_3 = arith.constant 0 : index
    %c0_4 = arith.constant 0 : index
    %4 = vector.load %arg3[%c0_3, %c0_4] : memref<1x1024xf32, #tpu.memory_space<vmem>>, vector<1x1024xf32>
    %5 = vector.broadcast %4 : vector<1x1024xf32> to vector<200x1024xf32>
    %6 = arith.addf %3, %5 : vector<200x1024xf32>
    %cst_5 = arith.constant 0.000000e+00 : f32
    %7 = vector.broadcast %cst_5 : f32 to vector<200x1024xf32>
    %8 = arith.maximumf %6, %7 : vector<200x1024xf32>
    %9 = arith.truncf %8 : vector<200x1024xf32> to vector<200x1024xbf16>
    %c0_6 = arith.constant 0 : index
    %c0_7 = arith.constant 0 : index
    %10 = vector.load %arg4[%c0_6, %c0_7] : memref<1024x1024xbf16, #tpu.memory_space<vmem>>, vector<1024x1024xbf16>
    %cst_8 = arith.constant dense<0.000000e+00> : vector<200x1024xf32>
    %11 = tpu.matmul %9, %10, %cst_8 {dimension_numbers = #tpu.dot_dimension_numbers<[1], [0], [0], [1], [0, 0, 1, 1], [], []>} : vector<200x1024xbf16>, vector<1024x1024xbf16>, vector<200x1024xf32> -> vector<200x1024xf32>
    %c0_9 = arith.constant 0 : index
    %c0_10 = arith.constant 0 : index
    %12 = vector.load %arg5[%c0_9, %c0_10] : memref<1x1024xf32, #tpu.memory_space<vmem>>, vector<1x1024xf32>
    %13 = vector.broadcast %12 : vector<1x1024xf32> to vector<200x1024xf32>
    %14 = arith.addf %11, %13 : vector<200x1024xf32>
    %cst_11 = arith.constant 0.000000e+00 : f32
    %15 = vector.broadcast %cst_11 : f32 to vector<200x1024xf32>
    %16 = arith.maximumf %14, %15 : vector<200x1024xf32>
    %c0_12 = arith.constant 0 : index
    %c0_13 = arith.constant 0 : index
    %17 = vector.load %arg6[%c0_12, %c0_13] : memref<1x1024xbf16, #tpu.memory_space<vmem>>, vector<1x1024xbf16>
    %18 = arith.truncf %16 : vector<200x1024xf32> to vector<200x1024xbf16>
    "tpu.trace_start"() <{level = 10 : i32, message = "ok,nk->on"}> : () -> ()
    %cst_14 = arith.constant dense<0.000000e+00> : vector<1x200xf32>
    %19 = tpu.matmul %17, %18, %cst_14 {dimension_numbers = #tpu.dot_dimension_numbers<[1], [1], [0], [0], [0, 0, 1, 0], [], []>} : vector<1x1024xbf16>, vector<200x1024xbf16>, vector<1x200xf32> -> vector<1x200xf32>
    "tpu.trace_stop"() : () -> ()
    %c0_15 = arith.constant 0 : index
    %c0_16 = arith.constant 0 : index
    %20 = vector.load %arg7[%c0_15, %c0_16] : memref<1x1xf32, #tpu.memory_space<vmem>>, vector<1x1xf32>
    %21 = vector.broadcast %20 : vector<1x1xf32> to vector<1x200xf32>
    %22 = arith.addf %19, %21 : vector<1x200xf32>
    %c0_17 = arith.constant 0 : index
    %c0_18 = arith.constant 0 : index
    %c0_19 = arith.constant 0 : index
    %23 = vector.load %arg8[%c0_17, %c0_18, %c0_19] : memref<1x1x200xf32, #tpu.memory_space<vmem>>, vector<1x1x200xf32>
    %24 = vector.shape_cast %23 : vector<1x1x200xf32> to vector<1x200xf32>
    %25 = vector.shape_cast %22 : vector<1x200xf32> to vector<1x1x200xf32>
    tpu.vector_store %arg8[%c0_17, %c0_18, %c0_19], %25 {strides = array<i32>} : memref<1x1x200xf32, #tpu.memory_space<vmem>>, vector<1x1x200xf32>,
    return
  }
  func.func @transform_0(%arg0: i32) -> (i32, i32) {
    %c0_i32 = arith.constant 0 : i32
    %c0_i32_0 = arith.constant 0 : i32
    return %arg0, %c0_i32 : i32, i32
  }
  func.func @transform_1(%arg0: i32) -> (i32, i32) {
    %c0_i32 = arith.constant 0 : i32
    %c0_i32_0 = arith.constant 0 : i32
    %c0_i32_1 = arith.constant 0 : i32
    return %c0_i32, %c0_i32_0 : i32, i32
  }
  func.func @transform_2(%arg0: i32) -> (i32, i32) {
    %c0_i32 = arith.constant 0 : i32
    %c0_i32_0 = arith.constant 0 : i32
    %c0_i32_1 = arith.constant 0 : i32
    return %c0_i32, %c0_i32_0 : i32, i32
  }
  func.func @transform_3(%arg0: i32) -> (i32, i32) {
    %c0_i32 = arith.constant 0 : i32
    %c0_i32_0 = arith.constant 0 : i32
    %c0_i32_1 = arith.constant 0 : i32
    return %c0_i32, %c0_i32_0 : i32, i32
  }
  func.func @transform_4(%arg0: i32) -> (i32, i32) {
    %c0_i32 = arith.constant 0 : i32
    %c0_i32_0 = arith.constant 0 : i32
    %c0_i32_1 = arith.constant 0 : i32
    return %c0_i32, %c0_i32_0 : i32, i32
  }
  func.func @transform_5(%arg0: i32) -> (i32, i32) {
    %c0_i32 = arith.constant 0 : i32
    %c0_i32_0 = arith.constant 0 : i32
    %c0_i32_1 = arith.constant 0 : i32
    return %c0_i32, %c0_i32_0 : i32, i32
  }
  func.func @transform_6(%arg0: i32) -> (i32, i32) {
    %c0_i32 = arith.constant 0 : i32
    %c0_i32_0 = arith.constant 0 : i32
    %c0_i32_1 = arith.constant 0 : i32
    return %c0_i32, %c0_i32_0 : i32, i32
  }
  func.func @transform_7(%arg0: i32) -> (i32, i32, i32) {
    %c0_i32 = arith.constant 0 : i32
    %c0_i32_0 = arith.constant 0 : i32
    %c0_i32_1 = arith.constant 0 : i32
    return %arg0, %c0_i32, %c0_i32_0 : i32, i32, i32
  }
}

</mosaic_0001>

<llo_original>
// kernel: da_ins_head_forward.1
$region0: #{da_ins_head_forward.1}
  #allocation0 [shape = 'u32[]', space=smem, size = 0x4, offset = 0x4, fixed_abs, tag = 'smem constant byte address 0x4 - core index']
  #allocation1 [shape = 'u32[144,128]{1,0:T(1,128)}', space=vmem, size = 0x12000, scoped, tag = 'internal scratch']
  #allocation2 [shape = 'f32[1,1]{1,0:T(1,128)S(1)}', space=vmem, size = 0x200, scoped, tag = 'scoped memory for da_ins_head_forward.1']
  %s0 = inlined_call_operand.hbm [shape: f32[200,128], index: 0, kind: input, shape index: {}]
  %s1 = inlined_call_operand.hbm [shape: bf16[128,1024], index: 1, kind: input, shape index: {}]
  %s2 = inlined_call_operand.hbm [shape: f32[1,1024], index: 2, kind: input, shape index: {}]
  %s3 = inlined_call_operand.hbm [shape: bf16[1024,1024], index: 3, kind: input, shape index: {}]
  %s4 = inlined_call_operand.hbm [shape: f32[1,1024], index: 4, kind: input, shape index: {}]
  %s5 = inlined_call_operand.hbm [shape: bf16[1,1024], index: 5, kind: input, shape index: {}]
  %s6 = inlined_call_operand.<no memory space> [shape: f32[1,1], index: 6, kind: input, shape index: {}]
  %s7 = inlined_call_operand.hbm [shape: f32[1,1,200], index: 7, kind: output, shape index: {}]
  %s8 = sld [smem:[#allocation0]]
  $region62: #{da_ins_head_forward.1} parent=0
    _
  %s10 = ssub.s32 1, %s8
  %s11 = scalar_select 0, %s10, %s8
  %v12 = vstv %s6
  %13 = vst [vmem:[#allocation2] sm:$0x1] %v12
  $region1: #{da_ins_head_forward.1} parent=0
    #allocation3 [shape = 'u8[102400]{0}', space=vmem, size = 0x19000, scoped, tag = 'input window, operand 0, single buffered']
    #allocation4 [shape = 's32[1]{0}', space=sflag, size = 0x4, scoped, tag = 'scoped memory for da_ins_head_forward.1']
    #allocation5 [shape = 's32[1]{0}', space=sflag, size = 0x4, scoped, tag = 'scoped memory for da_ins_head_forward.1']
    #allocation6 [shape = 'u8[262144]{0}', space=vmem, size = 0x40000, scoped, tag = 'input window, operand 1, single buffered']
    #allocation7 [shape = 's32[1]{0}', space=sflag, size = 0x4, scoped, tag = 'scoped memory for da_ins_head_forward.1']
    #allocation8 [shape = 'u8[4096]{0}', space=vmem, size = 0x1000, scoped, tag = 'input window, operand 2, single buffered']
    #allocation9 [shape = 'u8[2097152]{0}', space=vmem, size = 0x200000, scoped, tag = 'input window, operand 3, single buffered']
    #allocation10 [shape = 's32[1]{0}', space=sflag, size = 0x4, scoped, tag = 'scoped memory for da_ins_head_forward.1']
    #allocation11 [shape = 'u8[4096]{0}', space=vmem, size = 0x1000, scoped, tag = 'input window, operand 4, single buffered']
    #allocation12 [shape = 'u8[4096]{0}', space=vmem, size = 0x1000, scoped, tag = 'input window, operand 5, single buffered']
    #allocation13 [shape = 's32[1]{0}', space=sflag, size = 0x4, scoped, tag = 'scoped memory for da_ins_head_forward.1']
    #allocation14 [shape = 'u8[1024]{0}', space=vmem, size = 0x400, scoped, tag = 'output window, operand 0, single buffered']
    %14 = vsyncpa [#allocation4], 0
    %15 = vsyncpa [#allocation7], 0
    %16 = vsyncpa [#allocation10], 0
    %17 = vsyncpa [#allocation13], 0
    %18 = vsyncpa [#allocation5], 0
    // Predicated region
    $region2: #{da_ins_head_forward.1} parent=1 // pred_check
      _
    $region3: #{da_ins_head_forward.1} parent=1 // pred_check_branch
      %20 = sbr.rel (0) target = $region5
    $region4: #{da_ins_head_forward.1} parent=1 // pred_region
      %s22 = ssub.s32 3200, 3200
      %23 = vsyncadd [#allocation4], %s22
      %s24 = sshll.u32 [#allocation3], 4
      %s25 = int_to_ptr.vmem [resolvable:$true] %s24
      %30 = dma.hbm_to_vmem [thread:$0]  %s0, 3200, %s25, [#allocation4], 128, 128, 8
    $region5: #{da_ins_head_forward.1} parent=1 // pred_fallthru
      _
    // Predicated region
    $region6: #{da_ins_head_forward.1} parent=1 // pred_check
      _
    $region7: #{da_ins_head_forward.1} parent=1 // pred_check_branch
      %32 = sbr.rel (0) target = $region9
    $region8: #{da_ins_head_forward.1} parent=1 // pred_region
      %s34 = ssub.s32 8192, 8192
      %35 = vsyncadd [#allocation7], %s34
      %s36 = sshll.u32 [#allocation6], 4
      %s37 = int_to_ptr.vmem [resolvable:$true] %s36
      %42 = dma.hbm_to_vmem [thread:$0]  %s1, 8192, %s37, [#allocation7], 512, 512, 32
    $region9: #{da_ins_head_forward.1} parent=1 // pred_fallthru
      _
    // Predicated region
    $region10: #{da_ins_head_forward.1} parent=1 // pred_check
      _
    $region11: #{da_ins_head_forward.1} parent=1 // pred_check_branch
      %44 = sbr.rel (0) target = $region13
    $region12: #{da_ins_head_forward.1} parent=1 // pred_region
      %s46 = ssub.s32 128, 128
      %47 = vsyncadd [#allocation7], %s46
      %s49 = sshll.u32 [#allocation8], 4
      %s50 = int_to_ptr.vmem [resolvable:$true] %s49
      %52 = dma.hbm_to_vmem [thread:$0]  %s2, 128, %s50, [#allocation7]
    $region13: #{da_ins_head_forward.1} parent=1 // pred_fallthru
      _
    // Predicated region
    $region14: #{da_ins_head_forward.1} parent=1 // pred_check
      _
    $region15: #{da_ins_head_forward.1} parent=1 // pred_check_branch
      %54 = sbr.rel (0) target = $region17
    $region16: #{da_ins_head_forward.1} parent=1 // pred_region
      %s56 = ssub.s32 65536, 65536
      %57 = vsyncadd [#allocation10], %s56
      %s58 = sshll.u32 [#allocation9], 4
      %s59 = int_to_ptr.vmem [resolvable:$true] %s58
      %64 = dma.hbm_to_vmem [thread:$0]  %s3, 65536, %s59, [#allocation10], 512, 512, 32
    $region17: #{da_ins_head_forward.1} parent=1 // pred_fallthru
      _
    // Predicated region
    $region18: #{da_ins_head_forward.1} parent=1 // pred_check
      _
    $region19: #{da_ins_head_forward.1} parent=1 // pred_check_branch
      %66 = sbr.rel (0) target = $region21
    $region20: #{da_ins_head_forward.1} parent=1 // pred_region
      %s68 = ssub.s32 128, 128
      %69 = vsyncadd [#allocation10], %s68
      %s71 = sshll.u32 [#allocation11], 4
      %s72 = int_to_ptr.vmem [resolvable:$true] %s71
      %74 = dma.hbm_to_vmem [thread:$0]  %s4, 128, %s72, [#allocation10]
    $region21: #{da_ins_head_forward.1} parent=1 // pred_fallthru
      _
    // Predicated region
    $region22: #{da_ins_head_forward.1} parent=1 // pred_check
      _
    $region23: #{da_ins_head_forward.1} parent=1 // pred_check_branch
      %76 = sbr.rel (0) target = $region25
    $region24: #{da_ins_head_forward.1} parent=1 // pred_region
      %s78 = ssub.s32 128, 128
      %79 = vsyncadd [#allocation13], %s78
      %s81 = sshll.u32 [#allocation12], 4
      %s82 = int_to_ptr.vmem [resolvable:$true] %s81
      %84 = dma.hbm_to_vmem [thread:$0]  %s5, 128, %s82, [#allocation13]
    $region25: #{da_ins_head_forward.1} parent=1 // pred_fallthru
      _
    // Predicated region
    $region26: #{da_ins_head_forward.1} parent=1 // pred_check
      _
    $region27: #{da_ins_head_forward.1} parent=1 // pred_check_branch
      %86 = sbr.rel (0) target = $region29
    $region28: #{da_ins_head_forward.1} parent=1 // pred_region
      _
    $region29: #{da_ins_head_forward.1} parent=1 // pred_fallthru
      _
    // Predicated region
    $region30: #{da_ins_head_forward.1} parent=1 // pred_check
      _
    $region31: #{da_ins_head_forward.1} parent=1 // pred_check_branch
      %88 = sbr.rel (0) target = $region33
    $region32: #{da_ins_head_forward.1} parent=1 // pred_region
      %89 = dma.done [#allocation4], 3200
    $region33: #{da_ins_head_forward.1} parent=1 // pred_fallthru
      _
    // Predicated region
    $region34: #{da_ins_head_forward.1} parent=1 // pred_check
      _
    $region35: #{da_ins_head_forward.1} parent=1 // pred_check_branch
      %91 = sbr.rel (0) target = $region37
    $region36: #{da_ins_head_forward.1} parent=1 // pred_region
      %92 = dma.done [#allocation7], 8192
    $region37: #{da_ins_head_forward.1} parent=1 // pred_fallthru
      _
    // Predicated region
    $region38: #{da_ins_head_forward.1} parent=1 // pred_check
      _
    $region39: #{da_ins_head_forward.1} parent=1 // pred_check_branch
      %94 = sbr.rel (0) target = $region41
    $region40: #{da_ins_head_forward.1} parent=1 // pred_region
      %95 = dma.done [#allocation7], 128
    $region41: #{da_ins_head_forward.1} parent=1 // pred_fallthru
      _
    // Predicated region
    $region42: #{da_ins_head_forward.1} parent=1 // pred_check
      _
    $region43: #{da_ins_head_forward.1} parent=1 // pred_check_branch
      %97 = sbr.rel (0) target = $region45
    $region44: #{da_ins_head_forward.1} parent=1 // pred_region
      %98 = dma.done [#allocation10], 65536
    $region45: #{da_ins_head_forward.1} parent=1 // pred_fallthru
      _
    // Predicated region
    $region46: #{da_ins_head_forward.1} parent=1 // pred_check
      _
    $region47: #{da_ins_head_forward.1} parent=1 // pred_check_branch
      %100 = sbr.rel (0) target = $region49
    $region48: #{da_ins_head_forward.1} parent=1 // pred_region
      %101 = dma.done [#allocation10], 128
    $region49: #{da_ins_head_forward.1} parent=1 // pred_fallthru
      _
    // Predicated region
    $region50: #{da_ins_head_forward.1} parent=1 // pred_check
      _
    $region51: #{da_ins_head_forward.1} parent=1 // pred_check_branch
      %103 = sbr.rel (0) target = $region53
    $region52: #{da_ins_head_forward.1} parent=1 // pred_region
      %104 = dma.done [#allocation13], 128
    $region53: #{da_ins_head_forward.1} parent=1 // pred_fallthru
      _
    %v106 = vld [vmem:[#allocation3] sm:$0xff]
    %v107 = vld [vmem:[#allocation3 + $0x8] sm:$0xff]
    %v108 = vld [vmem:[#allocation3 + $0x10] sm:$0xff]
    %v109 = vld [vmem:[#allocation3 + $0x18] sm:$0xff]
    %v110 = vld [vmem:[#allocation3 + $0x20] sm:$0xff]
    %v111 = vld [vmem:[#allocation3 + $0x28] sm:$0xff]
    %v112 = vld [vmem:[#allocation3 + $0x30] sm:$0xff]
    %v113 = vld [vmem:[#allocation3 + $0x38] sm:$0xff]
    %v114 = vld [vmem:[#allocation3 + $0x40] sm:$0xff]
    %v115 = vld [vmem:[#allocation3 + $0x48] sm:$0xff]
    %v116 = vld [vmem:[#allocation3 + $0x50] sm:$0xff]
    %v117 = vld [vmem:[#allocation3 + $0x58] sm:$0xff]
    %v118 = vld [vmem:[#allocation3 + $0x60] sm:$0xff]
    %v119 = vld [vmem:[#allocation3 + $0x68] sm:$0xff]
    %v120 = vld [vmem:[#allocation3 + $0x70] sm:$0xff]
    %v121 = vld [vmem:[#allocation3 + $0x78] sm:$0xff]
    %v122 = vld [vmem:[#allocation3 + $0x80] sm:$0xff]
    %v123 = vld [vmem:[#allocation3 + $0x88] sm:$0xff]
    %v124 = vld [vmem:[#allocation3 + $0x90] sm:$0xff]
    %v125 = vld [vmem:[#allocation3 + $0x98] sm:$0xff]
    %v126 = vld [vmem:[#allocation3 + $0xa0] sm:$0xff]
    %v127 = vld [vmem:[#allocation3 + $0xa8] sm:$0xff]
    %v128 = vld [vmem:[#allocation3 + $0xb0] sm:$0xff]
    %v129 = vld [vmem:[#allocation3 + $0xb8] sm:$0xff]
    %v130 = vld [vmem:[#allocation3 + $0xc0] sm:$0xff]
    %v131 = vpack.c.bf16 %v107, %v106
    %v132 = vpack.c.bf16 %v109, %v108
    %v133 = vpack.c.bf16 %v111, %v110
    %v134 = vpack.c.bf16 %v113, %v112
    %v135 = vpack.c.bf16 %v115, %v114
    %v136 = vpack.c.bf16 %v117, %v116
    %v137 = vpack.c.bf16 %v119, %v118
    %v138 = vpack.c.bf16 %v121, %v120
    %v139 = vpack.c.bf16 %v123, %v122
    %v140 = vpack.c.bf16 %v125, %v124
    %v141 = vpack.c.bf16 %v127, %v126
    %v142 = vpack.c.bf16 %v129, %v128
    %v143 = vpack.c.bf16 %v130, %v130
    %v144 = vld [vmem:[#allocation6] sm:$0xff]
    %v145 = vld [vmem:[#allocation6 + $0x8] sm:$0xff]
    %v146 = vld [vmem:[#allocation6 + $0x10] sm:$0xff]
    %v147 = vld [vmem:[#allocation6 + $0x18] sm:$0xff]
    %v148 = vld [vmem:[#allocation6 + $0x20] sm:$0xff]
    %v149 = vld [vmem:[#allocation6 + $0x28] sm:$0xff]
    %v150 = vld [vmem:[#allocation6 + $0x30] sm:$0xff]
    %v151 = vld [vmem:[#allocation6 + $0x38] sm:$0xff]
    %v152 = vld [vmem:[#allocation6 + $0x40] sm:$0xff]
    %v153 = vld [vmem:[#allocation6 + $0x48] sm:$0xff]
    %v154 = vld [vmem:[#allocation6 + $0x50] sm:$0xff]
    %v155 = vld [vmem:[#allocation6 + $0x58] sm:$0xff]
    %v156 = vld [vmem:[#allocation6 + $0x60] sm:$0xff]
    %v157 = vld [vmem:[#allocation6 + $0x68] sm:$0xff]
    %v158 = vld [vmem:[#allocation6 + $0x70] sm:$0xff]
    %v159 = vld [vmem:[#allocation6 + $0x78] sm:$0xff]
    %v160 = vld [vmem:[#allocation6 + $0x80] sm:$0xff]
    %v161 = vld [vmem:[#allocation6 + $0x88] sm:$0xff]
    %v162 = vld [vmem:[#allocation6 + $0x90] sm:$0xff]
    %v163 = vld [vmem:[#allocation6 + $0x98] sm:$0xff]
    %v164 = vld [vmem:[#allocation6 + $0xa0] sm:$0xff]
    %v165 = vld [vmem:[#allocation6 + $0xa8] sm:$0xff]
    %v166 = vld [vmem:[#allocation6 + $0xb0] sm:$0xff]
    %v167 = vld [vmem:[#allocation6 + $0xb8] sm:$0xff]
    %v168 = vld [vmem:[#allocation6 + $0xc0] sm:$0xff]
    %v169 = vld [vmem:[#allocation6 + $0xc8] sm:$0xff]
    %v170 = vld [vmem:[#allocation6 + $0xd0] sm:$0xff]
    %v171 = vld [vmem:[#allocation6 + $0xd8] sm:$0xff]
    %v172 = vld [vmem:[#allocation6 + $0xe0] sm:$0xff]
    %v173 = vld [vmem:[#allocation6 + $0xe8] sm:$0xff]
    %v174 = vld [vmem:[#allocation6 + $0xf0] sm:$0xff]
    %v175 = vld [vmem:[#allocation6 + $0xf8] sm:$0xff]
    %v176 = vld [vmem:[#allocation6 + $0x100] sm:$0xff]
    %v177 = vld [vmem:[#allocation6 + $0x108] sm:$0xff]
    %v178 = vld [vmem:[#allocation6 + $0x110] sm:$0xff]
    %v179 = vld [vmem:[#allocation6 + $0x118] sm:$0xff]
    %v180 = vld [vmem:[#allocation6 + $0x120] sm:$0xff]
    %v181 = vld [vmem:[#allocation6 + $0x128] sm:$0xff]
    %v182 = vld [vmem:[#allocation6 + $0x130] sm:$0xff]
    %v183 = vld [vmem:[#allocation6 + $0x138] sm:$0xff]
    %v184 = vld [vmem:[#allocation6 + $0x140] sm:$0xff]
    %v185 = vld [vmem:[#allocation6 + $0x148] sm:$0xff]
    %v186 = vld [vmem:[#allocation6 + $0x150] sm:$0xff]
    %v187 = vld [vmem:[#allocation6 + $0x158] sm:$0xff]
    %v188 = vld [vmem:[#allocation6 + $0x160] sm:$0xff]
    %v189 = vld [vmem:[#allocation6 + $0x168] sm:$0xff]
    %v190 = vld [vmem:[#allocation6 + $0x170] sm:$0xff]
    %v191 = vld [vmem:[#allocation6 + $0x178] sm:$0xff]
    %v192 = vld [vmem:[#allocation6 + $0x180] sm:$0xff]
    %v193 = vld [vmem:[#allocation6 + $0x188] sm:$0xff]
    %v194 = vld [vmem:[#allocation6 + $0x190] sm:$0xff]
    %v195 = vld [vmem:[#allocation6 + $0x198] sm:$0xff]
    %v196 = vld [vmem:[#allocation6 + $0x1a0] sm:$0xff]
    %v197 = vld [vmem:[#allocation6 + $0x1a8] sm:$0xff]
    %v198 = vld [vmem:[#allocation6 + $0x1b0] sm:$0xff]
    %v199 = vld [vmem:[#allocation6 + $0x1b8] sm:$0xff]
    %v200 = vld [vmem:[#allocation6 + $0x1c0] sm:$0xff]
    %v201 = vld [vmem:[#allocation6 + $0x1c8] sm:$0xff]
    %v202 = vld [vmem:[#allocation6 + $0x1d0] sm:$0xff]
    %v203 = vld [vmem:[#allocation6 + $0x1d8] sm:$0xff]
    %v204 = vld [vmem:[#allocation6 + $0x1e0] sm:$0xff]
    %v205 = vld [vmem:[#allocation6 + $0x1e8] sm:$0xff]
    %v206 = vld [vmem:[#allocation6 + $0x1f0] sm:$0xff]
    %v207 = vld [vmem:[#allocation6 + $0x1f8] sm:$0xff]
    %v208 = vld [vmem:[#allocation8] sm:$0xff]
    %v210 = vlaneseq
    %v211 = vshrl.u32 %v210, 7
    %v212 = vsub.s32 0, %v211
    %v213 = vrot.slane %v208, %v212
    %v214 = vlaneseq
    %v215 = vshrl.u32 %v214, 7
    %v216 = vsub.s32 1, %v215
    %v217 = vrot.slane %v208, %v216
    %v218 = vlaneseq
    %v219 = vshrl.u32 %v218, 7
    %v220 = vsub.s32 2, %v219
    %v221 = vrot.slane %v208, %v220
    %v222 = vlaneseq
    %v223 = vshrl.u32 %v222, 7
    %v224 = vsub.s32 3, %v223
    %v225 = vrot.slane %v208, %v224
    %v226 = vlaneseq
    %v227 = vshrl.u32 %v226, 7
    %v228 = vsub.s32 4, %v227
    %v229 = vrot.slane %v208, %v228
    %v230 = vlaneseq
    %v231 = vshrl.u32 %v230, 7
    %v232 = vsub.s32 5, %v231
    %v233 = vrot.slane %v208, %v232
    %v234 = vlaneseq
    %v235 = vshrl.u32 %v234, 7
    %v236 = vsub.s32 6, %v235
    %v237 = vrot.slane %v208, %v236
    %v238 = vlaneseq
    %v239 = vshrl.u32 %v238, 7
    %v240 = vsub.s32 7, %v239
    %v241 = vrot.slane %v208, %v240
    %v314 = vunpack.c.l.b16 %v144
    %v315 = vunpack.c.h.b16 %v144
    %v316 = vunpack.c.l.b16 %v145
    %v317 = vunpack.c.h.b16 %v145
    %v318 = vunpack.c.l.b16 %v146
    %v319 = vunpack.c.h.b16 %v146
    %v320 = vunpack.c.l.b16 %v147
    %v321 = vunpack.c.h.b16 %v147
    %v322 = vunpack.c.l.b16 %v148
    %v323 = vunpack.c.h.b16 %v148
    %v324 = vunpack.c.l.b16 %v149
    %v325 = vunpack.c.h.b16 %v149
    %v326 = vunpack.c.l.b16 %v150
    %v327 = vunpack.c.h.b16 %v150
    %v328 = vunpack.c.l.b16 %v151
    %v329 = vunpack.c.h.b16 %v151
    %v330 = vunpack.c.l.b16 %v152
    %v331 = vunpack.c.h.b16 %v152
    %v332 = vunpack.c.l.b16 %v153
    %v333 = vunpack.c.h.b16 %v153
    %v334 = vunpack.c.l.b16 %v154
    %v335 = vunpack.c.h.b16 %v154
    %v336 = vunpack.c.l.b16 %v155
    %v337 = vunpack.c.h.b16 %v155
    %v338 = vunpack.c.l.b16 %v156
    %v339 = vunpack.c.h.b16 %v156
    %v340 = vunpack.c.l.b16 %v157
    %v341 = vunpack.c.h.b16 %v157
    %v342 = vunpack.c.l.b16 %v158
    %v343 = vunpack.c.h.b16 %v158
    %v344 = vunpack.c.l.b16 %v159
    %v345 = vunpack.c.h.b16 %v159
    %v346 = vunpack.c.l.b16 %v160
    %v347 = vunpack.c.h.b16 %v160
    %v348 = vunpack.c.l.b16 %v161
    %v349 = vunpack.c.h.b16 %v161
    %v350 = vunpack.c.l.b16 %v162
    %v351 = vunpack.c.h.b16 %v162
    %v352 = vunpack.c.l.b16 %v163
    %v353 = vunpack.c.h.b16 %v163
    %v354 = vunpack.c.l.b16 %v164
    %v355 = vunpack.c.h.b16 %v164
    %v356 = vunpack.c.l.b16 %v165
    %v357 = vunpack.c.h.b16 %v165
    %v358 = vunpack.c.l.b16 %v166
    %v359 = vunpack.c.h.b16 %v166
    %v360 = vunpack.c.l.b16 %v167
    %v361 = vunpack.c.h.b16 %v167
    %v362 = vunpack.c.l.b16 %v168
    %v363 = vunpack.c.h.b16 %v168
    %v364 = vunpack.c.l.b16 %v169
    %v365 = vunpack.c.h.b16 %v169
    %v366 = vunpack.c.l.b16 %v170
    %v367 = vunpack.c.h.b16 %v170
    %v368 = vunpack.c.l.b16 %v171
    %v369 = vunpack.c.h.b16 %v171
    %v370 = vunpack.c.l.b16 %v172
    %v371 = vunpack.c.h.b16 %v172
    %v372 = vunpack.c.l.b16 %v173
    %v373 = vunpack.c.h.b16 %v173
    %v374 = vunpack.c.l.b16 %v174
    %v375 = vunpack.c.h.b16 %v174
    %v376 = vunpack.c.l.b16 %v175
    %v377 = vunpack.c.h.b16 %v175
    %v378 = vunpack.c.l.b16 %v176
    %v379 = vunpack.c.h.b16 %v176
    %v380 = vunpack.c.l.b16 %v177
    %v381 = vunpack.c.h.b16 %v177
    %v382 = vunpack.c.l.b16 %v178
    %v383 = vunpack.c.h.b16 %v178
    %v384 = vunpack.c.l.b16 %v179
    %v385 = vunpack.c.h.b16 %v179
    %v386 = vunpack.c.l.b16 %v180
    %v387 = vunpack.c.h.b16 %v180
    %v388 = vunpack.c.l.b16 %v181
    %v389 = vunpack.c.h.b16 %v181
    %v390 = vunpack.c.l.b16 %v182
    %v391 = vunpack.c.h.b16 %v182
    %v392 = vunpack.c.l.b16 %v183
    %v393 = vunpack.c.h.b16 %v183
    %v394 = vunpack.c.l.b16 %v184
    %v395 = vunpack.c.h.b16 %v184
    %v396 = vunpack.c.l.b16 %v185
    %v397 = vunpack.c.h.b16 %v185
    %v398 = vunpack.c.l.b16 %v186
    %v399 = vunpack.c.h.b16 %v186
    %v400 = vunpack.c.l.b16 %v187
    %v401 = vunpack.c.h.b16 %v187
    %v402 = vunpack.c.l.b16 %v188
    %v403 = vunpack.c.h.b16 %v188
    %v404 = vunpack.c.l.b16 %v189
    %v405 = vunpack.c.h.b16 %v189
    %v406 = vunpack.c.l.b16 %v190
    %v407 = vunpack.c.h.b16 %v190
    %v408 = vunpack.c.l.b16 %v191
    %v409 = vunpack.c.h.b16 %v191
    %v410 = vunpack.c.l.b16 %v192
    %v411 = vunpack.c.h.b16 %v192
    %v412 = vunpack.c.l.b16 %v193
    %v413 = vunpack.c.h.b16 %v193
    %v414 = vunpack.c.l.b16 %v194
    %v415 = vunpack.c.h.b16 %v194
    %v416 = vunpack.c.l.b16 %v195
    %v417 = vunpack.c.h.b16 %v195
    %v418 = vunpack.c.l.b16 %v196
    %v419 = vunpack.c.h.b16 %v196
    %v420 = vunpack.c.l.b16 %v197
    %v421 = vunpack.c.h.b16 %v197
    %v422 = vunpack.c.l.b16 %v198
    %v423 = vunpack.c.h.b16 %v198
    %v424 = vunpack.c.l.b16 %v199
    %v425 = vunpack.c.h.b16 %v199
    %v426 = vunpack.c.l.b16 %v200
    %v427 = vunpack.c.h.b16 %v200
    %v428 = vunpack.c.l.b16 %v201
    %v429 = vunpack.c.h.b16 %v201
    %v430 = vunpack.c.l.b16 %v202
    %v431 = vunpack.c.h.b16 %v202
    %v432 = vunpack.c.l.b16 %v203
    %v433 = vunpack.c.h.b16 %v203
    %v434 = vunpack.c.l.b16 %v204
    %v435 = vunpack.c.h.b16 %v204
    %v436 = vunpack.c.l.b16 %v205
    %v437 = vunpack.c.h.b16 %v205
    %v438 = vunpack.c.l.b16 %v206
    %v439 = vunpack.c.h.b16 %v206
    %v440 = vunpack.c.l.b16 %v207
    %v441 = vunpack.c.h.b16 %v207
    %v442 = vpack.c.b16 %v322, %v314
    %v443 = vpack.c.b16 %v323, %v315
    %v444 = vpack.c.b16 %v324, %v316
    %v445 = vpack.c.b16 %v325, %v317
    %v446 = vpack.c.b16 %v326, %v318
    %v447 = vpack.c.b16 %v327, %v319
    %v448 = vpack.c.b16 %v328, %v320
    %v449 = vpack.c.b16 %v329, %v321
    %v450 = vpack.c.b16 %v338, %v330
    %v451 = vpack.c.b16 %v339, %v331
    %v452 = vpack.c.b16 %v340, %v332
    %v453 = vpack.c.b16 %v341, %v333
    %v454 = vpack.c.b16 %v342, %v334
    %v455 = vpack.c.b16 %v343, %v335
    %v456 = vpack.c.b16 %v344, %v336
    %v457 = vpack.c.b16 %v345, %v337
    %v458 = vpack.c.b16 %v354, %v346
    %v459 = vpack.c.b16 %v355, %v347
    %v460 = vpack.c.b16 %v356, %v348
    %v461 = vpack.c.b16 %v357, %v349
    %v462 = vpack.c.b16 %v358, %v350
    %v463 = vpack.c.b16 %v359, %v351
    %v464 = vpack.c.b16 %v360, %v352
    %v465 = vpack.c.b16 %v361, %v353
    %v466 = vpack.c.b16 %v370, %v362
    %v467 = vpack.c.b16 %v371, %v363
    %v468 = vpack.c.b16 %v372, %v364
    %v469 = vpack.c.b16 %v373, %v365
    %v470 = vpack.c.b16 %v374, %v366
    %v471 = vpack.c.b16 %v375, %v367
    %v472 = vpack.c.b16 %v376, %v368
    %v473 = vpack.c.b16 %v377, %v369
    %v474 = vpack.c.b16 %v386, %v378
    %v475 = vpack.c.b16 %v387, %v379
    %v476 = vpack.c.b16 %v388, %v380
    %v477 = vpack.c.b16 %v389, %v381
    %v478 = vpack.c.b16 %v390, %v382
    %v479 = vpack.c.b16 %v391, %v383
    %v480 = vpack.c.b16 %v392, %v384
    %v481 = vpack.c.b16 %v393, %v385
    %v482 = vpack.c.b16 %v402, %v394
    %v483 = vpack.c.b16 %v403, %v395
    %v484 = vpack.c.b16 %v404, %v396
    %v485 = vpack.c.b16 %v405, %v397
    %v486 = vpack.c.b16 %v406, %v398
    %v487 = vpack.c.b16 %v407, %v399
    %v488 = vpack.c.b16 %v408, %v400
    %v489 = vpack.c.b16 %v409, %v401
    %v490 = vpack.c.b16 %v418, %v410
    %v491 = vpack.c.b16 %v419, %v411
    %v492 = vpack.c.b16 %v420, %v412
    %v493 = vpack.c.b16 %v421, %v413
    %v494 = vpack.c.b16 %v422, %v414
    %v495 = vpack.c.b16 %v423, %v415
    %v496 = vpack.c.b16 %v424, %v416
    %v497 = vpack.c.b16 %v425, %v417
    %v498 = vpack.c.b16 %v434, %v426
    %v499 = vpack.c.b16 %v435, %v427
    %v500 = vpack.c.b16 %v436, %v428
    %v501 = vpack.c.b16 %v437, %v429
    %v502 = vpack.c.b16 %v438, %v430
    %v503 = vpack.c.b16 %v439, %v431
    %v504 = vpack.c.b16 %v440, %v432
    %v505 = vpack.c.b16 %v441, %v433
    %570 = vmatprep.subr.bf16.mxu0 %v443
    %571 = vmatpush1.bf16.msra.mxu0 %v442
    %572 = vmatprep.subr.bf16.mxu0 %v451
    %573 = vmatpush1.bf16.msra.mxu0 %v450
    %574 = vmatprep.subr.bf16.mxu0 %v459
    %575 = vmatpush1.bf16.msra.mxu0 %v458
    %576 = vmatprep.subr.bf16.mxu0 %v467
    %577 = vmatpush1.bf16.msra.mxu0 %v466
    %578 = vmatprep.subr.bf16.mxu0 %v475
    %579 = vmatpush1.bf16.msra.mxu0 %v474
    %580 = vmatprep.subr.bf16.mxu0 %v483
    %581 = vmatpush1.bf16.msra.mxu0 %v482
    %582 = vmatprep.subr.bf16.mxu0 %v491
    %583 = vmatpush1.bf16.msra.mxu0 %v490
    %584 = vmatprep.subr.bf16.mxu0 %v499
    %585 = vmatpush1.bf16.msra.mxu0 %v498
    %586 = vmatprep.subr.bf16.mxu0 0
    %587 = vmatpush1.bf16.msra.mxu0 0
    %588 = vmatprep.subr.bf16.mxu0 0
    %589 = vmatpush1.bf16.msra.mxu0 0
    %590 = vmatprep.subr.bf16.mxu0 0
    %591 = vmatpush1.bf16.msra.mxu0 0
    %592 = vmatprep.subr.bf16.mxu0 0
    %593 = vmatpush1.bf16.msra.mxu0 0
    %594 = vmatprep.subr.bf16.mxu0 0
    %595 = vmatpush1.bf16.msra.mxu0 0
    %596 = vmatprep.subr.bf16.mxu0 0
    %597 = vmatpush1.bf16.msra.mxu0 0
    %598 = vmatprep.subr.bf16.mxu0 0
    %599 = vmatpush1.bf16.msra.mxu0 0
    %600 = vmatprep.subr.bf16.mxu0 0
    %601 = vmatpush1.bf16.msra.mxu0 0
    %602 = vmatprep.mubr.bf16.mxu0 0
    %603 = vmatmul.mubr.bf16.gmra.mrb[0].mxu0 %v131
    %v604 = vpop.f32.mrb[0].mxu0
    %v605 = vadd.f32 %v213, %v604
    %v606 = vpop.f32.mrb[0].mxu0
    %v607 = vadd.f32 %v217, %v606
    %v608 = vpop.f32.mrb[0].mxu0
    %v609 = vadd.f32 %v213, %v608
    %v610 = vpop.f32.mrb[0].mxu0
    %v611 = vadd.f32 %v217, %v610
    %612 = vmatprep.mubr.bf16.mxu0 0
    %613 = vmatmul.mubr.bf16.gmra.mrb[0].mxu0 %v132
    %v614 = vpop.f32.mrb[0].mxu0
    %v615 = vadd.f32 %v213, %v614
    %v616 = vpop.f32.mrb[0].mxu0
    %v617 = vadd.f32 %v217, %v616
    %v618 = vpop.f32.mrb[0].mxu0
    %v619 = vadd.f32 %v213, %v618
    %v620 = vpop.f32.mrb[0].mxu0
    %v621 = vadd.f32 %v217, %v620
    %622 = vmatprep.mubr.bf16.mxu0 0
    %623 = vmatmul.mubr.bf16.gmra.mrb[0].mxu0 %v133
    %v624 = vpop.f32.mrb[0].mxu0
    %v625 = vadd.f32 %v213, %v624
    %v626 = vpop.f32.mrb[0].mxu0
    %v627 = vadd.f32 %v217, %v626
    %v628 = vpop.f32.mrb[0].mxu0
    %v629 = vadd.f32 %v213, %v628
    %v630 = vpop.f32.mrb[0].mxu0
    %v631 = vadd.f32 %v217, %v630
    %632 = vmatprep.mubr.bf16.mxu0 0
    %633 = vmatmul.mubr.bf16.gmra.mrb[0].mxu0 %v134
    %v634 = vpop.f32.mrb[0].mxu0
    %v635 = vadd.f32 %v213, %v634
    %v636 = vpop.f32.mrb[0].mxu0
    %v637 = vadd.f32 %v217, %v636
    %v638 = vpop.f32.mrb[0].mxu0
    %v639 = vadd.f32 %v213, %v638
    %v640 = vpop.f32.mrb[0].mxu0
    %v641 = vadd.f32 %v217, %v640
    %642 = vmatprep.mubr.bf16.mxu0 0
    %643 = vmatmul.mubr.bf16.gmra.mrb[0].mxu0 %v135
    %v644 = vpop.f32.mrb[0].mxu0
    %v645 = vadd.f32 %v213, %v644
    %v646 = vpop.f32.mrb[0].mxu0
    %v647 = vadd.f32 %v217, %v646
    %v648 = vpop.f32.mrb[0].mxu0
    %v649 = vadd.f32 %v213, %v648
    %v650 = vpop.f32.mrb[0].mxu0
    %v651 = vadd.f32 %v217, %v650
    %652 = vmatprep.mubr.bf16.mxu0 0
    %653 = vmatmul.mubr.bf16.gmra.mrb[0].mxu0 %v136
    %v654 = vpop.f32.mrb[0].mxu0
    %v655 = vadd.f32 %v213, %v654
    %v656 = vpop.f32.mrb[0].mxu0
    %v657 = vadd.f32 %v217, %v656
    %v658 = vpop.f32.mrb[0].mxu0
    %v659 = vadd.f32 %v213, %v658
    %v660 = vpop.f32.mrb[0].mxu0
    %v661 = vadd.f32 %v217, %v660
    %662 = vmatprep.mubr.bf16.mxu0 0
    %663 = vmatmul.mubr.bf16.gmra.mrb[0].mxu0 %v137
    %v664 = vpop.f32.mrb[0].mxu0
    %v665 = vadd.f32 %v213, %v664
    %v666 = vpop.f32.mrb[0].mxu0
    %v667 = vadd.f32 %v217, %v666
    %v668 = vpop.f32.mrb[0].mxu0
    %v669 = vadd.f32 %v213, %v668
    %v670 = vpop.f32.mrb[0].mxu0
    %v671 = vadd.f32 %v217, %v670
    %672 = vmatprep.mubr.bf16.mxu0 0
    %673 = vmatmul.mubr.bf16.gmra.mrb[0].mxu0 %v138
    %v674 = vpop.f32.mrb[0].mxu0
    %v675 = vadd.f32 %v213, %v674
    %v676 = vpop.f32.mrb[0].mxu0
    %v677 = vadd.f32 %v217, %v676
    %v678 = vpop.f32.mrb[0].mxu0
    %v679 = vadd.f32 %v213, %v678
    %v680 = vpop.f32.mrb[0].mxu0
    %v681 = vadd.f32 %v217, %v680
    %682 = vmatprep.mubr.bf16.mxu0 0
    %683 = vmatmul.mubr.bf16.gmra.mrb[0].mxu0 %v139
    %v684 = vpop.f32.mrb[0].mxu0
    %v685 = vadd.f32 %v213, %v684
    %v686 = vpop.f32.mrb[0].mxu0
    %v687 = vadd.f32 %v217, %v686
    %v688 = vpop.f32.mrb[0].mxu0
    %v689 = vadd.f32 %v213, %v688
    %v690 = vpop.f32.mrb[0].mxu0
    %v691 = vadd.f32 %v217, %v690
    %692 = vmatprep.mubr.bf16.mxu0 0
    %693 = vmatmul.mubr.bf16.gmra.mrb[0].mxu0 %v140
    %v694 = vpop.f32.mrb[0].mxu0
    %v695 = vadd.f32 %v213, %v694
    %v696 = vpop.f32.mrb[0].mxu0
    %v697 = vadd.f32 %v217, %v696
    %v698 = vpop.f32.mrb[0].mxu0
    %v699 = vadd.f32 %v213, %v698
    %v700 = vpop.f32.mrb[0].mxu0
    %v701 = vadd.f32 %v217, %v700
    %702 = vmatprep.mubr.bf16.mxu0 0
    %703 = vmatmul.mubr.bf16.gmra.mrb[0].mxu0 %v141
    %v704 = vpop.f32.mrb[0].mxu0
    %v705 = vadd.f32 %v213, %v704
    %v706 = vpop.f32.mrb[0].mxu0
    %v707 = vadd.f32 %v217, %v706
    %v708 = vpop.f32.mrb[0].mxu0
    %v709 = vadd.f32 %v213, %v708
    %v710 = vpop.f32.mrb[0].mxu0
    %v711 = vadd.f32 %v217, %v710
    %712 = vmatprep.mubr.bf16.mxu0 0
    %713 = vmatmul.mubr.bf16.gmra.mrb[0].mxu0 %v142
    %v714 = vpop.f32.mrb[0].mxu0
    %v715 = vadd.f32 %v213, %v714
    %v716 = vpop.f32.mrb[0].mxu0
    %v717 = vadd.f32 %v217, %v716
    %v718 = vpop.f32.mrb[0].mxu0
    %v719 = vadd.f32 %v213, %v718
    %v720 = vpop.f32.mrb[0].mxu0
    %v721 = vadd.f32 %v217, %v720
    %722 = vmatprep.mubr.bf16.mxu0 0
    %723 = vmatmul.mubr.bf16.gmra.mrb[0].mxu0 %v143
    %v724 = vpop.f32.mrb[0].mxu0
    %v725 = vadd.f32 %v213, %v724
    %v726 = vpop.f32.mrb[0].mxu0
    %v727 = vadd.f32 %v217, %v726
    %v728 = vpop.f32.mrb[0].mxu0
    %v729 = vpop.f32.mrb[0].mxu0
    %730 = vdwg.mxu0
    %731 = vmatprep.subr.bf16.mxu0 %v445
    %732 = vmatpush1.bf16.msra.mxu0 %v444
    %733 = vmatprep.subr.bf16.mxu0 %v453
    %734 = vmatpush1.bf16.msra.mxu0 %v452
    %735 = vmatprep.subr.bf16.mxu0 %v461
    %736 = vmatpush1.bf16.msra.mxu0 %v460
    %737 = vmatprep.subr.bf16.mxu0 %v469
    %738 = vmatpush1.bf16.msra.mxu0 %v468
    %739 = vmatprep.subr.bf16.mxu0 %v477
    %740 = vmatpush1.bf16.msra.mxu0 %v476
    %741 = vmatprep.subr.bf16.mxu0 %v485
    %742 = vmatpush1.bf16.msra.mxu0 %v484
    %743 = vmatprep.subr.bf16.mxu0 %v493
    %744 = vmatpush1.bf16.msra.mxu0 %v492
    %745 = vmatprep.subr.bf16.mxu0 %v501
    %746 = vmatpush1.bf16.msra.mxu0 %v500
    %747 = vmatprep.subr.bf16.mxu0 0
    %748 = vmatpush1.bf16.msra.mxu0 0
    %749 = vmatprep.subr.bf16.mxu0 0
    %750 = vmatpush1.bf16.msra.mxu0 0
    %751 = vmatprep.subr.bf16.mxu0 0
    %752 = vmatpush1.bf16.msra.mxu0 0
    %753 = vmatprep.subr.bf16.mxu0 0
    %754 = vmatpush1.bf16.msra.mxu0 0
    %755 = vmatprep.subr.bf16.mxu0 0
    %756 = vmatpush1.bf16.msra.mxu0 0
    %757 = vmatprep.subr.bf16.mxu0 0
    %758 = vmatpush1.bf16.msra.mxu0 0
    %759 = vmatprep.subr.bf16.mxu0 0
    %760 = vmatpush1.bf16.msra.mxu0 0
    %761 = vmatprep.subr.bf16.mxu0 0
    %762 = vmatpush1.bf16.msra.mxu0 0
    %763 = vmatprep.mubr.bf16.mxu0 0
    %764 = vmatmul.mubr.bf16.gmra.mrb[0].mxu0 %v131
    %v765 = vpop.f32.mrb[0].mxu0
    %v766 = vadd.f32 %v221, %v765
    %v767 = vpop.f32.mrb[0].mxu0
    %v768 = vadd.f32 %v225, %v767
    %v769 = vpop.f32.mrb[0].mxu0
    %v770 = vadd.f32 %v221, %v769
    %v771 = vpop.f32.mrb[0].mxu0
    %v772 = vadd.f32 %v225, %v771
    %773 = vmatprep.mubr.bf16.mxu0 0
    %774 = vmatmul.mubr.bf16.gmra.mrb[0].mxu0 %v132
    %v775 = vpop.f32.mrb[0].mxu0
    %v776 = vadd.f32 %v221, %v775
    %v777 = vpop.f32.mrb[0].mxu0
    %v778 = vadd.f32 %v225, %v777
    %v779 = vpop.f32.mrb[0].mxu0
    %v780 = vadd.f32 %v221, %v779
    %v781 = vpop.f32.mrb[0].mxu0
    %v782 = vadd.f32 %v225, %v781
    %783 = vmatprep.mubr.bf16.mxu0 0
    %784 = vmatmul.mubr.bf16.gmra.mrb[0].mxu0 %v133
    %v785 = vpop.f32.mrb[0].mxu0
    %v786 = vadd.f32 %v221, %v785
    %v787 = vpop.f32.mrb[0].mxu0
    %v788 = vadd.f32 %v225, %v787
    %v789 = vpop.f32.mrb[0].mxu0
    %v790 = vadd.f32 %v221, %v789
    %v791 = vpop.f32.mrb[0].mxu0
    %v792 = vadd.f32 %v225, %v791
    %793 = vmatprep.mubr.bf16.mxu0 0
    %794 = vmatmul.mubr.bf16.gmra.mrb[0].mxu0 %v134
    %v795 = vpop.f32.mrb[0].mxu0
    %v796 = vadd.f32 %v221, %v795
    %v797 = vpop.f32.mrb[0].mxu0
    %v798 = vadd.f32 %v225, %v797
    %v799 = vpop.f32.mrb[0].mxu0
    %v800 = vadd.f32 %v221, %v799
    %v801 = vpop.f32.mrb[0].mxu0
    %v802 = vadd.f32 %v225, %v801
    %803 = vmatprep.mubr.bf16.mxu0 0
    %804 = vmatmul.mubr.bf16.gmra.mrb[0].mxu0 %v135
    %v805 = vpop.f32.mrb[0].mxu0
    %v806 = vadd.f32 %v221, %v805
    %v807 = vpop.f32.mrb[0].mxu0
    %v808 = vadd.f32 %v225, %v807
    %v809 = vpop.f32.mrb[0].mxu0
    %v810 = vadd.f32 %v221, %v809
    %v811 = vpop.f32.mrb[0].mxu0
    %v812 = vadd.f32 %v225, %v811
    %813 = vmatprep.mubr.bf16.mxu0 0
    %814 = vmatmul.mubr.bf16.gmra.mrb[0].mxu0 %v136
    %v815 = vpop.f32.mrb[0].mxu0
    %v816 = vadd.f32 %v221, %v815
    %v817 = vpop.f32.mrb[0].mxu0
    %v818 = vadd.f32 %v225, %v817
    %v819 = vpop.f32.mrb[0].mxu0
    %v820 = vadd.f32 %v221, %v819
    %v821 = vpop.f32.mrb[0].mxu0
    %v822 = vadd.f32 %v225, %v821
    %823 = vmatprep.mubr.bf16.mxu0 0
    %824 = vmatmul.mubr.bf16.gmra.mrb[0].mxu0 %v137
    %v825 = vpop.f32.mrb[0].mxu0
    %v826 = vadd.f32 %v221, %v825
    %v827 = vpop.f32.mrb[0].mxu0
    %v828 = vadd.f32 %v225, %v827
    %v829 = vpop.f32.mrb[0].mxu0
    %v830 = vadd.f32 %v221, %v829
    %v831 = vpop.f32.mrb[0].mxu0
    %v832 = vadd.f32 %v225, %v831
    %833 = vmatprep.mubr.bf16.mxu0 0
    %834 = vmatmul.mubr.bf16.gmra.mrb[0].mxu0 %v138
    %v835 = vpop.f32.mrb[0].mxu0
    %v836 = vadd.f32 %v221, %v835
    %v837 = vpop.f32.mrb[0].mxu0
    %v838 = vadd.f32 %v225, %v837
    %v839 = vpop.f32.mrb[0].mxu0
    %v840 = vadd.f32 %v221, %v839
    %v841 = vpop.f32.mrb[0].mxu0
    %v842 = vadd.f32 %v225, %v841
    %843 = vmatprep.mubr.bf16.mxu0 0
    %844 = vmatmul.mubr.bf16.gmra.mrb[0].mxu0 %v139
    %v845 = vpop.f32.mrb[0].mxu0
    %v846 = vadd.f32 %v221, %v845
    %v847 = vpop.f32.mrb[0].mxu0
    %v848 = vadd.f32 %v225, %v847
    %v849 = vpop.f32.mrb[0].mxu0
    %v850 = vadd.f32 %v221, %v849
    %v851 = vpop.f32.mrb[0].mxu0
    %v852 = vadd.f32 %v225, %v851
    %853 = vmatprep.mubr.bf16.mxu0 0
    %854 = vmatmul.mubr.bf16.gmra.mrb[0].mxu0 %v140
    %v855 = vpop.f32.mrb[0].mxu0
    %v856 = vadd.f32 %v221, %v855
    %v857 = vpop.f32.mrb[0].mxu0
    %v858 = vadd.f32 %v225, %v857
    %v859 = vpop.f32.mrb[0].mxu0
    %v860 = vadd.f32 %v221, %v859
    %v861 = vpop.f32.mrb[0].mxu0
    %v862 = vadd.f32 %v225, %v861
    %863 = vmatprep.mubr.bf16.mxu0 0
    %864 = vmatmul.mubr.bf16.gmra.mrb[0].mxu0 %v141
    %v865 = vpop.f32.mrb[0].mxu0
    %v866 = vadd.f32 %v221, %v865
    %v867 = vpop.f32.mrb[0].mxu0
    %v868 = vadd.f32 %v225, %v867
    %v869 = vpop.f32.mrb[0].mxu0
    %v870 = vadd.f32 %v221, %v869
    %v871 = vpop.f32.mrb[0].mxu0
    %v872 = vadd.f32 %v225, %v871
    %873 = vmatprep.mubr.bf16.mxu0 0
    %874 = vmatmul.mubr.bf16.gmra.mrb[0].mxu0 %v142
    %v875 = vpop.f32.mrb[0].mxu0
    %v876 = vadd.f32 %v221, %v875
    %v877 = vpop.f32.mrb[0].mxu0
    %v878 = vadd.f32 %v225, %v877
    %v879 = vpop.f32.mrb[0].mxu0
    %v880 = vadd.f32 %v221, %v879
    %v881 = vpop.f32.mrb[0].mxu0
    %v882 = vadd.f32 %v225, %v881
    %883 = vmatprep.mubr.bf16.mxu0 0
    %884 = vmatmul.mubr.bf16.gmra.mrb[0].mxu0 %v143
    %v885 = vpop.f32.mrb[0].mxu0
    %v886 = vadd.f32 %v221, %v885
    %v887 = vpop.f32.mrb[0].mxu0
    %v888 = vadd.f32 %v225, %v887
    %v889 = vpop.f32.mrb[0].mxu0
    %v890 = vpop.f32.mrb[0].mxu0
    %891 = vdwg.mxu0
    %892 = vmatprep.subr.bf16.mxu0 %v447
    %893 = vmatpush1.bf16.msra.mxu0 %v446
    %894 = vmatprep.subr.bf16.mxu0 %v455
    %895 = vmatpush1.bf16.msra.mxu0 %v454
    %896 = vmatprep.subr.bf16.mxu0 %v463
    %897 = vmatpush1.bf16.msra.mxu0 %v462
    %898 = vmatprep.subr.bf16.mxu0 %v471
    %899 = vmatpush1.bf16.msra.mxu0 %v470
    %900 = vmatprep.subr.bf16.mxu0 %v479
    %901 = vmatpush1.bf16.msra.mxu0 %v478
    %902 = vmatprep.subr.bf16.mxu0 %v487
    %903 = vmatpush1.bf16.msra.mxu0 %v486
    %904 = vmatprep.subr.bf16.mxu0 %v495
    %905 = vmatpush1.bf16.msra.mxu0 %v494
    %906 = vmatprep.subr.bf16.mxu0 %v503
    %907 = vmatpush1.bf16.msra.mxu0 %v502
    %908 = vmatprep.subr.bf16.mxu0 0
    %909 = vmatpush1.bf16.msra.mxu0 0
    %910 = vmatprep.subr.bf16.mxu0 0
    %911 = vmatpush1.bf16.msra.mxu0 0
    %912 = vmatprep.subr.bf16.mxu0 0
    %913 = vmatpush1.bf16.msra.mxu0 0
    %914 = vmatprep.subr.bf16.mxu0 0
    %915 = vmatpush1.bf16.msra.mxu0 0
    %916 = vmatprep.subr.bf16.mxu0 0
    %917 = vmatpush1.bf16.msra.mxu0 0
    %918 = vmatprep.subr.bf16.mxu0 0
    %919 = vmatpush1.bf16.msra.mxu0 0
    %920 = vmatprep.subr.bf16.mxu0 0
    %921 = vmatpush1.bf16.msra.mxu0 0
    %922 = vmatprep.subr.bf16.mxu0 0
    %923 = vmatpush1.bf16.msra.mxu0 0
    %924 = vmatprep.mubr.bf16.mxu0 0
    %925 = vmatmul.mubr.bf16.gmra.mrb[0].mxu0 %v131
    %v926 = vpop.f32.mrb[0].mxu0
    %v927 = vadd.f32 %v229, %v926
    %v928 = vpop.f32.mrb[0].mxu0
    %v929 = vadd.f32 %v233, %v928
    %v930 = vpop.f32.mrb[0].mxu0
    %v931 = vadd.f32 %v229, %v930
    %v932 = vpop.f32.mrb[0].mxu0
    %v933 = vadd.f32 %v233, %v932
    %934 = vmatprep.mubr.bf16.mxu0 0
    %935 = vmatmul.mubr.bf16.gmra.mrb[0].mxu0 %v132
    %v936 = vpop.f32.mrb[0].mxu0
    %v937 = vadd.f32 %v229, %v936
    %v938 = vpop.f32.mrb[0].mxu0
    %v939 = vadd.f32 %v233, %v938
    %v940 = vpop.f32.mrb[0].mxu0
    %v941 = vadd.f32 %v229, %v940
    %v942 = vpop.f32.mrb[0].mxu0
    %v943 = vadd.f32 %v233, %v942
    %944 = vmatprep.mubr.bf16.mxu0 0
    %945 = vmatmul.mubr.bf16.gmra.mrb[0].mxu0 %v133
    %v946 = vpop.f32.mrb[0].mxu0
    %v947 = vadd.f32 %v229, %v946
    %v948 = vpop.f32.mrb[0].mxu0
    %v949 = vadd.f32 %v233, %v948
    %v950 = vpop.f32.mrb[0].mxu0
    %v951 = vadd.f32 %v229, %v950
    %v952 = vpop.f32.mrb[0].mxu0
    %v953 = vadd.f32 %v233, %v952
    %954 = vmatprep.mubr.bf16.mxu0 0
    %955 = vmatmul.mubr.bf16.gmra.mrb[0].mxu0 %v134
    %v956 = vpop.f32.mrb[0].mxu0
    %v957 = vadd.f32 %v229, %v956
    %v958 = vpop.f32.mrb[0].mxu0
    %v959 = vadd.f32 %v233, %v958
    %v960 = vpop.f32.mrb[0].mxu0
    %v961 = vadd.f32 %v229, %v960
    %v962 = vpop.f32.mrb[0].mxu0
    %v963 = vadd.f32 %v233, %v962
    %964 = vmatprep.mubr.bf16.mxu0 0
    %965 = vmatmul.mubr.bf16.gmra.mrb[0].mxu0 %v135
    %v966 = vpop.f32.mrb[0].mxu0
    %v967 = vadd.f32 %v229, %v966
    %v968 = vpop.f32.mrb[0].mxu0
    %v969 = vadd.f32 %v233, %v968
    %v970 = vpop.f32.mrb[0].mxu0
    %v971 = vadd.f32 %v229, %v970
    %v972 = vpop.f32.mrb[0].mxu0
    %v973 = vadd.f32 %v233, %v972
    %974 = vmatprep.mubr.bf16.mxu0 0
    %975 = vmatmul.mubr.bf16.gmra.mrb[0].mxu0 %v136
    %v976 = vpop.f32.mrb[0].mxu0
    %v977 = vadd.f32 %v229, %v976
    %v978 = vpop.f32.mrb[0].mxu0
    %v979 = vadd.f32 %v233, %v978
    %v980 = vpop.f32.mrb[0].mxu0
    %v981 = vadd.f32 %v229, %v980
    %v982 = vpop.f32.mrb[0].mxu0
    %v983 = vadd.f32 %v233, %v982
    %984 = vmatprep.mubr.bf16.mxu0 0
    %985 = vmatmul.mubr.bf16.gmra.mrb[0].mxu0 %v137
    %v986 = vpop.f32.mrb[0].mxu0
    %v987 = vadd.f32 %v229, %v986
    %v988 = vpop.f32.mrb[0].mxu0
    %v989 = vadd.f32 %v233, %v988
    %v990 = vpop.f32.mrb[0].mxu0
    %v991 = vadd.f32 %v229, %v990
    %v992 = vpop.f32.mrb[0].mxu0
    %v993 = vadd.f32 %v233, %v992
    %994 = vmatprep.mubr.bf16.mxu0 0
    %995 = vmatmul.mubr.bf16.gmra.mrb[0].mxu0 %v138
    %v996 = vpop.f32.mrb[0].mxu0
    %v997 = vadd.f32 %v229, %v996
    %v998 = vpop.f32.mrb[0].mxu0
    %v999 = vadd.f32 %v233, %v998
    %v1000 = vpop.f32.mrb[0].mxu0
    %v1001 = vadd.f32 %v229, %v1000
    %v1002 = vpop.f32.mrb[0].mxu0
    %v1003 = vadd.f32 %v233, %v1002
    %1004 = vmatprep.mubr.bf16.mxu0 0
    %1005 = vmatmul.mubr.bf16.gmra.mrb[0].mxu0 %v139
    %v1006 = vpop.f32.mrb[0].mxu0
    %v1007 = vadd.f32 %v229, %v1006
    %v1008 = vpop.f32.mrb[0].mxu0
    %v1009 = vadd.f32 %v233, %v1008
    %v1010 = vpop.f32.mrb[0].mxu0
    %v1011 = vadd.f32 %v229, %v1010
    %v1012 = vpop.f32.mrb[0].mxu0
    %v1013 = vadd.f32 %v233, %v1012
    %1014 = vmatprep.mubr.bf16.mxu0 0
    %1015 = vmatmul.mubr.bf16.gmra.mrb[0].mxu0 %v140
    %v1016 = vpop.f32.mrb[0].mxu0
    %v1017 = vadd.f32 %v229, %v1016
    %v1018 = vpop.f32.mrb[0].mxu0
    %v1019 = vadd.f32 %v233, %v1018
    %v1020 = vpop.f32.mrb[0].mxu0
    %v1021 = vadd.f32 %v229, %v1020
    %v1022 = vpop.f32.mrb[0].mxu0
    %v1023 = vadd.f32 %v233, %v1022
    %1024 = vmatprep.mubr.bf16.mxu0 0
    %1025 = vmatmul.mubr.bf16.gmra.mrb[0].mxu0 %v141
    %v1026 = vpop.f32.mrb[0].mxu0
    %v1027 = vadd.f32 %v229, %v1026
    %v1028 = vpop.f32.mrb[0].mxu0
    %v1029 = vadd.f32 %v233, %v1028
    %v1030 = vpop.f32.mrb[0].mxu0
    %v1031 = vadd.f32 %v229, %v1030
    %v1032 = vpop.f32.mrb[0].mxu0
    %v1033 = vadd.f32 %v233, %v1032
    %1034 = vmatprep.mubr.bf16.mxu0 0
    %1035 = vmatmul.mubr.bf16.gmra.mrb[0].mxu0 %v142
    %v1036 = vpop.f32.mrb[0].mxu0
    %v1037 = vadd.f32 %v229, %v1036
    %v1038 = vpop.f32.mrb[0].mxu0
    %v1039 = vadd.f32 %v233, %v1038
    %v1040 = vpop.f32.mrb[0].mxu0
    %v1041 = vadd.f32 %v229, %v1040
    %v1042 = vpop.f32.mrb[0].mxu0
    %v1043 = vadd.f32 %v233, %v1042
    %1044 = vmatprep.mubr.bf16.mxu0 0
    %1045 = vmatmul.mubr.bf16.gmra.mrb[0].mxu0 %v143
    %v1046 = vpop.f32.mrb[0].mxu0
    %v1047 = vadd.f32 %v229, %v1046
    %v1048 = vpop.f32.mrb[0].mxu0
    %v1049 = vadd.f32 %v233, %v1048
    %v1050 = vpop.f32.mrb[0].mxu0
    %v1051 = vpop.f32.mrb[0].mxu0
    %1052 = vdwg.mxu0
    %1053 = vmatprep.subr.bf16.mxu0 %v449
    %1054 = vmatpush1.bf16.msra.mxu0 %v448
    %1055 = vmatprep.subr.bf16.mxu0 %v457
    %1056 = vmatpush1.bf16.msra.mxu0 %v456
    %1057 = vmatprep.subr.bf16.mxu0 %v465
    %1058 = vmatpush1.bf16.msra.mxu0 %v464
    %1059 = vmatprep.subr.bf16.mxu0 %v473
    %1060 = vmatpush1.bf16.msra.mxu0 %v472
    %1061 = vmatprep.subr.bf16.mxu0 %v481
    %1062 = vmatpush1.bf16.msra.mxu0 %v480
    %1063 = vmatprep.subr.bf16.mxu0 %v489
    %1064 = vmatpush1.bf16.msra.mxu0 %v488
    %1065 = vmatprep.subr.bf16.mxu0 %v497
    %1066 = vmatpush1.bf16.msra.mxu0 %v496
    %1067 = vmatprep.subr.bf16.mxu0 %v505
    %1068 = vmatpush1.bf16.msra.mxu0 %v504
    %1069 = vmatprep.subr.bf16.mxu0 0
    %1070 = vmatpush1.bf16.msra.mxu0 0
    %1071 = vmatprep.subr.bf16.mxu0 0
    %1072 = vmatpush1.bf16.msra.mxu0 0
    %1073 = vmatprep.subr.bf16.mxu0 0
    %1074 = vmatpush1.bf16.msra.mxu0 0
    %1075 = vmatprep.subr.bf16.mxu0 0
    %1076 = vmatpush1.bf16.msra.mxu0 0
    %1077 = vmatprep.subr.bf16.mxu0 0
    %1078 = vmatpush1.bf16.msra.mxu0 0
    %1079 = vmatprep.subr.bf16.mxu0 0
    %1080 = vmatpush1.bf16.msra.mxu0 0
    %1081 = vmatprep.subr.bf16.mxu0 0
    %1082 = vmatpush1.bf16.msra.mxu0 0
    %1083 = vmatprep.subr.bf16.mxu0 0
    %1084 = vmatpush1.bf16.msra.mxu0 0
    %1085 = vmatprep.mubr.bf16.mxu0 0
    %1086 = vmatmul.mubr.bf16.gmra.mrb[0].mxu0 %v131
    %v1087 = vpop.f32.mrb[0].mxu0
    %v1088 = vadd.f32 %v237, %v1087
    %v1089 = vpop.f32.mrb[0].mxu0
    %v1090 = vadd.f32 %v241, %v1089
    %v1091 = vpop.f32.mrb[0].mxu0
    %v1092 = vadd.f32 %v237, %v1091
    %v1093 = vpop.f32.mrb[0].mxu0
    %v1094 = vadd.f32 %v241, %v1093
    %1095 = vmatprep.mubr.bf16.mxu0 0
    %1096 = vmatmul.mubr.bf16.gmra.mrb[0].mxu0 %v132
    %v1097 = vpop.f32.mrb[0].mxu0
    %v1098 = vadd.f32 %v237, %v1097
    %v1099 = vpop.f32.mrb[0].mxu0
    %v1100 = vadd.f32 %v241, %v1099
    %v1101 = vpop.f32.mrb[0].mxu0
    %v1102 = vadd.f32 %v237, %v1101
    %v1103 = vpop.f32.mrb[0].mxu0
    %v1104 = vadd.f32 %v241, %v1103
    %1105 = vmatprep.mubr.bf16.mxu0 0
    %1106 = vmatmul.mubr.bf16.gmra.mrb[0].mxu0 %v133
    %v1107 = vpop.f32.mrb[0].mxu0
    %v1108 = vadd.f32 %v237, %v1107
    %v1109 = vpop.f32.mrb[0].mxu0
    %v1110 = vadd.f32 %v241, %v1109
    %v1111 = vpop.f32.mrb[0].mxu0
    %v1112 = vadd.f32 %v237, %v1111
    %v1113 = vpop.f32.mrb[0].mxu0
    %v1114 = vadd.f32 %v241, %v1113
    %1115 = vmatprep.mubr.bf16.mxu0 0
    %1116 = vmatmul.mubr.bf16.gmra.mrb[0].mxu0 %v134
    %v1117 = vpop.f32.mrb[0].mxu0
    %v1118 = vadd.f32 %v237, %v1117
    %v1119 = vpop.f32.mrb[0].mxu0
    %v1120 = vadd.f32 %v241, %v1119
    %v1121 = vpop.f32.mrb[0].mxu0
    %v1122 = vadd.f32 %v237, %v1121
    %v1123 = vpop.f32.mrb[0].mxu0
    %v1124 = vadd.f32 %v241, %v1123
    %1125 = vmatprep.mubr.bf16.mxu0 0
    %1126 = vmatmul.mubr.bf16.gmra.mrb[0].mxu0 %v135
    %v1127 = vpop.f32.mrb[0].mxu0
    %v1128 = vadd.f32 %v237, %v1127
    %v1129 = vpop.f32.mrb[0].mxu0
    %v1130 = vadd.f32 %v241, %v1129
    %v1131 = vpop.f32.mrb[0].mxu0
    %v1132 = vadd.f32 %v237, %v1131
    %v1133 = vpop.f32.mrb[0].mxu0
    %v1134 = vadd.f32 %v241, %v1133
    %1135 = vmatprep.mubr.bf16.mxu0 0
    %1136 = vmatmul.mubr.bf16.gmra.mrb[0].mxu0 %v136
    %v1137 = vpop.f32.mrb[0].mxu0
    %v1138 = vadd.f32 %v237, %v1137
    %v1139 = vpop.f32.mrb[0].mxu0
    %v1140 = vadd.f32 %v241, %v1139
    %v1141 = vpop.f32.mrb[0].mxu0
    %v1142 = vadd.f32 %v237, %v1141
    %v1143 = vpop.f32.mrb[0].mxu0
    %v1144 = vadd.f32 %v241, %v1143
    %1145 = vmatprep.mubr.bf16.mxu0 0
    %1146 = vmatmul.mubr.bf16.gmra.mrb[0].mxu0 %v137
    %v1147 = vpop.f32.mrb[0].mxu0
    %v1148 = vadd.f32 %v237, %v1147
    %v1149 = vpop.f32.mrb[0].mxu0
    %v1150 = vadd.f32 %v241, %v1149
    %v1151 = vpop.f32.mrb[0].mxu0
    %v1152 = vadd.f32 %v237, %v1151
    %v1153 = vpop.f32.mrb[0].mxu0
    %v1154 = vadd.f32 %v241, %v1153
    %1155 = vmatprep.mubr.bf16.mxu0 0
    %1156 = vmatmul.mubr.bf16.gmra.mrb[0].mxu0 %v138
    %v1157 = vpop.f32.mrb[0].mxu0
    %v1158 = vadd.f32 %v237, %v1157
    %v1159 = vpop.f32.mrb[0].mxu0
    %v1160 = vadd.f32 %v241, %v1159
    %v1161 = vpop.f32.mrb[0].mxu0
    %v1162 = vadd.f32 %v237, %v1161
    %v1163 = vpop.f32.mrb[0].mxu0
    %v1164 = vadd.f32 %v241, %v1163
    %1165 = vmatprep.mubr.bf16.mxu0 0
    %1166 = vmatmul.mubr.bf16.gmra.mrb[0].mxu0 %v139
    %v1167 = vpop.f32.mrb[0].mxu0
    %v1168 = vadd.f32 %v237, %v1167
    %v1169 = vpop.f32.mrb[0].mxu0
    %v1170 = vadd.f32 %v241, %v1169
    %v1171 = vpop.f32.mrb[0].mxu0
    %v1172 = vadd.f32 %v237, %v1171
    %v1173 = vpop.f32.mrb[0].mxu0
    %v1174 = vadd.f32 %v241, %v1173
    %1175 = vmatprep.mubr.bf16.mxu0 0
    %1176 = vmatmul.mubr.bf16.gmra.mrb[0].mxu0 %v140
    %v1177 = vpop.f32.mrb[0].mxu0
    %v1178 = vadd.f32 %v237, %v1177
    %v1179 = vpop.f32.mrb[0].mxu0
    %v1180 = vadd.f32 %v241, %v1179
    %v1181 = vpop.f32.mrb[0].mxu0
    %v1182 = vadd.f32 %v237, %v1181
    %v1183 = vpop.f32.mrb[0].mxu0
    %v1184 = vadd.f32 %v241, %v1183
    %1185 = vmatprep.mubr.bf16.mxu0 0
    %1186 = vmatmul.mubr.bf16.gmra.mrb[0].mxu0 %v141
    %v1187 = vpop.f32.mrb[0].mxu0
    %v1188 = vadd.f32 %v237, %v1187
    %v1189 = vpop.f32.mrb[0].mxu0
    %v1190 = vadd.f32 %v241, %v1189
    %v1191 = vpop.f32.mrb[0].mxu0
    %v1192 = vadd.f32 %v237, %v1191
    %v1193 = vpop.f32.mrb[0].mxu0
    %v1194 = vadd.f32 %v241, %v1193
    %1195 = vmatprep.mubr.bf16.mxu0 0
    %1196 = vmatmul.mubr.bf16.gmra.mrb[0].mxu0 %v142
    %v1197 = vpop.f32.mrb[0].mxu0
    %v1198 = vadd.f32 %v237, %v1197
    %v1199 = vpop.f32.mrb[0].mxu0
    %v1200 = vadd.f32 %v241, %v1199
    %v1201 = vpop.f32.mrb[0].mxu0
    %v1202 = vadd.f32 %v237, %v1201
    %v1203 = vpop.f32.mrb[0].mxu0
    %v1204 = vadd.f32 %v241, %v1203
    %1205 = vmatprep.mubr.bf16.mxu0 0
    %1206 = vmatmul.mubr.bf16.gmra.mrb[0].mxu0 %v143
    %v1207 = vpop.f32.mrb[0].mxu0
    %v1208 = vadd.f32 %v237, %v1207
    %v1209 = vpop.f32.mrb[0].mxu0
    %v1210 = vadd.f32 %v241, %v1209
    %v1211 = vpop.f32.mrb[0].mxu0
    %v1212 = vpop.f32.mrb[0].mxu0
    %1213 = vdwg.mxu0
    %v1214 = vmax.f32 %v605, 0.0
    %v1215 = vmax.f32 %v607, 0.0
    %v1216 = vmax.f32 %v766, 0.0
    %v1217 = vmax.f32 %v768, 0.0
    %v1218 = vmax.f32 %v927, 0.0
    %v1219 = vmax.f32 %v929, 0.0
    %v1220 = vmax.f32 %v1088, 0.0
    %v1221 = vmax.f32 %v1090, 0.0
    %v1222 = vmax.f32 %v609, 0.0
    %v1223 = vmax.f32 %v611, 0.0
    %v1224 = vmax.f32 %v770, 0.0
    %v1225 = vmax.f32 %v772, 0.0
    %v1226 = vmax.f32 %v931, 0.0
    %v1227 = vmax.f32 %v933, 0.0
    %v1228 = vmax.f32 %v1092, 0.0
    %v1229 = vmax.f32 %v1094, 0.0
    %v1230 = vmax.f32 %v615, 0.0
    %v1231 = vmax.f32 %v617, 0.0
    %v1232 = vmax.f32 %v776, 0.0
    %v1233 = vmax.f32 %v778, 0.0
    %v1234 = vmax.f32 %v937, 0.0
    %v1235 = vmax.f32 %v939, 0.0
    %v1236 = vmax.f32 %v1098, 0.0
    %v1237 = vmax.f32 %v1100, 0.0
    %v1238 = vmax.f32 %v619, 0.0
    %v1239 = vmax.f32 %v621, 0.0
    %v1240 = vmax.f32 %v780, 0.0
    %v1241 = vmax.f32 %v782, 0.0
    %v1242 = vmax.f32 %v941, 0.0
    %v1243 = vmax.f32 %v943, 0.0
    %v1244 = vmax.f32 %v1102, 0.0
    %v1245 = vmax.f32 %v1104, 0.0
    %v1246 = vmax.f32 %v625, 0.0
    %v1247 = vmax.f32 %v627, 0.0
    %v1248 = vmax.f32 %v786, 0.0
    %v1249 = vmax.f32 %v788, 0.0
    %v1250 = vmax.f32 %v947, 0.0
    %v1251 = vmax.f32 %v949, 0.0
    %v1252 = vmax.f32 %v1108, 0.0
    %v1253 = vmax.f32 %v1110, 0.0
    %v1254 = vmax.f32 %v629, 0.0
    %v1255 = vmax.f32 %v631, 0.0
    %v1256 = vmax.f32 %v790, 0.0
    %v1257 = vmax.f32 %v792, 0.0
    %v1258 = vmax.f32 %v951, 0.0
    %v1259 = vmax.f32 %v953, 0.0
    %v1260 = vmax.f32 %v1112, 0.0
    %v1261 = vmax.f32 %v1114, 0.0
    %v1262 = vmax.f32 %v635, 0.0
    %v1263 = vmax.f32 %v637, 0.0
    %v1264 = vmax.f32 %v796, 0.0
    %v1265 = vmax.f32 %v798, 0.0
    %v1266 = vmax.f32 %v957, 0.0
    %v1267 = vmax.f32 %v959, 0.0
    %v1268 = vmax.f32 %v1118, 0.0
    %v1269 = vmax.f32 %v1120, 0.0
    %v1270 = vmax.f32 %v639, 0.0
    %v1271 = vmax.f32 %v641, 0.0
    %v1272 = vmax.f32 %v800, 0.0
    %v1273 = vmax.f32 %v802, 0.0
    %v1274 = vmax.f32 %v961, 0.0
    %v1275 = vmax.f32 %v963, 0.0
    %v1276 = vmax.f32 %v1122, 0.0
    %v1277 = vmax.f32 %v1124, 0.0
    %v1278 = vmax.f32 %v645, 0.0
    %v1279 = vmax.f32 %v647, 0.0
    %v1280 = vmax.f32 %v806, 0.0
    %v1281 = vmax.f32 %v808, 0.0
    %v1282 = vmax.f32 %v967, 0.0
    %v1283 = vmax.f32 %v969, 0.0
    %v1284 = vmax.f32 %v1128, 0.0
    %v1285 = vmax.f32 %v1130, 0.0
    %v1286 = vmax.f32 %v649, 0.0
    %v1287 = vmax.f32 %v651, 0.0
    %v1288 = vmax.f32 %v810, 0.0
    %v1289 = vmax.f32 %v812, 0.0
    %v1290 = vmax.f32 %v971, 0.0
    %v1291 = vmax.f32 %v973, 0.0
    %v1292 = vmax.f32 %v1132, 0.0
    %v1293 = vmax.f32 %v1134, 0.0
    %v1294 = vmax.f32 %v655, 0.0
    %v1295 = vmax.f32 %v657, 0.0
    %v1296 = vmax.f32 %v816, 0.0
    %v1297 = vmax.f32 %v818, 0.0
    %v1298 = vmax.f32 %v977, 0.0
    %v1299 = vmax.f32 %v979, 0.0
    %v1300 = vmax.f32 %v1138, 0.0
    %v1301 = vmax.f32 %v1140, 0.0
    %v1302 = vmax.f32 %v659, 0.0
    %v1303 = vmax.f32 %v661, 0.0
    %v1304 = vmax.f32 %v820, 0.0
    %v1305 = vmax.f32 %v822, 0.0
    %v1306 = vmax.f32 %v981, 0.0
    %v1307 = vmax.f32 %v983, 0.0
    %v1308 = vmax.f32 %v1142, 0.0
    %v1309 = vmax.f32 %v1144, 0.0
    %v1310 = vmax.f32 %v665, 0.0
    %v1311 = vmax.f32 %v667, 0.0
    %v1312 = vmax.f32 %v826, 0.0
    %v1313 = vmax.f32 %v828, 0.0
    %v1314 = vmax.f32 %v987, 0.0
    %v1315 = vmax.f32 %v989, 0.0
    %v1316 = vmax.f32 %v1148, 0.0
    %v1317 = vmax.f32 %v1150, 0.0
    %v1318 = vmax.f32 %v669, 0.0
    %v1319 = vmax.f32 %v671, 0.0
    %v1320 = vmax.f32 %v830, 0.0
    %v1321 = vmax.f32 %v832, 0.0
    %v1322 = vmax.f32 %v991, 0.0
    %v1323 = vmax.f32 %v993, 0.0
    %v1324 = vmax.f32 %v1152, 0.0
    %v1325 = vmax.f32 %v1154, 0.0
    %v1326 = vmax.f32 %v675, 0.0
    %v1327 = vmax.f32 %v677, 0.0
    %v1328 = vmax.f32 %v836, 0.0
    %v1329 = vmax.f32 %v838, 0.0
    %v1330 = vmax.f32 %v997, 0.0
    %v1331 = vmax.f32 %v999, 0.0
    %v1332 = vmax.f32 %v1158, 0.0
    %v1333 = vmax.f32 %v1160, 0.0
    %v1334 = vmax.f32 %v679, 0.0
    %v1335 = vmax.f32 %v681, 0.0
    %v1336 = vmax.f32 %v840, 0.0
    %v1337 = vmax.f32 %v842, 0.0
    %v1338 = vmax.f32 %v1001, 0.0
    %v1339 = vmax.f32 %v1003, 0.0
    %v1340 = vmax.f32 %v1162, 0.0
    %v1341 = vmax.f32 %v1164, 0.0
    %v1342 = vmax.f32 %v685, 0.0
    %v1343 = vmax.f32 %v687, 0.0
    %v1344 = vmax.f32 %v846, 0.0
    %v1345 = vmax.f32 %v848, 0.0
    %v1346 = vmax.f32 %v1007, 0.0
    %v1347 = vmax.f32 %v1009, 0.0
    %v1348 = vmax.f32 %v1168, 0.0
    %v1349 = vmax.f32 %v1170, 0.0
    %v1350 = vmax.f32 %v689, 0.0
    %v1351 = vmax.f32 %v691, 0.0
    %v1352 = vmax.f32 %v850, 0.0
    %v1353 = vmax.f32 %v852, 0.0
    %v1354 = vmax.f32 %v1011, 0.0
    %v1355 = vmax.f32 %v1013, 0.0
    %v1356 = vmax.f32 %v1172, 0.0
    %v1357 = vmax.f32 %v1174, 0.0
    %v1358 = vmax.f32 %v695, 0.0
    %v1359 = vmax.f32 %v697, 0.0
    %v1360 = vmax.f32 %v856, 0.0
    %v1361 = vmax.f32 %v858, 0.0
    %v1362 = vmax.f32 %v1017, 0.0
    %v1363 = vmax.f32 %v1019, 0.0
    %v1364 = vmax.f32 %v1178, 0.0
    %v1365 = vmax.f32 %v1180, 0.0
    %v1366 = vmax.f32 %v699, 0.0
    %v1367 = vmax.f32 %v701, 0.0
    %v1368 = vmax.f32 %v860, 0.0
    %v1369 = vmax.f32 %v862, 0.0
    %v1370 = vmax.f32 %v1021, 0.0
    %v1371 = vmax.f32 %v1023, 0.0
    %v1372 = vmax.f32 %v1182, 0.0
    %v1373 = vmax.f32 %v1184, 0.0
    %v1374 = vmax.f32 %v705, 0.0
    %v1375 = vmax.f32 %v707, 0.0
    %v1376 = vmax.f32 %v866, 0.0
    %v1377 = vmax.f32 %v868, 0.0
    %v1378 = vmax.f32 %v1027, 0.0
    %v1379 = vmax.f32 %v1029, 0.0
    %v1380 = vmax.f32 %v1188, 0.0
    %v1381 = vmax.f32 %v1190, 0.0
    %v1382 = vmax.f32 %v709, 0.0
    %v1383 = vmax.f32 %v711, 0.0
    %v1384 = vmax.f32 %v870, 0.0
    %v1385 = vmax.f32 %v872, 0.0
    %v1386 = vmax.f32 %v1031, 0.0
    %v1387 = vmax.f32 %v1033, 0.0
    %v1388 = vmax.f32 %v1192, 0.0
    %v1389 = vmax.f32 %v1194, 0.0
    %v1390 = vmax.f32 %v715, 0.0
    %v1391 = vmax.f32 %v717, 0.0
    %v1392 = vmax.f32 %v876, 0.0
    %v1393 = vmax.f32 %v878, 0.0
    %v1394 = vmax.f32 %v1037, 0.0
    %v1395 = vmax.f32 %v1039, 0.0
    %v1396 = vmax.f32 %v1198, 0.0
    %v1397 = vmax.f32 %v1200, 0.0
    %v1398 = vmax.f32 %v719, 0.0
    %v1399 = vmax.f32 %v721, 0.0
    %v1400 = vmax.f32 %v880, 0.0
    %v1401 = vmax.f32 %v882, 0.0
    %v1402 = vmax.f32 %v1041, 0.0
    %v1403 = vmax.f32 %v1043, 0.0
    %v1404 = vmax.f32 %v1202, 0.0
    %v1405 = vmax.f32 %v1204, 0.0
    %v1406 = vmax.f32 %v725, 0.0
    %v1407 = vmax.f32 %v727, 0.0
    %v1408 = vmax.f32 %v886, 0.0
    %v1409 = vmax.f32 %v888, 0.0
    %v1410 = vmax.f32 %v1047, 0.0
    %v1411 = vmax.f32 %v1049, 0.0
    %v1412 = vmax.f32 %v1208, 0.0
    %v1413 = vmax.f32 %v1210, 0.0
    %v1414 = vpack.c.bf16 %v1222, %v1214
    %v1415 = vpack.c.bf16 %v1223, %v1215
    %v1416 = vpack.c.bf16 %v1224, %v1216
    %v1417 = vpack.c.bf16 %v1225, %v1217
    %v1418 = vpack.c.bf16 %v1226, %v1218
    %v1419 = vpack.c.bf16 %v1227, %v1219
    %v1420 = vpack.c.bf16 %v1228, %v1220
    %v1421 = vpack.c.bf16 %v1229, %v1221
    %v1422 = vpack.c.bf16 %v1238, %v1230
    %v1423 = vpack.c.bf16 %v1239, %v1231
    %v1424 = vpack.c.bf16 %v1240, %v1232
    %v1425 = vpack.c.bf16 %v1241, %v1233
    %v1426 = vpack.c.bf16 %v1242, %v1234
    %v1427 = vpack.c.bf16 %v1243, %v1235
    %v1428 = vpack.c.bf16 %v1244, %v1236
    %v1429 = vpack.c.bf16 %v1245, %v1237
    %v1430 = vpack.c.bf16 %v1254, %v1246
    %v1431 = vpack.c.bf16 %v1255, %v1247
    %v1432 = vpack.c.bf16 %v1256, %v1248
    %v1433 = vpack.c.bf16 %v1257, %v1249
    %v1434 = vpack.c.bf16 %v1258, %v1250
    %v1435 = vpack.c.bf16 %v1259, %v1251
    %v1436 = vpack.c.bf16 %v1260, %v1252
    %v1437 = vpack.c.bf16 %v1261, %v1253
    %v1438 = vpack.c.bf16 %v1270, %v1262
    %v1439 = vpack.c.bf16 %v1271, %v1263
    %v1440 = vpack.c.bf16 %v1272, %v1264
    %v1441 = vpack.c.bf16 %v1273, %v1265
    %v1442 = vpack.c.bf16 %v1274, %v1266
    %v1443 = vpack.c.bf16 %v1275, %v1267
    %v1444 = vpack.c.bf16 %v1276, %v1268
    %v1445 = vpack.c.bf16 %v1277, %v1269
    %v1446 = vpack.c.bf16 %v1286, %v1278
    %v1447 = vpack.c.bf16 %v1287, %v1279
    %v1448 = vpack.c.bf16 %v1288, %v1280
    %v1449 = vpack.c.bf16 %v1289, %v1281
    %v1450 = vpack.c.bf16 %v1290, %v1282
    %v1451 = vpack.c.bf16 %v1291, %v1283
    %v1452 = vpack.c.bf16 %v1292, %v1284
    %v1453 = vpack.c.bf16 %v1293, %v1285
    %v1454 = vpack.c.bf16 %v1302, %v1294
    %v1455 = vpack.c.bf16 %v1303, %v1295
    %v1456 = vpack.c.bf16 %v1304, %v1296
    %v1457 = vpack.c.bf16 %v1305, %v1297
    %v1458 = vpack.c.bf16 %v1306, %v1298
    %v1459 = vpack.c.bf16 %v1307, %v1299
    %v1460 = vpack.c.bf16 %v1308, %v1300
    %v1461 = vpack.c.bf16 %v1309, %v1301
    %v1462 = vpack.c.bf16 %v1318, %v1310
    %v1463 = vpack.c.bf16 %v1319, %v1311
    %v1464 = vpack.c.bf16 %v1320, %v1312
    %v1465 = vpack.c.bf16 %v1321, %v1313
    %v1466 = vpack.c.bf16 %v1322, %v1314
    %v1467 = vpack.c.bf16 %v1323, %v1315
    %v1468 = vpack.c.bf16 %v1324, %v1316
    %v1469 = vpack.c.bf16 %v1325, %v1317
    %v1470 = vpack.c.bf16 %v1334, %v1326
    %v1471 = vpack.c.bf16 %v1335, %v1327
    %v1472 = vpack.c.bf16 %v1336, %v1328
    %v1473 = vpack.c.bf16 %v1337, %v1329
    %v1474 = vpack.c.bf16 %v1338, %v1330
    %v1475 = vpack.c.bf16 %v1339, %v1331
    %v1476 = vpack.c.bf16 %v1340, %v1332
    %v1477 = vpack.c.bf16 %v1341, %v1333
    %v1478 = vpack.c.bf16 %v1350, %v1342
    %v1479 = vpack.c.bf16 %v1351, %v1343
    %v1480 = vpack.c.bf16 %v1352, %v1344
    %v1481 = vpack.c.bf16 %v1353, %v1345
    %v1482 = vpack.c.bf16 %v1354, %v1346
    %v1483 = vpack.c.bf16 %v1355, %v1347
    %v1484 = vpack.c.bf16 %v1356, %v1348
    %v1485 = vpack.c.bf16 %v1357, %v1349
    %v1486 = vpack.c.bf16 %v1366, %v1358
    %v1487 = vpack.c.bf16 %v1367, %v1359
    %v1488 = vpack.c.bf16 %v1368, %v1360
    %v1489 = vpack.c.bf16 %v1369, %v1361
    %v1490 = vpack.c.bf16 %v1370, %v1362
    %v1491 = vpack.c.bf16 %v1371, %v1363
    %v1492 = vpack.c.bf16 %v1372, %v1364
    %v1493 = vpack.c.bf16 %v1373, %v1365
    %v1494 = vpack.c.bf16 %v1382, %v1374
    %v1495 = vpack.c.bf16 %v1383, %v1375
    %v1496 = vpack.c.bf16 %v1384, %v1376
    %v1497 = vpack.c.bf16 %v1385, %v1377
    %v1498 = vpack.c.bf16 %v1386, %v1378
    %v1499 = vpack.c.bf16 %v1387, %v1379
    %v1500 = vpack.c.bf16 %v1388, %v1380
    %v1501 = vpack.c.bf16 %v1389, %v1381
    %v1502 = vpack.c.bf16 %v1398, %v1390
    %v1503 = vpack.c.bf16 %v1399, %v1391
    %v1504 = vpack.c.bf16 %v1400, %v1392
    %v1505 = vpack.c.bf16 %v1401, %v1393
    %v1506 = vpack.c.bf16 %v1402, %v1394
    %v1507 = vpack.c.bf16 %v1403, %v1395
    %v1508 = vpack.c.bf16 %v1404, %v1396
    %v1509 = vpack.c.bf16 %v1405, %v1397
    %v1510 = vpack.c.bf16 %v1406, %v1406
    %v1511 = vpack.c.bf16 %v1407, %v1407
    %v1512 = vpack.c.bf16 %v1408, %v1408
    %v1513 = vpack.c.bf16 %v1409, %v1409
    %v1514 = vpack.c.bf16 %v1410, %v1410
    %v1515 = vpack.c.bf16 %v1411, %v1411
    %v1516 = vpack.c.bf16 %v1412, %v1412
    %v1517 = vpack.c.bf16 %v1413, %v1413
    %v1518 = vld [vmem:[#allocation9] sm:$0xff]
    %v1519 = vld [vmem:[#allocation9 + $0x8] sm:$0xff]
    %v1520 = vld [vmem:[#allocation9 + $0x10] sm:$0xff]
    %v1521 = vld [vmem:[#allocation9 + $0x18] sm:$0xff]
    %v1522 = vld [vmem:[#allocation9 + $0x20] sm:$0xff]
    %v1523 = vld [vmem:[#allocation9 + $0x28] sm:$0xff]
    %v1524 = vld [vmem:[#allocation9 + $0x30] sm:$0xff]
    %v1525 = vld [vmem:[#allocation9 + $0x38] sm:$0xff]
    %v1526 = vld [vmem:[#allocation9 + $0x40] sm:$0xff]
    %v1527 = vld [vmem:[#allocation9 + $0x48] sm:$0xff]
    %v1528 = vld [vmem:[#allocation9 + $0x50] sm:$0xff]
    %v1529 = vld [vmem:[#allocation9 + $0x58] sm:$0xff]
    %v1530 = vld [vmem:[#allocation9 + $0x60] sm:$0xff]
    %v1531 = vld [vmem:[#allocation9 + $0x68] sm:$0xff]
    %v1532 = vld [vmem:[#allocation9 + $0x70] sm:$0xff]
    %v1533 = vld [vmem:[#allocation9 + $0x78] sm:$0xff]
    %v1534 = vld [vmem:[#allocation9 + $0x80] sm:$0xff]
    %v1535 = vld [vmem:[#allocation9 + $0x88] sm:$0xff]
    %v1536 = vld [vmem:[#allocation9 + $0x90] sm:$0xff]
    %v1537 = vld [vmem:[#allocation9 + $0x98] sm:$0xff]
    %v1538 = vld [vmem:[#allocation9 + $0xa0] sm:$0xff]
    %v1539 = vld [vmem:[#allocation9 + $0xa8] sm:$0xff]
    %v1540 = vld [vmem:[#allocation9 + $0xb0] sm:$0xff]
    %v1541 = vld [vmem:[#allocation9 + $0xb8] sm:$0xff]
    %v1542 = vld [vmem:[#allocation9 + $0xc0] sm:$0xff]
    %v1543 = vld [vmem:[#allocation9 + $0xc8] sm:$0xff]
    %v1544 = vld [vmem:[#allocation9 + $0xd0] sm:$0xff]
    %v1545 = vld [vmem:[#allocation9 + $0xd8] sm:$0xff]
    %v1546 = vld [vmem:[#allocation9 + $0xe0] sm:$0xff]
    %v1547 = vld [vmem:[#allocation9 + $0xe8] sm:$0xff]
    %v1548 = vld [vmem:[#allocation9 + $0xf0] sm:$0xff]
    %v1549 = vld [vmem:[#allocation9 + $0xf8] sm:$0xff]
    %v1550 = vld [vmem:[#allocation9 + $0x100] sm:$0xff]
    %v1551 = vld [vmem:[#allocation9 + $0x108] sm:$0xff]
    %v1552 = vld [vmem:[#allocation9 + $0x110] sm:$0xff]
    %v1553 = vld [vmem:[#allocation9 + $0x118] sm:$0xff]
    %v1554 = vld [vmem:[#allocation9 + $0x120] sm:$0xff]
    %v1555 = vld [vmem:[#allocation9 + $0x128] sm:$0xff]
    %v1556 = vld [vmem:[#allocation9 + $0x130] sm:$0xff]
    %v1557 = vld [vmem:[#allocation9 + $0x138] sm:$0xff]
    %v1558 = vld [vmem:[#allocation9 + $0x140] sm:$0xff]
    %v1559 = vld [vmem:[#allocation9 + $0x148] sm:$0xff]
    %v1560 = vld [vmem:[#allocation9 + $0x150] sm:$0xff]
    %v1561 = vld [vmem:[#allocation9 + $0x158] sm:$0xff]
    %v1562 = vld [vmem:[#allocation9 + $0x160] sm:$0xff]
    %v1563 = vld [vmem:[#allocation9 + $0x168] sm:$0xff]
    %v1564 = vld [vmem:[#allocation9 + $0x170] sm:$0xff]
    %v1565 = vld [vmem:[#allocation9 + $0x178] sm:$0xff]
    %v1566 = vld [vmem:[#allocation9 + $0x180] sm:$0xff]
    %v1567 = vld [vmem:[#allocation9 + $0x188] sm:$0xff]
    %v1568 = vld [vmem:[#allocation9 + $0x190] sm:$0xff]
    %v1569 = vld [vmem:[#allocation9 + $0x198] sm:$0xff]
    %v1570 = vld [vmem:[#allocation9 + $0x1a0] sm:$0xff]
    %v1571 = vld [vmem:[#allocation9 + $0x1a8] sm:$0xff]
    %v1572 = vld [vmem:[#allocation9 + $0x1b0] sm:$0xff]
    %v1573 = vld [vmem:[#allocation9 + $0x1b8] sm:$0xff]
    %v1574 = vld [vmem:[#allocation9 + $0x1c0] sm:$0xff]
    %v1575 = vld [vmem:[#allocation9 + $0x1c8] sm:$0xff]
    %v1576 = vld [vmem:[#allocation9 + $0x1d0] sm:$0xff]
    %v1577 = vld [vmem:[#allocation9 + $0x1d8] sm:$0xff]
    %v1578 = vld [vmem:[#allocation9 + $0x1e0] sm:$0xff]
    %v1579 = vld [vmem:[#allocation9 + $0x1e8] sm:$0xff]
    %v1580 = vld [vmem:[#allocation9 + $0x1f0] sm:$0xff]
    %v1581 = vld [vmem:[#allocation9 + $0x1f8] sm:$0xff]
    %v1582 = vld [vmem:[#allocation9 + $0x200] sm:$0xff]
    %v1583 = vld [vmem:[#allocation9 + $0x208] sm:$0xff]
    %v1584 = vld [vmem:[#allocation9 + $0x210] sm:$0xff]
    %v1585 = vld [vmem:[#allocation9 + $0x218] sm:$0xff]
    %v1586 = vld [vmem:[#allocation9 + $0x220] sm:$0xff]
    %v1587 = vld [vmem:[#allocation9 + $0x228] sm:$0xff]
    %v1588 = vld [vmem:[#allocation9 + $0x230] sm:$0xff]
    %v1589 = vld [vmem:[#allocation9 + $0x238] sm:$0xff]
    %v1590 = vld [vmem:[#allocation9 + $0x240] sm:$0xff]
    %v1591 = vld [vmem:[#allocation9 + $0x248] sm:$0xff]
    %v1592 = vld [vmem:[#allocation9 + $0x250] sm:$0xff]
    %v1593 = vld [vmem:[#allocation9 + $0x258] sm:$0xff]
    %v1594 = vld [vmem:[#allocation9 + $0x260] sm:$0xff]
    %v1595 = vld [vmem:[#allocation9 + $0x268] sm:$0xff]
    %v1596 = vld [vmem:[#allocation9 + $0x270] sm:$0xff]
    %v1597 = vld [vmem:[#allocation9 + $0x278] sm:$0xff]
    %v1598 = vld [vmem:[#allocation9 + $0x280] sm:$0xff]
    %v1599 = vld [vmem:[#allocation9 + $0x288] sm:$0xff]
    %v1600 = vld [vmem:[#allocation9 + $0x290] sm:$0xff]
    %v1601 = vld [vmem:[#allocation9 + $0x298] sm:$0xff]
    %v1602 = vld [vmem:[#allocation9 + $0x2a0] sm:$0xff]
    %v1603 = vld [vmem:[#allocation9 + $0x2a8] sm:$0xff]
    %v1604 = vld [vmem:[#allocation9 + $0x2b0] sm:$0xff]
    %v1605 = vld [vmem:[#allocation9 + $0x2b8] sm:$0xff]
    %v1606 = vld [vmem:[#allocation9 + $0x2c0] sm:$0xff]
    %v1607 = vld [vmem:[#allocation9 + $0x2c8] sm:$0xff]
    %v1608 = vld [vmem:[#allocation9 + $0x2d0] sm:$0xff]
    %v1609 = vld [vmem:[#allocation9 + $0x2d8] sm:$0xff]
    %v1610 = vld [vmem:[#allocation9 + $0x2e0] sm:$0xff]
    %v1611 = vld [vmem:[#allocation9 + $0x2e8] sm:$0xff]
    %v1612 = vld [vmem:[#allocation9 + $0x2f0] sm:$0xff]
    %v1613 = vld [vmem:[#allocation9 + $0x2f8] sm:$0xff]
    %v1614 = vld [vmem:[#allocation9 + $0x300] sm:$0xff]
    %v1615 = vld [vmem:[#allocation9 + $0x308] sm:$0xff]
    %v1616 = vld [vmem:[#allocation9 + $0x310] sm:$0xff]
    %v1617 = vld [vmem:[#allocation9 + $0x318] sm:$0xff]
    %v1618 = vld [vmem:[#allocation9 + $0x320] sm:$0xff]
    %v1619 = vld [vmem:[#allocation9 + $0x328] sm:$0xff]
    %v1620 = vld [vmem:[#allocation9 + $0x330] sm:$0xff]
    %v1621 = vld [vmem:[#allocation9 + $0x338] sm:$0xff]
    %v1622 = vld [vmem:[#allocation9 + $0x340] sm:$0xff]
    %v1623 = vld [vmem:[#allocation9 + $0x348] sm:$0xff]
    %v1624 = vld [vmem:[#allocation9 + $0x350] sm:$0xff]
    %v1625 = vld [vmem:[#allocation9 + $0x358] sm:$0xff]
    %v1626 = vld [vmem:[#allocation9 + $0x360] sm:$0xff]
    %v1627 = vld [vmem:[#allocation9 + $0x368] sm:$0xff]
    %v1628 = vld [vmem:[#allocation9 + $0x370] sm:$0xff]
    %v1629 = vld [vmem:[#allocation9 + $0x378] sm:$0xff]
    %v1630 = vld [vmem:[#allocation9 + $0x380] sm:$0xff]
    %v1631 = vld [vmem:[#allocation9 + $0x388] sm:$0xff]
    %v1632 = vld [vmem:[#allocation9 + $0x390] sm:$0xff]
    %v1633 = vld [vmem:[#allocation9 + $0x398] sm:$0xff]
    %v1634 = vld [vmem:[#allocation9 + $0x3a0] sm:$0xff]
    %v1635 = vld [vmem:[#allocation9 + $0x3a8] sm:$0xff]
    %v1636 = vld [vmem:[#allocation9 + $0x3b0] sm:$0xff]
    %v1637 = vld [vmem:[#allocation9 + $0x3b8] sm:$0xff]
    %v1638 = vld [vmem:[#allocation9 + $0x3c0] sm:$0xff]
    %v1639 = vld [vmem:[#allocation9 + $0x3c8] sm:$0xff]
    %v1640 = vld [vmem:[#allocation9 + $0x3d0] sm:$0xff]
    %v1641 = vld [vmem:[#allocation9 + $0x3d8] sm:$0xff]
    %v1642 = vld [vmem:[#allocation9 + $0x3e0] sm:$0xff]
    %v1643 = vld [vmem:[#allocation9 + $0x3e8] sm:$0xff]
    %v1644 = vld [vmem:[#allocation9 + $0x3f0] sm:$0xff]
    %v1645 = vld [vmem:[#allocation9 + $0x3f8] sm:$0xff]
    %v1646 = vld [vmem:[#allocation9 + $0x400] sm:$0xff]
    %v1647 = vld [vmem:[#allocation9 + $0x408] sm:$0xff]
    %v1648 = vld [vmem:[#allocation9 + $0x410] sm:$0xff]
    %v1649 = vld [vmem:[#allocation9 + $0x418] sm:$0xff]
    %v1650 = vld [vmem:[#allocation9 + $0x420] sm:$0xff]
    %v1651 = vld [vmem:[#allocation9 + $0x428] sm:$0xff]
    %v1652 = vld [vmem:[#allocation9 + $0x430] sm:$0xff]
    %v1653 = vld [vmem:[#allocation9 + $0x438] sm:$0xff]
    %v1654 = vld [vmem:[#allocation9 + $0x440] sm:$0xff]
    %v1655 = vld [vmem:[#allocation9 + $0x448] sm:$0xff]
    %v1656 = vld [vmem:[#allocation9 + $0x450] sm:$0xff]
    %v1657 = vld [vmem:[#allocation9 + $0x458] sm:$0xff]
    %v1658 = vld [vmem:[#allocation9 + $0x460] sm:$0xff]
    %v1659 = vld [vmem:[#allocation9 + $0x468] sm:$0xff]
    %v1660 = vld [vmem:[#allocation9 + $0x470] sm:$0xff]
    %v1661 = vld [vmem:[#allocation9 + $0x478] sm:$0xff]
    %v1662 = vld [vmem:[#allocation9 + $0x480] sm:$0xff]
    %v1663 = vld [vmem:[#allocation9 + $0x488] sm:$0xff]
    %v1664 = vld [vmem:[#allocation9 + $0x490] sm:$0xff]
    %v1665 = vld [vmem:[#allocation9 + $0x498] sm:$0xff]
    %v1666 = vld [vmem:[#allocation9 + $0x4a0] sm:$0xff]
    %v1667 = vld [vmem:[#allocation9 + $0x4a8] sm:$0xff]
    %v1668 = vld [vmem:[#allocation9 + $0x4b0] sm:$0xff]
    %v1669 = vld [vmem:[#allocation9 + $0x4b8] sm:$0xff]
    %v1670 = vld [vmem:[#allocation9 + $0x4c0] sm:$0xff]
    %v1671 = vld [vmem:[#allocation9 + $0x4c8] sm:$0xff]
    %v1672 = vld [vmem:[#allocation9 + $0x4d0] sm:$0xff]
    %v1673 = vld [vmem:[#allocation9 + $0x4d8] sm:$0xff]
    %v1674 = vld [vmem:[#allocation9 + $0x4e0] sm:$0xff]
    %v1675 = vld [vmem:[#allocation9 + $0x4e8] sm:$0xff]
    %v1676 = vld [vmem:[#allocation9 + $0x4f0] sm:$0xff]
    %v1677 = vld [vmem:[#allocation9 + $0x4f8] sm:$0xff]
    %v1678 = vld [vmem:[#allocation9 + $0x500] sm:$0xff]
    %v1679 = vld [vmem:[#allocation9 + $0x508] sm:$0xff]
    %v1680 = vld [vmem:[#allocation9 + $0x510] sm:$0xff]
    %v1681 = vld [vmem:[#allocation9 + $0x518] sm:$0xff]
    %v1682 = vld [vmem:[#allocation9 + $0x520] sm:$0xff]
    %v1683 = vld [vmem:[#allocation9 + $0x528] sm:$0xff]
    %v1684 = vld [vmem:[#allocation9 + $0x530] sm:$0xff]
    %v1685 = vld [vmem:[#allocation9 + $0x538] sm:$0xff]
    %v1686 = vld [vmem:[#allocation9 + $0x540] sm:$0xff]
    %v1687 = vld [vmem:[#allocation9 + $0x548] sm:$0xff]
    %v1688 = vld [vmem:[#allocation9 + $0x550] sm:$0xff]
    %v1689 = vld [vmem:[#allocation9 + $0x558] sm:$0xff]
    %v1690 = vld [vmem:[#allocation9 + $0x560] sm:$0xff]
    %v1691 = vld [vmem:[#allocation9 + $0x568] sm:$0xff]
    %v1692 = vld [vmem:[#allocation9 + $0x570] sm:$0xff]
    %v1693 = vld [vmem:[#allocation9 + $0x578] sm:$0xff]
    %v1694 = vld [vmem:[#allocation9 + $0x580] sm:$0xff]
    %v1695 = vld [vmem:[#allocation9 + $0x588] sm:$0xff]
    %v1696 = vld [vmem:[#allocation9 + $0x590] sm:$0xff]
    %v1697 = vld [vmem:[#allocation9 + $0x598] sm:$0xff]
    %v1698 = vld [vmem:[#allocation9 + $0x5a0] sm:$0xff]
    %v1699 = vld [vmem:[#allocation9 + $0x5a8] sm:$0xff]
    %v1700 = vld [vmem:[#allocation9 + $0x5b0] sm:$0xff]
    %v1701 = vld [vmem:[#allocation9 + $0x5b8] sm:$0xff]
    %v1702 = vld [vmem:[#allocation9 + $0x5c0] sm:$0xff]
    %v1703 = vld [vmem:[#allocation9 + $0x5c8] sm:$0xff]
    %v1704 = vld [vmem:[#allocation9 + $0x5d0] sm:$0xff]
    %v1705 = vld [vmem:[#allocation9 + $0x5d8] sm:$0xff]
    %v1706 = vld [vmem:[#allocation9 + $0x5e0] sm:$0xff]
    %v1707 = vld [vmem:[#allocation9 + $0x5e8] sm:$0xff]
    %v1708 = vld [vmem:[#allocation9 + $0x5f0] sm:$0xff]
    %v1709 = vld [vmem:[#allocation9 + $0x5f8] sm:$0xff]
    %v1710 = vld [vmem:[#allocation9 + $0x600] sm:$0xff]
    %v1711 = vld [vmem:[#allocation9 + $0x608] sm:$0xff]
    %v1712 = vld [vmem:[#allocation9 + $0x610] sm:$0xff]
    %v1713 = vld [vmem:[#allocation9 + $0x618] sm:$0xff]
    %v1714 = vld [vmem:[#allocation9 + $0x620] sm:$0xff]
    %v1715 = vld [vmem:[#allocation9 + $0x628] sm:$0xff]
    %v1716 = vld [vmem:[#allocation9 + $0x630] sm:$0xff]
    %v1717 = vld [vmem:[#allocation9 + $0x638] sm:$0xff]
    %v1718 = vld [vmem:[#allocation9 + $0x640] sm:$0xff]
    %v1719 = vld [vmem:[#allocation9 + $0x648] sm:$0xff]
    %v1720 = vld [vmem:[#allocation9 + $0x650] sm:$0xff]
    %v1721 = vld [vmem:[#allocation9 + $0x658] sm:$0xff]
    %v1722 = vld [vmem:[#allocation9 + $0x660] sm:$0xff]
    %v1723 = vld [vmem:[#allocation9 + $0x668] sm:$0xff]
    %v1724 = vld [vmem:[#allocation9 + $0x670] sm:$0xff]
    %v1725 = vld [vmem:[#allocation9 + $0x678] sm:$0xff]
    %v1726 = vld [vmem:[#allocation9 + $0x680] sm:$0xff]
    %v1727 = vld [vmem:[#allocation9 + $0x688] sm:$0xff]
    %v1728 = vld [vmem:[#allocation9 + $0x690] sm:$0xff]
    %v1729 = vld [vmem:[#allocation9 + $0x698] sm:$0xff]
    %v1730 = vld [vmem:[#allocation9 + $0x6a0] sm:$0xff]
    %v1731 = vld [vmem:[#allocation9 + $0x6a8] sm:$0xff]
    %v1732 = vld [vmem:[#allocation9 + $0x6b0] sm:$0xff]
    %v1733 = vld [vmem:[#allocation9 + $0x6b8] sm:$0xff]
    %v1734 = vld [vmem:[#allocation9 + $0x6c0] sm:$0xff]
    %v1735 = vld [vmem:[#allocation9 + $0x6c8] sm:$0xff]
    %v1736 = vld [vmem:[#allocation9 + $0x6d0] sm:$0xff]
    %v1737 = vld [vmem:[#allocation9 + $0x6d8] sm:$0xff]
    %v1738 = vld [vmem:[#allocation9 + $0x6e0] sm:$0xff]
    %v1739 = vld [vmem:[#allocation9 + $0x6e8] sm:$0xff]
    %v1740 = vld [vmem:[#allocation9 + $0x6f0] sm:$0xff]
    %v1741 = vld [vmem:[#allocation9 + $0x6f8] sm:$0xff]
    %v1742 = vld [vmem:[#allocation9 + $0x700] sm:$0xff]
    %v1743 = vld [vmem:[#allocation9 + $0x708] sm:$0xff]
    %v1744 = vld [vmem:[#allocation9 + $0x710] sm:$0xff]
    %v1745 = vld [vmem:[#allocation9 + $0x718] sm:$0xff]
    %v1746 = vld [vmem:[#allocation9 + $0x720] sm:$0xff]
    %v1747 = vld [vmem:[#allocation9 + $0x728] sm:$0xff]
    %v1748 = vld [vmem:[#allocation9 + $0x730] sm:$0xff]
    %v1749 = vld [vmem:[#allocation9 + $0x738] sm:$0xff]
    %v1750 = vld [vmem:[#allocation9 + $0x740] sm:$0xff]
    %v1751 = vld [vmem:[#allocation9 + $0x748] sm:$0xff]
    %v1752 = vld [vmem:[#allocation9 + $0x750] sm:$0xff]
    %v1753 = vld [vmem:[#allocation9 + $0x758] sm:$0xff]
    %v1754 = vld [vmem:[#allocation9 + $0x760] sm:$0xff]
    %v1755 = vld [vmem:[#allocation9 + $0x768] sm:$0xff]
    %v1756 = vld [vmem:[#allocation9 + $0x770] sm:$0xff]
    %v1757 = vld [vmem:[#allocation9 + $0x778] sm:$0xff]
    %v1758 = vld [vmem:[#allocation9 + $0x780] sm:$0xff]
    %v1759 = vld [vmem:[#allocation9 + $0x788] sm:$0xff]
    %v1760 = vld [vmem:[#allocation9 + $0x790] sm:$0xff]
    %v1761 = vld [vmem:[#allocation9 + $0x798] sm:$0xff]
    %v1762 = vld [vmem:[#allocation9 + $0x7a0] sm:$0xff]
    %v1763 = vld [vmem:[#allocation9 + $0x7a8] sm:$0xff]
    %v1764 = vld [vmem:[#allocation9 + $0x7b0] sm:$0xff]
    %v1765 = vld [vmem:[#allocation9 + $0x7b8] sm:$0xff]
    %v1766 = vld [vmem:[#allocation9 + $0x7c0] sm:$0xff]
    %v1767 = vld [vmem:[#allocation9 + $0x7c8] sm:$0xff]
    %v1768 = vld [vmem:[#allocation9 + $0x7d0] sm:$0xff]
    %v1769 = vld [vmem:[#allocation9 + $0x7d8] sm:$0xff]
    %v1770 = vld [vmem:[#allocation9 + $0x7e0] sm:$0xff]
    %v1771 = vld [vmem:[#allocation9 + $0x7e8] sm:$0xff]
    %v1772 = vld [vmem:[#allocation9 + $0x7f0] sm:$0xff]
    %v1773 = vld [vmem:[#allocation9 + $0x7f8] sm:$0xff]
    %v1774 = vld [vmem:[#allocation9 + $0x800] sm:$0xff]
    %v1775 = vld [vmem:[#allocation9 + $0x808] sm:$0xff]
    %v1776 = vld [vmem:[#allocation9 + $0x810] sm:$0xff]
    %v1777 = vld [vmem:[#allocation9 + $0x818] sm:$0xff]
    %v1778 = vld [vmem:[#allocation9 + $0x820] sm:$0xff]
    %v1779 = vld [vmem:[#allocation9 + $0x828] sm:$0xff]
    %v1780 = vld [vmem:[#allocation9 + $0x830] sm:$0xff]
    %v1781 = vld [vmem:[#allocation9 + $0x838] sm:$0xff]
    %v1782 = vld [vmem:[#allocation9 + $0x840] sm:$0xff]
    %v1783 = vld [vmem:[#allocation9 + $0x848] sm:$0xff]
    %v1784 = vld [vmem:[#allocation9 + $0x850] sm:$0xff]
    %v1785 = vld [vmem:[#allocation9 + $0x858] sm:$0xff]
    %v1786 = vld [vmem:[#allocation9 + $0x860] sm:$0xff]
    %v1787 = vld [vmem:[#allocation9 + $0x868] sm:$0xff]
    %v1788 = vld [vmem:[#allocation9 + $0x870] sm:$0xff]
    %v1789 = vld [vmem:[#allocation9 + $0x878] sm:$0xff]
    %v1790 = vld [vmem:[#allocation9 + $0x880] sm:$0xff]
    %v1791 = vld [vmem:[#allocation9 + $0x888] sm:$0xff]
    %v1792 = vld [vmem:[#allocation9 + $0x890] sm:$0xff]
    %v1793 = vld [vmem:[#allocation9 + $0x898] sm:$0xff]
    %v1794 = vld [vmem:[#allocation9 + $0x8a0] sm:$0xff]
    %v1795 = vld [vmem:[#allocation9 + $0x8a8] sm:$0xff]
    %v1796 = vld [vmem:[#allocation9 + $0x8b0] sm:$0xff]
    %v1797 = vld [vmem:[#allocation9 + $0x8b8] sm:$0xff]
    %v1798 = vld [vmem:[#allocation9 + $0x8c0] sm:$0xff]
    %v1799 = vld [vmem:[#allocation9 + $0x8c8] sm:$0xff]
    %v1800 = vld [vmem:[#allocation9 + $0x8d0] sm:$0xff]
    %v1801 = vld [vmem:[#allocation9 + $0x8d8] sm:$0xff]
    %v1802 = vld [vmem:[#allocation9 + $0x8e0] sm:$0xff]
    %v1803 = vld [vmem:[#allocation9 + $0x8e8] sm:$0xff]
    %v1804 = vld [vmem:[#allocation9 + $0x8f0] sm:$0xff]
    %v1805 = vld [vmem:[#allocation9 + $0x8f8] sm:$0xff]
    %v1806 = vld [vmem:[#allocation9 + $0x900] sm:$0xff]
    %v1807 = vld [vmem:[#allocation9 + $0x908] sm:$0xff]
    %v1808 = vld [vmem:[#allocation9 + $0x910] sm:$0xff]
    %v1809 = vld [vmem:[#allocation9 + $0x918] sm:$0xff]
    %v1810 = vld [vmem:[#allocation9 + $0x920] sm:$0xff]
    %v1811 = vld [vmem:[#allocation9 + $0x928] sm:$0xff]
    %v1812 = vld [vmem:[#allocation9 + $0x930] sm:$0xff]
    %v1813 = vld [vmem:[#allocation9 + $0x938] sm:$0xff]
    %v1814 = vld [vmem:[#allocation9 + $0x940] sm:$0xff]
    %v1815 = vld [vmem:[#allocation9 + $0x948] sm:$0xff]
    %v1816 = vld [vmem:[#allocation9 + $0x950] sm:$0xff]
    %v1817 = vld [vmem:[#allocation9 + $0x958] sm:$0xff]
    %v1818 = vld [vmem:[#allocation9 + $0x960] sm:$0xff]
    %v1819 = vld [vmem:[#allocation9 + $0x968] sm:$0xff]
    %v1820 = vld [vmem:[#allocation9 + $0x970] sm:$0xff]
    %v1821 = vld [vmem:[#allocation9 + $0x978] sm:$0xff]
    %v1822 = vld [vmem:[#allocation9 + $0x980] sm:$0xff]
    %v1823 = vld [vmem:[#allocation9 + $0x988] sm:$0xff]
    %v1824 = vld [vmem:[#allocation9 + $0x990] sm:$0xff]
    %v1825 = vld [vmem:[#allocation9 + $0x998] sm:$0xff]
    %v1826 = vld [vmem:[#allocation9 + $0x9a0] sm:$0xff]
    %v1827 = vld [vmem:[#allocation9 + $0x9a8] sm:$0xff]
    %v1828 = vld [vmem:[#allocation9 + $0x9b0] sm:$0xff]
    %v1829 = vld [vmem:[#allocation9 + $0x9b8] sm:$0xff]
    %v1830 = vld [vmem:[#allocation9 + $0x9c0] sm:$0xff]
    %v1831 = vld [vmem:[#allocation9 + $0x9c8] sm:$0xff]
    %v1832 = vld [vmem:[#allocation9 + $0x9d0] sm:$0xff]
    %v1833 = vld [vmem:[#allocation9 + $0x9d8] sm:$0xff]
    %v1834 = vld [vmem:[#allocation9 + $0x9e0] sm:$0xff]
    %v1835 = vld [vmem:[#allocation9 + $0x9e8] sm:$0xff]
    %v1836 = vld [vmem:[#allocation9 + $0x9f0] sm:$0xff]
    %v1837 = vld [vmem:[#allocation9 + $0x9f8] sm:$0xff]
    %v1838 = vld [vmem:[#allocation9 + $0xa00] sm:$0xff]
    %v1839 = vld [vmem:[#allocation9 + $0xa08] sm:$0xff]
    %v1840 = vld [vmem:[#allocation9 + $0xa10] sm:$0xff]
    %v1841 = vld [vmem:[#allocation9 + $0xa18] sm:$0xff]
    %v1842 = vld [vmem:[#allocation9 + $0xa20] sm:$0xff]
    %v1843 = vld [vmem:[#allocation9 + $0xa28] sm:$0xff]
    %v1844 = vld [vmem:[#allocation9 + $0xa30] sm:$0xff]
    %v1845 = vld [vmem:[#allocation9 + $0xa38] sm:$0xff]
    %v1846 = vld [vmem:[#allocation9 + $0xa40] sm:$0xff]
    %v1847 = vld [vmem:[#allocation9 + $0xa48] sm:$0xff]
    %v1848 = vld [vmem:[#allocation9 + $0xa50] sm:$0xff]
    %v1849 = vld [vmem:[#allocation9 + $0xa58] sm:$0xff]
    %v1850 = vld [vmem:[#allocation9 + $0xa60] sm:$0xff]
    %v1851 = vld [vmem:[#allocation9 + $0xa68] sm:$0xff]
    %v1852 = vld [vmem:[#allocation9 + $0xa70] sm:$0xff]
    %v1853 = vld [vmem:[#allocation9 + $0xa78] sm:$0xff]
    %v1854 = vld [vmem:[#allocation9 + $0xa80] sm:$0xff]
    %v1855 = vld [vmem:[#allocation9 + $0xa88] sm:$0xff]
    %v1856 = vld [vmem:[#allocation9 + $0xa90] sm:$0xff]
    %v1857 = vld [vmem:[#allocation9 + $0xa98] sm:$0xff]
    %v1858 = vld [vmem:[#allocation9 + $0xaa0] sm:$0xff]
    %v1859 = vld [vmem:[#allocation9 + $0xaa8] sm:$0xff]
    %v1860 = vld [vmem:[#allocation9 + $0xab0] sm:$0xff]
    %v1861 = vld [vmem:[#allocation9 + $0xab8] sm:$0xff]
    %v1862 = vld [vmem:[#allocation9 + $0xac0] sm:$0xff]
    %v1863 = vld [vmem:[#allocation9 + $0xac8] sm:$0xff]
    %v1864 = vld [vmem:[#allocation9 + $0xad0] sm:$0xff]
    %v1865 = vld [vmem:[#allocation9 + $0xad8] sm:$0xff]
    %v1866 = vld [vmem:[#allocation9 + $0xae0] sm:$0xff]
    %v1867 = vld [vmem:[#allocation9 + $0xae8] sm:$0xff]
    %v1868 = vld [vmem:[#allocation9 + $0xaf0] sm:$0xff]
    %v1869 = vld [vmem:[#allocation9 + $0xaf8] sm:$0xff]
    %v1870 = vld [vmem:[#allocation9 + $0xb00] sm:$0xff]
    %v1871 = vld [vmem:[#allocation9 + $0xb08] sm:$0xff]
    %v1872 = vld [vmem:[#allocation9 + $0xb10] sm:$0xff]
    %v1873 = vld [vmem:[#allocation9 + $0xb18] sm:$0xff]
    %v1874 = vld [vmem:[#allocation9 + $0xb20] sm:$0xff]
    %v1875 = vld [vmem:[#allocation9 + $0xb28] sm:$0xff]
    %v1876 = vld [vmem:[#allocation9 + $0xb30] sm:$0xff]
    %v1877 = vld [vmem:[#allocation9 + $0xb38] sm:$0xff]
    %v1878 = vld [vmem:[#allocation9 + $0xb40] sm:$0xff]
    %v1879 = vld [vmem:[#allocation9 + $0xb48] sm:$0xff]
    %v1880 = vld [vmem:[#allocation9 + $0xb50] sm:$0xff]
    %v1881 = vld [vmem:[#allocation9 + $0xb58] sm:$0xff]
    %v1882 = vld [vmem:[#allocation9 + $0xb60] sm:$0xff]
    %v1883 = vld [vmem:[#allocation9 + $0xb68] sm:$0xff]
    %v1884 = vld [vmem:[#allocation9 + $0xb70] sm:$0xff]
    %v1885 = vld [vmem:[#allocation9 + $0xb78] sm:$0xff]
    %v1886 = vld [vmem:[#allocation9 + $0xb80] sm:$0xff]
    %v1887 = vld [vmem:[#allocation9 + $0xb88] sm:$0xff]
    %v1888 = vld [vmem:[#allocation9 + $0xb90] sm:$0xff]
    %v1889 = vld [vmem:[#allocation9 + $0xb98] sm:$0xff]
    %v1890 = vld [vmem:[#allocation9 + $0xba0] sm:$0xff]
    %v1891 = vld [vmem:[#allocation9 + $0xba8] sm:$0xff]
    %v1892 = vld [vmem:[#allocation9 + $0xbb0] sm:$0xff]
    %v1893 = vld [vmem:[#allocation9 + $0xbb8] sm:$0xff]
    %v1894 = vld [vmem:[#allocation9 + $0xbc0] sm:$0xff]
    %v1895 = vld [vmem:[#allocation9 + $0xbc8] sm:$0xff]
    %v1896 = vld [vmem:[#allocation9 + $0xbd0] sm:$0xff]
    %v1897 = vld [vmem:[#allocation9 + $0xbd8] sm:$0xff]
    %v1898 = vld [vmem:[#allocation9 + $0xbe0] sm:$0xff]
    %v1899 = vld [vmem:[#allocation9 + $0xbe8] sm:$0xff]
    %v1900 = vld [vmem:[#allocation9 + $0xbf0] sm:$0xff]
    %v1901 = vld [vmem:[#allocation9 + $0xbf8] sm:$0xff]
    %v1902 = vld [vmem:[#allocation9 + $0xc00] sm:$0xff]
    %v1903 = vld [vmem:[#allocation9 + $0xc08] sm:$0xff]
    %v1904 = vld [vmem:[#allocation9 + $0xc10] sm:$0xff]
    %v1905 = vld [vmem:[#allocation9 + $0xc18] sm:$0xff]
    %v1906 = vld [vmem:[#allocation9 + $0xc20] sm:$0xff]
    %v1907 = vld [vmem:[#allocation9 + $0xc28] sm:$0xff]
    %v1908 = vld [vmem:[#allocation9 + $0xc30] sm:$0xff]
    %v1909 = vld [vmem:[#allocation9 + $0xc38] sm:$0xff]
    %v1910 = vld [vmem:[#allocation9 + $0xc40] sm:$0xff]
    %v1911 = vld [vmem:[#allocation9 + $0xc48] sm:$0xff]
    %v1912 = vld [vmem:[#allocation9 + $0xc50] sm:$0xff]
    %v1913 = vld [vmem:[#allocation9 + $0xc58] sm:$0xff]
    %v1914 = vld [vmem:[#allocation9 + $0xc60] sm:$0xff]
    %v1915 = vld [vmem:[#allocation9 + $0xc68] sm:$0xff]
    %v1916 = vld [vmem:[#allocation9 + $0xc70] sm:$0xff]
    %v1917 = vld [vmem:[#allocation9 + $0xc78] sm:$0xff]
    %v1918 = vld [vmem:[#allocation9 + $0xc80] sm:$0xff]
    %v1919 = vld [vmem:[#allocation9 + $0xc88] sm:$0xff]
    %v1920 = vld [vmem:[#allocation9 + $0xc90] sm:$0xff]
    %v1921 = vld [vmem:[#allocation9 + $0xc98] sm:$0xff]
    %v1922 = vld [vmem:[#allocation9 + $0xca0] sm:$0xff]
    %v1923 = vld [vmem:[#allocation9 + $0xca8] sm:$0xff]
    %v1924 = vld [vmem:[#allocation9 + $0xcb0] sm:$0xff]
    %v1925 = vld [vmem:[#allocation9 + $0xcb8] sm:$0xff]
    %v1926 = vld [vmem:[#allocation9 + $0xcc0] sm:$0xff]
    %v1927 = vld [vmem:[#allocation9 + $0xcc8] sm:$0xff]
    %v1928 = vld [vmem:[#allocation9 + $0xcd0] sm:$0xff]
    %v1929 = vld [vmem:[#allocation9 + $0xcd8] sm:$0xff]
    %v1930 = vld [vmem:[#allocation9 + $0xce0] sm:$0xff]
    %v1931 = vld [vmem:[#allocation9 + $0xce8] sm:$0xff]
    %v1932 = vld [vmem:[#allocation9 + $0xcf0] sm:$0xff]
    %v1933 = vld [vmem:[#allocation9 + $0xcf8] sm:$0xff]
    %v1934 = vld [vmem:[#allocation9 + $0xd00] sm:$0xff]
    %v1935 = vld [vmem:[#allocation9 + $0xd08] sm:$0xff]
    %v1936 = vld [vmem:[#allocation9 + $0xd10] sm:$0xff]
    %v1937 = vld [vmem:[#allocation9 + $0xd18] sm:$0xff]
    %v1938 = vld [vmem:[#allocation9 + $0xd20] sm:$0xff]
    %v1939 = vld [vmem:[#allocation9 + $0xd28] sm:$0xff]
    %v1940 = vld [vmem:[#allocation9 + $0xd30] sm:$0xff]
    %v1941 = vld [vmem:[#allocation9 + $0xd38] sm:$0xff]
    %v1942 = vld [vmem:[#allocation9 + $0xd40] sm:$0xff]
    %v1943 = vld [vmem:[#allocation9 + $0xd48] sm:$0xff]
    %v1944 = vld [vmem:[#allocation9 + $0xd50] sm:$0xff]
    %v1945 = vld [vmem:[#allocation9 + $0xd58] sm:$0xff]
    %v1946 = vld [vmem:[#allocation9 + $0xd60] sm:$0xff]
    %v1947 = vld [vmem:[#allocation9 + $0xd68] sm:$0xff]
    %v1948 = vld [vmem:[#allocation9 + $0xd70] sm:$0xff]
    %v1949 = vld [vmem:[#allocation9 + $0xd78] sm:$0xff]
    %v1950 = vld [vmem:[#allocation9 + $0xd80] sm:$0xff]
    %v1951 = vld [vmem:[#allocation9 + $0xd88] sm:$0xff]
    %v1952 = vld [vmem:[#allocation9 + $0xd90] sm:$0xff]
    %v1953 = vld [vmem:[#allocation9 + $0xd98] sm:$0xff]
    %v1954 = vld [vmem:[#allocation9 + $0xda0] sm:$0xff]
    %v1955 = vld [vmem:[#allocation9 + $0xda8] sm:$0xff]
    %v1956 = vld [vmem:[#allocation9 + $0xdb0] sm:$0xff]
    %v1957 = vld [vmem:[#allocation9 + $0xdb8] sm:$0xff]
    %v1958 = vld [vmem:[#allocation9 + $0xdc0] sm:$0xff]
    %v1959 = vld [vmem:[#allocation9 + $0xdc8] sm:$0xff]
    %v1960 = vld [vmem:[#allocation9 + $0xdd0] sm:$0xff]
    %v1961 = vld [vmem:[#allocation9 + $0xdd8] sm:$0xff]
    %v1962 = vld [vmem:[#allocation9 + $0xde0] sm:$0xff]
    %v1963 = vld [vmem:[#allocation9 + $0xde8] sm:$0xff]
    %v1964 = vld [vmem:[#allocation9 + $0xdf0] sm:$0xff]
    %v1965 = vld [vmem:[#allocation9 + $0xdf8] sm:$0xff]
    %v1966 = vld [vmem:[#allocation9 + $0xe00] sm:$0xff]
    %v1967 = vld [vmem:[#allocation9 + $0xe08] sm:$0xff]
    %v1968 = vld [vmem:[#allocation9 + $0xe10] sm:$0xff]
    %v1969 = vld [vmem:[#allocation9 + $0xe18] sm:$0xff]
    %v1970 = vld [vmem:[#allocation9 + $0xe20] sm:$0xff]
    %v1971 = vld [vmem:[#allocation9 + $0xe28] sm:$0xff]
    %v1972 = vld [vmem:[#allocation9 + $0xe30] sm:$0xff]
    %v1973 = vld [vmem:[#allocation9 + $0xe38] sm:$0xff]
    %v1974 = vld [vmem:[#allocation9 + $0xe40] sm:$0xff]
    %v1975 = vld [vmem:[#allocation9 + $0xe48] sm:$0xff]
    %v1976 = vld [vmem:[#allocation9 + $0xe50] sm:$0xff]
    %v1977 = vld [vmem:[#allocation9 + $0xe58] sm:$0xff]
    %v1978 = vld [vmem:[#allocation9 + $0xe60] sm:$0xff]
    %v1979 = vld [vmem:[#allocation9 + $0xe68] sm:$0xff]
    %v1980 = vld [vmem:[#allocation9 + $0xe70] sm:$0xff]
    %v1981 = vld [vmem:[#allocation9 + $0xe78] sm:$0xff]
    %v1982 = vld [vmem:[#allocation9 + $0xe80] sm:$0xff]
    %v1983 = vld [vmem:[#allocation9 + $0xe88] sm:$0xff]
    %v1984 = vld [vmem:[#allocation9 + $0xe90] sm:$0xff]
    %v1985 = vld [vmem:[#allocation9 + $0xe98] sm:$0xff]
    %v1986 = vld [vmem:[#allocation9 + $0xea0] sm:$0xff]
    %v1987 = vld [vmem:[#allocation9 + $0xea8] sm:$0xff]
    %v1988 = vld [vmem:[#allocation9 + $0xeb0] sm:$0xff]
    %v1989 = vld [vmem:[#allocation9 + $0xeb8] sm:$0xff]
    %v1990 = vld [vmem:[#allocation9 + $0xec0] sm:$0xff]
    %v1991 = vld [vmem:[#allocation9 + $0xec8] sm:$0xff]
    %v1992 = vld [vmem:[#allocation9 + $0xed0] sm:$0xff]
    %v1993 = vld [vmem:[#allocation9 + $0xed8] sm:$0xff]
    %v1994 = vld [vmem:[#allocation9 + $0xee0] sm:$0xff]
    %v1995 = vld [vmem:[#allocation9 + $0xee8] sm:$0xff]
    %v1996 = vld [vmem:[#allocation9 + $0xef0] sm:$0xff]
    %v1997 = vld [vmem:[#allocation9 + $0xef8] sm:$0xff]
    %v1998 = vld [vmem:[#allocation9 + $0xf00] sm:$0xff]
    %v1999 = vld [vmem:[#allocation9 + $0xf08] sm:$0xff]
    %v2000 = vld [vmem:[#allocation9 + $0xf10] sm:$0xff]
    %v2001 = vld [vmem:[#allocation9 + $0xf18] sm:$0xff]
    %v2002 = vld [vmem:[#allocation9 + $0xf20] sm:$0xff]
    %v2003 = vld [vmem:[#allocation9 + $0xf28] sm:$0xff]
    %v2004 = vld [vmem:[#allocation9 + $0xf30] sm:$0xff]
    %v2005 = vld [vmem:[#allocation9 + $0xf38] sm:$0xff]
    %v2006 = vld [vmem:[#allocation9 + $0xf40] sm:$0xff]
    %v2007 = vld [vmem:[#allocation9 + $0xf48] sm:$0xff]
    %v2008 = vld [vmem:[#allocation9 + $0xf50] sm:$0xff]
    %v2009 = vld [vmem:[#allocation9 + $0xf58] sm:$0xff]
    %v2010 = vld [vmem:[#allocation9 + $0xf60] sm:$0xff]
    %v2011 = vld [vmem:[#allocation9 + $0xf68] sm:$0xff]
    %v2012 = vld [vmem:[#allocation9 + $0xf70] sm:$0xff]
    %v2013 = vld [vmem:[#allocation9 + $0xf78] sm:$0xff]
    %v2014 = vld [vmem:[#allocation9 + $0xf80] sm:$0xff]
    %v2015 = vld [vmem:[#allocation9 + $0xf88] sm:$0xff]
    %v2016 = vld [vmem:[#allocation9 + $0xf90] sm:$0xff]
    %v2017 = vld [vmem:[#allocation9 + $0xf98] sm:$0xff]
    %v2018 = vld [vmem:[#allocation9 + $0xfa0] sm:$0xff]
    %v2019 = vld [vmem:[#allocation9 + $0xfa8] sm:$0xff]
    %v2020 = vld [vmem:[#allocation9 + $0xfb0] sm:$0xff]
    %v2021 = vld [vmem:[#allocation9 + $0xfb8] sm:$0xff]
    %v2022 = vld [vmem:[#allocation9 + $0xfc0] sm:$0xff]
    %v2023 = vld [vmem:[#allocation9 + $0xfc8] sm:$0xff]
    %v2024 = vld [vmem:[#allocation9 + $0xfd0] sm:$0xff]
    %v2025 = vld [vmem:[#allocation9 + $0xfd8] sm:$0xff]
    %v2026 = vld [vmem:[#allocation9 + $0xfe0] sm:$0xff]
    %v2027 = vld [vmem:[#allocation9 + $0xfe8] sm:$0xff]
    %v2028 = vld [vmem:[#allocation9 + $0xff0] sm:$0xff]
    %v2029 = vld [vmem:[#allocation9 + $0xff8] sm:$0xff]
    %v2030 = vld [vmem:[#allocation11] sm:$0xff]
    %v2032 = vlaneseq
    %v2033 = vshrl.u32 %v2032, 7
    %v2034 = vsub.s32 0, %v2033
    %v2035 = vrot.slane %v2030, %v2034
    %v2036 = vlaneseq
    %v2037 = vshrl.u32 %v2036, 7
    %v2038 = vsub.s32 1, %v2037
    %v2039 = vrot.slane %v2030, %v2038
    %v2040 = vlaneseq
    %v2041 = vshrl.u32 %v2040, 7
    %v2042 = vsub.s32 2, %v2041
    %v2043 = vrot.slane %v2030, %v2042
    %v2044 = vlaneseq
    %v2045 = vshrl.u32 %v2044, 7
    %v2046 = vsub.s32 3, %v2045
    %v2047 = vrot.slane %v2030, %v2046
    %v2048 = vlaneseq
    %v2049 = vshrl.u32 %v2048, 7
    %v2050 = vsub.s32 4, %v2049
    %v2051 = vrot.slane %v2030, %v2050
    %v2052 = vlaneseq
    %v2053 = vshrl.u32 %v2052, 7
    %v2054 = vsub.s32 5, %v2053
    %v2055 = vrot.slane %v2030, %v2054
    %v2056 = vlaneseq
    %v2057 = vshrl.u32 %v2056, 7
    %v2058 = vsub.s32 6, %v2057
    %v2059 = vrot.slane %v2030, %v2058
    %v2060 = vlaneseq
    %v2061 = vshrl.u32 %v2060, 7
    %v2062 = vsub.s32 7, %v2061
    %v2063 = vrot.slane %v2030, %v2062
    %v2584 = vunpack.c.l.b16 %v1518
    %v2585 = vunpack.c.h.b16 %v1518
    %v2586 = vunpack.c.l.b16 %v1519
    %v2587 = vunpack.c.h.b16 %v1519
    %v2588 = vunpack.c.l.b16 %v1520
    %v2589 = vunpack.c.h.b16 %v1520
    %v2590 = vunpack.c.l.b16 %v1521
    %v2591 = vunpack.c.h.b16 %v1521
    %v2592 = vunpack.c.l.b16 %v1522
    %v2593 = vunpack.c.h.b16 %v1522
    %v2594 = vunpack.c.l.b16 %v1523
    %v2595 = vunpack.c.h.b16 %v1523
    %v2596 = vunpack.c.l.b16 %v1524
    %v2597 = vunpack.c.h.b16 %v1524
    %v2598 = vunpack.c.l.b16 %v1525
    %v2599 = vunpack.c.h.b16 %v1525
    %v2600 = vunpack.c.l.b16 %v1526
    %v2601 = vunpack.c.h.b16 %v1526
    %v2602 = vunpack.c.l.b16 %v1527
    %v2603 = vunpack.c.h.b16 %v1527
    %v2604 = vunpack.c.l.b16 %v1528
    %v2605 = vunpack.c.h.b16 %v1528
    %v2606 = vunpack.c.l.b16 %v1529
    %v2607 = vunpack.c.h.b16 %v1529
    %v2608 = vunpack.c.l.b16 %v1530
    %v2609 = vunpack.c.h.b16 %v1530
    %v2610 = vunpack.c.l.b16 %v1531
    %v2611 = vunpack.c.h.b16 %v1531
    %v2612 = vunpack.c.l.b16 %v1532
    %v2613 = vunpack.c.h.b16 %v1532
    %v2614 = vunpack.c.l.b16 %v1533
    %v2615 = vunpack.c.h.b16 %v1533
    %v2616 = vunpack.c.l.b16 %v1534
    %v2617 = vunpack.c.h.b16 %v1534
    %v2618 = vunpack.c.l.b16 %v1535
    %v2619 = vunpack.c.h.b16 %v1535
    %v2620 = vunpack.c.l.b16 %v1536
    %v2621 = vunpack.c.h.b16 %v1536
    %v2622 = vunpack.c.l.b16 %v1537
    %v2623 = vunpack.c.h.b16 %v1537
    %v2624 = vunpack.c.l.b16 %v1538
    %v2625 = vunpack.c.h.b16 %v1538
    %v2626 = vunpack.c.l.b16 %v1539
    %v2627 = vunpack.c.h.b16 %v1539
    %v2628 = vunpack.c.l.b16 %v1540
    %v2629 = vunpack.c.h.b16 %v1540
    %v2630 = vunpack.c.l.b16 %v1541
    %v2631 = vunpack.c.h.b16 %v1541
    %v2632 = vunpack.c.l.b16 %v1542
    %v2633 = vunpack.c.h.b16 %v1542
    %v2634 = vunpack.c.l.b16 %v1543
    %v2635 = vunpack.c.h.b16 %v1543
    %v2636 = vunpack.c.l.b16 %v1544
    %v2637 = vunpack.c.h.b16 %v1544
    %v2638 = vunpack.c.l.b16 %v1545
    %v2639 = vunpack.c.h.b16 %v1545
    %v2640 = vunpack.c.l.b16 %v1546
    %v2641 = vunpack.c.h.b16 %v1546
    %v2642 = vunpack.c.l.b16 %v1547
    %v2643 = vunpack.c.h.b16 %v1547
    %v2644 = vunpack.c.l.b16 %v1548
    %v2645 = vunpack.c.h.b16 %v1548
    %v2646 = vunpack.c.l.b16 %v1549
    %v2647 = vunpack.c.h.b16 %v1549
    %v2648 = vunpack.c.l.b16 %v1550
    %v2649 = vunpack.c.h.b16 %v1550
    %v2650 = vunpack.c.l.b16 %v1551
    %v2651 = vunpack.c.h.b16 %v1551
    %v2652 = vunpack.c.l.b16 %v1552
    %v2653 = vunpack.c.h.b16 %v1552
    %v2654 = vunpack.c.l.b16 %v1553
    %v2655 = vunpack.c.h.b16 %v1553
    %v2656 = vunpack.c.l.b16 %v1554
    %v2657 = vunpack.c.h.b16 %v1554
    %v2658 = vunpack.c.l.b16 %v1555
    %v2659 = vunpack.c.h.b16 %v1555
    %v2660 = vunpack.c.l.b16 %v1556
    %v2661 = vunpack.c.h.b16 %v1556
    %v2662 = vunpack.c.l.b16 %v1557
    %v2663 = vunpack.c.h.b16 %v1557
    %v2664 = vunpack.c.l.b16 %v1558
    %v2665 = vunpack.c.h.b16 %v1558
    %v2666 = vunpack.c.l.b16 %v1559
    %v2667 = vunpack.c.h.b16 %v1559
    %v2668 = vunpack.c.l.b16 %v1560
    %v2669 = vunpack.c.h.b16 %v1560
    %v2670 = vunpack.c.l.b16 %v1561
    %v2671 = vunpack.c.h.b16 %v1561
    %v2672 = vunpack.c.l.b16 %v1562
    %v2673 = vunpack.c.h.b16 %v1562
    %v2674 = vunpack.c.l.b16 %v1563
    %v2675 = vunpack.c.h.b16 %v1563
    %v2676 = vunpack.c.l.b16 %v1564
    %v2677 = vunpack.c.h.b16 %v1564
    %v2678 = vunpack.c.l.b16 %v1565
    %v2679 = vunpack.c.h.b16 %v1565
    %v2680 = vunpack.c.l.b16 %v1566
    %v2681 = vunpack.c.h.b16 %v1566
    %v2682 = vunpack.c.l.b16 %v1567
    %v2683 = vunpack.c.h.b16 %v1567
    %v2684 = vunpack.c.l.b16 %v1568
    %v2685 = vunpack.c.h.b16 %v1568
    %v2686 = vunpack.c.l.b16 %v1569
    %v2687 = vunpack.c.h.b16 %v1569
    %v2688 = vunpack.c.l.b16 %v1570
    %v2689 = vunpack.c.h.b16 %v1570
    %v2690 = vunpack.c.l.b16 %v1571
    %v2691 = vunpack.c.h.b16 %v1571
    %v2692 = vunpack.c.l.b16 %v1572
    %v2693 = vunpack.c.h.b16 %v1572
    %v2694 = vunpack.c.l.b16 %v1573
    %v2695 = vunpack.c.h.b16 %v1573
    %v2696 = vunpack.c.l.b16 %v1574
    %v2697 = vunpack.c.h.b16 %v1574
    %v2698 = vunpack.c.l.b16 %v1575
    %v2699 = vunpack.c.h.b16 %v1575
    %v2700 = vunpack.c.l.b16 %v1576
    %v2701 = vunpack.c.h.b16 %v1576
    %v2702 = vunpack.c.l.b16 %v1577
    %v2703 = vunpack.c.h.b16 %v1577
    %v2704 = vunpack.c.l.b16 %v1578
    %v2705 = vunpack.c.h.b16 %v1578
    %v2706 = vunpack.c.l.b16 %v1579
    %v2707 = vunpack.c.h.b16 %v1579
    %v2708 = vunpack.c.l.b16 %v1580
    %v2709 = vunpack.c.h.b16 %v1580
    %v2710 = vunpack.c.l.b16 %v1581
    %v2711 = vunpack.c.h.b16 %v1581
    %v2712 = vunpack.c.l.b16 %v1582
    %v2713 = vunpack.c.h.b16 %v1582
    %v2714 = vunpack.c.l.b16 %v1583
    %v2715 = vunpack.c.h.b16 %v1583
    %v2716 = vunpack.c.l.b16 %v1584
    %v2717 = vunpack.c.h.b16 %v1584
    %v2718 = vunpack.c.l.b16 %v1585
    %v2719 = vunpack.c.h.b16 %v1585
    %v2720 = vunpack.c.l.b16 %v1586
    %v2721 = vunpack.c.h.b16 %v1586
    %v2722 = vunpack.c.l.b16 %v1587
    %v2723 = vunpack.c.h.b16 %v1587
    %v2724 = vunpack.c.l.b16 %v1588
    %v2725 = vunpack.c.h.b16 %v1588
    %v2726 = vunpack.c.l.b16 %v1589
    %v2727 = vunpack.c.h.b16 %v1589
    %v2728 = vunpack.c.l.b16 %v1590
    %v2729 = vunpack.c.h.b16 %v1590
    %v2730 = vunpack.c.l.b16 %v1591
    %v2731 = vunpack.c.h.b16 %v1591
    %v2732 = vunpack.c.l.b16 %v1592
    %v2733 = vunpack.c.h.b16 %v1592
    %v2734 = vunpack.c.l.b16 %v1593
    %v2735 = vunpack.c.h.b16 %v1593
    %v2736 = vunpack.c.l.b16 %v1594
    %v2737 = vunpack.c.h.b16 %v1594
    %v2738 = vunpack.c.l.b16 %v1595
    %v2739 = vunpack.c.h.b16 %v1595
    %v2740 = vunpack.c.l.b16 %v1596
    %v2741 = vunpack.c.h.b16 %v1596
    %v2742 = vunpack.c.l.b16 %v1597
    %v2743 = vunpack.c.h.b16 %v1597
    %v2744 = vunpack.c.l.b16 %v1598
    %v2745 = vunpack.c.h.b16 %v1598
    %v2746 = vunpack.c.l.b16 %v1599
    %v2747 = vunpack.c.h.b16 %v1599
    %v2748 = vunpack.c.l.b16 %v1600
    %v2749 = vunpack.c.h.b16 %v1600
    %v2750 = vunpack.c.l.b16 %v1601
    %v2751 = vunpack.c.h.b16 %v1601
    %v2752 = vunpack.c.l.b16 %v1602
    %v2753 = vunpack.c.h.b16 %v1602
    %v2754 = vunpack.c.l.b16 %v1603
    %v2755 = vunpack.c.h.b16 %v1603
    %v2756 = vunpack.c.l.b16 %v1604
    %v2757 = vunpack.c.h.b16 %v1604
    %v2758 = vunpack.c.l.b16 %v1605
    %v2759 = vunpack.c.h.b16 %v1605
    %v2760 = vunpack.c.l.b16 %v1606
    %v2761 = vunpack.c.h.b16 %v1606
    %v2762 = vunpack.c.l.b16 %v1607
    %v2763 = vunpack.c.h.b16 %v1607
    %v2764 = vunpack.c.l.b16 %v1608
    %v2765 = vunpack.c.h.b16 %v1608
    %v2766 = vunpack.c.l.b16 %v1609
    %v2767 = vunpack.c.h.b16 %v1609
    %v2768 = vunpack.c.l.b16 %v1610
    %v2769 = vunpack.c.h.b16 %v1610
    %v2770 = vunpack.c.l.b16 %v1611
    %v2771 = vunpack.c.h.b16 %v1611
    %v2772 = vunpack.c.l.b16 %v1612
    %v2773 = vunpack.c.h.b16 %v1612
    %v2774 = vunpack.c.l.b16 %v1613
    %v2775 = vunpack.c.h.b16 %v1613
    %v2776 = vunpack.c.l.b16 %v1614
    %v2777 = vunpack.c.h.b16 %v1614
    %v2778 = vunpack.c.l.b16 %v1615
    %v2779 = vunpack.c.h.b16 %v1615
    %v2780 = vunpack.c.l.b16 %v1616
    %v2781 = vunpack.c.h.b16 %v1616
    %v2782 = vunpack.c.l.b16 %v1617
    %v2783 = vunpack.c.h.b16 %v1617
    %v2784 = vunpack.c.l.b16 %v1618
    %v2785 = vunpack.c.h.b16 %v1618
    %v2786 = vunpack.c.l.b16 %v1619
    %v2787 = vunpack.c.h.b16 %v1619
    %v2788 = vunpack.c.l.b16 %v1620
    %v2789 = vunpack.c.h.b16 %v1620
    %v2790 = vunpack.c.l.b16 %v1621
    %v2791 = vunpack.c.h.b16 %v1621
    %v2792 = vunpack.c.l.b16 %v1622
    %v2793 = vunpack.c.h.b16 %v1622
    %v2794 = vunpack.c.l.b16 %v1623
    %v2795 = vunpack.c.h.b16 %v1623
    %v2796 = vunpack.c.l.b16 %v1624
    %v2797 = vunpack.c.h.b16 %v1624
    %v2798 = vunpack.c.l.b16 %v1625
    %v2799 = vunpack.c.h.b16 %v1625
    %v2800 = vunpack.c.l.b16 %v1626
    %v2801 = vunpack.c.h.b16 %v1626
    %v2802 = vunpack.c.l.b16 %v1627
    %v2803 = vunpack.c.h.b16 %v1627
    %v2804 = vunpack.c.l.b16 %v1628
    %v2805 = vunpack.c.h.b16 %v1628
    %v2806 = vunpack.c.l.b16 %v1629
    %v2807 = vunpack.c.h.b16 %v1629
    %v2808 = vunpack.c.l.b16 %v1630
    %v2809 = vunpack.c.h.b16 %v1630
    %v2810 = vunpack.c.l.b16 %v1631
    %v2811 = vunpack.c.h.b16 %v1631
    %v2812 = vunpack.c.l.b16 %v1632
    %v2813 = vunpack.c.h.b16 %v1632
    %v2814 = vunpack.c.l.b16 %v1633
    %v2815 = vunpack.c.h.b16 %v1633
    %v2816 = vunpack.c.l.b16 %v1634
    %v2817 = vunpack.c.h.b16 %v1634
    %v2818 = vunpack.c.l.b16 %v1635
    %v2819 = vunpack.c.h.b16 %v1635
    %v2820 = vunpack.c.l.b16 %v1636
    %v2821 = vunpack.c.h.b16 %v1636
    %v2822 = vunpack.c.l.b16 %v1637
    %v2823 = vunpack.c.h.b16 %v1637
    %v2824 = vunpack.c.l.b16 %v1638
    %v2825 = vunpack.c.h.b16 %v1638
    %v2826 = vunpack.c.l.b16 %v1639
    %v2827 = vunpack.c.h.b16 %v1639
    %v2828 = vunpack.c.l.b16 %v1640
    %v2829 = vunpack.c.h.b16 %v1640
    %v2830 = vunpack.c.l.b16 %v1641
    %v2831 = vunpack.c.h.b16 %v1641
    %v2832 = vunpack.c.l.b16 %v1642
    %v2833 = vunpack.c.h.b16 %v1642
    %v2834 = vunpack.c.l.b16 %v1643
    %v2835 = vunpack.c.h.b16 %v1643
    %v2836 = vunpack.c.l.b16 %v1644
    %v2837 = vunpack.c.h.b16 %v1644
    %v2838 = vunpack.c.l.b16 %v1645
    %v2839 = vunpack.c.h.b16 %v1645
    %v2840 = vunpack.c.l.b16 %v1646
    %v2841 = vunpack.c.h.b16 %v1646
    %v2842 = vunpack.c.l.b16 %v1647
    %v2843 = vunpack.c.h.b16 %v1647
    %v2844 = vunpack.c.l.b16 %v1648
    %v2845 = vunpack.c.h.b16 %v1648
    %v2846 = vunpack.c.l.b16 %v1649
    %v2847 = vunpack.c.h.b16 %v1649
    %v2848 = vunpack.c.l.b16 %v1650
    %v2849 = vunpack.c.h.b16 %v1650
    %v2850 = vunpack.c.l.b16 %v1651
    %v2851 = vunpack.c.h.b16 %v1651
    %v2852 = vunpack.c.l.b16 %v1652
    %v2853 = vunpack.c.h.b16 %v1652
    %v2854 = vunpack.c.l.b16 %v1653
    %v2855 = vunpack.c.h.b16 %v1653
    %v2856 = vunpack.c.l.b16 %v1654
    %v2857 = vunpack.c.h.b16 %v1654
    %v2858 = vunpack.c.l.b16 %v1655
    %v2859 = vunpack.c.h.b16 %v1655
    %v2860 = vunpack.c.l.b16 %v1656
    %v2861 = vunpack.c.h.b16 %v1656
    %v2862 = vunpack.c.l.b16 %v1657
    %v2863 = vunpack.c.h.b16 %v1657
    %v2864 = vunpack.c.l.b16 %v1658
    %v2865 = vunpack.c.h.b16 %v1658
    %v2866 = vunpack.c.l.b16 %v1659
    %v2867 = vunpack.c.h.b16 %v1659
    %v2868 = vunpack.c.l.b16 %v1660
    %v2869 = vunpack.c.h.b16 %v1660
    %v2870 = vunpack.c.l.b16 %v1661
    %v2871 = vunpack.c.h.b16 %v1661
    %v2872 = vunpack.c.l.b16 %v1662
    %v2873 = vunpack.c.h.b16 %v1662
    %v2874 = vunpack.c.l.b16 %v1663
    %v2875 = vunpack.c.h.b16 %v1663
    %v2876 = vunpack.c.l.b16 %v1664
    %v2877 = vunpack.c.h.b16 %v1664
    %v2878 = vunpack.c.l.b16 %v1665
    %v2879 = vunpack.c.h.b16 %v1665
    %v2880 = vunpack.c.l.b16 %v1666
    %v2881 = vunpack.c.h.b16 %v1666
    %v2882 = vunpack.c.l.b16 %v1667
    %v2883 = vunpack.c.h.b16 %v1667
    %v2884 = vunpack.c.l.b16 %v1668
    %v2885 = vunpack.c.h.b16 %v1668
    %v2886 = vunpack.c.l.b16 %v1669
    %v2887 = vunpack.c.h.b16 %v1669
    %v2888 = vunpack.c.l.b16 %v1670
    %v2889 = vunpack.c.h.b16 %v1670
    %v2890 = vunpack.c.l.b16 %v1671
    %v2891 = vunpack.c.h.b16 %v1671
    %v2892 = vunpack.c.l.b16 %v1672
    %v2893 = vunpack.c.h.b16 %v1672
    %v2894 = vunpack.c.l.b16 %v1673
    %v2895 = vunpack.c.h.b16 %v1673
    %v2896 = vunpack.c.l.b16 %v1674
    %v2897 = vunpack.c.h.b16 %v1674
    %v2898 = vunpack.c.l.b16 %v1675
    %v2899 = vunpack.c.h.b16 %v1675
    %v2900 = vunpack.c.l.b16 %v1676
    %v2901 = vunpack.c.h.b16 %v1676
    %v2902 = vunpack.c.l.b16 %v1677
    %v2903 = vunpack.c.h.b16 %v1677
    %v2904 = vunpack.c.l.b16 %v1678
    %v2905 = vunpack.c.h.b16 %v1678
    %v2906 = vunpack.c.l.b16 %v1679
    %v2907 = vunpack.c.h.b16 %v1679
    %v2908 = vunpack.c.l.b16 %v1680
    %v2909 = vunpack.c.h.b16 %v1680
    %v2910 = vunpack.c.l.b16 %v1681
    %v2911 = vunpack.c.h.b16 %v1681
    %v2912 = vunpack.c.l.b16 %v1682
    %v2913 = vunpack.c.h.b16 %v1682
    %v2914 = vunpack.c.l.b16 %v1683
    %v2915 = vunpack.c.h.b16 %v1683
    %v2916 = vunpack.c.l.b16 %v1684
    %v2917 = vunpack.c.h.b16 %v1684
    %v2918 = vunpack.c.l.b16 %v1685
    %v2919 = vunpack.c.h.b16 %v1685
    %v2920 = vunpack.c.l.b16 %v1686
    %v2921 = vunpack.c.h.b16 %v1686
    %v2922 = vunpack.c.l.b16 %v1687
    %v2923 = vunpack.c.h.b16 %v1687
    %v2924 = vunpack.c.l.b16 %v1688
    %v2925 = vunpack.c.h.b16 %v1688
    %v2926 = vunpack.c.l.b16 %v1689
    %v2927 = vunpack.c.h.b16 %v1689
    %v2928 = vunpack.c.l.b16 %v1690
    %v2929 = vunpack.c.h.b16 %v1690
    %v2930 = vunpack.c.l.b16 %v1691
    %v2931 = vunpack.c.h.b16 %v1691
    %v2932 = vunpack.c.l.b16 %v1692
    %v2933 = vunpack.c.h.b16 %v1692
    %v2934 = vunpack.c.l.b16 %v1693
    %v2935 = vunpack.c.h.b16 %v1693
    %v2936 = vunpack.c.l.b16 %v1694
    %v2937 = vunpack.c.h.b16 %v1694
    %v2938 = vunpack.c.l.b16 %v1695
    %v2939 = vunpack.c.h.b16 %v1695
    %v2940 = vunpack.c.l.b16 %v1696
    %v2941 = vunpack.c.h.b16 %v1696
    %v2942 = vunpack.c.l.b16 %v1697
    %v2943 = vunpack.c.h.b16 %v1697
    %v2944 = vunpack.c.l.b16 %v1698
    %v2945 = vunpack.c.h.b16 %v1698
    %v2946 = vunpack.c.l.b16 %v1699
    %v2947 = vunpack.c.h.b16 %v1699
    %v2948 = vunpack.c.l.b16 %v1700
    %v2949 = vunpack.c.h.b16 %v1700
    %v2950 = vunpack.c.l.b16 %v1701
    %v2951 = vunpack.c.h.b16 %v1701
    %v2952 = vunpack.c.l.b16 %v1702
    %v2953 = vunpack.c.h.b16 %v1702
    %v2954 = vunpack.c.l.b16 %v1703
    %v2955 = vunpack.c.h.b16 %v1703
    %v2956 = vunpack.c.l.b16 %v1704
    %v2957 = vunpack.c.h.b16 %v1704
    %v2958 = vunpack.c.l.b16 %v1705
    %v2959 = vunpack.c.h.b16 %v1705
    %v2960 = vunpack.c.l.b16 %v1706
    %v2961 = vunpack.c.h.b16 %v1706
    %v2962 = vunpack.c.l.b16 %v1707
    %v2963 = vunpack.c.h.b16 %v1707
    %v2964 = vunpack.c.l.b16 %v1708
    %v2965 = vunpack.c.h.b16 %v1708
    %v2966 = vunpack.c.l.b16 %v1709
    %v2967 = vunpack.c.h.b16 %v1709
    %v2968 = vunpack.c.l.b16 %v1710
    %v2969 = vunpack.c.h.b16 %v1710
    %v2970 = vunpack.c.l.b16 %v1711
    %v2971 = vunpack.c.h.b16 %v1711
    %v2972 = vunpack.c.l.b16 %v1712
    %v2973 = vunpack.c.h.b16 %v1712
    %v2974 = vunpack.c.l.b16 %v1713
    %v2975 = vunpack.c.h.b16 %v1713
    %v2976 = vunpack.c.l.b16 %v1714
    %v2977 = vunpack.c.h.b16 %v1714
    %v2978 = vunpack.c.l.b16 %v1715
    %v2979 = vunpack.c.h.b16 %v1715
    %v2980 = vunpack.c.l.b16 %v1716
    %v2981 = vunpack.c.h.b16 %v1716
    %v2982 = vunpack.c.l.b16 %v1717
    %v2983 = vunpack.c.h.b16 %v1717
    %v2984 = vunpack.c.l.b16 %v1718
    %v2985 = vunpack.c.h.b16 %v1718
    %v2986 = vunpack.c.l.b16 %v1719
    %v2987 = vunpack.c.h.b16 %v1719
    %v2988 = vunpack.c.l.b16 %v1720
    %v2989 = vunpack.c.h.b16 %v1720
    %v2990 = vunpack.c.l.b16 %v1721
    %v2991 = vunpack.c.h.b16 %v1721
    %v2992 = vunpack.c.l.b16 %v1722
    %v2993 = vunpack.c.h.b16 %v1722
    %v2994 = vunpack.c.l.b16 %v1723
    %v2995 = vunpack.c.h.b16 %v1723
    %v2996 = vunpack.c.l.b16 %v1724
    %v2997 = vunpack.c.h.b16 %v1724
    %v2998 = vunpack.c.l.b16 %v1725
    %v2999 = vunpack.c.h.b16 %v1725
    %v3000 = vunpack.c.l.b16 %v1726
    %v3001 = vunpack.c.h.b16 %v1726
    %v3002 = vunpack.c.l.b16 %v1727
    %v3003 = vunpack.c.h.b16 %v1727
    %v3004 = vunpack.c.l.b16 %v1728
    %v3005 = vunpack.c.h.b16 %v1728
    %v3006 = vunpack.c.l.b16 %v1729
    %v3007 = vunpack.c.h.b16 %v1729
    %v3008 = vunpack.c.l.b16 %v1730
    %v3009 = vunpack.c.h.b16 %v1730
    %v3010 = vunpack.c.l.b16 %v1731
    %v3011 = vunpack.c.h.b16 %v1731
    %v3012 = vunpack.c.l.b16 %v1732
    %v3013 = vunpack.c.h.b16 %v1732
    %v3014 = vunpack.c.l.b16 %v1733
    %v3015 = vunpack.c.h.b16 %v1733
    %v3016 = vunpack.c.l.b16 %v1734
    %v3017 = vunpack.c.h.b16 %v1734
    %v3018 = vunpack.c.l.b16 %v1735
    %v3019 = vunpack.c.h.b16 %v1735
    %v3020 = vunpack.c.l.b16 %v1736
    %v3021 = vunpack.c.h.b16 %v1736
    %v3022 = vunpack.c.l.b16 %v1737
    %v3023 = vunpack.c.h.b16 %v1737
    %v3024 = vunpack.c.l.b16 %v1738
    %v3025 = vunpack.c.h.b16 %v1738
    %v3026 = vunpack.c.l.b16 %v1739
    %v3027 = vunpack.c.h.b16 %v1739
    %v3028 = vunpack.c.l.b16 %v1740
    %v3029 = vunpack.c.h.b16 %v1740
    %v3030 = vunpack.c.l.b16 %v1741
    %v3031 = vunpack.c.h.b16 %v1741
    %v3032 = vunpack.c.l.b16 %v1742
    %v3033 = vunpack.c.h.b16 %v1742
    %v3034 = vunpack.c.l.b16 %v1743
    %v3035 = vunpack.c.h.b16 %v1743
    %v3036 = vunpack.c.l.b16 %v1744
    %v3037 = vunpack.c.h.b16 %v1744
    %v3038 = vunpack.c.l.b16 %v1745
    %v3039 = vunpack.c.h.b16 %v1745
    %v3040 = vunpack.c.l.b16 %v1746
    %v3041 = vunpack.c.h.b16 %v1746
    %v3042 = vunpack.c.l.b16 %v1747
    %v3043 = vunpack.c.h.b16 %v1747
    %v3044 = vunpack.c.l.b16 %v1748
    %v3045 = vunpack.c.h.b16 %v1748
    %v3046 = vunpack.c.l.b16 %v1749
    %v3047 = vunpack.c.h.b16 %v1749
    %v3048 = vunpack.c.l.b16 %v1750
    %v3049 = vunpack.c.h.b16 %v1750
    %v3050 = vunpack.c.l.b16 %v1751
    %v3051 = vunpack.c.h.b16 %v1751
    %v3052 = vunpack.c.l.b16 %v1752
    %v3053 = vunpack.c.h.b16 %v1752
    %v3054 = vunpack.c.l.b16 %v1753
    %v3055 = vunpack.c.h.b16 %v1753
    %v3056 = vunpack.c.l.b16 %v1754
    %v3057 = vunpack.c.h.b16 %v1754
    %v3058 = vunpack.c.l.b16 %v1755
    %v3059 = vunpack.c.h.b16 %v1755
    %v3060 = vunpack.c.l.b16 %v1756
    %v3061 = vunpack.c.h.b16 %v1756
    %v3062 = vunpack.c.l.b16 %v1757
    %v3063 = vunpack.c.h.b16 %v1757
    %v3064 = vunpack.c.l.b16 %v1758
    %v3065 = vunpack.c.h.b16 %v1758
    %v3066 = vunpack.c.l.b16 %v1759
    %v3067 = vunpack.c.h.b16 %v1759
    %v3068 = vunpack.c.l.b16 %v1760
    %v3069 = vunpack.c.h.b16 %v1760
    %v3070 = vunpack.c.l.b16 %v1761
    %v3071 = vunpack.c.h.b16 %v1761
    %v3072 = vunpack.c.l.b16 %v1762
    %v3073 = vunpack.c.h.b16 %v1762
    %v3074 = vunpack.c.l.b16 %v1763
    %v3075 = vunpack.c.h.b16 %v1763
    %v3076 = vunpack.c.l.b16 %v1764
    %v3077 = vunpack.c.h.b16 %v1764
    %v3078 = vunpack.c.l.b16 %v1765
    %v3079 = vunpack.c.h.b16 %v1765
    %v3080 = vunpack.c.l.b16 %v1766
    %v3081 = vunpack.c.h.b16 %v1766
    %v3082 = vunpack.c.l.b16 %v1767
    %v3083 = vunpack.c.h.b16 %v1767
    %v3084 = vunpack.c.l.b16 %v1768
    %v3085 = vunpack.c.h.b16 %v1768
    %v3086 = vunpack.c.l.b16 %v1769
    %v3087 = vunpack.c.h.b16 %v1769
    %v3088 = vunpack.c.l.b16 %v1770
    %v3089 = vunpack.c.h.b16 %v1770
    %v3090 = vunpack.c.l.b16 %v1771
    %v3091 = vunpack.c.h.b16 %v1771
    %v3092 = vunpack.c.l.b16 %v1772
    %v3093 = vunpack.c.h.b16 %v1772
    %v3094 = vunpack.c.l.b16 %v1773
    %v3095 = vunpack.c.h.b16 %v1773
    %v3096 = vunpack.c.l.b16 %v1774
    %v3097 = vunpack.c.h.b16 %v1774
    %v3098 = vunpack.c.l.b16 %v1775
    %v3099 = vunpack.c.h.b16 %v1775
    %v3100 = vunpack.c.l.b16 %v1776
    %v3101 = vunpack.c.h.b16 %v1776
    %v3102 = vunpack.c.l.b16 %v1777
    %v3103 = vunpack.c.h.b16 %v1777
    %v3104 = vunpack.c.l.b16 %v1778
    %v3105 = vunpack.c.h.b16 %v1778
    %v3106 = vunpack.c.l.b16 %v1779
    %v3107 = vunpack.c.h.b16 %v1779
    %v3108 = vunpack.c.l.b16 %v1780
    %v3109 = vunpack.c.h.b16 %v1780
    %v3110 = vunpack.c.l.b16 %v1781
    %v3111 = vunpack.c.h.b16 %v1781
    %v3112 = vunpack.c.l.b16 %v1782
    %v3113 = vunpack.c.h.b16 %v1782
    %v3114 = vunpack.c.l.b16 %v1783
    %v3115 = vunpack.c.h.b16 %v1783
    %v3116 = vunpack.c.l.b16 %v1784
    %v3117 = vunpack.c.h.b16 %v1784
    %v3118 = vunpack.c.l.b16 %v1785
    %v3119 = vunpack.c.h.b16 %v1785
    %v3120 = vunpack.c.l.b16 %v1786
    %v3121 = vunpack.c.h.b16 %v1786
    %v3122 = vunpack.c.l.b16 %v1787
    %v3123 = vunpack.c.h.b16 %v1787
    %v3124 = vunpack.c.l.b16 %v1788
    %v3125 = vunpack.c.h.b16 %v1788
    %v3126 = vunpack.c.l.b16 %v1789
    %v3127 = vunpack.c.h.b16 %v1789
    %v3128 = vunpack.c.l.b16 %v1790
    %v3129 = vunpack.c.h.b16 %v1790
    %v3130 = vunpack.c.l.b16 %v1791
    %v3131 = vunpack.c.h.b16 %v1791
    %v3132 = vunpack.c.l.b16 %v1792
    %v3133 = vunpack.c.h.b16 %v1792
    %v3134 = vunpack.c.l.b16 %v1793
    %v3135 = vunpack.c.h.b16 %v1793
    %v3136 = vunpack.c.l.b16 %v1794
    %v3137 = vunpack.c.h.b16 %v1794
    %v3138 = vunpack.c.l.b16 %v1795
    %v3139 = vunpack.c.h.b16 %v1795
    %v3140 = vunpack.c.l.b16 %v1796
    %v3141 = vunpack.c.h.b16 %v1796
    %v3142 = vunpack.c.l.b16 %v1797
    %v3143 = vunpack.c.h.b16 %v1797
    %v3144 = vunpack.c.l.b16 %v1798
    %v3145 = vunpack.c.h.b16 %v1798
    %v3146 = vunpack.c.l.b16 %v1799
    %v3147 = vunpack.c.h.b16 %v1799
    %v3148 = vunpack.c.l.b16 %v1800
    %v3149 = vunpack.c.h.b16 %v1800
    %v3150 = vunpack.c.l.b16 %v1801
    %v3151 = vunpack.c.h.b16 %v1801
    %v3152 = vunpack.c.l.b16 %v1802
    %v3153 = vunpack.c.h.b16 %v1802
    %v3154 = vunpack.c.l.b16 %v1803
    %v3155 = vunpack.c.h.b16 %v1803
    %v3156 = vunpack.c.l.b16 %v1804
    %v3157 = vunpack.c.h.b16 %v1804
    %v3158 = vunpack.c.l.b16 %v1805
    %v3159 = vunpack.c.h.b16 %v1805
    %v3160 = vunpack.c.l.b16 %v1806
    %v3161 = vunpack.c.h.b16 %v1806
    %v3162 = vunpack.c.l.b16 %v1807
    %v3163 = vunpack.c.h.b16 %v1807
    %v3164 = vunpack.c.l.b16 %v1808
    %v3165 = vunpack.c.h.b16 %v1808
    %v3166 = vunpack.c.l.b16 %v1809
    %v3167 = vunpack.c.h.b16 %v1809
    %v3168 = vunpack.c.l.b16 %v1810
    %v3169 = vunpack.c.h.b16 %v1810
    %v3170 = vunpack.c.l.b16 %v1811
    %v3171 = vunpack.c.h.b16 %v1811
    %v3172 = vunpack.c.l.b16 %v1812
    %v3173 = vunpack.c.h.b16 %v1812
    %v3174 = vunpack.c.l.b16 %v1813
    %v3175 = vunpack.c.h.b16 %v1813
    %v3176 = vunpack.c.l.b16 %v1814
    %v3177 = vunpack.c.h.b16 %v1814
    %v3178 = vunpack.c.l.b16 %v1815
    %v3179 = vunpack.c.h.b16 %v1815
    %v3180 = vunpack.c.l.b16 %v1816
    %v3181 = vunpack.c.h.b16 %v1816
    %v3182 = vunpack.c.l.b16 %v1817
    %v3183 = vunpack.c.h.b16 %v1817
    %v3184 = vunpack.c.l.b16 %v1818
    %v3185 = vunpack.c.h.b16 %v1818
    %v3186 = vunpack.c.l.b16 %v1819
    %v3187 = vunpack.c.h.b16 %v1819
    %v3188 = vunpack.c.l.b16 %v1820
    %v3189 = vunpack.c.h.b16 %v1820
    %v3190 = vunpack.c.l.b16 %v1821
    %v3191 = vunpack.c.h.b16 %v1821
    %v3192 = vunpack.c.l.b16 %v1822
    %v3193 = vunpack.c.h.b16 %v1822
    %v3194 = vunpack.c.l.b16 %v1823
    %v3195 = vunpack.c.h.b16 %v1823
    %v3196 = vunpack.c.l.b16 %v1824
    %v3197 = vunpack.c.h.b16 %v1824
    %v3198 = vunpack.c.l.b16 %v1825
    %v3199 = vunpack.c.h.b16 %v1825
    %v3200 = vunpack.c.l.b16 %v1826
    %v3201 = vunpack.c.h.b16 %v1826
    %v3202 = vunpack.c.l.b16 %v1827
    %v3203 = vunpack.c.h.b16 %v1827
    %v3204 = vunpack.c.l.b16 %v1828
    %v3205 = vunpack.c.h.b16 %v1828
    %v3206 = vunpack.c.l.b16 %v1829
    %v3207 = vunpack.c.h.b16 %v1829
    %v3208 = vunpack.c.l.b16 %v1830
    %v3209 = vunpack.c.h.b16 %v1830
    %v3210 = vunpack.c.l.b16 %v1831
    %v3211 = vunpack.c.h.b16 %v1831
    %v3212 = vunpack.c.l.b16 %v1832
    %v3213 = vunpack.c.h.b16 %v1832
    %v3214 = vunpack.c.l.b16 %v1833
    %v3215 = vunpack.c.h.b16 %v1833
    %v3216 = vunpack.c.l.b16 %v1834
    %v3217 = vunpack.c.h.b16 %v1834
    %v3218 = vunpack.c.l.b16 %v1835
    %v3219 = vunpack.c.h.b16 %v1835
    %v3220 = vunpack.c.l.b16 %v1836
    %v3221 = vunpack.c.h.b16 %v1836
    %v3222 = vunpack.c.l.b16 %v1837
    %v3223 = vunpack.c.h.b16 %v1837
    %v3224 = vunpack.c.l.b16 %v1838
    %v3225 = vunpack.c.h.b16 %v1838
    %v3226 = vunpack.c.l.b16 %v1839
    %v3227 = vunpack.c.h.b16 %v1839
    %v3228 = vunpack.c.l.b16 %v1840
    %v3229 = vunpack.c.h.b16 %v1840
    %v3230 = vunpack.c.l.b16 %v1841
    %v3231 = vunpack.c.h.b16 %v1841
    %v3232 = vunpack.c.l.b16 %v1842
    %v3233 = vunpack.c.h.b16 %v1842
    %v3234 = vunpack.c.l.b16 %v1843
    %v3235 = vunpack.c.h.b16 %v1843
    %v3236 = vunpack.c.l.b16 %v1844
    %v3237 = vunpack.c.h.b16 %v1844
    %v3238 = vunpack.c.l.b16 %v1845
    %v3239 = vunpack.c.h.b16 %v1845
    %v3240 = vunpack.c.l.b16 %v1846
    %v3241 = vunpack.c.h.b16 %v1846
    %v3242 = vunpack.c.l.b16 %v1847
    %v3243 = vunpack.c.h.b16 %v1847
    %v3244 = vunpack.c.l.b16 %v1848
    %v3245 = vunpack.c.h.b16 %v1848
    %v3246 = vunpack.c.l.b16 %v1849
    %v3247 = vunpack.c.h.b16 %v1849
    %v3248 = vunpack.c.l.b16 %v1850
    %v3249 = vunpack.c.h.b16 %v1850
    %v3250 = vunpack.c.l.b16 %v1851
    %v3251 = vunpack.c.h.b16 %v1851
    %v3252 = vunpack.c.l.b16 %v1852
    %v3253 = vunpack.c.h.b16 %v1852
    %v3254 = vunpack.c.l.b16 %v1853
    %v3255 = vunpack.c.h.b16 %v1853
    %v3256 = vunpack.c.l.b16 %v1854
    %v3257 = vunpack.c.h.b16 %v1854
    %v3258 = vunpack.c.l.b16 %v1855
    %v3259 = vunpack.c.h.b16 %v1855
    %v3260 = vunpack.c.l.b16 %v1856
    %v3261 = vunpack.c.h.b16 %v1856
    %v3262 = vunpack.c.l.b16 %v1857
    %v3263 = vunpack.c.h.b16 %v1857
    %v3264 = vunpack.c.l.b16 %v1858
    %v3265 = vunpack.c.h.b16 %v1858
    %v3266 = vunpack.c.l.b16 %v1859
    %v3267 = vunpack.c.h.b16 %v1859
    %v3268 = vunpack.c.l.b16 %v1860
    %v3269 = vunpack.c.h.b16 %v1860
    %v3270 = vunpack.c.l.b16 %v1861
    %v3271 = vunpack.c.h.b16 %v1861
    %v3272 = vunpack.c.l.b16 %v1862
    %v3273 = vunpack.c.h.b16 %v1862
    %v3274 = vunpack.c.l.b16 %v1863
    %v3275 = vunpack.c.h.b16 %v1863
    %v3276 = vunpack.c.l.b16 %v1864
    %v3277 = vunpack.c.h.b16 %v1864
    %v3278 = vunpack.c.l.b16 %v1865
    %v3279 = vunpack.c.h.b16 %v1865
    %v3280 = vunpack.c.l.b16 %v1866
    %v3281 = vunpack.c.h.b16 %v1866
    %v3282 = vunpack.c.l.b16 %v1867
    %v3283 = vunpack.c.h.b16 %v1867
    %v3284 = vunpack.c.l.b16 %v1868
    %v3285 = vunpack.c.h.b16 %v1868
    %v3286 = vunpack.c.l.b16 %v1869
    %v3287 = vunpack.c.h.b16 %v1869
    %v3288 = vunpack.c.l.b16 %v1870
    %v3289 = vunpack.c.h.b16 %v1870
    %v3290 = vunpack.c.l.b16 %v1871
    %v3291 = vunpack.c.h.b16 %v1871
    %v3292 = vunpack.c.l.b16 %v1872
    %v3293 = vunpack.c.h.b16 %v1872
    %v3294 = vunpack.c.l.b16 %v1873
    %v3295 = vunpack.c.h.b16 %v1873
    %v3296 = vunpack.c.l.b16 %v1874
    %v3297 = vunpack.c.h.b16 %v1874
    %v3298 = vunpack.c.l.b16 %v1875
    %v3299 = vunpack.c.h.b16 %v1875
    %v3300 = vunpack.c.l.b16 %v1876
    %v3301 = vunpack.c.h.b16 %v1876
    %v3302 = vunpack.c.l.b16 %v1877
    %v3303 = vunpack.c.h.b16 %v1877
    %v3304 = vunpack.c.l.b16 %v1878
    %v3305 = vunpack.c.h.b16 %v1878
    %v3306 = vunpack.c.l.b16 %v1879
    %v3307 = vunpack.c.h.b16 %v1879
    %v3308 = vunpack.c.l.b16 %v1880
    %v3309 = vunpack.c.h.b16 %v1880
    %v3310 = vunpack.c.l.b16 %v1881
    %v3311 = vunpack.c.h.b16 %v1881
    %v3312 = vunpack.c.l.b16 %v1882
    %v3313 = vunpack.c.h.b16 %v1882
    %v3314 = vunpack.c.l.b16 %v1883
    %v3315 = vunpack.c.h.b16 %v1883
    %v3316 = vunpack.c.l.b16 %v1884
    %v3317 = vunpack.c.h.b16 %v1884
    %v3318 = vunpack.c.l.b16 %v1885
    %v3319 = vunpack.c.h.b16 %v1885
    %v3320 = vunpack.c.l.b16 %v1886
    %v3321 = vunpack.c.h.b16 %v1886
    %v3322 = vunpack.c.l.b16 %v1887
    %v3323 = vunpack.c.h.b16 %v1887
    %v3324 = vunpack.c.l.b16 %v1888
    %v3325 = vunpack.c.h.b16 %v1888
    %v3326 = vunpack.c.l.b16 %v1889
    %v3327 = vunpack.c.h.b16 %v1889
    %v3328 = vunpack.c.l.b16 %v1890
    %v3329 = vunpack.c.h.b16 %v1890
    %v3330 = vunpack.c.l.b16 %v1891
    %v3331 = vunpack.c.h.b16 %v1891
    %v3332 = vunpack.c.l.b16 %v1892
    %v3333 = vunpack.c.h.b16 %v1892
    %v3334 = vunpack.c.l.b16 %v1893
    %v3335 = vunpack.c.h.b16 %v1893
    %v3336 = vunpack.c.l.b16 %v1894
    %v3337 = vunpack.c.h.b16 %v1894
    %v3338 = vunpack.c.l.b16 %v1895
    %v3339 = vunpack.c.h.b16 %v1895
    %v3340 = vunpack.c.l.b16 %v1896
    %v3341 = vunpack.c.h.b16 %v1896
    %v3342 = vunpack.c.l.b16 %v1897
    %v3343 = vunpack.c.h.b16 %v1897
    %v3344 = vunpack.c.l.b16 %v1898
    %v3345 = vunpack.c.h.b16 %v1898
    %v3346 = vunpack.c.l.b16 %v1899
    %v3347 = vunpack.c.h.b16 %v1899
    %v3348 = vunpack.c.l.b16 %v1900
    %v3349 = vunpack.c.h.b16 %v1900
    %v3350 = vunpack.c.l.b16 %v1901
    %v3351 = vunpack.c.h.b16 %v1901
    %v3352 = vunpack.c.l.b16 %v1902
    %v3353 = vunpack.c.h.b16 %v1902
    %v3354 = vunpack.c.l.b16 %v1903
    %v3355 = vunpack.c.h.b16 %v1903
    %v3356 = vunpack.c.l.b16 %v1904
    %v3357 = vunpack.c.h.b16 %v1904
    %v3358 = vunpack.c.l.b16 %v1905
    %v3359 = vunpack.c.h.b16 %v1905
    %v3360 = vunpack.c.l.b16 %v1906
    %v3361 = vunpack.c.h.b16 %v1906
    %v3362 = vunpack.c.l.b16 %v1907
    %v3363 = vunpack.c.h.b16 %v1907
    %v3364 = vunpack.c.l.b16 %v1908
    %v3365 = vunpack.c.h.b16 %v1908
    %v3366 = vunpack.c.l.b16 %v1909
    %v3367 = vunpack.c.h.b16 %v1909
    %v3368 = vunpack.c.l.b16 %v1910
    %v3369 = vunpack.c.h.b16 %v1910
    %v3370 = vunpack.c.l.b16 %v1911
    %v3371 = vunpack.c.h.b16 %v1911
    %v3372 = vunpack.c.l.b16 %v1912
    %v3373 = vunpack.c.h.b16 %v1912
    %v3374 = vunpack.c.l.b16 %v1913
    %v3375 = vunpack.c.h.b16 %v1913
    %v3376 = vunpack.c.l.b16 %v1914
    %v3377 = vunpack.c.h.b16 %v1914
    %v3378 = vunpack.c.l.b16 %v1915
    %v3379 = vunpack.c.h.b16 %v1915
    %v3380 = vunpack.c.l.b16 %v1916
    %v3381 = vunpack.c.h.b16 %v1916
    %v3382 = vunpack.c.l.b16 %v1917
    %v3383 = vunpack.c.h.b16 %v1917
    %v3384 = vunpack.c.l.b16 %v1918
    %v3385 = vunpack.c.h.b16 %v1918
    %v3386 = vunpack.c.l.b16 %v1919
    %v3387 = vunpack.c.h.b16 %v1919
    %v3388 = vunpack.c.l.b16 %v1920
    %v3389 = vunpack.c.h.b16 %v1920
    %v3390 = vunpack.c.l.b16 %v1921
    %v3391 = vunpack.c.h.b16 %v1921
    %v3392 = vunpack.c.l.b16 %v1922
    %v3393 = vunpack.c.h.b16 %v1922
    %v3394 = vunpack.c.l.b16 %v1923
    %v3395 = vunpack.c.h.b16 %v1923
    %v3396 = vunpack.c.l.b16 %v1924
    %v3397 = vunpack.c.h.b16 %v1924
    %v3398 = vunpack.c.l.b16 %v1925
    %v3399 = vunpack.c.h.b16 %v1925
    %v3400 = vunpack.c.l.b16 %v1926
    %v3401 = vunpack.c.h.b16 %v1926
    %v3402 = vunpack.c.l.b16 %v1927
    %v3403 = vunpack.c.h.b16 %v1927
    %v3404 = vunpack.c.l.b16 %v1928
    %v3405 = vunpack.c.h.b16 %v1928
    %v3406 = vunpack.c.l.b16 %v1929
    %v3407 = vunpack.c.h.b16 %v1929
    %v3408 = vunpack.c.l.b16 %v1930
    %v3409 = vunpack.c.h.b16 %v1930
    %v3410 = vunpack.c.l.b16 %v1931
    %v3411 = vunpack.c.h.b16 %v1931
    %v3412 = vunpack.c.l.b16 %v1932
    %v3413 = vunpack.c.h.b16 %v1932
    %v3414 = vunpack.c.l.b16 %v1933
    %v3415 = vunpack.c.h.b16 %v1933
    %v3416 = vunpack.c.l.b16 %v1934
    %v3417 = vunpack.c.h.b16 %v1934
    %v3418 = vunpack.c.l.b16 %v1935
    %v3419 = vunpack.c.h.b16 %v1935
    %v3420 = vunpack.c.l.b16 %v1936
    %v3421 = vunpack.c.h.b16 %v1936
    %v3422 = vunpack.c.l.b16 %v1937
    %v3423 = vunpack.c.h.b16 %v1937
    %v3424 = vunpack.c.l.b16 %v1938
    %v3425 = vunpack.c.h.b16 %v1938
    %v3426 = vunpack.c.l.b16 %v1939
    %v3427 = vunpack.c.h.b16 %v1939
    %v3428 = vunpack.c.l.b16 %v1940
    %v3429 = vunpack.c.h.b16 %v1940
    %v3430 = vunpack.c.l.b16 %v1941
    %v3431 = vunpack.c.h.b16 %v1941
    %v3432 = vunpack.c.l.b16 %v1942
    %v3433 = vunpack.c.h.b16 %v1942
    %v3434 = vunpack.c.l.b16 %v1943
    %v3435 = vunpack.c.h.b16 %v1943
    %v3436 = vunpack.c.l.b16 %v1944
    %v3437 = vunpack.c.h.b16 %v1944
    %v3438 = vunpack.c.l.b16 %v1945
    %v3439 = vunpack.c.h.b16 %v1945
    %v3440 = vunpack.c.l.b16 %v1946
    %v3441 = vunpack.c.h.b16 %v1946
    %v3442 = vunpack.c.l.b16 %v1947
    %v3443 = vunpack.c.h.b16 %v1947
    %v3444 = vunpack.c.l.b16 %v1948
    %v3445 = vunpack.c.h.b16 %v1948
    %v3446 = vunpack.c.l.b16 %v1949
    %v3447 = vunpack.c.h.b16 %v1949
    %v3448 = vunpack.c.l.b16 %v1950
    %v3449 = vunpack.c.h.b16 %v1950
    %v3450 = vunpack.c.l.b16 %v1951
    %v3451 = vunpack.c.h.b16 %v1951
    %v3452 = vunpack.c.l.b16 %v1952
    %v3453 = vunpack.c.h.b16 %v1952
    %v3454 = vunpack.c.l.b16 %v1953
    %v3455 = vunpack.c.h.b16 %v1953
    %v3456 = vunpack.c.l.b16 %v1954
    %v3457 = vunpack.c.h.b16 %v1954
    %v3458 = vunpack.c.l.b16 %v1955
    %v3459 = vunpack.c.h.b16 %v1955
    %v3460 = vunpack.c.l.b16 %v1956
    %v3461 = vunpack.c.h.b16 %v1956
    %v3462 = vunpack.c.l.b16 %v1957
    %v3463 = vunpack.c.h.b16 %v1957
    %v3464 = vunpack.c.l.b16 %v1958
    %v3465 = vunpack.c.h.b16 %v1958
    %v3466 = vunpack.c.l.b16 %v1959
    %v3467 = vunpack.c.h.b16 %v1959
    %v3468 = vunpack.c.l.b16 %v1960
    %v3469 = vunpack.c.h.b16 %v1960
    %v3470 = vunpack.c.l.b16 %v1961
    %v3471 = vunpack.c.h.b16 %v1961
    %v3472 = vunpack.c.l.b16 %v1962
    %v3473 = vunpack.c.h.b16 %v1962
    %v3474 = vunpack.c.l.b16 %v1963
    %v3475 = vunpack.c.h.b16 %v1963
    %v3476 = vunpack.c.l.b16 %v1964
    %v3477 = vunpack.c.h.b16 %v1964
    %v3478 = vunpack.c.l.b16 %v1965
    %v3479 = vunpack.c.h.b16 %v1965
    %v3480 = vunpack.c.l.b16 %v1966
    %v3481 = vunpack.c.h.b16 %v1966
    %v3482 = vunpack.c.l.b16 %v1967
    %v3483 = vunpack.c.h.b16 %v1967
    %v3484 = vunpack.c.l.b16 %v1968
    %v3485 = vunpack.c.h.b16 %v1968
    %v3486 = vunpack.c.l.b16 %v1969
    %v3487 = vunpack.c.h.b16 %v1969
    %v3488 = vunpack.c.l.b16 %v1970
    %v3489 = vunpack.c.h.b16 %v1970
    %v3490 = vunpack.c.l.b16 %v1971
    %v3491 = vunpack.c.h.b16 %v1971
    %v3492 = vunpack.c.l.b16 %v1972
    %v3493 = vunpack.c.h.b16 %v1972
    %v3494 = vunpack.c.l.b16 %v1973
    %v3495 = vunpack.c.h.b16 %v1973
    %v3496 = vunpack.c.l.b16 %v1974
    %v3497 = vunpack.c.h.b16 %v1974
    %v3498 = vunpack.c.l.b16 %v1975
    %v3499 = vunpack.c.h.b16 %v1975
    %v3500 = vunpack.c.l.b16 %v1976
    %v3501 = vunpack.c.h.b16 %v1976
    %v3502 = vunpack.c.l.b16 %v1977
    %v3503 = vunpack.c.h.b16 %v1977
    %v3504 = vunpack.c.l.b16 %v1978
    %v3505 = vunpack.c.h.b16 %v1978
    %v3506 = vunpack.c.l.b16 %v1979
    %v3507 = vunpack.c.h.b16 %v1979
    %v3508 = vunpack.c.l.b16 %v1980
    %v3509 = vunpack.c.h.b16 %v1980
    %v3510 = vunpack.c.l.b16 %v1981
    %v3511 = vunpack.c.h.b16 %v1981
    %v3512 = vunpack.c.l.b16 %v1982
    %v3513 = vunpack.c.h.b16 %v1982
    %v3514 = vunpack.c.l.b16 %v1983
    %v3515 = vunpack.c.h.b16 %v1983
    %v3516 = vunpack.c.l.b16 %v1984
    %v3517 = vunpack.c.h.b16 %v1984
    %v3518 = vunpack.c.l.b16 %v1985
    %v3519 = vunpack.c.h.b16 %v1985
    %v3520 = vunpack.c.l.b16 %v1986
    %v3521 = vunpack.c.h.b16 %v1986
    %v3522 = vunpack.c.l.b16 %v1987
    %v3523 = vunpack.c.h.b16 %v1987
    %v3524 = vunpack.c.l.b16 %v1988
    %v3525 = vunpack.c.h.b16 %v1988
    %v3526 = vunpack.c.l.b16 %v1989
    %v3527 = vunpack.c.h.b16 %v1989
    %v3528 = vunpack.c.l.b16 %v1990
    %v3529 = vunpack.c.h.b16 %v1990
    %v3530 = vunpack.c.l.b16 %v1991
    %v3531 = vunpack.c.h.b16 %v1991
    %v3532 = vunpack.c.l.b16 %v1992
    %v3533 = vunpack.c.h.b16 %v1992
    %v3534 = vunpack.c.l.b16 %v1993
    %v3535 = vunpack.c.h.b16 %v1993
    %v3536 = vunpack.c.l.b16 %v1994
    %v3537 = vunpack.c.h.b16 %v1994
    %v3538 = vunpack.c.l.b16 %v1995
    %v3539 = vunpack.c.h.b16 %v1995
    %v3540 = vunpack.c.l.b16 %v1996
    %v3541 = vunpack.c.h.b16 %v1996
    %v3542 = vunpack.c.l.b16 %v1997
    %v3543 = vunpack.c.h.b16 %v1997
    %v3544 = vunpack.c.l.b16 %v1998
    %v3545 = vunpack.c.h.b16 %v1998
    %v3546 = vunpack.c.l.b16 %v1999
    %v3547 = vunpack.c.h.b16 %v1999
    %v3548 = vunpack.c.l.b16 %v2000
    %v3549 = vunpack.c.h.b16 %v2000
    %v3550 = vunpack.c.l.b16 %v2001
    %v3551 = vunpack.c.h.b16 %v2001
    %v3552 = vunpack.c.l.b16 %v2002
    %v3553 = vunpack.c.h.b16 %v2002
    %v3554 = vunpack.c.l.b16 %v2003
    %v3555 = vunpack.c.h.b16 %v2003
    %v3556 = vunpack.c.l.b16 %v2004
    %v3557 = vunpack.c.h.b16 %v2004
    %v3558 = vunpack.c.l.b16 %v2005
    %v3559 = vunpack.c.h.b16 %v2005
    %v3560 = vunpack.c.l.b16 %v2006
    %v3561 = vunpack.c.h.b16 %v2006
    %v3562 = vunpack.c.l.b16 %v2007
    %v3563 = vunpack.c.h.b16 %v2007
    %v3564 = vunpack.c.l.b16 %v2008
    %v3565 = vunpack.c.h.b16 %v2008
    %v3566 = vunpack.c.l.b16 %v2009
    %v3567 = vunpack.c.h.b16 %v2009
    %v3568 = vunpack.c.l.b16 %v2010
    %v3569 = vunpack.c.h.b16 %v2010
    %v3570 = vunpack.c.l.b16 %v2011
    %v3571 = vunpack.c.h.b16 %v2011
    %v3572 = vunpack.c.l.b16 %v2012
    %v3573 = vunpack.c.h.b16 %v2012
    %v3574 = vunpack.c.l.b16 %v2013
    %v3575 = vunpack.c.h.b16 %v2013
    %v3576 = vunpack.c.l.b16 %v2014
    %v3577 = vunpack.c.h.b16 %v2014
    %v3578 = vunpack.c.l.b16 %v2015
    %v3579 = vunpack.c.h.b16 %v2015
    %v3580 = vunpack.c.l.b16 %v2016
    %v3581 = vunpack.c.h.b16 %v2016
    %v3582 = vunpack.c.l.b16 %v2017
    %v3583 = vunpack.c.h.b16 %v2017
    %v3584 = vunpack.c.l.b16 %v2018
    %v3585 = vunpack.c.h.b16 %v2018
    %v3586 = vunpack.c.l.b16 %v2019
    %v3587 = vunpack.c.h.b16 %v2019
    %v3588 = vunpack.c.l.b16 %v2020
    %v3589 = vunpack.c.h.b16 %v2020
    %v3590 = vunpack.c.l.b16 %v2021
    %v3591 = vunpack.c.h.b16 %v2021
    %v3592 = vunpack.c.l.b16 %v2022
    %v3593 = vunpack.c.h.b16 %v2022
    %v3594 = vunpack.c.l.b16 %v2023
    %v3595 = vunpack.c.h.b16 %v2023
    %v3596 = vunpack.c.l.b16 %v2024
    %v3597 = vunpack.c.h.b16 %v2024
    %v3598 = vunpack.c.l.b16 %v2025
    %v3599 = vunpack.c.h.b16 %v2025
    %v3600 = vunpack.c.l.b16 %v2026
    %v3601 = vunpack.c.h.b16 %v2026
    %v3602 = vunpack.c.l.b16 %v2027
    %v3603 = vunpack.c.h.b16 %v2027
    %v3604 = vunpack.c.l.b16 %v2028
    %v3605 = vunpack.c.h.b16 %v2028
    %v3606 = vunpack.c.l.b16 %v2029
    %v3607 = vunpack.c.h.b16 %v2029
    %v3608 = vpack.c.b16 %v2592, %v2584
    %v3609 = vpack.c.b16 %v2593, %v2585
    %v3610 = vpack.c.b16 %v2594, %v2586
    %v3611 = vpack.c.b16 %v2595, %v2587
    %v3612 = vpack.c.b16 %v2596, %v2588
    %v3613 = vpack.c.b16 %v2597, %v2589
    %v3614 = vpack.c.b16 %v2598, %v2590
    %v3615 = vpack.c.b16 %v2599, %v2591
    %v3616 = vpack.c.b16 %v2608, %v2600
    %v3617 = vpack.c.b16 %v2609, %v2601
    %v3618 = vpack.c.b16 %v2610, %v2602
    %v3619 = vpack.c.b16 %v2611, %v2603
    %v3620 = vpack.c.b16 %v2612, %v2604
    %v3621 = vpack.c.b16 %v2613, %v2605
    %v3622 = vpack.c.b16 %v2614, %v2606
    %v3623 = vpack.c.b16 %v2615, %v2607
    %v3624 = vpack.c.b16 %v2624, %v2616
    %v3625 = vpack.c.b16 %v2625, %v2617
    %v3626 = vpack.c.b16 %v2626, %v2618
    %v3627 = vpack.c.b16 %v2627, %v2619
    %v3628 = vpack.c.b16 %v2628, %v2620
    %v3629 = vpack.c.b16 %v2629, %v2621
    %v3630 = vpack.c.b16 %v2630, %v2622
    %v3631 = vpack.c.b16 %v2631, %v2623
    %v3632 = vpack.c.b16 %v2640, %v2632
    %v3633 = vpack.c.b16 %v2641, %v2633
    %v3634 = vpack.c.b16 %v2642, %v2634
    %v3635 = vpack.c.b16 %v2643, %v2635
    %v3636 = vpack.c.b16 %v2644, %v2636
    %v3637 = vpack.c.b16 %v2645, %v2637
    %v3638 = vpack.c.b16 %v2646, %v2638
    %v3639 = vpack.c.b16 %v2647, %v2639
    %v3640 = vpack.c.b16 %v2656, %v2648
    %v3641 = vpack.c.b16 %v2657, %v2649
    %v3642 = vpack.c.b16 %v2658, %v2650
    %v3643 = vpack.c.b16 %v2659, %v2651
    %v3644 = vpack.c.b16 %v2660, %v2652
    %v3645 = vpack.c.b16 %v2661, %v2653
    %v3646 = vpack.c.b16 %v2662, %v2654
    %v3647 = vpack.c.b16 %v2663, %v2655
    %v3648 = vpack.c.b16 %v2672, %v2664
    %v3649 = vpack.c.b16 %v2673, %v2665
    %v3650 = vpack.c.b16 %v2674, %v2666
    %v3651 = vpack.c.b16 %v2675, %v2667
    %v3652 = vpack.c.b16 %v2676, %v2668
    %v3653 = vpack.c.b16 %v2677, %v2669
    %v3654 = vpack.c.b16 %v2678, %v2670
    %v3655 = vpack.c.b16 %v2679, %v2671
    %v3656 = vpack.c.b16 %v2688, %v2680
    %v3657 = vpack.c.b16 %v2689, %v2681
    %v3658 = vpack.c.b16 %v2690, %v2682
    %v3659 = vpack.c.b16 %v2691, %v2683
    %v3660 = vpack.c.b16 %v2692, %v2684
    %v3661 = vpack.c.b16 %v2693, %v2685
    %v3662 = vpack.c.b16 %v2694, %v2686
    %v3663 = vpack.c.b16 %v2695, %v2687
    %v3664 = vpack.c.b16 %v2704, %v2696
    %v3665 = vpack.c.b16 %v2705, %v2697
    %v3666 = vpack.c.b16 %v2706, %v2698
    %v3667 = vpack.c.b16 %v2707, %v2699
    %v3668 = vpack.c.b16 %v2708, %v2700
    %v3669 = vpack.c.b16 %v2709, %v2701
    %v3670 = vpack.c.b16 %v2710, %v2702
    %v3671 = vpack.c.b16 %v2711, %v2703
    %v3672 = vpack.c.b16 %v2720, %v2712
    %v3673 = vpack.c.b16 %v2721, %v2713
    %v3674 = vpack.c.b16 %v2722, %v2714
    %v3675 = vpack.c.b16 %v2723, %v2715
    %v3676 = vpack.c.b16 %v2724, %v2716
    %v3677 = vpack.c.b16 %v2725, %v2717
    %v3678 = vpack.c.b16 %v2726, %v2718
    %v3679 = vpack.c.b16 %v2727, %v2719
    %v3680 = vpack.c.b16 %v2736, %v2728
    %v3681 = vpack.c.b16 %v2737, %v2729
    %v3682 = vpack.c.b16 %v2738, %v2730
    %v3683 = vpack.c.b16 %v2739, %v2731
    %v3684 = vpack.c.b16 %v2740, %v2732
    %v3685 = vpack.c.b16 %v2741, %v2733
    %v3686 = vpack.c.b16 %v2742, %v2734
    %v3687 = vpack.c.b16 %v2743, %v2735
    %v3688 = vpack.c.b16 %v2752, %v2744
    %v3689 = vpack.c.b16 %v2753, %v2745
    %v3690 = vpack.c.b16 %v2754, %v2746
    %v3691 = vpack.c.b16 %v2755, %v2747
    %v3692 = vpack.c.b16 %v2756, %v2748
    %v3693 = vpack.c.b16 %v2757, %v2749
    %v3694 = vpack.c.b16 %v2758, %v2750
    %v3695 = vpack.c.b16 %v2759, %v2751
    %v3696 = vpack.c.b16 %v2768, %v2760
    %v3697 = vpack.c.b16 %v2769, %v2761
    %v3698 = vpack.c.b16 %v2770, %v2762
    %v3699 = vpack.c.b16 %v2771, %v2763
    %v3700 = vpack.c.b16 %v2772, %v2764
    %v3701 = vpack.c.b16 %v2773, %v2765
    %v3702 = vpack.c.b16 %v2774, %v2766
    %v3703 = vpack.c.b16 %v2775, %v2767
    %v3704 = vpack.c.b16 %v2784, %v2776
    %v3705 = vpack.c.b16 %v2785, %v2777
    %v3706 = vpack.c.b16 %v2786, %v2778
    %v3707 = vpack.c.b16 %v2787, %v2779
    %v3708 = vpack.c.b16 %v2788, %v2780
    %v3709 = vpack.c.b16 %v2789, %v2781
    %v3710 = vpack.c.b16 %v2790, %v2782
    %v3711 = vpack.c.b16 %v2791, %v2783
    %v3712 = vpack.c.b16 %v2800, %v2792
    %v3713 = vpack.c.b16 %v2801, %v2793
    %v3714 = vpack.c.b16 %v2802, %v2794
    %v3715 = vpack.c.b16 %v2803, %v2795
    %v3716 = vpack.c.b16 %v2804, %v2796
    %v3717 = vpack.c.b16 %v2805, %v2797
    %v3718 = vpack.c.b16 %v2806, %v2798
    %v3719 = vpack.c.b16 %v2807, %v2799
    %v3720 = vpack.c.b16 %v2816, %v2808
    %v3721 = vpack.c.b16 %v2817, %v2809
    %v3722 = vpack.c.b16 %v2818, %v2810
    %v3723 = vpack.c.b16 %v2819, %v2811
    %v3724 = vpack.c.b16 %v2820, %v2812
    %v3725 = vpack.c.b16 %v2821, %v2813
    %v3726 = vpack.c.b16 %v2822, %v2814
    %v3727 = vpack.c.b16 %v2823, %v2815
    %v3728 = vpack.c.b16 %v2832, %v2824
    %v3729 = vpack.c.b16 %v2833, %v2825
    %v3730 = vpack.c.b16 %v2834, %v2826
    %v3731 = vpack.c.b16 %v2835, %v2827
    %v3732 = vpack.c.b16 %v2836, %v2828
    %v3733 = vpack.c.b16 %v2837, %v2829
    %v3734 = vpack.c.b16 %v2838, %v2830
    %v3735 = vpack.c.b16 %v2839, %v2831
    %v3736 = vpack.c.b16 %v2848, %v2840
    %v3737 = vpack.c.b16 %v2849, %v2841
    %v3738 = vpack.c.b16 %v2850, %v2842
    %v3739 = vpack.c.b16 %v2851, %v2843
    %v3740 = vpack.c.b16 %v2852, %v2844
    %v3741 = vpack.c.b16 %v2853, %v2845
    %v3742 = vpack.c.b16 %v2854, %v2846
    %v3743 = vpack.c.b16 %v2855, %v2847
    %v3744 = vpack.c.b16 %v2864, %v2856
    %v3745 = vpack.c.b16 %v2865, %v2857
    %v3746 = vpack.c.b16 %v2866, %v2858
    %v3747 = vpack.c.b16 %v2867, %v2859
    %v3748 = vpack.c.b16 %v2868, %v2860
    %v3749 = vpack.c.b16 %v2869, %v2861
    %v3750 = vpack.c.b16 %v2870, %v2862
    %v3751 = vpack.c.b16 %v2871, %v2863
    %v3752 = vpack.c.b16 %v2880, %v2872
    %v3753 = vpack.c.b16 %v2881, %v2873
    %v3754 = vpack.c.b16 %v2882, %v2874
    %v3755 = vpack.c.b16 %v2883, %v2875
    %v3756 = vpack.c.b16 %v2884, %v2876
    %v3757 = vpack.c.b16 %v2885, %v2877
    %v3758 = vpack.c.b16 %v2886, %v2878
    %v3759 = vpack.c.b16 %v2887, %v2879
    %v3760 = vpack.c.b16 %v2896, %v2888
    %v3761 = vpack.c.b16 %v2897, %v2889
    %v3762 = vpack.c.b16 %v2898, %v2890
    %v3763 = vpack.c.b16 %v2899, %v2891
    %v3764 = vpack.c.b16 %v2900, %v2892
    %v3765 = vpack.c.b16 %v2901, %v2893
    %v3766 = vpack.c.b16 %v2902, %v2894
    %v3767 = vpack.c.b16 %v2903, %v2895
    %v3768 = vpack.c.b16 %v2912, %v2904
    %v3769 = vpack.c.b16 %v2913, %v2905
    %v3770 = vpack.c.b16 %v2914, %v2906
    %v3771 = vpack.c.b16 %v2915, %v2907
    %v3772 = vpack.c.b16 %v2916, %v2908
    %v3773 = vpack.c.b16 %v2917, %v2909
    %v3774 = vpack.c.b16 %v2918, %v2910
    %v3775 = vpack.c.b16 %v2919, %v2911
    %v3776 = vpack.c.b16 %v2928, %v2920
    %v3777 = vpack.c.b16 %v2929, %v2921
    %v3778 = vpack.c.b16 %v2930, %v2922
    %v3779 = vpack.c.b16 %v2931, %v2923
    %v3780 = vpack.c.b16 %v2932, %v2924
    %v3781 = vpack.c.b16 %v2933, %v2925
    %v3782 = vpack.c.b16 %v2934, %v2926
    %v3783 = vpack.c.b16 %v2935, %v2927
    %v3784 = vpack.c.b16 %v2944, %v2936
    %v3785 = vpack.c.b16 %v2945, %v2937
    %v3786 = vpack.c.b16 %v2946, %v2938
    %v3787 = vpack.c.b16 %v2947, %v2939
    %v3788 = vpack.c.b16 %v2948, %v2940
    %v3789 = vpack.c.b16 %v2949, %v2941
    %v3790 = vpack.c.b16 %v2950, %v2942
    %v3791 = vpack.c.b16 %v2951, %v2943
    %v3792 = vpack.c.b16 %v2960, %v2952
    %v3793 = vpack.c.b16 %v2961, %v2953
    %v3794 = vpack.c.b16 %v2962, %v2954
    %v3795 = vpack.c.b16 %v2963, %v2955
    %v3796 = vpack.c.b16 %v2964, %v2956
    %v3797 = vpack.c.b16 %v2965, %v2957
    %v3798 = vpack.c.b16 %v2966, %v2958
    %v3799 = vpack.c.b16 %v2967, %v2959
    %v3800 = vpack.c.b16 %v2976, %v2968
    %v3801 = vpack.c.b16 %v2977, %v2969
    %v3802 = vpack.c.b16 %v2978, %v2970
    %v3803 = vpack.c.b16 %v2979, %v2971
    %v3804 = vpack.c.b16 %v2980, %v2972
    %v3805 = vpack.c.b16 %v2981, %v2973
    %v3806 = vpack.c.b16 %v2982, %v2974
    %v3807 = vpack.c.b16 %v2983, %v2975
    %v3808 = vpack.c.b16 %v2992, %v2984
    %v3809 = vpack.c.b16 %v2993, %v2985
    %v3810 = vpack.c.b16 %v2994, %v2986
    %v3811 = vpack.c.b16 %v2995, %v2987
    %v3812 = vpack.c.b16 %v2996, %v2988
    %v3813 = vpack.c.b16 %v2997, %v2989
    %v3814 = vpack.c.b16 %v2998, %v2990
    %v3815 = vpack.c.b16 %v2999, %v2991
    %v3816 = vpack.c.b16 %v3008, %v3000
    %v3817 = vpack.c.b16 %v3009, %v3001
    %v3818 = vpack.c.b16 %v3010, %v3002
    %v3819 = vpack.c.b16 %v3011, %v3003
    %v3820 = vpack.c.b16 %v3012, %v3004
    %v3821 = vpack.c.b16 %v3013, %v3005
    %v3822 = vpack.c.b16 %v3014, %v3006
    %v3823 = vpack.c.b16 %v3015, %v3007
    %v3824 = vpack.c.b16 %v3024, %v3016
    %v3825 = vpack.c.b16 %v3025, %v3017
    %v3826 = vpack.c.b16 %v3026, %v3018
    %v3827 = vpack.c.b16 %v3027, %v3019
    %v3828 = vpack.c.b16 %v3028, %v3020
    %v3829 = vpack.c.b16 %v3029, %v3021
    %v3830 = vpack.c.b16 %v3030, %v3022
    %v3831 = vpack.c.b16 %v3031, %v3023
    %v3832 = vpack.c.b16 %v3040, %v3032
    %v3833 = vpack.c.b16 %v3041, %v3033
    %v3834 = vpack.c.b16 %v3042, %v3034
    %v3835 = vpack.c.b16 %v3043, %v3035
    %v3836 = vpack.c.b16 %v3044, %v3036
    %v3837 = vpack.c.b16 %v3045, %v3037
    %v3838 = vpack.c.b16 %v3046, %v3038
    %v3839 = vpack.c.b16 %v3047, %v3039
    %v3840 = vpack.c.b16 %v3056, %v3048
    %v3841 = vpack.c.b16 %v3057, %v3049
    %v3842 = vpack.c.b16 %v3058, %v3050
    %v3843 = vpack.c.b16 %v3059, %v3051
    %v3844 = vpack.c.b16 %v3060, %v3052
    %v3845 = vpack.c.b16 %v3061, %v3053
    %v3846 = vpack.c.b16 %v3062, %v3054
    %v3847 = vpack.c.b16 %v3063, %v3055
    %v3848 = vpack.c.b16 %v3072, %v3064
    %v3849 = vpack.c.b16 %v3073, %v3065
    %v3850 = vpack.c.b16 %v3074, %v3066
    %v3851 = vpack.c.b16 %v3075, %v3067
    %v3852 = vpack.c.b16 %v3076, %v3068
    %v3853 = vpack.c.b16 %v3077, %v3069
    %v3854 = vpack.c.b16 %v3078, %v3070
    %v3855 = vpack.c.b16 %v3079, %v3071
    %v3856 = vpack.c.b16 %v3088, %v3080
    %v3857 = vpack.c.b16 %v3089, %v3081
    %v3858 = vpack.c.b16 %v3090, %v3082
    %v3859 = vpack.c.b16 %v3091, %v3083
    %v3860 = vpack.c.b16 %v3092, %v3084
    %v3861 = vpack.c.b16 %v3093, %v3085
    %v3862 = vpack.c.b16 %v3094, %v3086
    %v3863 = vpack.c.b16 %v3095, %v3087
    %v3864 = vpack.c.b16 %v3104, %v3096
    %v3865 = vpack.c.b16 %v3105, %v3097
    %v3866 = vpack.c.b16 %v3106, %v3098
    %v3867 = vpack.c.b16 %v3107, %v3099
    %v3868 = vpack.c.b16 %v3108, %v3100
    %v3869 = vpack.c.b16 %v3109, %v3101
    %v3870 = vpack.c.b16 %v3110, %v3102
    %v3871 = vpack.c.b16 %v3111, %v3103
    %v3872 = vpack.c.b16 %v3120, %v3112
    %v3873 = vpack.c.b16 %v3121, %v3113
    %v3874 = vpack.c.b16 %v3122, %v3114
    %v3875 = vpack.c.b16 %v3123, %v3115
    %v3876 = vpack.c.b16 %v3124, %v3116
    %v3877 = vpack.c.b16 %v3125, %v3117
    %v3878 = vpack.c.b16 %v3126, %v3118
    %v3879 = vpack.c.b16 %v3127, %v3119
    %v3880 = vpack.c.b16 %v3136, %v3128
    %v3881 = vpack.c.b16 %v3137, %v3129
    %v3882 = vpack.c.b16 %v3138, %v3130
    %v3883 = vpack.c.b16 %v3139, %v3131
    %v3884 = vpack.c.b16 %v3140, %v3132
    %v3885 = vpack.c.b16 %v3141, %v3133
    %v3886 = vpack.c.b16 %v3142, %v3134
    %v3887 = vpack.c.b16 %v3143, %v3135
    %v3888 = vpack.c.b16 %v3152, %v3144
    %v3889 = vpack.c.b16 %v3153, %v3145
    %v3890 = vpack.c.b16 %v3154, %v3146
    %v3891 = vpack.c.b16 %v3155, %v3147
    %v3892 = vpack.c.b16 %v3156, %v3148
    %v3893 = vpack.c.b16 %v3157, %v3149
    %v3894 = vpack.c.b16 %v3158, %v3150
    %v3895 = vpack.c.b16 %v3159, %v3151
    %v3896 = vpack.c.b16 %v3168, %v3160
    %v3897 = vpack.c.b16 %v3169, %v3161
    %v3898 = vpack.c.b16 %v3170, %v3162
    %v3899 = vpack.c.b16 %v3171, %v3163
    %v3900 = vpack.c.b16 %v3172, %v3164
    %v3901 = vpack.c.b16 %v3173, %v3165
    %v3902 = vpack.c.b16 %v3174, %v3166
    %v3903 = vpack.c.b16 %v3175, %v3167
    %v3904 = vpack.c.b16 %v3184, %v3176
    %v3905 = vpack.c.b16 %v3185, %v3177
    %v3906 = vpack.c.b16 %v3186, %v3178
    %v3907 = vpack.c.b16 %v3187, %v3179
    %v3908 = vpack.c.b16 %v3188, %v3180
    %v3909 = vpack.c.b16 %v3189, %v3181
    %v3910 = vpack.c.b16 %v3190, %v3182
    %v3911 = vpack.c.b16 %v3191, %v3183
    %v3912 = vpack.c.b16 %v3200, %v3192
    %v3913 = vpack.c.b16 %v3201, %v3193
    %v3914 = vpack.c.b16 %v3202, %v3194
    %v3915 = vpack.c.b16 %v3203, %v3195
    %v3916 = vpack.c.b16 %v3204, %v3196
    %v3917 = vpack.c.b16 %v3205, %v3197
    %v3918 = vpack.c.b16 %v3206, %v3198
    %v3919 = vpack.c.b16 %v3207, %v3199
    %v3920 = vpack.c.b16 %v3216, %v3208
    %v3921 = vpack.c.b16 %v3217, %v3209
    %v3922 = vpack.c.b16 %v3218, %v3210
    %v3923 = vpack.c.b16 %v3219, %v3211
    %v3924 = vpack.c.b16 %v3220, %v3212
    %v3925 = vpack.c.b16 %v3221, %v3213
    %v3926 = vpack.c.b16 %v3222, %v3214
    %v3927 = vpack.c.b16 %v3223, %v3215
    %v3928 = vpack.c.b16 %v3232, %v3224
    %v3929 = vpack.c.b16 %v3233, %v3225
    %v3930 = vpack.c.b16 %v3234, %v3226
    %v3931 = vpack.c.b16 %v3235, %v3227
    %v3932 = vpack.c.b16 %v3236, %v3228
    %v3933 = vpack.c.b16 %v3237, %v3229
    %v3934 = vpack.c.b16 %v3238, %v3230
    %v3935 = vpack.c.b16 %v3239, %v3231
    %v3936 = vpack.c.b16 %v3248, %v3240
    %v3937 = vpack.c.b16 %v3249, %v3241
    %v3938 = vpack.c.b16 %v3250, %v3242
    %v3939 = vpack.c.b16 %v3251, %v3243
    %v3940 = vpack.c.b16 %v3252, %v3244
    %v3941 = vpack.c.b16 %v3253, %v3245
    %v3942 = vpack.c.b16 %v3254, %v3246
    %v3943 = vpack.c.b16 %v3255, %v3247
    %v3944 = vpack.c.b16 %v3264, %v3256
    %v3945 = vpack.c.b16 %v3265, %v3257
    %v3946 = vpack.c.b16 %v3266, %v3258
    %v3947 = vpack.c.b16 %v3267, %v3259
    %v3948 = vpack.c.b16 %v3268, %v3260
    %v3949 = vpack.c.b16 %v3269, %v3261
    %v3950 = vpack.c.b16 %v3270, %v3262
    %v3951 = vpack.c.b16 %v3271, %v3263
    %v3952 = vpack.c.b16 %v3280, %v3272
    %v3953 = vpack.c.b16 %v3281, %v3273
    %v3954 = vpack.c.b16 %v3282, %v3274
    %v3955 = vpack.c.b16 %v3283, %v3275
    %v3956 = vpack.c.b16 %v3284, %v3276
    %v3957 = vpack.c.b16 %v3285, %v3277
    %v3958 = vpack.c.b16 %v3286, %v3278
    %v3959 = vpack.c.b16 %v3287, %v3279
    %v3960 = vpack.c.b16 %v3296, %v3288
    %v3961 = vpack.c.b16 %v3297, %v3289
    %v3962 = vpack.c.b16 %v3298, %v3290
    %v3963 = vpack.c.b16 %v3299, %v3291
    %v3964 = vpack.c.b16 %v3300, %v3292
    %v3965 = vpack.c.b16 %v3301, %v3293
    %v3966 = vpack.c.b16 %v3302, %v3294
    %v3967 = vpack.c.b16 %v3303, %v3295
    %v3968 = vpack.c.b16 %v3312, %v3304
    %v3969 = vpack.c.b16 %v3313, %v3305
    %v3970 = vpack.c.b16 %v3314, %v3306
    %v3971 = vpack.c.b16 %v3315, %v3307
    %v3972 = vpack.c.b16 %v3316, %v3308
    %v3973 = vpack.c.b16 %v3317, %v3309
    %v3974 = vpack.c.b16 %v3318, %v3310
    %v3975 = vpack.c.b16 %v3319, %v3311
    %v3976 = vpack.c.b16 %v3328, %v3320
    %v3977 = vpack.c.b16 %v3329, %v3321
    %v3978 = vpack.c.b16 %v3330, %v3322
    %v3979 = vpack.c.b16 %v3331, %v3323
    %v3980 = vpack.c.b16 %v3332, %v3324
    %v3981 = vpack.c.b16 %v3333, %v3325
    %v3982 = vpack.c.b16 %v3334, %v3326
    %v3983 = vpack.c.b16 %v3335, %v3327
    %v3984 = vpack.c.b16 %v3344, %v3336
    %v3985 = vpack.c.b16 %v3345, %v3337
    %v3986 = vpack.c.b16 %v3346, %v3338
    %v3987 = vpack.c.b16 %v3347, %v3339
    %v3988 = vpack.c.b16 %v3348, %v3340
    %v3989 = vpack.c.b16 %v3349, %v3341
    %v3990 = vpack.c.b16 %v3350, %v3342
    %v3991 = vpack.c.b16 %v3351, %v3343
    %v3992 = vpack.c.b16 %v3360, %v3352
    %v3993 = vpack.c.b16 %v3361, %v3353
    %v3994 = vpack.c.b16 %v3362, %v3354
    %v3995 = vpack.c.b16 %v3363, %v3355
    %v3996 = vpack.c.b16 %v3364, %v3356
    %v3997 = vpack.c.b16 %v3365, %v3357
    %v3998 = vpack.c.b16 %v3366, %v3358
    %v3999 = vpack.c.b16 %v3367, %v3359
    %v4000 = vpack.c.b16 %v3376, %v3368
    %v4001 = vpack.c.b16 %v3377, %v3369
    %v4002 = vpack.c.b16 %v3378, %v3370
    %v4003 = vpack.c.b16 %v3379, %v3371
    %v4004 = vpack.c.b16 %v3380, %v3372
    %v4005 = vpack.c.b16 %v3381, %v3373
    %v4006 = vpack.c.b16 %v3382, %v3374
    %v4007 = vpack.c.b16 %v3383, %v3375
    %v4008 = vpack.c.b16 %v3392, %v3384
    %v4009 = vpack.c.b16 %v3393, %v3385
    %v4010 = vpack.c.b16 %v3394, %v3386
    %v4011 = vpack.c.b16 %v3395, %v3387
    %v4012 = vpack.c.b16 %v3396, %v3388
    %v4013 = vpack.c.b16 %v3397, %v3389
    %v4014 = vpack.c.b16 %v3398, %v3390
    %v4015 = vpack.c.b16 %v3399, %v3391
    %v4016 = vpack.c.b16 %v3408, %v3400
    %v4017 = vpack.c.b16 %v3409, %v3401
    %v4018 = vpack.c.b16 %v3410, %v3402
    %v4019 = vpack.c.b16 %v3411, %v3403
    %v4020 = vpack.c.b16 %v3412, %v3404
    %v4021 = vpack.c.b16 %v3413, %v3405
    %v4022 = vpack.c.b16 %v3414, %v3406
    %v4023 = vpack.c.b16 %v3415, %v3407
    %v4024 = vpack.c.b16 %v3424, %v3416
    %v4025 = vpack.c.b16 %v3425, %v3417
    %v4026 = vpack.c.b16 %v3426, %v3418
    %v4027 = vpack.c.b16 %v3427, %v3419
    %v4028 = vpack.c.b16 %v3428, %v3420
    %v4029 = vpack.c.b16 %v3429, %v3421
    %v4030 = vpack.c.b16 %v3430, %v3422
    %v4031 = vpack.c.b16 %v3431, %v3423
    %v4032 = vpack.c.b16 %v3440, %v3432
    %v4033 = vpack.c.b16 %v3441, %v3433
    %v4034 = vpack.c.b16 %v3442, %v3434
    %v4035 = vpack.c.b16 %v3443, %v3435
    %v4036 = vpack.c.b16 %v3444, %v3436
    %v4037 = vpack.c.b16 %v3445, %v3437
    %v4038 = vpack.c.b16 %v3446, %v3438
    %v4039 = vpack.c.b16 %v3447, %v3439
    %v4040 = vpack.c.b16 %v3456, %v3448
    %v4041 = vpack.c.b16 %v3457, %v3449
    %v4042 = vpack.c.b16 %v3458, %v3450
    %v4043 = vpack.c.b16 %v3459, %v3451
    %v4044 = vpack.c.b16 %v3460, %v3452
    %v4045 = vpack.c.b16 %v3461, %v3453
    %v4046 = vpack.c.b16 %v3462, %v3454
    %v4047 = vpack.c.b16 %v3463, %v3455
    %v4048 = vpack.c.b16 %v3472, %v3464
    %v4049 = vpack.c.b16 %v3473, %v3465
    %v4050 = vpack.c.b16 %v3474, %v3466
    %v4051 = vpack.c.b16 %v3475, %v3467
    %v4052 = vpack.c.b16 %v3476, %v3468
    %v4053 = vpack.c.b16 %v3477, %v3469
    %v4054 = vpack.c.b16 %v3478, %v3470
    %v4055 = vpack.c.b16 %v3479, %v3471
    %v4056 = vpack.c.b16 %v3488, %v3480
    %v4057 = vpack.c.b16 %v3489, %v3481
    %v4058 = vpack.c.b16 %v3490, %v3482
    %v4059 = vpack.c.b16 %v3491, %v3483
    %v4060 = vpack.c.b16 %v3492, %v3484
    %v4061 = vpack.c.b16 %v3493, %v3485
    %v4062 = vpack.c.b16 %v3494, %v3486
    %v4063 = vpack.c.b16 %v3495, %v3487
    %v4064 = vpack.c.b16 %v3504, %v3496
    %v4065 = vpack.c.b16 %v3505, %v3497
    %v4066 = vpack.c.b16 %v3506, %v3498
    %v4067 = vpack.c.b16 %v3507, %v3499
    %v4068 = vpack.c.b16 %v3508, %v3500
    %v4069 = vpack.c.b16 %v3509, %v3501
    %v4070 = vpack.c.b16 %v3510, %v3502
    %v4071 = vpack.c.b16 %v3511, %v3503
    %v4072 = vpack.c.b16 %v3520, %v3512
    %v4073 = vpack.c.b16 %v3521, %v3513
    %v4074 = vpack.c.b16 %v3522, %v3514
    %v4075 = vpack.c.b16 %v3523, %v3515
    %v4076 = vpack.c.b16 %v3524, %v3516
    %v4077 = vpack.c.b16 %v3525, %v3517
    %v4078 = vpack.c.b16 %v3526, %v3518
    %v4079 = vpack.c.b16 %v3527, %v3519
    %v4080 = vpack.c.b16 %v3536, %v3528
    %v4081 = vpack.c.b16 %v3537, %v3529
    %v4082 = vpack.c.b16 %v3538, %v3530
    %v4083 = vpack.c.b16 %v3539, %v3531
    %v4084 = vpack.c.b16 %v3540, %v3532
    %v4085 = vpack.c.b16 %v3541, %v3533
    %v4086 = vpack.c.b16 %v3542, %v3534
    %v4087 = vpack.c.b16 %v3543, %v3535
    %v4088 = vpack.c.b16 %v3552, %v3544
    %v4089 = vpack.c.b16 %v3553, %v3545
    %v4090 = vpack.c.b16 %v3554, %v3546
    %v4091 = vpack.c.b16 %v3555, %v3547
    %v4092 = vpack.c.b16 %v3556, %v3548
    %v4093 = vpack.c.b16 %v3557, %v3549
    %v4094 = vpack.c.b16 %v3558, %v3550
    %v4095 = vpack.c.b16 %v3559, %v3551
    %v4096 = vpack.c.b16 %v3568, %v3560
    %v4097 = vpack.c.b16 %v3569, %v3561
    %v4098 = vpack.c.b16 %v3570, %v3562
    %v4099 = vpack.c.b16 %v3571, %v3563
    %v4100 = vpack.c.b16 %v3572, %v3564
    %v4101 = vpack.c.b16 %v3573, %v3565
    %v4102 = vpack.c.b16 %v3574, %v3566
    %v4103 = vpack.c.b16 %v3575, %v3567
    %v4104 = vpack.c.b16 %v3584, %v3576
    %v4105 = vpack.c.b16 %v3585, %v3577
    %v4106 = vpack.c.b16 %v3586, %v3578
    %v4107 = vpack.c.b16 %v3587, %v3579
    %v4108 = vpack.c.b16 %v3588, %v3580
    %v4109 = vpack.c.b16 %v3589, %v3581
    %v4110 = vpack.c.b16 %v3590, %v3582
    %v4111 = vpack.c.b16 %v3591, %v3583
    %v4112 = vpack.c.b16 %v3600, %v3592
    %v4113 = vpack.c.b16 %v3601, %v3593
    %v4114 = vpack.c.b16 %v3602, %v3594
    %v4115 = vpack.c.b16 %v3603, %v3595
    %v4116 = vpack.c.b16 %v3604, %v3596
    %v4117 = vpack.c.b16 %v3605, %v3597
    %v4118 = vpack.c.b16 %v3606, %v3598
    %v4119 = vpack.c.b16 %v3607, %v3599
    %4632 = vmatprep.subr.bf16.mxu0 %v3609
    %4633 = vmatpush1.bf16.msra.mxu0 %v3608
    %4634 = vmatprep.subr.bf16.mxu0 %v3617
    %4635 = vmatpush1.bf16.msra.mxu0 %v3616
    %4636 = vmatprep.subr.bf16.mxu0 %v3625
    %4637 = vmatpush1.bf16.msra.mxu0 %v3624
    %4638 = vmatprep.subr.bf16.mxu0 %v3633
    %4639 = vmatpush1.bf16.msra.mxu0 %v3632
    %4640 = vmatprep.subr.bf16.mxu0 %v3641
    %4641 = vmatpush1.bf16.msra.mxu0 %v3640
    %4642 = vmatprep.subr.bf16.mxu0 %v3649
    %4643 = vmatpush1.bf16.msra.mxu0 %v3648
    %4644 = vmatprep.subr.bf16.mxu0 %v3657
    %4645 = vmatpush1.bf16.msra.mxu0 %v3656
    %4646 = vmatprep.subr.bf16.mxu0 %v3665
    %4647 = vmatpush1.bf16.msra.mxu0 %v3664
    %4648 = vmatprep.subr.bf16.mxu0 %v3673
    %4649 = vmatpush1.bf16.msra.mxu0 %v3672
    %4650 = vmatprep.subr.bf16.mxu0 %v3681
    %4651 = vmatpush1.bf16.msra.mxu0 %v3680
    %4652 = vmatprep.subr.bf16.mxu0 %v3689
    %4653 = vmatpush1.bf16.msra.mxu0 %v3688
    %4654 = vmatprep.subr.bf16.mxu0 %v3697
    %4655 = vmatpush1.bf16.msra.mxu0 %v3696
    %4656 = vmatprep.subr.bf16.mxu0 %v3705
    %4657 = vmatpush1.bf16.msra.mxu0 %v3704
    %4658 = vmatprep.subr.bf16.mxu0 %v3713
    %4659 = vmatpush1.bf16.msra.mxu0 %v3712
    %4660 = vmatprep.subr.bf16.mxu0 %v3721
    %4661 = vmatpush1.bf16.msra.mxu0 %v3720
    %4662 = vmatprep.subr.bf16.mxu0 %v3729
    %4663 = vmatpush1.bf16.msra.mxu0 %v3728
    %4664 = vmatprep.mubr.bf16.mxu0 %v1415
    %4665 = vmatmul.mubr.bf16.gmra.mrb[0].mxu0 %v1414
    %v4666 = vpop.f32.mrb[0].mxu0
    %v4667 = vadd.f32 %v2035, %v4666
    %v4668 = vpop.f32.mrb[0].mxu0
    %v4669 = vadd.f32 %v2039, %v4668
    %v4670 = vpop.f32.mrb[0].mxu0
    %v4671 = vadd.f32 %v2035, %v4670
    %v4672 = vpop.f32.mrb[0].mxu0
    %v4673 = vadd.f32 %v2039, %v4672
    %4674 = vmatprep.mubr.bf16.mxu0 %v1423
    %4675 = vmatmul.mubr.bf16.gmra.mrb[0].mxu0 %v1422
    %v4676 = vpop.f32.mrb[0].mxu0
    %v4677 = vadd.f32 %v2035, %v4676
    %v4678 = vpop.f32.mrb[0].mxu0
    %v4679 = vadd.f32 %v2039, %v4678
    %v4680 = vpop.f32.mrb[0].mxu0
    %v4681 = vadd.f32 %v2035, %v4680
    %v4682 = vpop.f32.mrb[0].mxu0
    %v4683 = vadd.f32 %v2039, %v4682
    %4684 = vmatprep.mubr.bf16.mxu0 %v1431
    %4685 = vmatmul.mubr.bf16.gmra.mrb[0].mxu0 %v1430
    %v4686 = vpop.f32.mrb[0].mxu0
    %v4687 = vadd.f32 %v2035, %v4686
    %v4688 = vpop.f32.mrb[0].mxu0
    %v4689 = vadd.f32 %v2039, %v4688
    %v4690 = vpop.f32.mrb[0].mxu0
    %v4691 = vadd.f32 %v2035, %v4690
    %v4692 = vpop.f32.mrb[0].mxu0
    %v4693 = vadd.f32 %v2039, %v4692
    %4694 = vmatprep.mubr.bf16.mxu0 %v1439
    %4695 = vmatmul.mubr.bf16.gmra.mrb[0].mxu0 %v1438
    %v4696 = vpop.f32.mrb[0].mxu0
    %v4697 = vadd.f32 %v2035, %v4696
    %v4698 = vpop.f32.mrb[0].mxu0
    %v4699 = vadd.f32 %v2039, %v4698
    %v4700 = vpop.f32.mrb[0].mxu0
    %v4701 = vadd.f32 %v2035, %v4700
    %v4702 = vpop.f32.mrb[0].mxu0
    %v4703 = vadd.f32 %v2039, %v4702
    %4704 = vmatprep.mubr.bf16.mxu0 %v1447
    %4705 = vmatmul.mubr.bf16.gmra.mrb[0].mxu0 %v1446
    %v4706 = vpop.f32.mrb[0].mxu0
    %v4707 = vadd.f32 %v2035, %v4706
    %v4708 = vpop.f32.mrb[0].mxu0
    %v4709 = vadd.f32 %v2039, %v4708
    %v4710 = vpop.f32.mrb[0].mxu0
    %v4711 = vadd.f32 %v2035, %v4710
    %v4712 = vpop.f32.mrb[0].mxu0
    %v4713 = vadd.f32 %v2039, %v4712
    %4714 = vmatprep.mubr.bf16.mxu0 %v1455
    %4715 = vmatmul.mubr.bf16.gmra.mrb[0].mxu0 %v1454
    %v4716 = vpop.f32.mrb[0].mxu0
    %v4717 = vadd.f32 %v2035, %v4716
    %v4718 = vpop.f32.mrb[0].mxu0
    %v4719 = vadd.f32 %v2039, %v4718
    %v4720 = vpop.f32.mrb[0].mxu0
    %v4721 = vadd.f32 %v2035, %v4720
    %v4722 = vpop.f32.mrb[0].mxu0
    %v4723 = vadd.f32 %v2039, %v4722
    %4724 = vmatprep.mubr.bf16.mxu0 %v1463
    %4725 = vmatmul.mubr.bf16.gmra.mrb[0].mxu0 %v1462
    %v4726 = vpop.f32.mrb[0].mxu0
    %v4727 = vadd.f32 %v2035, %v4726
    %v4728 = vpop.f32.mrb[0].mxu0
    %v4729 = vadd.f32 %v2039, %v4728
    %v4730 = vpop.f32.mrb[0].mxu0
    %v4731 = vadd.f32 %v2035, %v4730
    %v4732 = vpop.f32.mrb[0].mxu0
    %v4733 = vadd.f32 %v2039, %v4732
    %4734 = vmatprep.mubr.bf16.mxu0 %v1471
    %4735 = vmatmul.mubr.bf16.gmra.mrb[0].mxu0 %v1470
    %v4736 = vpop.f32.mrb[0].mxu0
    %v4737 = vadd.f32 %v2035, %v4736
    %v4738 = vpop.f32.mrb[0].mxu0
    %v4739 = vadd.f32 %v2039, %v4738
    %v4740 = vpop.f32.mrb[0].mxu0
    %v4741 = vadd.f32 %v2035, %v4740
    %v4742 = vpop.f32.mrb[0].mxu0
    %v4743 = vadd.f32 %v2039, %v4742
    %4744 = vmatprep.mubr.bf16.mxu0 %v1479
    %4745 = vmatmul.mubr.bf16.gmra.mrb[0].mxu0 %v1478
    %v4746 = vpop.f32.mrb[0].mxu0
    %v4747 = vadd.f32 %v2035, %v4746
    %v4748 = vpop.f32.mrb[0].mxu0
    %v4749 = vadd.f32 %v2039, %v4748
    %v4750 = vpop.f32.mrb[0].mxu0
    %v4751 = vadd.f32 %v2035, %v4750
    %v4752 = vpop.f32.mrb[0].mxu0
    %v4753 = vadd.f32 %v2039, %v4752
    %4754 = vmatprep.mubr.bf16.mxu0 %v1487
    %4755 = vmatmul.mubr.bf16.gmra.mrb[0].mxu0 %v1486
    %v4756 = vpop.f32.mrb[0].mxu0
    %v4757 = vadd.f32 %v2035, %v4756
    %v4758 = vpop.f32.mrb[0].mxu0
    %v4759 = vadd.f32 %v2039, %v4758
    %v4760 = vpop.f32.mrb[0].mxu0
    %v4761 = vadd.f32 %v2035, %v4760
    %v4762 = vpop.f32.mrb[0].mxu0
    %v4763 = vadd.f32 %v2039, %v4762
    %4764 = vmatprep.mubr.bf16.mxu0 %v1495
    %4765 = vmatmul.mubr.bf16.gmra.mrb[0].mxu0 %v1494
    %v4766 = vpop.f32.mrb[0].mxu0
    %v4767 = vadd.f32 %v2035, %v4766
    %v4768 = vpop.f32.mrb[0].mxu0
    %v4769 = vadd.f32 %v2039, %v4768
    %v4770 = vpop.f32.mrb[0].mxu0
    %v4771 = vadd.f32 %v2035, %v4770
    %v4772 = vpop.f32.mrb[0].mxu0
    %v4773 = vadd.f32 %v2039, %v4772
    %4774 = vmatprep.mubr.bf16.mxu0 %v1503
    %4775 = vmatmul.mubr.bf16.gmra.mrb[0].mxu0 %v1502
    %v4776 = vpop.f32.mrb[0].mxu0
    %v4777 = vadd.f32 %v2035, %v4776
    %v4778 = vpop.f32.mrb[0].mxu0
    %v4779 = vadd.f32 %v2039, %v4778
    %v4780 = vpop.f32.mrb[0].mxu0
    %v4781 = vadd.f32 %v2035, %v4780
    %v4782 = vpop.f32.mrb[0].mxu0
    %v4783 = vadd.f32 %v2039, %v4782
    %4784 = vmatprep.mubr.bf16.mxu0 %v1511
    %4785 = vmatmul.mubr.bf16.gmra.mrb[0].mxu0 %v1510
    %v4786 = vpop.f32.mrb[0].mxu0
    %v4787 = vadd.f32 %v2035, %v4786
    %v4788 = vpop.f32.mrb[0].mxu0
    %v4789 = vadd.f32 %v2039, %v4788
    %v4790 = vpop.f32.mrb[0].mxu0
    %v4791 = vpop.f32.mrb[0].mxu0
    %4792 = vdwg.mxu0
    %4793 = vmatprep.subr.bf16.mxu0 %v3737
    %4794 = vmatpush1.bf16.msra.mxu0 %v3736
    %4795 = vmatprep.subr.bf16.mxu0 %v3745
    %4796 = vmatpush1.bf16.msra.mxu0 %v3744
    %4797 = vmatprep.subr.bf16.mxu0 %v3753
    %4798 = vmatpush1.bf16.msra.mxu0 %v3752
    %4799 = vmatprep.subr.bf16.mxu0 %v3761
    %4800 = vmatpush1.bf16.msra.mxu0 %v3760
    %4801 = vmatprep.subr.bf16.mxu0 %v3769
    %4802 = vmatpush1.bf16.msra.mxu0 %v3768
    %4803 = vmatprep.subr.bf16.mxu0 %v3777
    %4804 = vmatpush1.bf16.msra.mxu0 %v3776
    %4805 = vmatprep.subr.bf16.mxu0 %v3785
    %4806 = vmatpush1.bf16.msra.mxu0 %v3784
    %4807 = vmatprep.subr.bf16.mxu0 %v3793
    %4808 = vmatpush1.bf16.msra.mxu0 %v3792
    %4809 = vmatprep.subr.bf16.mxu0 %v3801
    %4810 = vmatpush1.bf16.msra.mxu0 %v3800
    %4811 = vmatprep.subr.bf16.mxu0 %v3809
    %4812 = vmatpush1.bf16.msra.mxu0 %v3808
    %4813 = vmatprep.subr.bf16.mxu0 %v3817
    %4814 = vmatpush1.bf16.msra.mxu0 %v3816
    %4815 = vmatprep.subr.bf16.mxu0 %v3825
    %4816 = vmatpush1.bf16.msra.mxu0 %v3824
    %4817 = vmatprep.subr.bf16.mxu0 %v3833
    %4818 = vmatpush1.bf16.msra.mxu0 %v3832
    %4819 = vmatprep.subr.bf16.mxu0 %v3841
    %4820 = vmatpush1.bf16.msra.mxu0 %v3840
    %4821 = vmatprep.subr.bf16.mxu0 %v3849
    %4822 = vmatpush1.bf16.msra.mxu0 %v3848
    %4823 = vmatprep.subr.bf16.mxu0 %v3857
    %4824 = vmatpush1.bf16.msra.mxu0 %v3856
    %4825 = vmatprep.mubr.bf16.mxu0 %v1417
    %4826 = vmatmul.mubr.bf16.gmra.mrb[0].mxu0 %v1416
    %v4827 = vpop.f32.mrb[0].mxu0
    %v4828 = vadd.f32 %v4667, %v4827
    %v4829 = vpop.f32.mrb[0].mxu0
    %v4830 = vadd.f32 %v4669, %v4829
    %v4831 = vpop.f32.mrb[0].mxu0
    %v4832 = vadd.f32 %v4671, %v4831
    %v4833 = vpop.f32.mrb[0].mxu0
    %v4834 = vadd.f32 %v4673, %v4833
    %4835 = vmatprep.mubr.bf16.mxu0 %v1425
    %4836 = vmatmul.mubr.bf16.gmra.mrb[0].mxu0 %v1424
    %v4837 = vpop.f32.mrb[0].mxu0
    %v4838 = vadd.f32 %v4677, %v4837
    %v4839 = vpop.f32.mrb[0].mxu0
    %v4840 = vadd.f32 %v4679, %v4839
    %v4841 = vpop.f32.mrb[0].mxu0
    %v4842 = vadd.f32 %v4681, %v4841
    %v4843 = vpop.f32.mrb[0].mxu0
    %v4844 = vadd.f32 %v4683, %v4843
    %4845 = vmatprep.mubr.bf16.mxu0 %v1433
    %4846 = vmatmul.mubr.bf16.gmra.mrb[0].mxu0 %v1432
    %v4847 = vpop.f32.mrb[0].mxu0
    %v4848 = vadd.f32 %v4687, %v4847
    %v4849 = vpop.f32.mrb[0].mxu0
    %v4850 = vadd.f32 %v4689, %v4849
    %v4851 = vpop.f32.mrb[0].mxu0
    %v4852 = vadd.f32 %v4691, %v4851
    %v4853 = vpop.f32.mrb[0].mxu0
    %v4854 = vadd.f32 %v4693, %v4853
    %4855 = vmatprep.mubr.bf16.mxu0 %v1441
    %4856 = vmatmul.mubr.bf16.gmra.mrb[0].mxu0 %v1440
    %v4857 = vpop.f32.mrb[0].mxu0
    %v4858 = vadd.f32 %v4697, %v4857
    %v4859 = vpop.f32.mrb[0].mxu0
    %v4860 = vadd.f32 %v4699, %v4859
    %v4861 = vpop.f32.mrb[0].mxu0
    %v4862 = vadd.f32 %v4701, %v4861
    %v4863 = vpop.f32.mrb[0].mxu0
    %v4864 = vadd.f32 %v4703, %v4863
    %4865 = vmatprep.mubr.bf16.mxu0 %v1449
    %4866 = vmatmul.mubr.bf16.gmra.mrb[0].mxu0 %v1448
    %v4867 = vpop.f32.mrb[0].mxu0
    %v4868 = vadd.f32 %v4707, %v4867
    %v4869 = vpop.f32.mrb[0].mxu0
    %v4870 = vadd.f32 %v4709, %v4869
    %v4871 = vpop.f32.mrb[0].mxu0
    %v4872 = vadd.f32 %v4711, %v4871
    %v4873 = vpop.f32.mrb[0].mxu0
    %v4874 = vadd.f32 %v4713, %v4873
    %4875 = vmatprep.mubr.bf16.mxu0 %v1457
    %4876 = vmatmul.mubr.bf16.gmra.mrb[0].mxu0 %v1456
    %v4877 = vpop.f32.mrb[0].mxu0
    %v4878 = vadd.f32 %v4717, %v4877
    %v4879 = vpop.f32.mrb[0].mxu0
    %v4880 = vadd.f32 %v4719, %v4879
    %v4881 = vpop.f32.mrb[0].mxu0
    %v4882 = vadd.f32 %v4721, %v4881
    %v4883 = vpop.f32.mrb[0].mxu0
    %v4884 = vadd.f32 %v4723, %v4883
    %4885 = vmatprep.mubr.bf16.mxu0 %v1465
    %4886 = vmatmul.mubr.bf16.gmra.mrb[0].mxu0 %v1464
    %v4887 = vpop.f32.mrb[0].mxu0
    %v4888 = vadd.f32 %v4727, %v4887
    %v4889 = vpop.f32.mrb[0].mxu0
    %v4890 = vadd.f32 %v4729, %v4889
    %v4891 = vpop.f32.mrb[0].mxu0
    %v4892 = vadd.f32 %v4731, %v4891
    %v4893 = vpop.f32.mrb[0].mxu0
    %v4894 = vadd.f32 %v4733, %v4893
    %4895 = vmatprep.mubr.bf16.mxu0 %v1473
    %4896 = vmatmul.mubr.bf16.gmra.mrb[0].mxu0 %v1472
    %v4897 = vpop.f32.mrb[0].mxu0
    %v4898 = vadd.f32 %v4737, %v4897
    %v4899 = vpop.f32.mrb[0].mxu0
    %v4900 = vadd.f32 %v4739, %v4899
    %v4901 = vpop.f32.mrb[0].mxu0
    %v4902 = vadd.f32 %v4741, %v4901
    %v4903 = vpop.f32.mrb[0].mxu0
    %v4904 = vadd.f32 %v4743, %v4903
    %4905 = vmatprep.mubr.bf16.mxu0 %v1481
    %4906 = vmatmul.mubr.bf16.gmra.mrb[0].mxu0 %v1480
    %v4907 = vpop.f32.mrb[0].mxu0
    %v4908 = vadd.f32 %v4747, %v4907
    %v4909 = vpop.f32.mrb[0].mxu0
    %v4910 = vadd.f32 %v4749, %v4909
    %v4911 = vpop.f32.mrb[0].mxu0
    %v4912 = vadd.f32 %v4751, %v4911
    %v4913 = vpop.f32.mrb[0].mxu0
    %v4914 = vadd.f32 %v4753, %v4913
    %4915 = vmatprep.mubr.bf16.mxu0 %v1489
    %4916 = vmatmul.mubr.bf16.gmra.mrb[0].mxu0 %v1488
    %v4917 = vpop.f32.mrb[0].mxu0
    %v4918 = vadd.f32 %v4757, %v4917
    %v4919 = vpop.f32.mrb[0].mxu0
    %v4920 = vadd.f32 %v4759, %v4919
    %v4921 = vpop.f32.mrb[0].mxu0
    %v4922 = vadd.f32 %v4761, %v4921
    %v4923 = vpop.f32.mrb[0].mxu0
    %v4924 = vadd.f32 %v4763, %v4923
    %4925 = vmatprep.mubr.bf16.mxu0 %v1497
    %4926 = vmatmul.mubr.bf16.gmra.mrb[0].mxu0 %v1496
    %v4927 = vpop.f32.mrb[0].mxu0
    %v4928 = vadd.f32 %v4767, %v4927
    %v4929 = vpop.f32.mrb[0].mxu0
    %v4930 = vadd.f32 %v4769, %v4929
    %v4931 = vpop.f32.mrb[0].mxu0
    %v4932 = vadd.f32 %v4771, %v4931
    %v4933 = vpop.f32.mrb[0].mxu0
    %v4934 = vadd.f32 %v4773, %v4933
    %4935 = vmatprep.mubr.bf16.mxu0 %v1505
    %4936 = vmatmul.mubr.bf16.gmra.mrb[0].mxu0 %v1504
    %v4937 = vpop.f32.mrb[0].mxu0
    %v4938 = vadd.f32 %v4777, %v4937
    %v4939 = vpop.f32.mrb[0].mxu0
    %v4940 = vadd.f32 %v4779, %v4939
    %v4941 = vpop.f32.mrb[0].mxu0
    %v4942 = vadd.f32 %v4781, %v4941
    %v4943 = vpop.f32.mrb[0].mxu0
    %v4944 = vadd.f32 %v4783, %v4943
    %4945 = vmatprep.mubr.bf16.mxu0 %v1513
    %4946 = vmatmul.mubr.bf16.gmra.mrb[0].mxu0 %v1512
    %v4947 = vpop.f32.mrb[0].mxu0
    %v4948 = vadd.f32 %v4787, %v4947
    %v4949 = vpop.f32.mrb[0].mxu0
    %v4950 = vadd.f32 %v4789, %v4949
    %v4951 = vpop.f32.mrb[0].mxu0
    %v4952 = vpop.f32.mrb[0].mxu0
    %4953 = vdwg.mxu0
    %4954 = vmatprep.subr.bf16.mxu0 %v3865
    %4955 = vmatpush1.bf16.msra.mxu0 %v3864
    %4956 = vmatprep.subr.bf16.mxu0 %v3873
    %4957 = vmatpush1.bf16.msra.mxu0 %v3872
    %4958 = vmatprep.subr.bf16.mxu0 %v3881
    %4959 = vmatpush1.bf16.msra.mxu0 %v3880
    %4960 = vmatprep.subr.bf16.mxu0 %v3889
    %4961 = vmatpush1.bf16.msra.mxu0 %v3888
    %4962 = vmatprep.subr.bf16.mxu0 %v3897
    %4963 = vmatpush1.bf16.msra.mxu0 %v3896
    %4964 = vmatprep.subr.bf16.mxu0 %v3905
    %4965 = vmatpush1.bf16.msra.mxu0 %v3904
    %4966 = vmatprep.subr.bf16.mxu0 %v3913
    %4967 = vmatpush1.bf16.msra.mxu0 %v3912
    %4968 = vmatprep.subr.bf16.mxu0 %v3921
    %4969 = vmatpush1.bf16.msra.mxu0 %v3920
    %4970 = vmatprep.subr.bf16.mxu0 %v3929
    %4971 = vmatpush1.bf16.msra.mxu0 %v3928
    %4972 = vmatprep.subr.bf16.mxu0 %v3937
    %4973 = vmatpush1.bf16.msra.mxu0 %v3936
    %4974 = vmatprep.subr.bf16.mxu0 %v3945
    %4975 = vmatpush1.bf16.msra.mxu0 %v3944
    %4976 = vmatprep.subr.bf16.mxu0 %v3953
    %4977 = vmatpush1.bf16.msra.mxu0 %v3952
    %4978 = vmatprep.subr.bf16.mxu0 %v3961
    %4979 = vmatpush1.bf16.msra.mxu0 %v3960
    %4980 = vmatprep.subr.bf16.mxu0 %v3969
    %4981 = vmatpush1.bf16.msra.mxu0 %v3968
    %4982 = vmatprep.subr.bf16.mxu0 %v3977
    %4983 = vmatpush1.bf16.msra.mxu0 %v3976
    %4984 = vmatprep.subr.bf16.mxu0 %v3985
    %4985 = vmatpush1.bf16.msra.mxu0 %v3984
    %4986 = vmatprep.mubr.bf16.mxu0 %v1419
    %4987 = vmatmul.mubr.bf16.gmra.mrb[0].mxu0 %v1418
    %v4988 = vpop.f32.mrb[0].mxu0
    %v4989 = vadd.f32 %v4828, %v4988
    %v4990 = vpop.f32.mrb[0].mxu0
    %v4991 = vadd.f32 %v4830, %v4990
    %v4992 = vpop.f32.mrb[0].mxu0
    %v4993 = vadd.f32 %v4832, %v4992
    %v4994 = vpop.f32.mrb[0].mxu0
    %v4995 = vadd.f32 %v4834, %v4994
    %4996 = vmatprep.mubr.bf16.mxu0 %v1427
    %4997 = vmatmul.mubr.bf16.gmra.mrb[0].mxu0 %v1426
    %v4998 = vpop.f32.mrb[0].mxu0
    %v4999 = vadd.f32 %v4838, %v4998
    %v5000 = vpop.f32.mrb[0].mxu0
    %v5001 = vadd.f32 %v4840, %v5000
    %v5002 = vpop.f32.mrb[0].mxu0
    %v5003 = vadd.f32 %v4842, %v5002
    %v5004 = vpop.f32.mrb[0].mxu0
    %v5005 = vadd.f32 %v4844, %v5004
    %5006 = vmatprep.mubr.bf16.mxu0 %v1435
    %5007 = vmatmul.mubr.bf16.gmra.mrb[0].mxu0 %v1434
    %v5008 = vpop.f32.mrb[0].mxu0
    %v5009 = vadd.f32 %v4848, %v5008
    %v5010 = vpop.f32.mrb[0].mxu0
    %v5011 = vadd.f32 %v4850, %v5010
    %v5012 = vpop.f32.mrb[0].mxu0
    %v5013 = vadd.f32 %v4852, %v5012
    %v5014 = vpop.f32.mrb[0].mxu0
    %v5015 = vadd.f32 %v4854, %v5014
    %5016 = vmatprep.mubr.bf16.mxu0 %v1443
    %5017 = vmatmul.mubr.bf16.gmra.mrb[0].mxu0 %v1442
    %v5018 = vpop.f32.mrb[0].mxu0
    %v5019 = vadd.f32 %v4858, %v5018
    %v5020 = vpop.f32.mrb[0].mxu0
    %v5021 = vadd.f32 %v4860, %v5020
    %v5022 = vpop.f32.mrb[0].mxu0
    %v5023 = vadd.f32 %v4862, %v5022
    %v5024 = vpop.f32.mrb[0].mxu0
    %v5025 = vadd.f32 %v4864, %v5024
    %5026 = vmatprep.mubr.bf16.mxu0 %v1451
    %5027 = vmatmul.mubr.bf16.gmra.mrb[0].mxu0 %v1450
    %v5028 = vpop.f32.mrb[0].mxu0
    %v5029 = vadd.f32 %v4868, %v5028
    %v5030 = vpop.f32.mrb[0].mxu0
    %v5031 = vadd.f32 %v4870, %v5030
    %v5032 = vpop.f32.mrb[0].mxu0
    %v5033 = vadd.f32 %v4872, %v5032
    %v5034 = vpop.f32.mrb[0].mxu0
    %v5035 = vadd.f32 %v4874, %v5034
    %5036 = vmatprep.mubr.bf16.mxu0 %v1459
    %5037 = vmatmul.mubr.bf16.gmra.mrb[0].mxu0 %v1458
    %v5038 = vpop.f32.mrb[0].mxu0
    %v5039 = vadd.f32 %v4878, %v5038
    %v5040 = vpop.f32.mrb[0].mxu0
    %v5041 = vadd.f32 %v4880, %v5040
    %v5042 = vpop.f32.mrb[0].mxu0
    %v5043 = vadd.f32 %v4882, %v5042
    %v5044 = vpop.f32.mrb[0].mxu0
    %v5045 = vadd.f32 %v4884, %v5044
    %5046 = vmatprep.mubr.bf16.mxu0 %v1467
    %5047 = vmatmul.mubr.bf16.gmra.mrb[0].mxu0 %v1466
    %v5048 = vpop.f32.mrb[0].mxu0
    %v5049 = vadd.f32 %v4888, %v5048
    %v5050 = vpop.f32.mrb[0].mxu0
    %v5051 = vadd.f32 %v4890, %v5050
    %v5052 = vpop.f32.mrb[0].mxu0
    %v5053 = vadd.f32 %v4892, %v5052
    %v5054 = vpop.f32.mrb[0].mxu0
    %v5055 = vadd.f32 %v4894, %v5054
    %5056 = vmatprep.mubr.bf16.mxu0 %v1475
    %5057 = vmatmul.mubr.bf16.gmra.mrb[0].mxu0 %v1474
    %v5058 = vpop.f32.mrb[0].mxu0
    %v5059 = vadd.f32 %v4898, %v5058
    %v5060 = vpop.f32.mrb[0].mxu0
    %v5061 = vadd.f32 %v4900, %v5060
    %v5062 = vpop.f32.mrb[0].mxu0
    %v5063 = vadd.f32 %v4902, %v5062
    %v5064 = vpop.f32.mrb[0].mxu0
    %v5065 = vadd.f32 %v4904, %v5064
    %5066 = vmatprep.mubr.bf16.mxu0 %v1483
    %5067 = vmatmul.mubr.bf16.gmra.mrb[0].mxu0 %v1482
    %v5068 = vpop.f32.mrb[0].mxu0
    %v5069 = vadd.f32 %v4908, %v5068
    %v5070 = vpop.f32.mrb[0].mxu0
    %v5071 = vadd.f32 %v4910, %v5070
    %v5072 = vpop.f32.mrb[0].mxu0
    %v5073 = vadd.f32 %v4912, %v5072
    %v5074 = vpop.f32.mrb[0].mxu0
    %v5075 = vadd.f32 %v4914, %v5074
    %5076 = vmatprep.mubr.bf16.mxu0 %v1491
    %5077 = vmatmul.mubr.bf16.gmra.mrb[0].mxu0 %v1490
    %v5078 = vpop.f32.mrb[0].mxu0
    %v5079 = vadd.f32 %v4918, %v5078
    %v5080 = vpop.f32.mrb[0].mxu0
    %v5081 = vadd.f32 %v4920, %v5080
    %v5082 = vpop.f32.mrb[0].mxu0
    %v5083 = vadd.f32 %v4922, %v5082
    %v5084 = vpop.f32.mrb[0].mxu0
    %v5085 = vadd.f32 %v4924, %v5084
    %5086 = vmatprep.mubr.bf16.mxu0 %v1499
    %5087 = vmatmul.mubr.bf16.gmra.mrb[0].mxu0 %v1498
    %v5088 = vpop.f32.mrb[0].mxu0
    %v5089 = vadd.f32 %v4928, %v5088
    %v5090 = vpop.f32.mrb[0].mxu0
    %v5091 = vadd.f32 %v4930, %v5090
    %v5092 = vpop.f32.mrb[0].mxu0
    %v5093 = vadd.f32 %v4932, %v5092
    %v5094 = vpop.f32.mrb[0].mxu0
    %v5095 = vadd.f32 %v4934, %v5094
    %5096 = vmatprep.mubr.bf16.mxu0 %v1507
    %5097 = vmatmul.mubr.bf16.gmra.mrb[0].mxu0 %v1506
    %v5098 = vpop.f32.mrb[0].mxu0
    %v5099 = vadd.f32 %v4938, %v5098
    %v5100 = vpop.f32.mrb[0].mxu0
    %v5101 = vadd.f32 %v4940, %v5100
    %v5102 = vpop.f32.mrb[0].mxu0
    %v5103 = vadd.f32 %v4942, %v5102
    %v5104 = vpop.f32.mrb[0].mxu0
    %v5105 = vadd.f32 %v4944, %v5104
    %5106 = vmatprep.mubr.bf16.mxu0 %v1515
    %5107 = vmatmul.mubr.bf16.gmra.mrb[0].mxu0 %v1514
    %v5108 = vpop.f32.mrb[0].mxu0
    %v5109 = vadd.f32 %v4948, %v5108
    %v5110 = vpop.f32.mrb[0].mxu0
    %v5111 = vadd.f32 %v4950, %v5110
    %v5112 = vpop.f32.mrb[0].mxu0
    %v5113 = vpop.f32.mrb[0].mxu0
    %5114 = vdwg.mxu0
    %5115 = vmatprep.subr.bf16.mxu0 %v3993
    %5116 = vmatpush1.bf16.msra.mxu0 %v3992
    %5117 = vmatprep.subr.bf16.mxu0 %v4001
    %5118 = vmatpush1.bf16.msra.mxu0 %v4000
    %5119 = vmatprep.subr.bf16.mxu0 %v4009
    %5120 = vmatpush1.bf16.msra.mxu0 %v4008
    %5121 = vmatprep.subr.bf16.mxu0 %v4017
    %5122 = vmatpush1.bf16.msra.mxu0 %v4016
    %5123 = vmatprep.subr.bf16.mxu0 %v4025
    %5124 = vmatpush1.bf16.msra.mxu0 %v4024
    %5125 = vmatprep.subr.bf16.mxu0 %v4033
    %5126 = vmatpush1.bf16.msra.mxu0 %v4032
    %5127 = vmatprep.subr.bf16.mxu0 %v4041
    %5128 = vmatpush1.bf16.msra.mxu0 %v4040
    %5129 = vmatprep.subr.bf16.mxu0 %v4049
    %5130 = vmatpush1.bf16.msra.mxu0 %v4048
    %5131 = vmatprep.subr.bf16.mxu0 %v4057
    %5132 = vmatpush1.bf16.msra.mxu0 %v4056
    %5133 = vmatprep.subr.bf16.mxu0 %v4065
    %5134 = vmatpush1.bf16.msra.mxu0 %v4064
    %5135 = vmatprep.subr.bf16.mxu0 %v4073
    %5136 = vmatpush1.bf16.msra.mxu0 %v4072
    %5137 = vmatprep.subr.bf16.mxu0 %v4081
    %5138 = vmatpush1.bf16.msra.mxu0 %v4080
    %5139 = vmatprep.subr.bf16.mxu0 %v4089
    %5140 = vmatpush1.bf16.msra.mxu0 %v4088
    %5141 = vmatprep.subr.bf16.mxu0 %v4097
    %5142 = vmatpush1.bf16.msra.mxu0 %v4096
    %5143 = vmatprep.subr.bf16.mxu0 %v4105
    %5144 = vmatpush1.bf16.msra.mxu0 %v4104
    %5145 = vmatprep.subr.bf16.mxu0 %v4113
    %5146 = vmatpush1.bf16.msra.mxu0 %v4112
    %5147 = vmatprep.mubr.bf16.mxu0 %v1421
    %5148 = vmatmul.mubr.bf16.gmra.mrb[0].mxu0 %v1420
    %v5149 = vpop.f32.mrb[0].mxu0
    %v5150 = vadd.f32 %v4989, %v5149
    %v5151 = vpop.f32.mrb[0].mxu0
    %v5152 = vadd.f32 %v4991, %v5151
    %v5153 = vpop.f32.mrb[0].mxu0
    %v5154 = vadd.f32 %v4993, %v5153
    %v5155 = vpop.f32.mrb[0].mxu0
    %v5156 = vadd.f32 %v4995, %v5155
    %5157 = vmatprep.mubr.bf16.mxu0 %v1429
    %5158 = vmatmul.mubr.bf16.gmra.mrb[0].mxu0 %v1428
    %v5159 = vpop.f32.mrb[0].mxu0
    %v5160 = vadd.f32 %v4999, %v5159
    %v5161 = vpop.f32.mrb[0].mxu0
    %v5162 = vadd.f32 %v5001, %v5161
    %v5163 = vpop.f32.mrb[0].mxu0
    %v5164 = vadd.f32 %v5003, %v5163
    %v5165 = vpop.f32.mrb[0].mxu0
    %v5166 = vadd.f32 %v5005, %v5165
    %5167 = vmatprep.mubr.bf16.mxu0 %v1437
    %5168 = vmatmul.mubr.bf16.gmra.mrb[0].mxu0 %v1436
    %v5169 = vpop.f32.mrb[0].mxu0
    %v5170 = vadd.f32 %v5009, %v5169
    %v5171 = vpop.f32.mrb[0].mxu0
    %v5172 = vadd.f32 %v5011, %v5171
    %v5173 = vpop.f32.mrb[0].mxu0
    %v5174 = vadd.f32 %v5013, %v5173
    %v5175 = vpop.f32.mrb[0].mxu0
    %v5176 = vadd.f32 %v5015, %v5175
    %5177 = vmatprep.mubr.bf16.mxu0 %v1445
    %5178 = vmatmul.mubr.bf16.gmra.mrb[0].mxu0 %v1444
    %v5179 = vpop.f32.mrb[0].mxu0
    %v5180 = vadd.f32 %v5019, %v5179
    %v5181 = vpop.f32.mrb[0].mxu0
    %v5182 = vadd.f32 %v5021, %v5181
    %v5183 = vpop.f32.mrb[0].mxu0
    %v5184 = vadd.f32 %v5023, %v5183
    %v5185 = vpop.f32.mrb[0].mxu0
    %v5186 = vadd.f32 %v5025, %v5185
    %5187 = vmatprep.mubr.bf16.mxu0 %v1453
    %5188 = vmatmul.mubr.bf16.gmra.mrb[0].mxu0 %v1452
    %v5189 = vpop.f32.mrb[0].mxu0
    %v5190 = vadd.f32 %v5029, %v5189
    %v5191 = vpop.f32.mrb[0].mxu0
    %v5192 = vadd.f32 %v5031, %v5191
    %v5193 = vpop.f32.mrb[0].mxu0
    %v5194 = vadd.f32 %v5033, %v5193
    %v5195 = vpop.f32.mrb[0].mxu0
    %v5196 = vadd.f32 %v5035, %v5195
    %5197 = vmatprep.mubr.bf16.mxu0 %v1461
    %5198 = vmatmul.mubr.bf16.gmra.mrb[0].mxu0 %v1460
    %v5199 = vpop.f32.mrb[0].mxu0
    %v5200 = vadd.f32 %v5039, %v5199
    %v5201 = vpop.f32.mrb[0].mxu0
    %v5202 = vadd.f32 %v5041, %v5201
    %v5203 = vpop.f32.mrb[0].mxu0
    %v5204 = vadd.f32 %v5043, %v5203
    %v5205 = vpop.f32.mrb[0].mxu0
    %v5206 = vadd.f32 %v5045, %v5205
    %5207 = vmatprep.mubr.bf16.mxu0 %v1469
    %5208 = vmatmul.mubr.bf16.gmra.mrb[0].mxu0 %v1468
    %v5209 = vpop.f32.mrb[0].mxu0
    %v5210 = vadd.f32 %v5049, %v5209
    %v5211 = vpop.f32.mrb[0].mxu0
    %v5212 = vadd.f32 %v5051, %v5211
    %v5213 = vpop.f32.mrb[0].mxu0
    %v5214 = vadd.f32 %v5053, %v5213
    %v5215 = vpop.f32.mrb[0].mxu0
    %v5216 = vadd.f32 %v5055, %v5215
    %5217 = vmatprep.mubr.bf16.mxu0 %v1477
    %5218 = vmatmul.mubr.bf16.gmra.mrb[0].mxu0 %v1476
    %v5219 = vpop.f32.mrb[0].mxu0
    %v5220 = vadd.f32 %v5059, %v5219
    %v5221 = vpop.f32.mrb[0].mxu0
    %v5222 = vadd.f32 %v5061, %v5221
    %v5223 = vpop.f32.mrb[0].mxu0
    %v5224 = vadd.f32 %v5063, %v5223
    %v5225 = vpop.f32.mrb[0].mxu0
    %v5226 = vadd.f32 %v5065, %v5225
    %5227 = vmatprep.mubr.bf16.mxu0 %v1485
    %5228 = vmatmul.mubr.bf16.gmra.mrb[0].mxu0 %v1484
    %v5229 = vpop.f32.mrb[0].mxu0
    %v5230 = vadd.f32 %v5069, %v5229
    %v5231 = vpop.f32.mrb[0].mxu0
    %v5232 = vadd.f32 %v5071, %v5231
    %v5233 = vpop.f32.mrb[0].mxu0
    %v5234 = vadd.f32 %v5073, %v5233
    %v5235 = vpop.f32.mrb[0].mxu0
    %v5236 = vadd.f32 %v5075, %v5235
    %5237 = vmatprep.mubr.bf16.mxu0 %v1493
    %5238 = vmatmul.mubr.bf16.gmra.mrb[0].mxu0 %v1492
    %v5239 = vpop.f32.mrb[0].mxu0
    %v5240 = vadd.f32 %v5079, %v5239
    %v5241 = vpop.f32.mrb[0].mxu0
    %v5242 = vadd.f32 %v5081, %v5241
    %v5243 = vpop.f32.mrb[0].mxu0
    %v5244 = vadd.f32 %v5083, %v5243
    %v5245 = vpop.f32.mrb[0].mxu0
    %v5246 = vadd.f32 %v5085, %v5245
    %5247 = vmatprep.mubr.bf16.mxu0 %v1501
    %5248 = vmatmul.mubr.bf16.gmra.mrb[0].mxu0 %v1500
    %v5249 = vpop.f32.mrb[0].mxu0
    %v5250 = vadd.f32 %v5089, %v5249
    %v5251 = vpop.f32.mrb[0].mxu0
    %v5252 = vadd.f32 %v5091, %v5251
    %v5253 = vpop.f32.mrb[0].mxu0
    %v5254 = vadd.f32 %v5093, %v5253
    %v5255 = vpop.f32.mrb[0].mxu0
    %v5256 = vadd.f32 %v5095, %v5255
    %5257 = vmatprep.mubr.bf16.mxu0 %v1509
    %5258 = vmatmul.mubr.bf16.gmra.mrb[0].mxu0 %v1508
    %v5259 = vpop.f32.mrb[0].mxu0
    %v5260 = vadd.f32 %v5099, %v5259
    %v5261 = vpop.f32.mrb[0].mxu0
    %v5262 = vadd.f32 %v5101, %v5261
    %v5263 = vpop.f32.mrb[0].mxu0
    %v5264 = vadd.f32 %v5103, %v5263
    %v5265 = vpop.f32.mrb[0].mxu0
    %v5266 = vadd.f32 %v5105, %v5265
    %5267 = vmatprep.mubr.bf16.mxu0 %v1517
    %5268 = vmatmul.mubr.bf16.gmra.mrb[0].mxu0 %v1516
    %v5269 = vpop.f32.mrb[0].mxu0
    %v5270 = vadd.f32 %v5109, %v5269
    %v5271 = vpop.f32.mrb[0].mxu0
    %v5272 = vadd.f32 %v5111, %v5271
    %v5273 = vpop.f32.mrb[0].mxu0
    %v5274 = vpop.f32.mrb[0].mxu0
    %5275 = vdwg.mxu0
    %5276 = vmatprep.subr.bf16.mxu0 %v3611
    %5277 = vmatpush1.bf16.msra.mxu0 %v3610
    %5278 = vmatprep.subr.bf16.mxu0 %v3619
    %5279 = vmatpush1.bf16.msra.mxu0 %v3618
    %5280 = vmatprep.subr.bf16.mxu0 %v3627
    %5281 = vmatpush1.bf16.msra.mxu0 %v3626
    %5282 = vmatprep.subr.bf16.mxu0 %v3635
    %5283 = vmatpush1.bf16.msra.mxu0 %v3634
    %5284 = vmatprep.subr.bf16.mxu0 %v3643
    %5285 = vmatpush1.bf16.msra.mxu0 %v3642
    %5286 = vmatprep.subr.bf16.mxu0 %v3651
    %5287 = vmatpush1.bf16.msra.mxu0 %v3650
    %5288 = vmatprep.subr.bf16.mxu0 %v3659
    %5289 = vmatpush1.bf16.msra.mxu0 %v3658
    %5290 = vmatprep.subr.bf16.mxu0 %v3667
    %5291 = vmatpush1.bf16.msra.mxu0 %v3666
    %5292 = vmatprep.subr.bf16.mxu0 %v3675
    %5293 = vmatpush1.bf16.msra.mxu0 %v3674
    %5294 = vmatprep.subr.bf16.mxu0 %v3683
    %5295 = vmatpush1.bf16.msra.mxu0 %v3682
    %5296 = vmatprep.subr.bf16.mxu0 %v3691
    %5297 = vmatpush1.bf16.msra.mxu0 %v3690
    %5298 = vmatprep.subr.bf16.mxu0 %v3699
    %5299 = vmatpush1.bf16.msra.mxu0 %v3698
    %5300 = vmatprep.subr.bf16.mxu0 %v3707
    %5301 = vmatpush1.bf16.msra.mxu0 %v3706
    %5302 = vmatprep.subr.bf16.mxu0 %v3715
    %5303 = vmatpush1.bf16.msra.mxu0 %v3714
    %5304 = vmatprep.subr.bf16.mxu0 %v3723
    %5305 = vmatpush1.bf16.msra.mxu0 %v3722
    %5306 = vmatprep.subr.bf16.mxu0 %v3731
    %5307 = vmatpush1.bf16.msra.mxu0 %v3730
    %5308 = vmatprep.mubr.bf16.mxu0 %v1415
    %5309 = vmatmul.mubr.bf16.gmra.mrb[0].mxu0 %v1414
    %v5310 = vpop.f32.mrb[0].mxu0
    %v5311 = vadd.f32 %v2043, %v5310
    %v5312 = vpop.f32.mrb[0].mxu0
    %v5313 = vadd.f32 %v2047, %v5312
    %v5314 = vpop.f32.mrb[0].mxu0
    %v5315 = vadd.f32 %v2043, %v5314
    %v5316 = vpop.f32.mrb[0].mxu0
    %v5317 = vadd.f32 %v2047, %v5316
    %5318 = vmatprep.mubr.bf16.mxu0 %v1423
    %5319 = vmatmul.mubr.bf16.gmra.mrb[0].mxu0 %v1422
    %v5320 = vpop.f32.mrb[0].mxu0
    %v5321 = vadd.f32 %v2043, %v5320
    %v5322 = vpop.f32.mrb[0].mxu0
    %v5323 = vadd.f32 %v2047, %v5322
    %v5324 = vpop.f32.mrb[0].mxu0
    %v5325 = vadd.f32 %v2043, %v5324
    %v5326 = vpop.f32.mrb[0].mxu0
    %v5327 = vadd.f32 %v2047, %v5326
    %5328 = vmatprep.mubr.bf16.mxu0 %v1431
    %5329 = vmatmul.mubr.bf16.gmra.mrb[0].mxu0 %v1430
    %v5330 = vpop.f32.mrb[0].mxu0
    %v5331 = vadd.f32 %v2043, %v5330
    %v5332 = vpop.f32.mrb[0].mxu0
    %v5333 = vadd.f32 %v2047, %v5332
    %v5334 = vpop.f32.mrb[0].mxu0
    %v5335 = vadd.f32 %v2043, %v5334
    %v5336 = vpop.f32.mrb[0].mxu0
    %v5337 = vadd.f32 %v2047, %v5336
    %5338 = vmatprep.mubr.bf16.mxu0 %v1439
    %5339 = vmatmul.mubr.bf16.gmra.mrb[0].mxu0 %v1438
    %v5340 = vpop.f32.mrb[0].mxu0
    %v5341 = vadd.f32 %v2043, %v5340
    %v5342 = vpop.f32.mrb[0].mxu0
    %v5343 = vadd.f32 %v2047, %v5342
    %v5344 = vpop.f32.mrb[0].mxu0
    %v5345 = vadd.f32 %v2043, %v5344
    %v5346 = vpop.f32.mrb[0].mxu0
    %v5347 = vadd.f32 %v2047, %v5346
    %5348 = vmatprep.mubr.bf16.mxu0 %v1447
    %5349 = vmatmul.mubr.bf16.gmra.mrb[0].mxu0 %v1446
    %v5350 = vpop.f32.mrb[0].mxu0
    %v5351 = vadd.f32 %v2043, %v5350
    %v5352 = vpop.f32.mrb[0].mxu0
    %v5353 = vadd.f32 %v2047, %v5352
    %v5354 = vpop.f32.mrb[0].mxu0
    %v5355 = vadd.f32 %v2043, %v5354
    %v5356 = vpop.f32.mrb[0].mxu0
    %v5357 = vadd.f32 %v2047, %v5356
    %5358 = vmatprep.mubr.bf16.mxu0 %v1455
    %5359 = vmatmul.mubr.bf16.gmra.mrb[0].mxu0 %v1454
    %v5360 = vpop.f32.mrb[0].mxu0
    %v5361 = vadd.f32 %v2043, %v5360
    %v5362 = vpop.f32.mrb[0].mxu0
    %v5363 = vadd.f32 %v2047, %v5362
    %v5364 = vpop.f32.mrb[0].mxu0
    %v5365 = vadd.f32 %v2043, %v5364
    %v5366 = vpop.f32.mrb[0].mxu0
    %v5367 = vadd.f32 %v2047, %v5366
    %5368 = vmatprep.mubr.bf16.mxu0 %v1463
    %5369 = vmatmul.mubr.bf16.gmra.mrb[0].mxu0 %v1462
    %v5370 = vpop.f32.mrb[0].mxu0
    %v5371 = vadd.f32 %v2043, %v5370
    %v5372 = vpop.f32.mrb[0].mxu0
    %v5373 = vadd.f32 %v2047, %v5372
    %v5374 = vpop.f32.mrb[0].mxu0
    %v5375 = vadd.f32 %v2043, %v5374
    %v5376 = vpop.f32.mrb[0].mxu0
    %v5377 = vadd.f32 %v2047, %v5376
    %5378 = vmatprep.mubr.bf16.mxu0 %v1471
    %5379 = vmatmul.mubr.bf16.gmra.mrb[0].mxu0 %v1470
    %v5380 = vpop.f32.mrb[0].mxu0
    %v5381 = vadd.f32 %v2043, %v5380
    %v5382 = vpop.f32.mrb[0].mxu0
    %v5383 = vadd.f32 %v2047, %v5382
    %v5384 = vpop.f32.mrb[0].mxu0
    %v5385 = vadd.f32 %v2043, %v5384
    %v5386 = vpop.f32.mrb[0].mxu0
    %v5387 = vadd.f32 %v2047, %v5386
    %5388 = vmatprep.mubr.bf16.mxu0 %v1479
    %5389 = vmatmul.mubr.bf16.gmra.mrb[0].mxu0 %v1478
    %v5390 = vpop.f32.mrb[0].mxu0
    %v5391 = vadd.f32 %v2043, %v5390
    %v5392 = vpop.f32.mrb[0].mxu0
    %v5393 = vadd.f32 %v2047, %v5392
    %v5394 = vpop.f32.mrb[0].mxu0
    %v5395 = vadd.f32 %v2043, %v5394
    %v5396 = vpop.f32.mrb[0].mxu0
    %v5397 = vadd.f32 %v2047, %v5396
    %5398 = vmatprep.mubr.bf16.mxu0 %v1487
    %5399 = vmatmul.mubr.bf16.gmra.mrb[0].mxu0 %v1486
    %v5400 = vpop.f32.mrb[0].mxu0
    %v5401 = vadd.f32 %v2043, %v5400
    %v5402 = vpop.f32.mrb[0].mxu0
    %v5403 = vadd.f32 %v2047, %v5402
    %v5404 = vpop.f32.mrb[0].mxu0
    %v5405 = vadd.f32 %v2043, %v5404
    %v5406 = vpop.f32.mrb[0].mxu0
    %v5407 = vadd.f32 %v2047, %v5406
    %5408 = vmatprep.mubr.bf16.mxu0 %v1495
    %5409 = vmatmul.mubr.bf16.gmra.mrb[0].mxu0 %v1494
    %v5410 = vpop.f32.mrb[0].mxu0
    %v5411 = vadd.f32 %v2043, %v5410
    %v5412 = vpop.f32.mrb[0].mxu0
    %v5413 = vadd.f32 %v2047, %v5412
    %v5414 = vpop.f32.mrb[0].mxu0
    %v5415 = vadd.f32 %v2043, %v5414
    %v5416 = vpop.f32.mrb[0].mxu0
    %v5417 = vadd.f32 %v2047, %v5416
    %5418 = vmatprep.mubr.bf16.mxu0 %v1503
    %5419 = vmatmul.mubr.bf16.gmra.mrb[0].mxu0 %v1502
    %v5420 = vpop.f32.mrb[0].mxu0
    %v5421 = vadd.f32 %v2043, %v5420
    %v5422 = vpop.f32.mrb[0].mxu0
    %v5423 = vadd.f32 %v2047, %v5422
    %v5424 = vpop.f32.mrb[0].mxu0
    %v5425 = vadd.f32 %v2043, %v5424
    %v5426 = vpop.f32.mrb[0].mxu0
    %v5427 = vadd.f32 %v2047, %v5426
    %5428 = vmatprep.mubr.bf16.mxu0 %v1511
    %5429 = vmatmul.mubr.bf16.gmra.mrb[0].mxu0 %v1510
    %v5430 = vpop.f32.mrb[0].mxu0
    %v5431 = vadd.f32 %v2043, %v5430
    %v5432 = vpop.f32.mrb[0].mxu0
    %v5433 = vadd.f32 %v2047, %v5432
    %v5434 = vpop.f32.mrb[0].mxu0
    %v5435 = vpop.f32.mrb[0].mxu0
    %5436 = vdwg.mxu0
    %5437 = vmatprep.subr.bf16.mxu0 %v3739
    %5438 = vmatpush1.bf16.msra.mxu0 %v3738
    %5439 = vmatprep.subr.bf16.mxu0 %v3747
    %5440 = vmatpush1.bf16.msra.mxu0 %v3746
    %5441 = vmatprep.subr.bf16.mxu0 %v3755
    %5442 = vmatpush1.bf16.msra.mxu0 %v3754
    %5443 = vmatprep.subr.bf16.mxu0 %v3763
    %5444 = vmatpush1.bf16.msra.mxu0 %v3762
    %5445 = vmatprep.subr.bf16.mxu0 %v3771
    %5446 = vmatpush1.bf16.msra.mxu0 %v3770
    %5447 = vmatprep.subr.bf16.mxu0 %v3779
    %5448 = vmatpush1.bf16.msra.mxu0 %v3778
    %5449 = vmatprep.subr.bf16.mxu0 %v3787
    %5450 = vmatpush1.bf16.msra.mxu0 %v3786
    %5451 = vmatprep.subr.bf16.mxu0 %v3795
    %5452 = vmatpush1.bf16.msra.mxu0 %v3794
    %5453 = vmatprep.subr.bf16.mxu0 %v3803
    %5454 = vmatpush1.bf16.msra.mxu0 %v3802
    %5455 = vmatprep.subr.bf16.mxu0 %v3811
    %5456 = vmatpush1.bf16.msra.mxu0 %v3810
    %5457 = vmatprep.subr.bf16.mxu0 %v3819
    %5458 = vmatpush1.bf16.msra.mxu0 %v3818
    %5459 = vmatprep.subr.bf16.mxu0 %v3827
    %5460 = vmatpush1.bf16.msra.mxu0 %v3826
    %5461 = vmatprep.subr.bf16.mxu0 %v3835
    %5462 = vmatpush1.bf16.msra.mxu0 %v3834
    %5463 = vmatprep.subr.bf16.mxu0 %v3843
    %5464 = vmatpush1.bf16.msra.mxu0 %v3842
    %5465 = vmatprep.subr.bf16.mxu0 %v3851
    %5466 = vmatpush1.bf16.msra.mxu0 %v3850
    %5467 = vmatprep.subr.bf16.mxu0 %v3859
    %5468 = vmatpush1.bf16.msra.mxu0 %v3858
    %5469 = vmatprep.mubr.bf16.mxu0 %v1417
    %5470 = vmatmul.mubr.bf16.gmra.mrb[0].mxu0 %v1416
    %v5471 = vpop.f32.mrb[0].mxu0
    %v5472 = vadd.f32 %v5311, %v5471
    %v5473 = vpop.f32.mrb[0].mxu0
    %v5474 = vadd.f32 %v5313, %v5473
    %v5475 = vpop.f32.mrb[0].mxu0
    %v5476 = vadd.f32 %v5315, %v5475
    %v5477 = vpop.f32.mrb[0].mxu0
    %v5478 = vadd.f32 %v5317, %v5477
    %5479 = vmatprep.mubr.bf16.mxu0 %v1425
    %5480 = vmatmul.mubr.bf16.gmra.mrb[0].mxu0 %v1424
    %v5481 = vpop.f32.mrb[0].mxu0
    %v5482 = vadd.f32 %v5321, %v5481
    %v5483 = vpop.f32.mrb[0].mxu0
    %v5484 = vadd.f32 %v5323, %v5483
    %v5485 = vpop.f32.mrb[0].mxu0
    %v5486 = vadd.f32 %v5325, %v5485
    %v5487 = vpop.f32.mrb[0].mxu0
    %v5488 = vadd.f32 %v5327, %v5487
    %5489 = vmatprep.mubr.bf16.mxu0 %v1433
    %5490 = vmatmul.mubr.bf16.gmra.mrb[0].mxu0 %v1432
    %v5491 = vpop.f32.mrb[0].mxu0
    %v5492 = vadd.f32 %v5331, %v5491
    %v5493 = vpop.f32.mrb[0].mxu0
    %v5494 = vadd.f32 %v5333, %v5493
    %v5495 = vpop.f32.mrb[0].mxu0
    %v5496 = vadd.f32 %v5335, %v5495
    %v5497 = vpop.f32.mrb[0].mxu0
    %v5498 = vadd.f32 %v5337, %v5497
    %5499 = vmatprep.mubr.bf16.mxu0 %v1441
    %5500 = vmatmul.mubr.bf16.gmra.mrb[0].mxu0 %v1440
    %v5501 = vpop.f32.mrb[0].mxu0
    %v5502 = vadd.f32 %v5341, %v5501
    %v5503 = vpop.f32.mrb[0].mxu0
    %v5504 = vadd.f32 %v5343, %v5503
    %v5505 = vpop.f32.mrb[0].mxu0
    %v5506 = vadd.f32 %v5345, %v5505
    %v5507 = vpop.f32.mrb[0].mxu0
    %v5508 = vadd.f32 %v5347, %v5507
    %5509 = vmatprep.mubr.bf16.mxu0 %v1449
    %5510 = vmatmul.mubr.bf16.gmra.mrb[0].mxu0 %v1448
    %v5511 = vpop.f32.mrb[0].mxu0
    %v5512 = vadd.f32 %v5351, %v5511
    %v5513 = vpop.f32.mrb[0].mxu0
    %v5514 = vadd.f32 %v5353, %v5513
    %v5515 = vpop.f32.mrb[0].mxu0
    %v5516 = vadd.f32 %v5355, %v5515
    %v5517 = vpop.f32.mrb[0].mxu0
    %v5518 = vadd.f32 %v5357, %v5517
    %5519 = vmatprep.mubr.bf16.mxu0 %v1457
    %5520 = vmatmul.mubr.bf16.gmra.mrb[0].mxu0 %v1456
    %v5521 = vpop.f32.mrb[0].mxu0
    %v5522 = vadd.f32 %v5361, %v5521
    %v5523 = vpop.f32.mrb[0].mxu0
    %v5524 = vadd.f32 %v5363, %v5523
    %v5525 = vpop.f32.mrb[0].mxu0
    %v5526 = vadd.f32 %v5365, %v5525
    %v5527 = vpop.f32.mrb[0].mxu0
    %v5528 = vadd.f32 %v5367, %v5527
    %5529 = vmatprep.mubr.bf16.mxu0 %v1465
    %5530 = vmatmul.mubr.bf16.gmra.mrb[0].mxu0 %v1464
    %v5531 = vpop.f32.mrb[0].mxu0
    %v5532 = vadd.f32 %v5371, %v5531
    %v5533 = vpop.f32.mrb[0].mxu0
    %v5534 = vadd.f32 %v5373, %v5533
    %v5535 = vpop.f32.mrb[0].mxu0
    %v5536 = vadd.f32 %v5375, %v5535
    %v5537 = vpop.f32.mrb[0].mxu0
    %v5538 = vadd.f32 %v5377, %v5537
    %5539 = vmatprep.mubr.bf16.mxu0 %v1473
    %5540 = vmatmul.mubr.bf16.gmra.mrb[0].mxu0 %v1472
    %v5541 = vpop.f32.mrb[0].mxu0
    %v5542 = vadd.f32 %v5381, %v5541
    %v5543 = vpop.f32.mrb[0].mxu0
    %v5544 = vadd.f32 %v5383, %v5543
    %v5545 = vpop.f32.mrb[0].mxu0
    %v5546 = vadd.f32 %v5385, %v5545
    %v5547 = vpop.f32.mrb[0].mxu0
    %v5548 = vadd.f32 %v5387, %v5547
    %5549 = vmatprep.mubr.bf16.mxu0 %v1481
    %5550 = vmatmul.mubr.bf16.gmra.mrb[0].mxu0 %v1480
    %v5551 = vpop.f32.mrb[0].mxu0
    %v5552 = vadd.f32 %v5391, %v5551
    %v5553 = vpop.f32.mrb[0].mxu0
    %v5554 = vadd.f32 %v5393, %v5553
    %v5555 = vpop.f32.mrb[0].mxu0
    %v5556 = vadd.f32 %v5395, %v5555
    %v5557 = vpop.f32.mrb[0].mxu0
    %v5558 = vadd.f32 %v5397, %v5557
    %5559 = vmatprep.mubr.bf16.mxu0 %v1489
    %5560 = vmatmul.mubr.bf16.gmra.mrb[0].mxu0 %v1488
    %v5561 = vpop.f32.mrb[0].mxu0
    %v5562 = vadd.f32 %v5401, %v5561
    %v5563 = vpop.f32.mrb[0].mxu0
    %v5564 = vadd.f32 %v5403, %v5563
    %v5565 = vpop.f32.mrb[0].mxu0
    %v5566 = vadd.f32 %v5405, %v5565
    %v5567 = vpop.f32.mrb[0].mxu0
    %v5568 = vadd.f32 %v5407, %v5567
    %5569 = vmatprep.mubr.bf16.mxu0 %v1497
    %5570 = vmatmul.mubr.bf16.gmra.mrb[0].mxu0 %v1496
    %v5571 = vpop.f32.mrb[0].mxu0
    %v5572 = vadd.f32 %v5411, %v5571
    %v5573 = vpop.f32.mrb[0].mxu0
    %v5574 = vadd.f32 %v5413, %v5573
    %v5575 = vpop.f32.mrb[0].mxu0
    %v5576 = vadd.f32 %v5415, %v5575
    %v5577 = vpop.f32.mrb[0].mxu0
    %v5578 = vadd.f32 %v5417, %v5577
    %5579 = vmatprep.mubr.bf16.mxu0 %v1505
    %5580 = vmatmul.mubr.bf16.gmra.mrb[0].mxu0 %v1504
    %v5581 = vpop.f32.mrb[0].mxu0
    %v5582 = vadd.f32 %v5421, %v5581
    %v5583 = vpop.f32.mrb[0].mxu0
    %v5584 = vadd.f32 %v5423, %v5583
    %v5585 = vpop.f32.mrb[0].mxu0
    %v5586 = vadd.f32 %v5425, %v5585
    %v5587 = vpop.f32.mrb[0].mxu0
    %v5588 = vadd.f32 %v5427, %v5587
    %5589 = vmatprep.mubr.bf16.mxu0 %v1513
    %5590 = vmatmul.mubr.bf16.gmra.mrb[0].mxu0 %v1512
    %v5591 = vpop.f32.mrb[0].mxu0
    %v5592 = vadd.f32 %v5431, %v5591
    %v5593 = vpop.f32.mrb[0].mxu0
    %v5594 = vadd.f32 %v5433, %v5593
    %v5595 = vpop.f32.mrb[0].mxu0
    %v5596 = vpop.f32.mrb[0].mxu0
    %5597 = vdwg.mxu0
    %5598 = vmatprep.subr.bf16.mxu0 %v3867
    %5599 = vmatpush1.bf16.msra.mxu0 %v3866
    %5600 = vmatprep.subr.bf16.mxu0 %v3875
    %5601 = vmatpush1.bf16.msra.mxu0 %v3874
    %5602 = vmatprep.subr.bf16.mxu0 %v3883
    %5603 = vmatpush1.bf16.msra.mxu0 %v3882
    %5604 = vmatprep.subr.bf16.mxu0 %v3891
    %5605 = vmatpush1.bf16.msra.mxu0 %v3890
    %5606 = vmatprep.subr.bf16.mxu0 %v3899
    %5607 = vmatpush1.bf16.msra.mxu0 %v3898
    %5608 = vmatprep.subr.bf16.mxu0 %v3907
    %5609 = vmatpush1.bf16.msra.mxu0 %v3906
    %5610 = vmatprep.subr.bf16.mxu0 %v3915
    %5611 = vmatpush1.bf16.msra.mxu0 %v3914
    %5612 = vmatprep.subr.bf16.mxu0 %v3923
    %5613 = vmatpush1.bf16.msra.mxu0 %v3922
    %5614 = vmatprep.subr.bf16.mxu0 %v3931
    %5615 = vmatpush1.bf16.msra.mxu0 %v3930
    %5616 = vmatprep.subr.bf16.mxu0 %v3939
    %5617 = vmatpush1.bf16.msra.mxu0 %v3938
    %5618 = vmatprep.subr.bf16.mxu0 %v3947
    %5619 = vmatpush1.bf16.msra.mxu0 %v3946
    %5620 = vmatprep.subr.bf16.mxu0 %v3955
    %5621 = vmatpush1.bf16.msra.mxu0 %v3954
    %5622 = vmatprep.subr.bf16.mxu0 %v3963
    %5623 = vmatpush1.bf16.msra.mxu0 %v3962
    %5624 = vmatprep.subr.bf16.mxu0 %v3971
    %5625 = vmatpush1.bf16.msra.mxu0 %v3970
    %5626 = vmatprep.subr.bf16.mxu0 %v3979
    %5627 = vmatpush1.bf16.msra.mxu0 %v3978
    %5628 = vmatprep.subr.bf16.mxu0 %v3987
    %5629 = vmatpush1.bf16.msra.mxu0 %v3986
    %5630 = vmatprep.mubr.bf16.mxu0 %v1419
    %5631 = vmatmul.mubr.bf16.gmra.mrb[0].mxu0 %v1418
    %v5632 = vpop.f32.mrb[0].mxu0
    %v5633 = vadd.f32 %v5472, %v5632
    %v5634 = vpop.f32.mrb[0].mxu0
    %v5635 = vadd.f32 %v5474, %v5634
    %v5636 = vpop.f32.mrb[0].mxu0
    %v5637 = vadd.f32 %v5476, %v5636
    %v5638 = vpop.f32.mrb[0].mxu0
    %v5639 = vadd.f32 %v5478, %v5638
    %5640 = vmatprep.mubr.bf16.mxu0 %v1427
    %5641 = vmatmul.mubr.bf16.gmra.mrb[0].mxu0 %v1426
    %v5642 = vpop.f32.mrb[0].mxu0
    %v5643 = vadd.f32 %v5482, %v5642
    %v5644 = vpop.f32.mrb[0].mxu0
    %v5645 = vadd.f32 %v5484, %v5644
    %v5646 = vpop.f32.mrb[0].mxu0
    %v5647 = vadd.f32 %v5486, %v5646
    %v5648 = vpop.f32.mrb[0].mxu0
    %v5649 = vadd.f32 %v5488, %v5648
    %5650 = vmatprep.mubr.bf16.mxu0 %v1435
    %5651 = vmatmul.mubr.bf16.gmra.mrb[0].mxu0 %v1434
    %v5652 = vpop.f32.mrb[0].mxu0
    %v5653 = vadd.f32 %v5492, %v5652
    %v5654 = vpop.f32.mrb[0].mxu0
    %v5655 = vadd.f32 %v5494, %v5654
    %v5656 = vpop.f32.mrb[0].mxu0
    %v5657 = vadd.f32 %v5496, %v5656
    %v5658 = vpop.f32.mrb[0].mxu0
    %v5659 = vadd.f32 %v5498, %v5658
    %5660 = vmatprep.mubr.bf16.mxu0 %v1443
    %5661 = vmatmul.mubr.bf16.gmra.mrb[0].mxu0 %v1442
    %v5662 = vpop.f32.mrb[0].mxu0
    %v5663 = vadd.f32 %v5502, %v5662
    %v5664 = vpop.f32.mrb[0].mxu0
    %v5665 = vadd.f32 %v5504, %v5664
    %v5666 = vpop.f32.mrb[0].mxu0
    %v5667 = vadd.f32 %v5506, %v5666
    %v5668 = vpop.f32.mrb[0].mxu0
    %v5669 = vadd.f32 %v5508, %v5668
    %5670 = vmatprep.mubr.bf16.mxu0 %v1451
    %5671 = vmatmul.mubr.bf16.gmra.mrb[0].mxu0 %v1450
    %v5672 = vpop.f32.mrb[0].mxu0
    %v5673 = vadd.f32 %v5512, %v5672
    %v5674 = vpop.f32.mrb[0].mxu0
    %v5675 = vadd.f32 %v5514, %v5674
    %v5676 = vpop.f32.mrb[0].mxu0
    %v5677 = vadd.f32 %v5516, %v5676
    %v5678 = vpop.f32.mrb[0].mxu0
    %v5679 = vadd.f32 %v5518, %v5678
    %5680 = vmatprep.mubr.bf16.mxu0 %v1459
    %5681 = vmatmul.mubr.bf16.gmra.mrb[0].mxu0 %v1458
    %v5682 = vpop.f32.mrb[0].mxu0
    %v5683 = vadd.f32 %v5522, %v5682
    %v5684 = vpop.f32.mrb[0].mxu0
    %v5685 = vadd.f32 %v5524, %v5684
    %v5686 = vpop.f32.mrb[0].mxu0
    %v5687 = vadd.f32 %v5526, %v5686
    %v5688 = vpop.f32.mrb[0].mxu0
    %v5689 = vadd.f32 %v5528, %v5688
    %5690 = vmatprep.mubr.bf16.mxu0 %v1467
    %5691 = vmatmul.mubr.bf16.gmra.mrb[0].mxu0 %v1466
    %v5692 = vpop.f32.mrb[0].mxu0
    %v5693 = vadd.f32 %v5532, %v5692
    %v5694 = vpop.f32.mrb[0].mxu0
    %v5695 = vadd.f32 %v5534, %v5694
    %v5696 = vpop.f32.mrb[0].mxu0
    %v5697 = vadd.f32 %v5536, %v5696
    %v5698 = vpop.f32.mrb[0].mxu0
    %v5699 = vadd.f32 %v5538, %v5698
    %5700 = vmatprep.mubr.bf16.mxu0 %v1475
    %5701 = vmatmul.mubr.bf16.gmra.mrb[0].mxu0 %v1474
    %v5702 = vpop.f32.mrb[0].mxu0
    %v5703 = vadd.f32 %v5542, %v5702
    %v5704 = vpop.f32.mrb[0].mxu0
    %v5705 = vadd.f32 %v5544, %v5704
    %v5706 = vpop.f32.mrb[0].mxu0
    %v5707 = vadd.f32 %v5546, %v5706
    %v5708 = vpop.f32.mrb[0].mxu0
    %v5709 = vadd.f32 %v5548, %v5708
    %5710 = vmatprep.mubr.bf16.mxu0 %v1483
    %5711 = vmatmul.mubr.bf16.gmra.mrb[0].mxu0 %v1482
    %v5712 = vpop.f32.mrb[0].mxu0
    %v5713 = vadd.f32 %v5552, %v5712
    %v5714 = vpop.f32.mrb[0].mxu0
    %v5715 = vadd.f32 %v5554, %v5714
    %v5716 = vpop.f32.mrb[0].mxu0
    %v5717 = vadd.f32 %v5556, %v5716
    %v5718 = vpop.f32.mrb[0].mxu0
    %v5719 = vadd.f32 %v5558, %v5718
    %5720 = vmatprep.mubr.bf16.mxu0 %v1491
    %5721 = vmatmul.mubr.bf16.gmra.mrb[0].mxu0 %v1490
    %v5722 = vpop.f32.mrb[0].mxu0
    %v5723 = vadd.f32 %v5562, %v5722
    %v5724 = vpop.f32.mrb[0].mxu0
    %v5725 = vadd.f32 %v5564, %v5724
    %v5726 = vpop.f32.mrb[0].mxu0
    %v5727 = vadd.f32 %v5566, %v5726
    %v5728 = vpop.f32.mrb[0].mxu0
    %v5729 = vadd.f32 %v5568, %v5728
    %5730 = vmatprep.mubr.bf16.mxu0 %v1499
    %5731 = vmatmul.mubr.bf16.gmra.mrb[0].mxu0 %v1498
    %v5732 = vpop.f32.mrb[0].mxu0
    %v5733 = vadd.f32 %v5572, %v5732
    %v5734 = vpop.f32.mrb[0].mxu0
    %v5735 = vadd.f32 %v5574, %v5734
    %v5736 = vpop.f32.mrb[0].mxu0
    %v5737 = vadd.f32 %v5576, %v5736
    %v5738 = vpop.f32.mrb[0].mxu0
    %v5739 = vadd.f32 %v5578, %v5738
    %5740 = vmatprep.mubr.bf16.mxu0 %v1507
    %5741 = vmatmul.mubr.bf16.gmra.mrb[0].mxu0 %v1506
    %v5742 = vpop.f32.mrb[0].mxu0
    %v5743 = vadd.f32 %v5582, %v5742
    %v5744 = vpop.f32.mrb[0].mxu0
    %v5745 = vadd.f32 %v5584, %v5744
    %v5746 = vpop.f32.mrb[0].mxu0
    %v5747 = vadd.f32 %v5586, %v5746
    %v5748 = vpop.f32.mrb[0].mxu0
    %v5749 = vadd.f32 %v5588, %v5748
    %5750 = vmatprep.mubr.bf16.mxu0 %v1515
    %5751 = vmatmul.mubr.bf16.gmra.mrb[0].mxu0 %v1514
    %v5752 = vpop.f32.mrb[0].mxu0
    %v5753 = vadd.f32 %v5592, %v5752
    %v5754 = vpop.f32.mrb[0].mxu0
    %v5755 = vadd.f32 %v5594, %v5754
    %v5756 = vpop.f32.mrb[0].mxu0
    %v5757 = vpop.f32.mrb[0].mxu0
    %5758 = vdwg.mxu0
    %5759 = vmatprep.subr.bf16.mxu0 %v3995
    %5760 = vmatpush1.bf16.msra.mxu0 %v3994
    %5761 = vmatprep.subr.bf16.mxu0 %v4003
    %5762 = vmatpush1.bf16.msra.mxu0 %v4002
    %5763 = vmatprep.subr.bf16.mxu0 %v4011
    %5764 = vmatpush1.bf16.msra.mxu0 %v4010
    %5765 = vmatprep.subr.bf16.mxu0 %v4019
    %5766 = vmatpush1.bf16.msra.mxu0 %v4018
    %5767 = vmatprep.subr.bf16.mxu0 %v4027
    %5768 = vmatpush1.bf16.msra.mxu0 %v4026
    %5769 = vmatprep.subr.bf16.mxu0 %v4035
    %5770 = vmatpush1.bf16.msra.mxu0 %v4034
    %5771 = vmatprep.subr.bf16.mxu0 %v4043
    %5772 = vmatpush1.bf16.msra.mxu0 %v4042
    %5773 = vmatprep.subr.bf16.mxu0 %v4051
    %5774 = vmatpush1.bf16.msra.mxu0 %v4050
    %5775 = vmatprep.subr.bf16.mxu0 %v4059
    %5776 = vmatpush1.bf16.msra.mxu0 %v4058
    %5777 = vmatprep.subr.bf16.mxu0 %v4067
    %5778 = vmatpush1.bf16.msra.mxu0 %v4066
    %5779 = vmatprep.subr.bf16.mxu0 %v4075
    %5780 = vmatpush1.bf16.msra.mxu0 %v4074
    %5781 = vmatprep.subr.bf16.mxu0 %v4083
    %5782 = vmatpush1.bf16.msra.mxu0 %v4082
    %5783 = vmatprep.subr.bf16.mxu0 %v4091
    %5784 = vmatpush1.bf16.msra.mxu0 %v4090
    %5785 = vmatprep.subr.bf16.mxu0 %v4099
    %5786 = vmatpush1.bf16.msra.mxu0 %v4098
    %5787 = vmatprep.subr.bf16.mxu0 %v4107
    %5788 = vmatpush1.bf16.msra.mxu0 %v4106
    %5789 = vmatprep.subr.bf16.mxu0 %v4115
    %5790 = vmatpush1.bf16.msra.mxu0 %v4114
    %5791 = vmatprep.mubr.bf16.mxu0 %v1421
    %5792 = vmatmul.mubr.bf16.gmra.mrb[0].mxu0 %v1420
    %v5793 = vpop.f32.mrb[0].mxu0
    %v5794 = vadd.f32 %v5633, %v5793
    %v5795 = vpop.f32.mrb[0].mxu0
    %v5796 = vadd.f32 %v5635, %v5795
    %v5797 = vpop.f32.mrb[0].mxu0
    %v5798 = vadd.f32 %v5637, %v5797
    %v5799 = vpop.f32.mrb[0].mxu0
    %v5800 = vadd.f32 %v5639, %v5799
    %5801 = vmatprep.mubr.bf16.mxu0 %v1429
    %5802 = vmatmul.mubr.bf16.gmra.mrb[0].mxu0 %v1428
    %v5803 = vpop.f32.mrb[0].mxu0
    %v5804 = vadd.f32 %v5643, %v5803
    %v5805 = vpop.f32.mrb[0].mxu0
    %v5806 = vadd.f32 %v5645, %v5805
    %v5807 = vpop.f32.mrb[0].mxu0
    %v5808 = vadd.f32 %v5647, %v5807
    %v5809 = vpop.f32.mrb[0].mxu0
    %v5810 = vadd.f32 %v5649, %v5809
    %5811 = vmatprep.mubr.bf16.mxu0 %v1437
    %5812 = vmatmul.mubr.bf16.gmra.mrb[0].mxu0 %v1436
    %v5813 = vpop.f32.mrb[0].mxu0
    %v5814 = vadd.f32 %v5653, %v5813
    %v5815 = vpop.f32.mrb[0].mxu0
    %v5816 = vadd.f32 %v5655, %v5815
    %v5817 = vpop.f32.mrb[0].mxu0
    %v5818 = vadd.f32 %v5657, %v5817
    %v5819 = vpop.f32.mrb[0].mxu0
    %v5820 = vadd.f32 %v5659, %v5819
    %5821 = vmatprep.mubr.bf16.mxu0 %v1445
    %5822 = vmatmul.mubr.bf16.gmra.mrb[0].mxu0 %v1444
    %v5823 = vpop.f32.mrb[0].mxu0
    %v5824 = vadd.f32 %v5663, %v5823
    %v5825 = vpop.f32.mrb[0].mxu0
    %v5826 = vadd.f32 %v5665, %v5825
    %v5827 = vpop.f32.mrb[0].mxu0
    %v5828 = vadd.f32 %v5667, %v5827
    %v5829 = vpop.f32.mrb[0].mxu0
    %v5830 = vadd.f32 %v5669, %v5829
    %5831 = vmatprep.mubr.bf16.mxu0 %v1453
    %5832 = vmatmul.mubr.bf16.gmra.mrb[0].mxu0 %v1452
    %v5833 = vpop.f32.mrb[0].mxu0
    %v5834 = vadd.f32 %v5673, %v5833
    %v5835 = vpop.f32.mrb[0].mxu0
    %v5836 = vadd.f32 %v5675, %v5835
    %v5837 = vpop.f32.mrb[0].mxu0
    %v5838 = vadd.f32 %v5677, %v5837
    %v5839 = vpop.f32.mrb[0].mxu0
    %v5840 = vadd.f32 %v5679, %v5839
    %5841 = vmatprep.mubr.bf16.mxu0 %v1461
    %5842 = vmatmul.mubr.bf16.gmra.mrb[0].mxu0 %v1460
    %v5843 = vpop.f32.mrb[0].mxu0
    %v5844 = vadd.f32 %v5683, %v5843
    %v5845 = vpop.f32.mrb[0].mxu0
    %v5846 = vadd.f32 %v5685, %v5845
    %v5847 = vpop.f32.mrb[0].mxu0
    %v5848 = vadd.f32 %v5687, %v5847
    %v5849 = vpop.f32.mrb[0].mxu0
    %v5850 = vadd.f32 %v5689, %v5849
    %5851 = vmatprep.mubr.bf16.mxu0 %v1469
    %5852 = vmatmul.mubr.bf16.gmra.mrb[0].mxu0 %v1468
    %v5853 = vpop.f32.mrb[0].mxu0
    %v5854 = vadd.f32 %v5693, %v5853
    %v5855 = vpop.f32.mrb[0].mxu0
    %v5856 = vadd.f32 %v5695, %v5855
    %v5857 = vpop.f32.mrb[0].mxu0
    %v5858 = vadd.f32 %v5697, %v5857
    %v5859 = vpop.f32.mrb[0].mxu0
    %v5860 = vadd.f32 %v5699, %v5859
    %5861 = vmatprep.mubr.bf16.mxu0 %v1477
    %5862 = vmatmul.mubr.bf16.gmra.mrb[0].mxu0 %v1476
    %v5863 = vpop.f32.mrb[0].mxu0
    %v5864 = vadd.f32 %v5703, %v5863
    %v5865 = vpop.f32.mrb[0].mxu0
    %v5866 = vadd.f32 %v5705, %v5865
    %v5867 = vpop.f32.mrb[0].mxu0
    %v5868 = vadd.f32 %v5707, %v5867
    %v5869 = vpop.f32.mrb[0].mxu0
    %v5870 = vadd.f32 %v5709, %v5869
    %5871 = vmatprep.mubr.bf16.mxu0 %v1485
    %5872 = vmatmul.mubr.bf16.gmra.mrb[0].mxu0 %v1484
    %v5873 = vpop.f32.mrb[0].mxu0
    %v5874 = vadd.f32 %v5713, %v5873
    %v5875 = vpop.f32.mrb[0].mxu0
    %v5876 = vadd.f32 %v5715, %v5875
    %v5877 = vpop.f32.mrb[0].mxu0
    %v5878 = vadd.f32 %v5717, %v5877
    %v5879 = vpop.f32.mrb[0].mxu0
    %v5880 = vadd.f32 %v5719, %v5879
    %5881 = vmatprep.mubr.bf16.mxu0 %v1493
    %5882 = vmatmul.mubr.bf16.gmra.mrb[0].mxu0 %v1492
    %v5883 = vpop.f32.mrb[0].mxu0
    %v5884 = vadd.f32 %v5723, %v5883
    %v5885 = vpop.f32.mrb[0].mxu0
    %v5886 = vadd.f32 %v5725, %v5885
    %v5887 = vpop.f32.mrb[0].mxu0
    %v5888 = vadd.f32 %v5727, %v5887
    %v5889 = vpop.f32.mrb[0].mxu0
    %v5890 = vadd.f32 %v5729, %v5889
    %5891 = vmatprep.mubr.bf16.mxu0 %v1501
    %5892 = vmatmul.mubr.bf16.gmra.mrb[0].mxu0 %v1500
    %v5893 = vpop.f32.mrb[0].mxu0
    %v5894 = vadd.f32 %v5733, %v5893
    %v5895 = vpop.f32.mrb[0].mxu0
    %v5896 = vadd.f32 %v5735, %v5895
    %v5897 = vpop.f32.mrb[0].mxu0
    %v5898 = vadd.f32 %v5737, %v5897
    %v5899 = vpop.f32.mrb[0].mxu0
    %v5900 = vadd.f32 %v5739, %v5899
    %5901 = vmatprep.mubr.bf16.mxu0 %v1509
    %5902 = vmatmul.mubr.bf16.gmra.mrb[0].mxu0 %v1508
    %v5903 = vpop.f32.mrb[0].mxu0
    %v5904 = vadd.f32 %v5743, %v5903
    %v5905 = vpop.f32.mrb[0].mxu0
    %v5906 = vadd.f32 %v5745, %v5905
    %v5907 = vpop.f32.mrb[0].mxu0
    %v5908 = vadd.f32 %v5747, %v5907
    %v5909 = vpop.f32.mrb[0].mxu0
    %v5910 = vadd.f32 %v5749, %v5909
    %5911 = vmatprep.mubr.bf16.mxu0 %v1517
    %5912 = vmatmul.mubr.bf16.gmra.mrb[0].mxu0 %v1516
    %v5913 = vpop.f32.mrb[0].mxu0
    %v5914 = vadd.f32 %v5753, %v5913
    %v5915 = vpop.f32.mrb[0].mxu0
    %v5916 = vadd.f32 %v5755, %v5915
    %v5917 = vpop.f32.mrb[0].mxu0
    %v5918 = vpop.f32.mrb[0].mxu0
    %5919 = vdwg.mxu0
    %5920 = vmatprep.subr.bf16.mxu0 %v3613
    %5921 = vmatpush1.bf16.msra.mxu0 %v3612
    %5922 = vmatprep.subr.bf16.mxu0 %v3621
    %5923 = vmatpush1.bf16.msra.mxu0 %v3620
    %5924 = vmatprep.subr.bf16.mxu0 %v3629
    %5925 = vmatpush1.bf16.msra.mxu0 %v3628
    %5926 = vmatprep.subr.bf16.mxu0 %v3637
    %5927 = vmatpush1.bf16.msra.mxu0 %v3636
    %5928 = vmatprep.subr.bf16.mxu0 %v3645
    %5929 = vmatpush1.bf16.msra.mxu0 %v3644
    %5930 = vmatprep.subr.bf16.mxu0 %v3653
    %5931 = vmatpush1.bf16.msra.mxu0 %v3652
    %5932 = vmatprep.subr.bf16.mxu0 %v3661
    %5933 = vmatpush1.bf16.msra.mxu0 %v3660
    %5934 = vmatprep.subr.bf16.mxu0 %v3669
    %5935 = vmatpush1.bf16.msra.mxu0 %v3668
    %5936 = vmatprep.subr.bf16.mxu0 %v3677
    %5937 = vmatpush1.bf16.msra.mxu0 %v3676
    %5938 = vmatprep.subr.bf16.mxu0 %v3685
    %5939 = vmatpush1.bf16.msra.mxu0 %v3684
    %5940 = vmatprep.subr.bf16.mxu0 %v3693
    %5941 = vmatpush1.bf16.msra.mxu0 %v3692
    %5942 = vmatprep.subr.bf16.mxu0 %v3701
    %5943 = vmatpush1.bf16.msra.mxu0 %v3700
    %5944 = vmatprep.subr.bf16.mxu0 %v3709
    %5945 = vmatpush1.bf16.msra.mxu0 %v3708
    %5946 = vmatprep.subr.bf16.mxu0 %v3717
    %5947 = vmatpush1.bf16.msra.mxu0 %v3716
    %5948 = vmatprep.subr.bf16.mxu0 %v3725
    %5949 = vmatpush1.bf16.msra.mxu0 %v3724
    %5950 = vmatprep.subr.bf16.mxu0 %v3733
    %5951 = vmatpush1.bf16.msra.mxu0 %v3732
    %5952 = vmatprep.mubr.bf16.mxu0 %v1415
    %5953 = vmatmul.mubr.bf16.gmra.mrb[0].mxu0 %v1414
    %v5954 = vpop.f32.mrb[0].mxu0
    %v5955 = vadd.f32 %v2051, %v5954
    %v5956 = vpop.f32.mrb[0].mxu0
    %v5957 = vadd.f32 %v2055, %v5956
    %v5958 = vpop.f32.mrb[0].mxu0
    %v5959 = vadd.f32 %v2051, %v5958
    %v5960 = vpop.f32.mrb[0].mxu0
    %v5961 = vadd.f32 %v2055, %v5960
    %5962 = vmatprep.mubr.bf16.mxu0 %v1423
    %5963 = vmatmul.mubr.bf16.gmra.mrb[0].mxu0 %v1422
    %v5964 = vpop.f32.mrb[0].mxu0
    %v5965 = vadd.f32 %v2051, %v5964
    %v5966 = vpop.f32.mrb[0].mxu0
    %v5967 = vadd.f32 %v2055, %v5966
    %v5968 = vpop.f32.mrb[0].mxu0
    %v5969 = vadd.f32 %v2051, %v5968
    %v5970 = vpop.f32.mrb[0].mxu0
    %v5971 = vadd.f32 %v2055, %v5970
    %5972 = vmatprep.mubr.bf16.mxu0 %v1431
    %5973 = vmatmul.mubr.bf16.gmra.mrb[0].mxu0 %v1430
    %v5974 = vpop.f32.mrb[0].mxu0
    %v5975 = vadd.f32 %v2051, %v5974
    %v5976 = vpop.f32.mrb[0].mxu0
    %v5977 = vadd.f32 %v2055, %v5976
    %v5978 = vpop.f32.mrb[0].mxu0
    %v5979 = vadd.f32 %v2051, %v5978
    %v5980 = vpop.f32.mrb[0].mxu0
    %v5981 = vadd.f32 %v2055, %v5980
    %5982 = vmatprep.mubr.bf16.mxu0 %v1439
    %5983 = vmatmul.mubr.bf16.gmra.mrb[0].mxu0 %v1438
    %v5984 = vpop.f32.mrb[0].mxu0
    %v5985 = vadd.f32 %v2051, %v5984
    %v5986 = vpop.f32.mrb[0].mxu0
    %v5987 = vadd.f32 %v2055, %v5986
    %v5988 = vpop.f32.mrb[0].mxu0
    %v5989 = vadd.f32 %v2051, %v5988
    %v5990 = vpop.f32.mrb[0].mxu0
    %v5991 = vadd.f32 %v2055, %v5990
    %5992 = vmatprep.mubr.bf16.mxu0 %v1447
    %5993 = vmatmul.mubr.bf16.gmra.mrb[0].mxu0 %v1446
    %v5994 = vpop.f32.mrb[0].mxu0
    %v5995 = vadd.f32 %v2051, %v5994
    %v5996 = vpop.f32.mrb[0].mxu0
    %v5997 = vadd.f32 %v2055, %v5996
    %v5998 = vpop.f32.mrb[0].mxu0
    %v5999 = vadd.f32 %v2051, %v5998
    %v6000 = vpop.f32.mrb[0].mxu0
    %v6001 = vadd.f32 %v2055, %v6000
    %6002 = vmatprep.mubr.bf16.mxu0 %v1455
    %6003 = vmatmul.mubr.bf16.gmra.mrb[0].mxu0 %v1454
    %v6004 = vpop.f32.mrb[0].mxu0
    %v6005 = vadd.f32 %v2051, %v6004
    %v6006 = vpop.f32.mrb[0].mxu0
    %v6007 = vadd.f32 %v2055, %v6006
    %v6008 = vpop.f32.mrb[0].mxu0
    %v6009 = vadd.f32 %v2051, %v6008
    %v6010 = vpop.f32.mrb[0].mxu0
    %v6011 = vadd.f32 %v2055, %v6010
    %6012 = vmatprep.mubr.bf16.mxu0 %v1463
    %6013 = vmatmul.mubr.bf16.gmra.mrb[0].mxu0 %v1462
    %v6014 = vpop.f32.mrb[0].mxu0
    %v6015 = vadd.f32 %v2051, %v6014
    %v6016 = vpop.f32.mrb[0].mxu0
    %v6017 = vadd.f32 %v2055, %v6016
    %v6018 = vpop.f32.mrb[0].mxu0
    %v6019 = vadd.f32 %v2051, %v6018
    %v6020 = vpop.f32.mrb[0].mxu0
    %v6021 = vadd.f32 %v2055, %v6020
    %6022 = vmatprep.mubr.bf16.mxu0 %v1471
    %6023 = vmatmul.mubr.bf16.gmra.mrb[0].mxu0 %v1470
    %v6024 = vpop.f32.mrb[0].mxu0
    %v6025 = vadd.f32 %v2051, %v6024
    %v6026 = vpop.f32.mrb[0].mxu0
    %v6027 = vadd.f32 %v2055, %v6026
    %v6028 = vpop.f32.mrb[0].mxu0
    %v6029 = vadd.f32 %v2051, %v6028
    %v6030 = vpop.f32.mrb[0].mxu0
    %v6031 = vadd.f32 %v2055, %v6030
    %6032 = vmatprep.mubr.bf16.mxu0 %v1479
    %6033 = vmatmul.mubr.bf16.gmra.mrb[0].mxu0 %v1478
    %v6034 = vpop.f32.mrb[0].mxu0
    %v6035 = vadd.f32 %v2051, %v6034
    %v6036 = vpop.f32.mrb[0].mxu0
    %v6037 = vadd.f32 %v2055, %v6036
    %v6038 = vpop.f32.mrb[0].mxu0
    %v6039 = vadd.f32 %v2051, %v6038
    %v6040 = vpop.f32.mrb[0].mxu0
    %v6041 = vadd.f32 %v2055, %v6040
    %6042 = vmatprep.mubr.bf16.mxu0 %v1487
    %6043 = vmatmul.mubr.bf16.gmra.mrb[0].mxu0 %v1486
    %v6044 = vpop.f32.mrb[0].mxu0
    %v6045 = vadd.f32 %v2051, %v6044
    %v6046 = vpop.f32.mrb[0].mxu0
    %v6047 = vadd.f32 %v2055, %v6046
    %v6048 = vpop.f32.mrb[0].mxu0
    %v6049 = vadd.f32 %v2051, %v6048
    %v6050 = vpop.f32.mrb[0].mxu0
    %v6051 = vadd.f32 %v2055, %v6050
    %6052 = vmatprep.mubr.bf16.mxu0 %v1495
    %6053 = vmatmul.mubr.bf16.gmra.mrb[0].mxu0 %v1494
    %v6054 = vpop.f32.mrb[0].mxu0
    %v6055 = vadd.f32 %v2051, %v6054
    %v6056 = vpop.f32.mrb[0].mxu0
    %v6057 = vadd.f32 %v2055, %v6056
    %v6058 = vpop.f32.mrb[0].mxu0
    %v6059 = vadd.f32 %v2051, %v6058
    %v6060 = vpop.f32.mrb[0].mxu0
    %v6061 = vadd.f32 %v2055, %v6060
    %6062 = vmatprep.mubr.bf16.mxu0 %v1503
    %6063 = vmatmul.mubr.bf16.gmra.mrb[0].mxu0 %v1502
    %v6064 = vpop.f32.mrb[0].mxu0
    %v6065 = vadd.f32 %v2051, %v6064
    %v6066 = vpop.f32.mrb[0].mxu0
    %v6067 = vadd.f32 %v2055, %v6066
    %v6068 = vpop.f32.mrb[0].mxu0
    %v6069 = vadd.f32 %v2051, %v6068
    %v6070 = vpop.f32.mrb[0].mxu0
    %v6071 = vadd.f32 %v2055, %v6070
    %6072 = vmatprep.mubr.bf16.mxu0 %v1511
    %6073 = vmatmul.mubr.bf16.gmra.mrb[0].mxu0 %v1510
    %v6074 = vpop.f32.mrb[0].mxu0
    %v6075 = vadd.f32 %v2051, %v6074
    %v6076 = vpop.f32.mrb[0].mxu0
    %v6077 = vadd.f32 %v2055, %v6076
    %v6078 = vpop.f32.mrb[0].mxu0
    %v6079 = vpop.f32.mrb[0].mxu0
    %6080 = vdwg.mxu0
    %6081 = vmatprep.subr.bf16.mxu0 %v3741
    %6082 = vmatpush1.bf16.msra.mxu0 %v3740
    %6083 = vmatprep.subr.bf16.mxu0 %v3749
    %6084 = vmatpush1.bf16.msra.mxu0 %v3748
    %6085 = vmatprep.subr.bf16.mxu0 %v3757
    %6086 = vmatpush1.bf16.msra.mxu0 %v3756
    %6087 = vmatprep.subr.bf16.mxu0 %v3765
    %6088 = vmatpush1.bf16.msra.mxu0 %v3764
    %6089 = vmatprep.subr.bf16.mxu0 %v3773
    %6090 = vmatpush1.bf16.msra.mxu0 %v3772
    %6091 = vmatprep.subr.bf16.mxu0 %v3781
    %6092 = vmatpush1.bf16.msra.mxu0 %v3780
    %6093 = vmatprep.subr.bf16.mxu0 %v3789
    %6094 = vmatpush1.bf16.msra.mxu0 %v3788
    %6095 = vmatprep.subr.bf16.mxu0 %v3797
    %6096 = vmatpush1.bf16.msra.mxu0 %v3796
    %6097 = vmatprep.subr.bf16.mxu0 %v3805
    %6098 = vmatpush1.bf16.msra.mxu0 %v3804
    %6099 = vmatprep.subr.bf16.mxu0 %v3813
    %6100 = vmatpush1.bf16.msra.mxu0 %v3812
    %6101 = vmatprep.subr.bf16.mxu0 %v3821
    %6102 = vmatpush1.bf16.msra.mxu0 %v3820
    %6103 = vmatprep.subr.bf16.mxu0 %v3829
    %6104 = vmatpush1.bf16.msra.mxu0 %v3828
    %6105 = vmatprep.subr.bf16.mxu0 %v3837
    %6106 = vmatpush1.bf16.msra.mxu0 %v3836
    %6107 = vmatprep.subr.bf16.mxu0 %v3845
    %6108 = vmatpush1.bf16.msra.mxu0 %v3844
    %6109 = vmatprep.subr.bf16.mxu0 %v3853
    %6110 = vmatpush1.bf16.msra.mxu0 %v3852
    %6111 = vmatprep.subr.bf16.mxu0 %v3861
    %6112 = vmatpush1.bf16.msra.mxu0 %v3860
    %6113 = vmatprep.mubr.bf16.mxu0 %v1417
    %6114 = vmatmul.mubr.bf16.gmra.mrb[0].mxu0 %v1416
    %v6115 = vpop.f32.mrb[0].mxu0
    %v6116 = vadd.f32 %v5955, %v6115
    %v6117 = vpop.f32.mrb[0].mxu0
    %v6118 = vadd.f32 %v5957, %v6117
    %v6119 = vpop.f32.mrb[0].mxu0
    %v6120 = vadd.f32 %v5959, %v6119
    %v6121 = vpop.f32.mrb[0].mxu0
    %v6122 = vadd.f32 %v5961, %v6121
    %6123 = vmatprep.mubr.bf16.mxu0 %v1425
    %6124 = vmatmul.mubr.bf16.gmra.mrb[0].mxu0 %v1424
    %v6125 = vpop.f32.mrb[0].mxu0
    %v6126 = vadd.f32 %v5965, %v6125
    %v6127 = vpop.f32.mrb[0].mxu0
    %v6128 = vadd.f32 %v5967, %v6127
    %v6129 = vpop.f32.mrb[0].mxu0
    %v6130 = vadd.f32 %v5969, %v6129
    %v6131 = vpop.f32.mrb[0].mxu0
    %v6132 = vadd.f32 %v5971, %v6131
    %6133 = vmatprep.mubr.bf16.mxu0 %v1433
    %6134 = vmatmul.mubr.bf16.gmra.mrb[0].mxu0 %v1432
    %v6135 = vpop.f32.mrb[0].mxu0
    %v6136 = vadd.f32 %v5975, %v6135
    %v6137 = vpop.f32.mrb[0].mxu0
    %v6138 = vadd.f32 %v5977, %v6137
    %v6139 = vpop.f32.mrb[0].mxu0
    %v6140 = vadd.f32 %v5979, %v6139
    %v6141 = vpop.f32.mrb[0].mxu0
    %v6142 = vadd.f32 %v5981, %v6141
    %6143 = vmatprep.mubr.bf16.mxu0 %v1441
    %6144 = vmatmul.mubr.bf16.gmra.mrb[0].mxu0 %v1440
    %v6145 = vpop.f32.mrb[0].mxu0
    %v6146 = vadd.f32 %v5985, %v6145
    %v6147 = vpop.f32.mrb[0].mxu0
    %v6148 = vadd.f32 %v5987, %v6147
    %v6149 = vpop.f32.mrb[0].mxu0
    %v6150 = vadd.f32 %v5989, %v6149
    %v6151 = vpop.f32.mrb[0].mxu0
    %v6152 = vadd.f32 %v5991, %v6151
    %6153 = vmatprep.mubr.bf16.mxu0 %v1449
    %6154 = vmatmul.mubr.bf16.gmra.mrb[0].mxu0 %v1448
    %v6155 = vpop.f32.mrb[0].mxu0
    %v6156 = vadd.f32 %v5995, %v6155
    %v6157 = vpop.f32.mrb[0].mxu0
    %v6158 = vadd.f32 %v5997, %v6157
    %v6159 = vpop.f32.mrb[0].mxu0
    %v6160 = vadd.f32 %v5999, %v6159
    %v6161 = vpop.f32.mrb[0].mxu0
    %v6162 = vadd.f32 %v6001, %v6161
    %6163 = vmatprep.mubr.bf16.mxu0 %v1457
    %6164 = vmatmul.mubr.bf16.gmra.mrb[0].mxu0 %v1456
    %v6165 = vpop.f32.mrb[0].mxu0
    %v6166 = vadd.f32 %v6005, %v6165
    %v6167 = vpop.f32.mrb[0].mxu0
    %v6168 = vadd.f32 %v6007, %v6167
    %v6169 = vpop.f32.mrb[0].mxu0
    %v6170 = vadd.f32 %v6009, %v6169
    %v6171 = vpop.f32.mrb[0].mxu0
    %v6172 = vadd.f32 %v6011, %v6171
    %6173 = vmatprep.mubr.bf16.mxu0 %v1465
    %6174 = vmatmul.mubr.bf16.gmra.mrb[0].mxu0 %v1464
    %v6175 = vpop.f32.mrb[0].mxu0
    %v6176 = vadd.f32 %v6015, %v6175
    %v6177 = vpop.f32.mrb[0].mxu0
    %v6178 = vadd.f32 %v6017, %v6177
    %v6179 = vpop.f32.mrb[0].mxu0
    %v6180 = vadd.f32 %v6019, %v6179
    %v6181 = vpop.f32.mrb[0].mxu0
    %v6182 = vadd.f32 %v6021, %v6181
    %6183 = vmatprep.mubr.bf16.mxu0 %v1473
    %6184 = vmatmul.mubr.bf16.gmra.mrb[0].mxu0 %v1472
    %v6185 = vpop.f32.mrb[0].mxu0
    %v6186 = vadd.f32 %v6025, %v6185
    %v6187 = vpop.f32.mrb[0].mxu0
    %v6188 = vadd.f32 %v6027, %v6187
    %v6189 = vpop.f32.mrb[0].mxu0
    %v6190 = vadd.f32 %v6029, %v6189
    %v6191 = vpop.f32.mrb[0].mxu0
    %v6192 = vadd.f32 %v6031, %v6191
    %6193 = vmatprep.mubr.bf16.mxu0 %v1481
    %6194 = vmatmul.mubr.bf16.gmra.mrb[0].mxu0 %v1480
    %v6195 = vpop.f32.mrb[0].mxu0
    %v6196 = vadd.f32 %v6035, %v6195
    %v6197 = vpop.f32.mrb[0].mxu0
    %v6198 = vadd.f32 %v6037, %v6197
    %v6199 = vpop.f32.mrb[0].mxu0
    %v6200 = vadd.f32 %v6039, %v6199
    %v6201 = vpop.f32.mrb[0].mxu0
    %v6202 = vadd.f32 %v6041, %v6201
    %6203 = vmatprep.mubr.bf16.mxu0 %v1489
    %6204 = vmatmul.mubr.bf16.gmra.mrb[0].mxu0 %v1488
    %v6205 = vpop.f32.mrb[0].mxu0
    %v6206 = vadd.f32 %v6045, %v6205
    %v6207 = vpop.f32.mrb[0].mxu0
    %v6208 = vadd.f32 %v6047, %v6207
    %v6209 = vpop.f32.mrb[0].mxu0
    %v6210 = vadd.f32 %v6049, %v6209
    %v6211 = vpop.f32.mrb[0].mxu0
    %v6212 = vadd.f32 %v6051, %v6211
    %6213 = vmatprep.mubr.bf16.mxu0 %v1497
    %6214 = vmatmul.mubr.bf16.gmra.mrb[0].mxu0 %v1496
    %v6215 = vpop.f32.mrb[0].mxu0
    %v6216 = vadd.f32 %v6055, %v6215
    %v6217 = vpop.f32.mrb[0].mxu0
    %v6218 = vadd.f32 %v6057, %v6217
    %v6219 = vpop.f32.mrb[0].mxu0
    %v6220 = vadd.f32 %v6059, %v6219
    %v6221 = vpop.f32.mrb[0].mxu0
    %v6222 = vadd.f32 %v6061, %v6221
    %6223 = vmatprep.mubr.bf16.mxu0 %v1505
    %6224 = vmatmul.mubr.bf16.gmra.mrb[0].mxu0 %v1504
    %v6225 = vpop.f32.mrb[0].mxu0
    %v6226 = vadd.f32 %v6065, %v6225
    %v6227 = vpop.f32.mrb[0].mxu0
    %v6228 = vadd.f32 %v6067, %v6227
    %v6229 = vpop.f32.mrb[0].mxu0
    %v6230 = vadd.f32 %v6069, %v6229
    %v6231 = vpop.f32.mrb[0].mxu0
    %v6232 = vadd.f32 %v6071, %v6231
    %6233 = vmatprep.mubr.bf16.mxu0 %v1513
    %6234 = vmatmul.mubr.bf16.gmra.mrb[0].mxu0 %v1512
    %v6235 = vpop.f32.mrb[0].mxu0
    %v6236 = vadd.f32 %v6075, %v6235
    %v6237 = vpop.f32.mrb[0].mxu0
    %v6238 = vadd.f32 %v6077, %v6237
    %v6239 = vpop.f32.mrb[0].mxu0
    %v6240 = vpop.f32.mrb[0].mxu0
    %6241 = vdwg.mxu0
    %6242 = vmatprep.subr.bf16.mxu0 %v3869
    %6243 = vmatpush1.bf16.msra.mxu0 %v3868
    %6244 = vmatprep.subr.bf16.mxu0 %v3877
    %6245 = vmatpush1.bf16.msra.mxu0 %v3876
    %6246 = vmatprep.subr.bf16.mxu0 %v3885
    %6247 = vmatpush1.bf16.msra.mxu0 %v3884
    %6248 = vmatprep.subr.bf16.mxu0 %v3893
    %6249 = vmatpush1.bf16.msra.mxu0 %v3892
    %6250 = vmatprep.subr.bf16.mxu0 %v3901
    %6251 = vmatpush1.bf16.msra.mxu0 %v3900
    %6252 = vmatprep.subr.bf16.mxu0 %v3909
    %6253 = vmatpush1.bf16.msra.mxu0 %v3908
    %6254 = vmatprep.subr.bf16.mxu0 %v3917
    %6255 = vmatpush1.bf16.msra.mxu0 %v3916
    %6256 = vmatprep.subr.bf16.mxu0 %v3925
    %6257 = vmatpush1.bf16.msra.mxu0 %v3924
    %6258 = vmatprep.subr.bf16.mxu0 %v3933
    %6259 = vmatpush1.bf16.msra.mxu0 %v3932
    %6260 = vmatprep.subr.bf16.mxu0 %v3941
    %6261 = vmatpush1.bf16.msra.mxu0 %v3940
    %6262 = vmatprep.subr.bf16.mxu0 %v3949
    %6263 = vmatpush1.bf16.msra.mxu0 %v3948
    %6264 = vmatprep.subr.bf16.mxu0 %v3957
    %6265 = vmatpush1.bf16.msra.mxu0 %v3956
    %6266 = vmatprep.subr.bf16.mxu0 %v3965
    %6267 = vmatpush1.bf16.msra.mxu0 %v3964
    %6268 = vmatprep.subr.bf16.mxu0 %v3973
    %6269 = vmatpush1.bf16.msra.mxu0 %v3972
    %6270 = vmatprep.subr.bf16.mxu0 %v3981
    %6271 = vmatpush1.bf16.msra.mxu0 %v3980
    %6272 = vmatprep.subr.bf16.mxu0 %v3989
    %6273 = vmatpush1.bf16.msra.mxu0 %v3988
    %6274 = vmatprep.mubr.bf16.mxu0 %v1419
    %6275 = vmatmul.mubr.bf16.gmra.mrb[0].mxu0 %v1418
    %v6276 = vpop.f32.mrb[0].mxu0
    %v6277 = vadd.f32 %v6116, %v6276
    %v6278 = vpop.f32.mrb[0].mxu0
    %v6279 = vadd.f32 %v6118, %v6278
    %v6280 = vpop.f32.mrb[0].mxu0
    %v6281 = vadd.f32 %v6120, %v6280
    %v6282 = vpop.f32.mrb[0].mxu0
    %v6283 = vadd.f32 %v6122, %v6282
    %6284 = vmatprep.mubr.bf16.mxu0 %v1427
    %6285 = vmatmul.mubr.bf16.gmra.mrb[0].mxu0 %v1426
    %v6286 = vpop.f32.mrb[0].mxu0
    %v6287 = vadd.f32 %v6126, %v6286
    %v6288 = vpop.f32.mrb[0].mxu0
    %v6289 = vadd.f32 %v6128, %v6288
    %v6290 = vpop.f32.mrb[0].mxu0
    %v6291 = vadd.f32 %v6130, %v6290
    %v6292 = vpop.f32.mrb[0].mxu0
    %v6293 = vadd.f32 %v6132, %v6292
    %6294 = vmatprep.mubr.bf16.mxu0 %v1435
    %6295 = vmatmul.mubr.bf16.gmra.mrb[0].mxu0 %v1434
    %v6296 = vpop.f32.mrb[0].mxu0
    %v6297 = vadd.f32 %v6136, %v6296
    %v6298 = vpop.f32.mrb[0].mxu0
    %v6299 = vadd.f32 %v6138, %v6298
    %v6300 = vpop.f32.mrb[0].mxu0
    %v6301 = vadd.f32 %v6140, %v6300
    %v6302 = vpop.f32.mrb[0].mxu0
    %v6303 = vadd.f32 %v6142, %v6302
    %6304 = vmatprep.mubr.bf16.mxu0 %v1443
    %6305 = vmatmul.mubr.bf16.gmra.mrb[0].mxu0 %v1442
    %v6306 = vpop.f32.mrb[0].mxu0
    %v6307 = vadd.f32 %v6146, %v6306
    %v6308 = vpop.f32.mrb[0].mxu0
    %v6309 = vadd.f32 %v6148, %v6308
    %v6310 = vpop.f32.mrb[0].mxu0
    %v6311 = vadd.f32 %v6150, %v6310
    %v6312 = vpop.f32.mrb[0].mxu0
    %v6313 = vadd.f32 %v6152, %v6312
    %6314 = vmatprep.mubr.bf16.mxu0 %v1451
    %6315 = vmatmul.mubr.bf16.gmra.mrb[0].mxu0 %v1450
    %v6316 = vpop.f32.mrb[0].mxu0
    %v6317 = vadd.f32 %v6156, %v6316
    %v6318 = vpop.f32.mrb[0].mxu0
    %v6319 = vadd.f32 %v6158, %v6318
    %v6320 = vpop.f32.mrb[0].mxu0
    %v6321 = vadd.f32 %v6160, %v6320
    %v6322 = vpop.f32.mrb[0].mxu0
    %v6323 = vadd.f32 %v6162, %v6322
    %6324 = vmatprep.mubr.bf16.mxu0 %v1459
    %6325 = vmatmul.mubr.bf16.gmra.mrb[0].mxu0 %v1458
    %v6326 = vpop.f32.mrb[0].mxu0
    %v6327 = vadd.f32 %v6166, %v6326
    %v6328 = vpop.f32.mrb[0].mxu0
    %v6329 = vadd.f32 %v6168, %v6328
    %v6330 = vpop.f32.mrb[0].mxu0
    %v6331 = vadd.f32 %v6170, %v6330
    %v6332 = vpop.f32.mrb[0].mxu0
    %v6333 = vadd.f32 %v6172, %v6332
    %6334 = vmatprep.mubr.bf16.mxu0 %v1467
    %6335 = vmatmul.mubr.bf16.gmra.mrb[0].mxu0 %v1466
    %v6336 = vpop.f32.mrb[0].mxu0
    %v6337 = vadd.f32 %v6176, %v6336
    %v6338 = vpop.f32.mrb[0].mxu0
    %v6339 = vadd.f32 %v6178, %v6338
    %v6340 = vpop.f32.mrb[0].mxu0
    %v6341 = vadd.f32 %v6180, %v6340
    %v6342 = vpop.f32.mrb[0].mxu0
    %v6343 = vadd.f32 %v6182, %v6342
    %6344 = vmatprep.mubr.bf16.mxu0 %v1475
    %6345 = vmatmul.mubr.bf16.gmra.mrb[0].mxu0 %v1474
    %v6346 = vpop.f32.mrb[0].mxu0
    %v6347 = vadd.f32 %v6186, %v6346
    %v6348 = vpop.f32.mrb[0].mxu0
    %v6349 = vadd.f32 %v6188, %v6348
    %v6350 = vpop.f32.mrb[0].mxu0
    %v6351 = vadd.f32 %v6190, %v6350
    %v6352 = vpop.f32.mrb[0].mxu0
    %v6353 = vadd.f32 %v6192, %v6352
    %6354 = vmatprep.mubr.bf16.mxu0 %v1483
    %6355 = vmatmul.mubr.bf16.gmra.mrb[0].mxu0 %v1482
    %v6356 = vpop.f32.mrb[0].mxu0
    %v6357 = vadd.f32 %v6196, %v6356
    %v6358 = vpop.f32.mrb[0].mxu0
    %v6359 = vadd.f32 %v6198, %v6358
    %v6360 = vpop.f32.mrb[0].mxu0
    %v6361 = vadd.f32 %v6200, %v6360
    %v6362 = vpop.f32.mrb[0].mxu0
    %v6363 = vadd.f32 %v6202, %v6362
    %6364 = vmatprep.mubr.bf16.mxu0 %v1491
    %6365 = vmatmul.mubr.bf16.gmra.mrb[0].mxu0 %v1490
    %v6366 = vpop.f32.mrb[0].mxu0
    %v6367 = vadd.f32 %v6206, %v6366
    %v6368 = vpop.f32.mrb[0].mxu0
    %v6369 = vadd.f32 %v6208, %v6368
    %v6370 = vpop.f32.mrb[0].mxu0
    %v6371 = vadd.f32 %v6210, %v6370
    %v6372 = vpop.f32.mrb[0].mxu0
    %v6373 = vadd.f32 %v6212, %v6372
    %6374 = vmatprep.mubr.bf16.mxu0 %v1499
    %6375 = vmatmul.mubr.bf16.gmra.mrb[0].mxu0 %v1498
    %v6376 = vpop.f32.mrb[0].mxu0
    %v6377 = vadd.f32 %v6216, %v6376
    %v6378 = vpop.f32.mrb[0].mxu0
    %v6379 = vadd.f32 %v6218, %v6378
    %v6380 = vpop.f32.mrb[0].mxu0
    %v6381 = vadd.f32 %v6220, %v6380
    %v6382 = vpop.f32.mrb[0].mxu0
    %v6383 = vadd.f32 %v6222, %v6382
    %6384 = vmatprep.mubr.bf16.mxu0 %v1507
    %6385 = vmatmul.mubr.bf16.gmra.mrb[0].mxu0 %v1506
    %v6386 = vpop.f32.mrb[0].mxu0
    %v6387 = vadd.f32 %v6226, %v6386
    %v6388 = vpop.f32.mrb[0].mxu0
    %v6389 = vadd.f32 %v6228, %v6388
    %v6390 = vpop.f32.mrb[0].mxu0
    %v6391 = vadd.f32 %v6230, %v6390
    %v6392 = vpop.f32.mrb[0].mxu0
    %v6393 = vadd.f32 %v6232, %v6392
    %6394 = vmatprep.mubr.bf16.mxu0 %v1515
    %6395 = vmatmul.mubr.bf16.gmra.mrb[0].mxu0 %v1514
    %v6396 = vpop.f32.mrb[0].mxu0
    %v6397 = vadd.f32 %v6236, %v6396
    %v6398 = vpop.f32.mrb[0].mxu0
    %v6399 = vadd.f32 %v6238, %v6398
    %v6400 = vpop.f32.mrb[0].mxu0
    %v6401 = vpop.f32.mrb[0].mxu0
    %6402 = vdwg.mxu0
    %6403 = vmatprep.subr.bf16.mxu0 %v3997
    %6404 = vmatpush1.bf16.msra.mxu0 %v3996
    %6405 = vmatprep.subr.bf16.mxu0 %v4005
    %6406 = vmatpush1.bf16.msra.mxu0 %v4004
    %6407 = vmatprep.subr.bf16.mxu0 %v4013
    %6408 = vmatpush1.bf16.msra.mxu0 %v4012
    %6409 = vmatprep.subr.bf16.mxu0 %v4021
    %6410 = vmatpush1.bf16.msra.mxu0 %v4020
    %6411 = vmatprep.subr.bf16.mxu0 %v4029
    %6412 = vmatpush1.bf16.msra.mxu0 %v4028
    %6413 = vmatprep.subr.bf16.mxu0 %v4037
    %6414 = vmatpush1.bf16.msra.mxu0 %v4036
    %6415 = vmatprep.subr.bf16.mxu0 %v4045
    %6416 = vmatpush1.bf16.msra.mxu0 %v4044
    %6417 = vmatprep.subr.bf16.mxu0 %v4053
    %6418 = vmatpush1.bf16.msra.mxu0 %v4052
    %6419 = vmatprep.subr.bf16.mxu0 %v4061
    %6420 = vmatpush1.bf16.msra.mxu0 %v4060
    %6421 = vmatprep.subr.bf16.mxu0 %v4069
    %6422 = vmatpush1.bf16.msra.mxu0 %v4068
    %6423 = vmatprep.subr.bf16.mxu0 %v4077
    %6424 = vmatpush1.bf16.msra.mxu0 %v4076
    %6425 = vmatprep.subr.bf16.mxu0 %v4085
    %6426 = vmatpush1.bf16.msra.mxu0 %v4084
    %6427 = vmatprep.subr.bf16.mxu0 %v4093
    %6428 = vmatpush1.bf16.msra.mxu0 %v4092
    %6429 = vmatprep.subr.bf16.mxu0 %v4101
    %6430 = vmatpush1.bf16.msra.mxu0 %v4100
    %6431 = vmatprep.subr.bf16.mxu0 %v4109
    %6432 = vmatpush1.bf16.msra.mxu0 %v4108
    %6433 = vmatprep.subr.bf16.mxu0 %v4117
    %6434 = vmatpush1.bf16.msra.mxu0 %v4116
    %6435 = vmatprep.mubr.bf16.mxu0 %v1421
    %6436 = vmatmul.mubr.bf16.gmra.mrb[0].mxu0 %v1420
    %v6437 = vpop.f32.mrb[0].mxu0
    %v6438 = vadd.f32 %v6277, %v6437
    %v6439 = vpop.f32.mrb[0].mxu0
    %v6440 = vadd.f32 %v6279, %v6439
    %v6441 = vpop.f32.mrb[0].mxu0
    %v6442 = vadd.f32 %v6281, %v6441
    %v6443 = vpop.f32.mrb[0].mxu0
    %v6444 = vadd.f32 %v6283, %v6443
    %6445 = vmatprep.mubr.bf16.mxu0 %v1429
    %6446 = vmatmul.mubr.bf16.gmra.mrb[0].mxu0 %v1428
    %v6447 = vpop.f32.mrb[0].mxu0
    %v6448 = vadd.f32 %v6287, %v6447
    %v6449 = vpop.f32.mrb[0].mxu0
    %v6450 = vadd.f32 %v6289, %v6449
    %v6451 = vpop.f32.mrb[0].mxu0
    %v6452 = vadd.f32 %v6291, %v6451
    %v6453 = vpop.f32.mrb[0].mxu0
    %v6454 = vadd.f32 %v6293, %v6453
    %6455 = vmatprep.mubr.bf16.mxu0 %v1437
    %6456 = vmatmul.mubr.bf16.gmra.mrb[0].mxu0 %v1436
    %v6457 = vpop.f32.mrb[0].mxu0
    %v6458 = vadd.f32 %v6297, %v6457
    %v6459 = vpop.f32.mrb[0].mxu0
    %v6460 = vadd.f32 %v6299, %v6459
    %v6461 = vpop.f32.mrb[0].mxu0
    %v6462 = vadd.f32 %v6301, %v6461
    %v6463 = vpop.f32.mrb[0].mxu0
    %v6464 = vadd.f32 %v6303, %v6463
    %6465 = vmatprep.mubr.bf16.mxu0 %v1445
    %6466 = vmatmul.mubr.bf16.gmra.mrb[0].mxu0 %v1444
    %v6467 = vpop.f32.mrb[0].mxu0
    %v6468 = vadd.f32 %v6307, %v6467
    %v6469 = vpop.f32.mrb[0].mxu0
    %v6470 = vadd.f32 %v6309, %v6469
    %v6471 = vpop.f32.mrb[0].mxu0
    %v6472 = vadd.f32 %v6311, %v6471
    %v6473 = vpop.f32.mrb[0].mxu0
    %v6474 = vadd.f32 %v6313, %v6473
    %6475 = vmatprep.mubr.bf16.mxu0 %v1453
    %6476 = vmatmul.mubr.bf16.gmra.mrb[0].mxu0 %v1452
    %v6477 = vpop.f32.mrb[0].mxu0
    %v6478 = vadd.f32 %v6317, %v6477
    %v6479 = vpop.f32.mrb[0].mxu0
    %v6480 = vadd.f32 %v6319, %v6479
    %v6481 = vpop.f32.mrb[0].mxu0
    %v6482 = vadd.f32 %v6321, %v6481
    %v6483 = vpop.f32.mrb[0].mxu0
    %v6484 = vadd.f32 %v6323, %v6483
    %6485 = vmatprep.mubr.bf16.mxu0 %v1461
    %6486 = vmatmul.mubr.bf16.gmra.mrb[0].mxu0 %v1460
    %v6487 = vpop.f32.mrb[0].mxu0
    %v6488 = vadd.f32 %v6327, %v6487
    %v6489 = vpop.f32.mrb[0].mxu0
    %v6490 = vadd.f32 %v6329, %v6489
    %v6491 = vpop.f32.mrb[0].mxu0
    %v6492 = vadd.f32 %v6331, %v6491
    %v6493 = vpop.f32.mrb[0].mxu0
    %v6494 = vadd.f32 %v6333, %v6493
    %6495 = vmatprep.mubr.bf16.mxu0 %v1469
    %6496 = vmatmul.mubr.bf16.gmra.mrb[0].mxu0 %v1468
    %v6497 = vpop.f32.mrb[0].mxu0
    %v6498 = vadd.f32 %v6337, %v6497
    %v6499 = vpop.f32.mrb[0].mxu0
    %v6500 = vadd.f32 %v6339, %v6499
    %v6501 = vpop.f32.mrb[0].mxu0
    %v6502 = vadd.f32 %v6341, %v6501
    %v6503 = vpop.f32.mrb[0].mxu0
    %v6504 = vadd.f32 %v6343, %v6503
    %6505 = vmatprep.mubr.bf16.mxu0 %v1477
    %6506 = vmatmul.mubr.bf16.gmra.mrb[0].mxu0 %v1476
    %v6507 = vpop.f32.mrb[0].mxu0
    %v6508 = vadd.f32 %v6347, %v6507
    %v6509 = vpop.f32.mrb[0].mxu0
    %v6510 = vadd.f32 %v6349, %v6509
    %v6511 = vpop.f32.mrb[0].mxu0
    %v6512 = vadd.f32 %v6351, %v6511
    %v6513 = vpop.f32.mrb[0].mxu0
    %v6514 = vadd.f32 %v6353, %v6513
    %6515 = vmatprep.mubr.bf16.mxu0 %v1485
    %6516 = vmatmul.mubr.bf16.gmra.mrb[0].mxu0 %v1484
    %v6517 = vpop.f32.mrb[0].mxu0
    %v6518 = vadd.f32 %v6357, %v6517
    %v6519 = vpop.f32.mrb[0].mxu0
    %v6520 = vadd.f32 %v6359, %v6519
    %v6521 = vpop.f32.mrb[0].mxu0
    %v6522 = vadd.f32 %v6361, %v6521
    %v6523 = vpop.f32.mrb[0].mxu0
    %v6524 = vadd.f32 %v6363, %v6523
    %6525 = vmatprep.mubr.bf16.mxu0 %v1493
    %6526 = vmatmul.mubr.bf16.gmra.mrb[0].mxu0 %v1492
    %v6527 = vpop.f32.mrb[0].mxu0
    %v6528 = vadd.f32 %v6367, %v6527
    %v6529 = vpop.f32.mrb[0].mxu0
    %v6530 = vadd.f32 %v6369, %v6529
    %v6531 = vpop.f32.mrb[0].mxu0
    %v6532 = vadd.f32 %v6371, %v6531
    %v6533 = vpop.f32.mrb[0].mxu0
    %v6534 = vadd.f32 %v6373, %v6533
    %6535 = vmatprep.mubr.bf16.mxu0 %v1501
    %6536 = vmatmul.mubr.bf16.gmra.mrb[0].mxu0 %v1500
    %v6537 = vpop.f32.mrb[0].mxu0
    %v6538 = vadd.f32 %v6377, %v6537
    %v6539 = vpop.f32.mrb[0].mxu0
    %v6540 = vadd.f32 %v6379, %v6539
    %v6541 = vpop.f32.mrb[0].mxu0
    %v6542 = vadd.f32 %v6381, %v6541
    %v6543 = vpop.f32.mrb[0].mxu0
    %v6544 = vadd.f32 %v6383, %v6543
    %6545 = vmatprep.mubr.bf16.mxu0 %v1509
    %6546 = vmatmul.mubr.bf16.gmra.mrb[0].mxu0 %v1508
    %v6547 = vpop.f32.mrb[0].mxu0
    %v6548 = vadd.f32 %v6387, %v6547
    %v6549 = vpop.f32.mrb[0].mxu0
    %v6550 = vadd.f32 %v6389, %v6549
    %v6551 = vpop.f32.mrb[0].mxu0
    %v6552 = vadd.f32 %v6391, %v6551
    %v6553 = vpop.f32.mrb[0].mxu0
    %v6554 = vadd.f32 %v6393, %v6553
    %6555 = vmatprep.mubr.bf16.mxu0 %v1517
    %6556 = vmatmul.mubr.bf16.gmra.mrb[0].mxu0 %v1516
    %v6557 = vpop.f32.mrb[0].mxu0
    %v6558 = vadd.f32 %v6397, %v6557
    %v6559 = vpop.f32.mrb[0].mxu0
    %v6560 = vadd.f32 %v6399, %v6559
    %v6561 = vpop.f32.mrb[0].mxu0
    %v6562 = vpop.f32.mrb[0].mxu0
    %6563 = vdwg.mxu0
    %6564 = vmatprep.subr.bf16.mxu0 %v3615
    %6565 = vmatpush1.bf16.msra.mxu0 %v3614
    %6566 = vmatprep.subr.bf16.mxu0 %v3623
    %6567 = vmatpush1.bf16.msra.mxu0 %v3622
    %6568 = vmatprep.subr.bf16.mxu0 %v3631
    %6569 = vmatpush1.bf16.msra.mxu0 %v3630
    %6570 = vmatprep.subr.bf16.mxu0 %v3639
    %6571 = vmatpush1.bf16.msra.mxu0 %v3638
    %6572 = vmatprep.subr.bf16.mxu0 %v3647
    %6573 = vmatpush1.bf16.msra.mxu0 %v3646
    %6574 = vmatprep.subr.bf16.mxu0 %v3655
    %6575 = vmatpush1.bf16.msra.mxu0 %v3654
    %6576 = vmatprep.subr.bf16.mxu0 %v3663
    %6577 = vmatpush1.bf16.msra.mxu0 %v3662
    %6578 = vmatprep.subr.bf16.mxu0 %v3671
    %6579 = vmatpush1.bf16.msra.mxu0 %v3670
    %6580 = vmatprep.subr.bf16.mxu0 %v3679
    %6581 = vmatpush1.bf16.msra.mxu0 %v3678
    %6582 = vmatprep.subr.bf16.mxu0 %v3687
    %6583 = vmatpush1.bf16.msra.mxu0 %v3686
    %6584 = vmatprep.subr.bf16.mxu0 %v3695
    %6585 = vmatpush1.bf16.msra.mxu0 %v3694
    %6586 = vmatprep.subr.bf16.mxu0 %v3703
    %6587 = vmatpush1.bf16.msra.mxu0 %v3702
    %6588 = vmatprep.subr.bf16.mxu0 %v3711
    %6589 = vmatpush1.bf16.msra.mxu0 %v3710
    %6590 = vmatprep.subr.bf16.mxu0 %v3719
    %6591 = vmatpush1.bf16.msra.mxu0 %v3718
    %6592 = vmatprep.subr.bf16.mxu0 %v3727
    %6593 = vmatpush1.bf16.msra.mxu0 %v3726
    %6594 = vmatprep.subr.bf16.mxu0 %v3735
    %6595 = vmatpush1.bf16.msra.mxu0 %v3734
    %6596 = vmatprep.mubr.bf16.mxu0 %v1415
    %6597 = vmatmul.mubr.bf16.gmra.mrb[0].mxu0 %v1414
    %v6598 = vpop.f32.mrb[0].mxu0
    %v6599 = vadd.f32 %v2059, %v6598
    %v6600 = vpop.f32.mrb[0].mxu0
    %v6601 = vadd.f32 %v2063, %v6600
    %v6602 = vpop.f32.mrb[0].mxu0
    %v6603 = vadd.f32 %v2059, %v6602
    %v6604 = vpop.f32.mrb[0].mxu0
    %v6605 = vadd.f32 %v2063, %v6604
    %6606 = vmatprep.mubr.bf16.mxu0 %v1423
    %6607 = vmatmul.mubr.bf16.gmra.mrb[0].mxu0 %v1422
    %v6608 = vpop.f32.mrb[0].mxu0
    %v6609 = vadd.f32 %v2059, %v6608
    %v6610 = vpop.f32.mrb[0].mxu0
    %v6611 = vadd.f32 %v2063, %v6610
    %v6612 = vpop.f32.mrb[0].mxu0
    %v6613 = vadd.f32 %v2059, %v6612
    %v6614 = vpop.f32.mrb[0].mxu0
    %v6615 = vadd.f32 %v2063, %v6614
    %6616 = vmatprep.mubr.bf16.mxu0 %v1431
    %6617 = vmatmul.mubr.bf16.gmra.mrb[0].mxu0 %v1430
    %v6618 = vpop.f32.mrb[0].mxu0
    %v6619 = vadd.f32 %v2059, %v6618
    %v6620 = vpop.f32.mrb[0].mxu0
    %v6621 = vadd.f32 %v2063, %v6620
    %v6622 = vpop.f32.mrb[0].mxu0
    %v6623 = vadd.f32 %v2059, %v6622
    %v6624 = vpop.f32.mrb[0].mxu0
    %v6625 = vadd.f32 %v2063, %v6624
    %6626 = vmatprep.mubr.bf16.mxu0 %v1439
    %6627 = vmatmul.mubr.bf16.gmra.mrb[0].mxu0 %v1438
    %v6628 = vpop.f32.mrb[0].mxu0
    %v6629 = vadd.f32 %v2059, %v6628
    %v6630 = vpop.f32.mrb[0].mxu0
    %v6631 = vadd.f32 %v2063, %v6630
    %v6632 = vpop.f32.mrb[0].mxu0
    %v6633 = vadd.f32 %v2059, %v6632
    %v6634 = vpop.f32.mrb[0].mxu0
    %v6635 = vadd.f32 %v2063, %v6634
    %6636 = vmatprep.mubr.bf16.mxu0 %v1447
    %6637 = vmatmul.mubr.bf16.gmra.mrb[0].mxu0 %v1446
    %v6638 = vpop.f32.mrb[0].mxu0
    %v6639 = vadd.f32 %v2059, %v6638
    %v6640 = vpop.f32.mrb[0].mxu0
    %v6641 = vadd.f32 %v2063, %v6640
    %v6642 = vpop.f32.mrb[0].mxu0
    %v6643 = vadd.f32 %v2059, %v6642
    %v6644 = vpop.f32.mrb[0].mxu0
    %v6645 = vadd.f32 %v2063, %v6644
    %6646 = vmatprep.mubr.bf16.mxu0 %v1455
    %6647 = vmatmul.mubr.bf16.gmra.mrb[0].mxu0 %v1454
    %v6648 = vpop.f32.mrb[0].mxu0
    %v6649 = vadd.f32 %v2059, %v6648
    %v6650 = vpop.f32.mrb[0].mxu0
    %v6651 = vadd.f32 %v2063, %v6650
    %v6652 = vpop.f32.mrb[0].mxu0
    %v6653 = vadd.f32 %v2059, %v6652
    %v6654 = vpop.f32.mrb[0].mxu0
    %v6655 = vadd.f32 %v2063, %v6654
    %6656 = vmatprep.mubr.bf16.mxu0 %v1463
    %6657 = vmatmul.mubr.bf16.gmra.mrb[0].mxu0 %v1462
    %v6658 = vpop.f32.mrb[0].mxu0
    %v6659 = vadd.f32 %v2059, %v6658
    %v6660 = vpop.f32.mrb[0].mxu0
    %v6661 = vadd.f32 %v2063, %v6660
    %v6662 = vpop.f32.mrb[0].mxu0
    %v6663 = vadd.f32 %v2059, %v6662
    %v6664 = vpop.f32.mrb[0].mxu0
    %v6665 = vadd.f32 %v2063, %v6664
    %6666 = vmatprep.mubr.bf16.mxu0 %v1471
    %6667 = vmatmul.mubr.bf16.gmra.mrb[0].mxu0 %v1470
    %v6668 = vpop.f32.mrb[0].mxu0
    %v6669 = vadd.f32 %v2059, %v6668
    %v6670 = vpop.f32.mrb[0].mxu0
    %v6671 = vadd.f32 %v2063, %v6670
    %v6672 = vpop.f32.mrb[0].mxu0
    %v6673 = vadd.f32 %v2059, %v6672
    %v6674 = vpop.f32.mrb[0].mxu0
    %v6675 = vadd.f32 %v2063, %v6674
    %6676 = vmatprep.mubr.bf16.mxu0 %v1479
    %6677 = vmatmul.mubr.bf16.gmra.mrb[0].mxu0 %v1478
    %v6678 = vpop.f32.mrb[0].mxu0
    %v6679 = vadd.f32 %v2059, %v6678
    %v6680 = vpop.f32.mrb[0].mxu0
    %v6681 = vadd.f32 %v2063, %v6680
    %v6682 = vpop.f32.mrb[0].mxu0
    %v6683 = vadd.f32 %v2059, %v6682
    %v6684 = vpop.f32.mrb[0].mxu0
    %v6685 = vadd.f32 %v2063, %v6684
    %6686 = vmatprep.mubr.bf16.mxu0 %v1487
    %6687 = vmatmul.mubr.bf16.gmra.mrb[0].mxu0 %v1486
    %v6688 = vpop.f32.mrb[0].mxu0
    %v6689 = vadd.f32 %v2059, %v6688
    %v6690 = vpop.f32.mrb[0].mxu0
    %v6691 = vadd.f32 %v2063, %v6690
    %v6692 = vpop.f32.mrb[0].mxu0
    %v6693 = vadd.f32 %v2059, %v6692
    %v6694 = vpop.f32.mrb[0].mxu0
    %v6695 = vadd.f32 %v2063, %v6694
    %6696 = vmatprep.mubr.bf16.mxu0 %v1495
    %6697 = vmatmul.mubr.bf16.gmra.mrb[0].mxu0 %v1494
    %v6698 = vpop.f32.mrb[0].mxu0
    %v6699 = vadd.f32 %v2059, %v6698
    %v6700 = vpop.f32.mrb[0].mxu0
    %v6701 = vadd.f32 %v2063, %v6700
    %v6702 = vpop.f32.mrb[0].mxu0
    %v6703 = vadd.f32 %v2059, %v6702
    %v6704 = vpop.f32.mrb[0].mxu0
    %v6705 = vadd.f32 %v2063, %v6704
    %6706 = vmatprep.mubr.bf16.mxu0 %v1503
    %6707 = vmatmul.mubr.bf16.gmra.mrb[0].mxu0 %v1502
    %v6708 = vpop.f32.mrb[0].mxu0
    %v6709 = vadd.f32 %v2059, %v6708
    %v6710 = vpop.f32.mrb[0].mxu0
    %v6711 = vadd.f32 %v2063, %v6710
    %v6712 = vpop.f32.mrb[0].mxu0
    %v6713 = vadd.f32 %v2059, %v6712
    %v6714 = vpop.f32.mrb[0].mxu0
    %v6715 = vadd.f32 %v2063, %v6714
    %6716 = vmatprep.mubr.bf16.mxu0 %v1511
    %6717 = vmatmul.mubr.bf16.gmra.mrb[0].mxu0 %v1510
    %v6718 = vpop.f32.mrb[0].mxu0
    %v6719 = vadd.f32 %v2059, %v6718
    %v6720 = vpop.f32.mrb[0].mxu0
    %v6721 = vadd.f32 %v2063, %v6720
    %v6722 = vpop.f32.mrb[0].mxu0
    %v6723 = vpop.f32.mrb[0].mxu0
    %6724 = vdwg.mxu0
    %6725 = vmatprep.subr.bf16.mxu0 %v3743
    %6726 = vmatpush1.bf16.msra.mxu0 %v3742
    %6727 = vmatprep.subr.bf16.mxu0 %v3751
    %6728 = vmatpush1.bf16.msra.mxu0 %v3750
    %6729 = vmatprep.subr.bf16.mxu0 %v3759
    %6730 = vmatpush1.bf16.msra.mxu0 %v3758
    %6731 = vmatprep.subr.bf16.mxu0 %v3767
    %6732 = vmatpush1.bf16.msra.mxu0 %v3766
    %6733 = vmatprep.subr.bf16.mxu0 %v3775
    %6734 = vmatpush1.bf16.msra.mxu0 %v3774
    %6735 = vmatprep.subr.bf16.mxu0 %v3783
    %6736 = vmatpush1.bf16.msra.mxu0 %v3782
    %6737 = vmatprep.subr.bf16.mxu0 %v3791
    %6738 = vmatpush1.bf16.msra.mxu0 %v3790
    %6739 = vmatprep.subr.bf16.mxu0 %v3799
    %6740 = vmatpush1.bf16.msra.mxu0 %v3798
    %6741 = vmatprep.subr.bf16.mxu0 %v3807
    %6742 = vmatpush1.bf16.msra.mxu0 %v3806
    %6743 = vmatprep.subr.bf16.mxu0 %v3815
    %6744 = vmatpush1.bf16.msra.mxu0 %v3814
    %6745 = vmatprep.subr.bf16.mxu0 %v3823
    %6746 = vmatpush1.bf16.msra.mxu0 %v3822
    %6747 = vmatprep.subr.bf16.mxu0 %v3831
    %6748 = vmatpush1.bf16.msra.mxu0 %v3830
    %6749 = vmatprep.subr.bf16.mxu0 %v3839
    %6750 = vmatpush1.bf16.msra.mxu0 %v3838
    %6751 = vmatprep.subr.bf16.mxu0 %v3847
    %6752 = vmatpush1.bf16.msra.mxu0 %v3846
    %6753 = vmatprep.subr.bf16.mxu0 %v3855
    %6754 = vmatpush1.bf16.msra.mxu0 %v3854
    %6755 = vmatprep.subr.bf16.mxu0 %v3863
    %6756 = vmatpush1.bf16.msra.mxu0 %v3862
    %6757 = vmatprep.mubr.bf16.mxu0 %v1417
    %6758 = vmatmul.mubr.bf16.gmra.mrb[0].mxu0 %v1416
    %v6759 = vpop.f32.mrb[0].mxu0
    %v6760 = vadd.f32 %v6599, %v6759
    %v6761 = vpop.f32.mrb[0].mxu0
    %v6762 = vadd.f32 %v6601, %v6761
    %v6763 = vpop.f32.mrb[0].mxu0
    %v6764 = vadd.f32 %v6603, %v6763
    %v6765 = vpop.f32.mrb[0].mxu0
    %v6766 = vadd.f32 %v6605, %v6765
    %6767 = vmatprep.mubr.bf16.mxu0 %v1425
    %6768 = vmatmul.mubr.bf16.gmra.mrb[0].mxu0 %v1424
    %v6769 = vpop.f32.mrb[0].mxu0
    %v6770 = vadd.f32 %v6609, %v6769
    %v6771 = vpop.f32.mrb[0].mxu0
    %v6772 = vadd.f32 %v6611, %v6771
    %v6773 = vpop.f32.mrb[0].mxu0
    %v6774 = vadd.f32 %v6613, %v6773
    %v6775 = vpop.f32.mrb[0].mxu0
    %v6776 = vadd.f32 %v6615, %v6775
    %6777 = vmatprep.mubr.bf16.mxu0 %v1433
    %6778 = vmatmul.mubr.bf16.gmra.mrb[0].mxu0 %v1432
    %v6779 = vpop.f32.mrb[0].mxu0
    %v6780 = vadd.f32 %v6619, %v6779
    %v6781 = vpop.f32.mrb[0].mxu0
    %v6782 = vadd.f32 %v6621, %v6781
    %v6783 = vpop.f32.mrb[0].mxu0
    %v6784 = vadd.f32 %v6623, %v6783
    %v6785 = vpop.f32.mrb[0].mxu0
    %v6786 = vadd.f32 %v6625, %v6785
    %6787 = vmatprep.mubr.bf16.mxu0 %v1441
    %6788 = vmatmul.mubr.bf16.gmra.mrb[0].mxu0 %v1440
    %v6789 = vpop.f32.mrb[0].mxu0
    %v6790 = vadd.f32 %v6629, %v6789
    %v6791 = vpop.f32.mrb[0].mxu0
    %v6792 = vadd.f32 %v6631, %v6791
    %v6793 = vpop.f32.mrb[0].mxu0
    %v6794 = vadd.f32 %v6633, %v6793
    %v6795 = vpop.f32.mrb[0].mxu0
    %v6796 = vadd.f32 %v6635, %v6795
    %6797 = vmatprep.mubr.bf16.mxu0 %v1449
    %6798 = vmatmul.mubr.bf16.gmra.mrb[0].mxu0 %v1448
    %v6799 = vpop.f32.mrb[0].mxu0
    %v6800 = vadd.f32 %v6639, %v6799
    %v6801 = vpop.f32.mrb[0].mxu0
    %v6802 = vadd.f32 %v6641, %v6801
    %v6803 = vpop.f32.mrb[0].mxu0
    %v6804 = vadd.f32 %v6643, %v6803
    %v6805 = vpop.f32.mrb[0].mxu0
    %v6806 = vadd.f32 %v6645, %v6805
    %6807 = vmatprep.mubr.bf16.mxu0 %v1457
    %6808 = vmatmul.mubr.bf16.gmra.mrb[0].mxu0 %v1456
    %v6809 = vpop.f32.mrb[0].mxu0
    %v6810 = vadd.f32 %v6649, %v6809
    %v6811 = vpop.f32.mrb[0].mxu0
    %v6812 = vadd.f32 %v6651, %v6811
    %v6813 = vpop.f32.mrb[0].mxu0
    %v6814 = vadd.f32 %v6653, %v6813
    %v6815 = vpop.f32.mrb[0].mxu0
    %v6816 = vadd.f32 %v6655, %v6815
    %6817 = vmatprep.mubr.bf16.mxu0 %v1465
    %6818 = vmatmul.mubr.bf16.gmra.mrb[0].mxu0 %v1464
    %v6819 = vpop.f32.mrb[0].mxu0
    %v6820 = vadd.f32 %v6659, %v6819
    %v6821 = vpop.f32.mrb[0].mxu0
    %v6822 = vadd.f32 %v6661, %v6821
    %v6823 = vpop.f32.mrb[0].mxu0
    %v6824 = vadd.f32 %v6663, %v6823
    %v6825 = vpop.f32.mrb[0].mxu0
    %v6826 = vadd.f32 %v6665, %v6825
    %6827 = vmatprep.mubr.bf16.mxu0 %v1473
    %6828 = vmatmul.mubr.bf16.gmra.mrb[0].mxu0 %v1472
    %v6829 = vpop.f32.mrb[0].mxu0
    %v6830 = vadd.f32 %v6669, %v6829
    %v6831 = vpop.f32.mrb[0].mxu0
    %v6832 = vadd.f32 %v6671, %v6831
    %v6833 = vpop.f32.mrb[0].mxu0
    %v6834 = vadd.f32 %v6673, %v6833
    %v6835 = vpop.f32.mrb[0].mxu0
    %v6836 = vadd.f32 %v6675, %v6835
    %6837 = vmatprep.mubr.bf16.mxu0 %v1481
    %6838 = vmatmul.mubr.bf16.gmra.mrb[0].mxu0 %v1480
    %v6839 = vpop.f32.mrb[0].mxu0
    %v6840 = vadd.f32 %v6679, %v6839
    %v6841 = vpop.f32.mrb[0].mxu0
    %v6842 = vadd.f32 %v6681, %v6841
    %v6843 = vpop.f32.mrb[0].mxu0
    %v6844 = vadd.f32 %v6683, %v6843
    %v6845 = vpop.f32.mrb[0].mxu0
    %v6846 = vadd.f32 %v6685, %v6845
    %6847 = vmatprep.mubr.bf16.mxu0 %v1489
    %6848 = vmatmul.mubr.bf16.gmra.mrb[0].mxu0 %v1488
    %v6849 = vpop.f32.mrb[0].mxu0
    %v6850 = vadd.f32 %v6689, %v6849
    %v6851 = vpop.f32.mrb[0].mxu0
    %v6852 = vadd.f32 %v6691, %v6851
    %v6853 = vpop.f32.mrb[0].mxu0
    %v6854 = vadd.f32 %v6693, %v6853
    %v6855 = vpop.f32.mrb[0].mxu0
    %v6856 = vadd.f32 %v6695, %v6855
    %6857 = vmatprep.mubr.bf16.mxu0 %v1497
    %6858 = vmatmul.mubr.bf16.gmra.mrb[0].mxu0 %v1496
    %v6859 = vpop.f32.mrb[0].mxu0
    %v6860 = vadd.f32 %v6699, %v6859
    %v6861 = vpop.f32.mrb[0].mxu0
    %v6862 = vadd.f32 %v6701, %v6861
    %v6863 = vpop.f32.mrb[0].mxu0
    %v6864 = vadd.f32 %v6703, %v6863
    %v6865 = vpop.f32.mrb[0].mxu0
    %v6866 = vadd.f32 %v6705, %v6865
    %6867 = vmatprep.mubr.bf16.mxu0 %v1505
    %6868 = vmatmul.mubr.bf16.gmra.mrb[0].mxu0 %v1504
    %v6869 = vpop.f32.mrb[0].mxu0
    %v6870 = vadd.f32 %v6709, %v6869
    %v6871 = vpop.f32.mrb[0].mxu0
    %v6872 = vadd.f32 %v6711, %v6871
    %v6873 = vpop.f32.mrb[0].mxu0
    %v6874 = vadd.f32 %v6713, %v6873
    %v6875 = vpop.f32.mrb[0].mxu0
    %v6876 = vadd.f32 %v6715, %v6875
    %6877 = vmatprep.mubr.bf16.mxu0 %v1513
    %6878 = vmatmul.mubr.bf16.gmra.mrb[0].mxu0 %v1512
    %v6879 = vpop.f32.mrb[0].mxu0
    %v6880 = vadd.f32 %v6719, %v6879
    %v6881 = vpop.f32.mrb[0].mxu0
    %v6882 = vadd.f32 %v6721, %v6881
    %v6883 = vpop.f32.mrb[0].mxu0
    %v6884 = vpop.f32.mrb[0].mxu0
    %6885 = vdwg.mxu0
    %6886 = vmatprep.subr.bf16.mxu0 %v3871
    %6887 = vmatpush1.bf16.msra.mxu0 %v3870
    %6888 = vmatprep.subr.bf16.mxu0 %v3879
    %6889 = vmatpush1.bf16.msra.mxu0 %v3878
    %6890 = vmatprep.subr.bf16.mxu0 %v3887
    %6891 = vmatpush1.bf16.msra.mxu0 %v3886
    %6892 = vmatprep.subr.bf16.mxu0 %v3895
    %6893 = vmatpush1.bf16.msra.mxu0 %v3894
    %6894 = vmatprep.subr.bf16.mxu0 %v3903
    %6895 = vmatpush1.bf16.msra.mxu0 %v3902
    %6896 = vmatprep.subr.bf16.mxu0 %v3911
    %6897 = vmatpush1.bf16.msra.mxu0 %v3910
    %6898 = vmatprep.subr.bf16.mxu0 %v3919
    %6899 = vmatpush1.bf16.msra.mxu0 %v3918
    %6900 = vmatprep.subr.bf16.mxu0 %v3927
    %6901 = vmatpush1.bf16.msra.mxu0 %v3926
    %6902 = vmatprep.subr.bf16.mxu0 %v3935
    %6903 = vmatpush1.bf16.msra.mxu0 %v3934
    %6904 = vmatprep.subr.bf16.mxu0 %v3943
    %6905 = vmatpush1.bf16.msra.mxu0 %v3942
    %6906 = vmatprep.subr.bf16.mxu0 %v3951
    %6907 = vmatpush1.bf16.msra.mxu0 %v3950
    %6908 = vmatprep.subr.bf16.mxu0 %v3959
    %6909 = vmatpush1.bf16.msra.mxu0 %v3958
    %6910 = vmatprep.subr.bf16.mxu0 %v3967
    %6911 = vmatpush1.bf16.msra.mxu0 %v3966
    %6912 = vmatprep.subr.bf16.mxu0 %v3975
    %6913 = vmatpush1.bf16.msra.mxu0 %v3974
    %6914 = vmatprep.subr.bf16.mxu0 %v3983
    %6915 = vmatpush1.bf16.msra.mxu0 %v3982
    %6916 = vmatprep.subr.bf16.mxu0 %v3991
    %6917 = vmatpush1.bf16.msra.mxu0 %v3990
    %6918 = vmatprep.mubr.bf16.mxu0 %v1419
    %6919 = vmatmul.mubr.bf16.gmra.mrb[0].mxu0 %v1418
    %v6920 = vpop.f32.mrb[0].mxu0
    %v6921 = vadd.f32 %v6760, %v6920
    %v6922 = vpop.f32.mrb[0].mxu0
    %v6923 = vadd.f32 %v6762, %v6922
    %v6924 = vpop.f32.mrb[0].mxu0
    %v6925 = vadd.f32 %v6764, %v6924
    %v6926 = vpop.f32.mrb[0].mxu0
    %v6927 = vadd.f32 %v6766, %v6926
    %6928 = vmatprep.mubr.bf16.mxu0 %v1427
    %6929 = vmatmul.mubr.bf16.gmra.mrb[0].mxu0 %v1426
    %v6930 = vpop.f32.mrb[0].mxu0
    %v6931 = vadd.f32 %v6770, %v6930
    %v6932 = vpop.f32.mrb[0].mxu0
    %v6933 = vadd.f32 %v6772, %v6932
    %v6934 = vpop.f32.mrb[0].mxu0
    %v6935 = vadd.f32 %v6774, %v6934
    %v6936 = vpop.f32.mrb[0].mxu0
    %v6937 = vadd.f32 %v6776, %v6936
    %6938 = vmatprep.mubr.bf16.mxu0 %v1435
    %6939 = vmatmul.mubr.bf16.gmra.mrb[0].mxu0 %v1434
    %v6940 = vpop.f32.mrb[0].mxu0
    %v6941 = vadd.f32 %v6780, %v6940
    %v6942 = vpop.f32.mrb[0].mxu0
    %v6943 = vadd.f32 %v6782, %v6942
    %v6944 = vpop.f32.mrb[0].mxu0
    %v6945 = vadd.f32 %v6784, %v6944
    %v6946 = vpop.f32.mrb[0].mxu0
    %v6947 = vadd.f32 %v6786, %v6946
    %6948 = vmatprep.mubr.bf16.mxu0 %v1443
    %6949 = vmatmul.mubr.bf16.gmra.mrb[0].mxu0 %v1442
    %v6950 = vpop.f32.mrb[0].mxu0
    %v6951 = vadd.f32 %v6790, %v6950
    %v6952 = vpop.f32.mrb[0].mxu0
    %v6953 = vadd.f32 %v6792, %v6952
    %v6954 = vpop.f32.mrb[0].mxu0
    %v6955 = vadd.f32 %v6794, %v6954
    %v6956 = vpop.f32.mrb[0].mxu0
    %v6957 = vadd.f32 %v6796, %v6956
    %6958 = vmatprep.mubr.bf16.mxu0 %v1451
    %6959 = vmatmul.mubr.bf16.gmra.mrb[0].mxu0 %v1450
    %v6960 = vpop.f32.mrb[0].mxu0
    %v6961 = vadd.f32 %v6800, %v6960
    %v6962 = vpop.f32.mrb[0].mxu0
    %v6963 = vadd.f32 %v6802, %v6962
    %v6964 = vpop.f32.mrb[0].mxu0
    %v6965 = vadd.f32 %v6804, %v6964
    %v6966 = vpop.f32.mrb[0].mxu0
    %v6967 = vadd.f32 %v6806, %v6966
    %6968 = vmatprep.mubr.bf16.mxu0 %v1459
    %6969 = vmatmul.mubr.bf16.gmra.mrb[0].mxu0 %v1458
    %v6970 = vpop.f32.mrb[0].mxu0
    %v6971 = vadd.f32 %v6810, %v6970
    %v6972 = vpop.f32.mrb[0].mxu0
    %v6973 = vadd.f32 %v6812, %v6972
    %v6974 = vpop.f32.mrb[0].mxu0
    %v6975 = vadd.f32 %v6814, %v6974
    %v6976 = vpop.f32.mrb[0].mxu0
    %v6977 = vadd.f32 %v6816, %v6976
    %6978 = vmatprep.mubr.bf16.mxu0 %v1467
    %6979 = vmatmul.mubr.bf16.gmra.mrb[0].mxu0 %v1466
    %v6980 = vpop.f32.mrb[0].mxu0
    %v6981 = vadd.f32 %v6820, %v6980
    %v6982 = vpop.f32.mrb[0].mxu0
    %v6983 = vadd.f32 %v6822, %v6982
    %v6984 = vpop.f32.mrb[0].mxu0
    %v6985 = vadd.f32 %v6824, %v6984
    %v6986 = vpop.f32.mrb[0].mxu0
    %v6987 = vadd.f32 %v6826, %v6986
    %6988 = vmatprep.mubr.bf16.mxu0 %v1475
    %6989 = vmatmul.mubr.bf16.gmra.mrb[0].mxu0 %v1474
    %v6990 = vpop.f32.mrb[0].mxu0
    %v6991 = vadd.f32 %v6830, %v6990
    %v6992 = vpop.f32.mrb[0].mxu0
    %v6993 = vadd.f32 %v6832, %v6992
    %v6994 = vpop.f32.mrb[0].mxu0
    %v6995 = vadd.f32 %v6834, %v6994
    %v6996 = vpop.f32.mrb[0].mxu0
    %v6997 = vadd.f32 %v6836, %v6996
    %6998 = vmatprep.mubr.bf16.mxu0 %v1483
    %6999 = vmatmul.mubr.bf16.gmra.mrb[0].mxu0 %v1482
    %v7000 = vpop.f32.mrb[0].mxu0
    %v7001 = vadd.f32 %v6840, %v7000
    %v7002 = vpop.f32.mrb[0].mxu0
    %v7003 = vadd.f32 %v6842, %v7002
    %v7004 = vpop.f32.mrb[0].mxu0
    %v7005 = vadd.f32 %v6844, %v7004
    %v7006 = vpop.f32.mrb[0].mxu0
    %v7007 = vadd.f32 %v6846, %v7006
    %7008 = vmatprep.mubr.bf16.mxu0 %v1491
    %7009 = vmatmul.mubr.bf16.gmra.mrb[0].mxu0 %v1490
    %v7010 = vpop.f32.mrb[0].mxu0
    %v7011 = vadd.f32 %v6850, %v7010
    %v7012 = vpop.f32.mrb[0].mxu0
    %v7013 = vadd.f32 %v6852, %v7012
    %v7014 = vpop.f32.mrb[0].mxu0
    %v7015 = vadd.f32 %v6854, %v7014
    %v7016 = vpop.f32.mrb[0].mxu0
    %v7017 = vadd.f32 %v6856, %v7016
    %7018 = vmatprep.mubr.bf16.mxu0 %v1499
    %7019 = vmatmul.mubr.bf16.gmra.mrb[0].mxu0 %v1498
    %v7020 = vpop.f32.mrb[0].mxu0
    %v7021 = vadd.f32 %v6860, %v7020
    %v7022 = vpop.f32.mrb[0].mxu0
    %v7023 = vadd.f32 %v6862, %v7022
    %v7024 = vpop.f32.mrb[0].mxu0
    %v7025 = vadd.f32 %v6864, %v7024
    %v7026 = vpop.f32.mrb[0].mxu0
    %v7027 = vadd.f32 %v6866, %v7026
    %7028 = vmatprep.mubr.bf16.mxu0 %v1507
    %7029 = vmatmul.mubr.bf16.gmra.mrb[0].mxu0 %v1506
    %v7030 = vpop.f32.mrb[0].mxu0
    %v7031 = vadd.f32 %v6870, %v7030
    %v7032 = vpop.f32.mrb[0].mxu0
    %v7033 = vadd.f32 %v6872, %v7032
    %v7034 = vpop.f32.mrb[0].mxu0
    %v7035 = vadd.f32 %v6874, %v7034
    %v7036 = vpop.f32.mrb[0].mxu0
    %v7037 = vadd.f32 %v6876, %v7036
    %7038 = vmatprep.mubr.bf16.mxu0 %v1515
    %7039 = vmatmul.mubr.bf16.gmra.mrb[0].mxu0 %v1514
    %v7040 = vpop.f32.mrb[0].mxu0
    %v7041 = vadd.f32 %v6880, %v7040
    %v7042 = vpop.f32.mrb[0].mxu0
    %v7043 = vadd.f32 %v6882, %v7042
    %v7044 = vpop.f32.mrb[0].mxu0
    %v7045 = vpop.f32.mrb[0].mxu0
    %7046 = vdwg.mxu0
    %7047 = vmatprep.subr.bf16.mxu0 %v3999
    %7048 = vmatpush1.bf16.msra.mxu0 %v3998
    %7049 = vmatprep.subr.bf16.mxu0 %v4007
    %7050 = vmatpush1.bf16.msra.mxu0 %v4006
    %7051 = vmatprep.subr.bf16.mxu0 %v4015
    %7052 = vmatpush1.bf16.msra.mxu0 %v4014
    %7053 = vmatprep.subr.bf16.mxu0 %v4023
    %7054 = vmatpush1.bf16.msra.mxu0 %v4022
    %7055 = vmatprep.subr.bf16.mxu0 %v4031
    %7056 = vmatpush1.bf16.msra.mxu0 %v4030
    %7057 = vmatprep.subr.bf16.mxu0 %v4039
    %7058 = vmatpush1.bf16.msra.mxu0 %v4038
    %7059 = vmatprep.subr.bf16.mxu0 %v4047
    %7060 = vmatpush1.bf16.msra.mxu0 %v4046
    %7061 = vmatprep.subr.bf16.mxu0 %v4055
    %7062 = vmatpush1.bf16.msra.mxu0 %v4054
    %7063 = vmatprep.subr.bf16.mxu0 %v4063
    %7064 = vmatpush1.bf16.msra.mxu0 %v4062
    %7065 = vmatprep.subr.bf16.mxu0 %v4071
    %7066 = vmatpush1.bf16.msra.mxu0 %v4070
    %7067 = vmatprep.subr.bf16.mxu0 %v4079
    %7068 = vmatpush1.bf16.msra.mxu0 %v4078
    %7069 = vmatprep.subr.bf16.mxu0 %v4087
    %7070 = vmatpush1.bf16.msra.mxu0 %v4086
    %7071 = vmatprep.subr.bf16.mxu0 %v4095
    %7072 = vmatpush1.bf16.msra.mxu0 %v4094
    %7073 = vmatprep.subr.bf16.mxu0 %v4103
    %7074 = vmatpush1.bf16.msra.mxu0 %v4102
    %7075 = vmatprep.subr.bf16.mxu0 %v4111
    %7076 = vmatpush1.bf16.msra.mxu0 %v4110
    %7077 = vmatprep.subr.bf16.mxu0 %v4119
    %7078 = vmatpush1.bf16.msra.mxu0 %v4118
    %7079 = vmatprep.mubr.bf16.mxu0 %v1421
    %7080 = vmatmul.mubr.bf16.gmra.mrb[0].mxu0 %v1420
    %v7081 = vpop.f32.mrb[0].mxu0
    %v7082 = vadd.f32 %v6921, %v7081
    %v7083 = vpop.f32.mrb[0].mxu0
    %v7084 = vadd.f32 %v6923, %v7083
    %v7085 = vpop.f32.mrb[0].mxu0
    %v7086 = vadd.f32 %v6925, %v7085
    %v7087 = vpop.f32.mrb[0].mxu0
    %v7088 = vadd.f32 %v6927, %v7087
    %7089 = vmatprep.mubr.bf16.mxu0 %v1429
    %7090 = vmatmul.mubr.bf16.gmra.mrb[0].mxu0 %v1428
    %v7091 = vpop.f32.mrb[0].mxu0
    %v7092 = vadd.f32 %v6931, %v7091
    %v7093 = vpop.f32.mrb[0].mxu0
    %v7094 = vadd.f32 %v6933, %v7093
    %v7095 = vpop.f32.mrb[0].mxu0
    %v7096 = vadd.f32 %v6935, %v7095
    %v7097 = vpop.f32.mrb[0].mxu0
    %v7098 = vadd.f32 %v6937, %v7097
    %7099 = vmatprep.mubr.bf16.mxu0 %v1437
    %7100 = vmatmul.mubr.bf16.gmra.mrb[0].mxu0 %v1436
    %v7101 = vpop.f32.mrb[0].mxu0
    %v7102 = vadd.f32 %v6941, %v7101
    %v7103 = vpop.f32.mrb[0].mxu0
    %v7104 = vadd.f32 %v6943, %v7103
    %v7105 = vpop.f32.mrb[0].mxu0
    %v7106 = vadd.f32 %v6945, %v7105
    %v7107 = vpop.f32.mrb[0].mxu0
    %v7108 = vadd.f32 %v6947, %v7107
    %7109 = vmatprep.mubr.bf16.mxu0 %v1445
    %7110 = vmatmul.mubr.bf16.gmra.mrb[0].mxu0 %v1444
    %v7111 = vpop.f32.mrb[0].mxu0
    %v7112 = vadd.f32 %v6951, %v7111
    %v7113 = vpop.f32.mrb[0].mxu0
    %v7114 = vadd.f32 %v6953, %v7113
    %v7115 = vpop.f32.mrb[0].mxu0
    %v7116 = vadd.f32 %v6955, %v7115
    %v7117 = vpop.f32.mrb[0].mxu0
    %v7118 = vadd.f32 %v6957, %v7117
    %7119 = vmatprep.mubr.bf16.mxu0 %v1453
    %7120 = vmatmul.mubr.bf16.gmra.mrb[0].mxu0 %v1452
    %v7121 = vpop.f32.mrb[0].mxu0
    %v7122 = vadd.f32 %v6961, %v7121
    %v7123 = vpop.f32.mrb[0].mxu0
    %v7124 = vadd.f32 %v6963, %v7123
    %v7125 = vpop.f32.mrb[0].mxu0
    %v7126 = vadd.f32 %v6965, %v7125
    %v7127 = vpop.f32.mrb[0].mxu0
    %v7128 = vadd.f32 %v6967, %v7127
    %7129 = vmatprep.mubr.bf16.mxu0 %v1461
    %7130 = vmatmul.mubr.bf16.gmra.mrb[0].mxu0 %v1460
    %v7131 = vpop.f32.mrb[0].mxu0
    %v7132 = vadd.f32 %v6971, %v7131
    %v7133 = vpop.f32.mrb[0].mxu0
    %v7134 = vadd.f32 %v6973, %v7133
    %v7135 = vpop.f32.mrb[0].mxu0
    %v7136 = vadd.f32 %v6975, %v7135
    %v7137 = vpop.f32.mrb[0].mxu0
    %v7138 = vadd.f32 %v6977, %v7137
    %7139 = vmatprep.mubr.bf16.mxu0 %v1469
    %7140 = vmatmul.mubr.bf16.gmra.mrb[0].mxu0 %v1468
    %v7141 = vpop.f32.mrb[0].mxu0
    %v7142 = vadd.f32 %v6981, %v7141
    %v7143 = vpop.f32.mrb[0].mxu0
    %v7144 = vadd.f32 %v6983, %v7143
    %v7145 = vpop.f32.mrb[0].mxu0
    %v7146 = vadd.f32 %v6985, %v7145
    %v7147 = vpop.f32.mrb[0].mxu0
    %v7148 = vadd.f32 %v6987, %v7147
    %7149 = vmatprep.mubr.bf16.mxu0 %v1477
    %7150 = vmatmul.mubr.bf16.gmra.mrb[0].mxu0 %v1476
    %v7151 = vpop.f32.mrb[0].mxu0
    %v7152 = vadd.f32 %v6991, %v7151
    %v7153 = vpop.f32.mrb[0].mxu0
    %v7154 = vadd.f32 %v6993, %v7153
    %v7155 = vpop.f32.mrb[0].mxu0
    %v7156 = vadd.f32 %v6995, %v7155
    %v7157 = vpop.f32.mrb[0].mxu0
    %v7158 = vadd.f32 %v6997, %v7157
    %7159 = vmatprep.mubr.bf16.mxu0 %v1485
    %7160 = vmatmul.mubr.bf16.gmra.mrb[0].mxu0 %v1484
    %v7161 = vpop.f32.mrb[0].mxu0
    %v7162 = vadd.f32 %v7001, %v7161
    %v7163 = vpop.f32.mrb[0].mxu0
    %v7164 = vadd.f32 %v7003, %v7163
    %v7165 = vpop.f32.mrb[0].mxu0
    %v7166 = vadd.f32 %v7005, %v7165
    %v7167 = vpop.f32.mrb[0].mxu0
    %v7168 = vadd.f32 %v7007, %v7167
    %7169 = vmatprep.mubr.bf16.mxu0 %v1493
    %7170 = vmatmul.mubr.bf16.gmra.mrb[0].mxu0 %v1492
    %v7171 = vpop.f32.mrb[0].mxu0
    %v7172 = vadd.f32 %v7011, %v7171
    %v7173 = vpop.f32.mrb[0].mxu0
    %v7174 = vadd.f32 %v7013, %v7173
    %v7175 = vpop.f32.mrb[0].mxu0
    %v7176 = vadd.f32 %v7015, %v7175
    %v7177 = vpop.f32.mrb[0].mxu0
    %v7178 = vadd.f32 %v7017, %v7177
    %7179 = vmatprep.mubr.bf16.mxu0 %v1501
    %7180 = vmatmul.mubr.bf16.gmra.mrb[0].mxu0 %v1500
    %v7181 = vpop.f32.mrb[0].mxu0
    %v7182 = vadd.f32 %v7021, %v7181
    %v7183 = vpop.f32.mrb[0].mxu0
    %v7184 = vadd.f32 %v7023, %v7183
    %v7185 = vpop.f32.mrb[0].mxu0
    %v7186 = vadd.f32 %v7025, %v7185
    %v7187 = vpop.f32.mrb[0].mxu0
    %v7188 = vadd.f32 %v7027, %v7187
    %7189 = vmatprep.mubr.bf16.mxu0 %v1509
    %7190 = vmatmul.mubr.bf16.gmra.mrb[0].mxu0 %v1508
    %v7191 = vpop.f32.mrb[0].mxu0
    %v7192 = vadd.f32 %v7031, %v7191
    %v7193 = vpop.f32.mrb[0].mxu0
    %v7194 = vadd.f32 %v7033, %v7193
    %v7195 = vpop.f32.mrb[0].mxu0
    %v7196 = vadd.f32 %v7035, %v7195
    %v7197 = vpop.f32.mrb[0].mxu0
    %v7198 = vadd.f32 %v7037, %v7197
    %7199 = vmatprep.mubr.bf16.mxu0 %v1517
    %7200 = vmatmul.mubr.bf16.gmra.mrb[0].mxu0 %v1516
    %v7201 = vpop.f32.mrb[0].mxu0
    %v7202 = vadd.f32 %v7041, %v7201
    %v7203 = vpop.f32.mrb[0].mxu0
    %v7204 = vadd.f32 %v7043, %v7203
    %v7205 = vpop.f32.mrb[0].mxu0
    %v7206 = vpop.f32.mrb[0].mxu0
    %7207 = vdwg.mxu0
    %v7208 = vmax.f32 %v5150, 0.0
    %v7209 = vmax.f32 %v5152, 0.0
    %v7210 = vmax.f32 %v5794, 0.0
    %v7211 = vmax.f32 %v5796, 0.0
    %v7212 = vmax.f32 %v6438, 0.0
    %v7213 = vmax.f32 %v6440, 0.0
    %v7214 = vmax.f32 %v7082, 0.0
    %v7215 = vmax.f32 %v7084, 0.0
    %v7216 = vmax.f32 %v5154, 0.0
    %v7217 = vmax.f32 %v5156, 0.0
    %v7218 = vmax.f32 %v5798, 0.0
    %v7219 = vmax.f32 %v5800, 0.0
    %v7220 = vmax.f32 %v6442, 0.0
    %v7221 = vmax.f32 %v6444, 0.0
    %v7222 = vmax.f32 %v7086, 0.0
    %v7223 = vmax.f32 %v7088, 0.0
    %v7224 = vmax.f32 %v5160, 0.0
    %v7225 = vmax.f32 %v5162, 0.0
    %v7226 = vmax.f32 %v5804, 0.0
    %v7227 = vmax.f32 %v5806, 0.0
    %v7228 = vmax.f32 %v6448, 0.0
    %v7229 = vmax.f32 %v6450, 0.0
    %v7230 = vmax.f32 %v7092, 0.0
    %v7231 = vmax.f32 %v7094, 0.0
    %v7232 = vmax.f32 %v5164, 0.0
    %v7233 = vmax.f32 %v5166, 0.0
    %v7234 = vmax.f32 %v5808, 0.0
    %v7235 = vmax.f32 %v5810, 0.0
    %v7236 = vmax.f32 %v6452, 0.0
    %v7237 = vmax.f32 %v6454, 0.0
    %v7238 = vmax.f32 %v7096, 0.0
    %v7239 = vmax.f32 %v7098, 0.0
    %v7240 = vmax.f32 %v5170, 0.0
    %v7241 = vmax.f32 %v5172, 0.0
    %v7242 = vmax.f32 %v5814, 0.0
    %v7243 = vmax.f32 %v5816, 0.0
    %v7244 = vmax.f32 %v6458, 0.0
    %v7245 = vmax.f32 %v6460, 0.0
    %v7246 = vmax.f32 %v7102, 0.0
    %v7247 = vmax.f32 %v7104, 0.0
    %v7248 = vmax.f32 %v5174, 0.0
    %v7249 = vmax.f32 %v5176, 0.0
    %v7250 = vmax.f32 %v5818, 0.0
    %v7251 = vmax.f32 %v5820, 0.0
    %v7252 = vmax.f32 %v6462, 0.0
    %v7253 = vmax.f32 %v6464, 0.0
    %v7254 = vmax.f32 %v7106, 0.0
    %v7255 = vmax.f32 %v7108, 0.0
    %v7256 = vmax.f32 %v5180, 0.0
    %v7257 = vmax.f32 %v5182, 0.0
    %v7258 = vmax.f32 %v5824, 0.0
    %v7259 = vmax.f32 %v5826, 0.0
    %v7260 = vmax.f32 %v6468, 0.0
    %v7261 = vmax.f32 %v6470, 0.0
    %v7262 = vmax.f32 %v7112, 0.0
    %v7263 = vmax.f32 %v7114, 0.0
    %v7264 = vmax.f32 %v5184, 0.0
    %v7265 = vmax.f32 %v5186, 0.0
    %v7266 = vmax.f32 %v5828, 0.0
    %v7267 = vmax.f32 %v5830, 0.0
    %v7268 = vmax.f32 %v6472, 0.0
    %v7269 = vmax.f32 %v6474, 0.0
    %v7270 = vmax.f32 %v7116, 0.0
    %v7271 = vmax.f32 %v7118, 0.0
    %v7272 = vmax.f32 %v5190, 0.0
    %v7273 = vmax.f32 %v5192, 0.0
    %v7274 = vmax.f32 %v5834, 0.0
    %v7275 = vmax.f32 %v5836, 0.0
    %v7276 = vmax.f32 %v6478, 0.0
    %v7277 = vmax.f32 %v6480, 0.0
    %v7278 = vmax.f32 %v7122, 0.0
    %v7279 = vmax.f32 %v7124, 0.0
    %v7280 = vmax.f32 %v5194, 0.0
    %v7281 = vmax.f32 %v5196, 0.0
    %v7282 = vmax.f32 %v5838, 0.0
    %v7283 = vmax.f32 %v5840, 0.0
    %v7284 = vmax.f32 %v6482, 0.0
    %v7285 = vmax.f32 %v6484, 0.0
    %v7286 = vmax.f32 %v7126, 0.0
    %v7287 = vmax.f32 %v7128, 0.0
    %v7288 = vmax.f32 %v5200, 0.0
    %v7289 = vmax.f32 %v5202, 0.0
    %v7290 = vmax.f32 %v5844, 0.0
    %v7291 = vmax.f32 %v5846, 0.0
    %v7292 = vmax.f32 %v6488, 0.0
    %v7293 = vmax.f32 %v6490, 0.0
    %v7294 = vmax.f32 %v7132, 0.0
    %v7295 = vmax.f32 %v7134, 0.0
    %v7296 = vmax.f32 %v5204, 0.0
    %v7297 = vmax.f32 %v5206, 0.0
    %v7298 = vmax.f32 %v5848, 0.0
    %v7299 = vmax.f32 %v5850, 0.0
    %v7300 = vmax.f32 %v6492, 0.0
    %v7301 = vmax.f32 %v6494, 0.0
    %v7302 = vmax.f32 %v7136, 0.0
    %v7303 = vmax.f32 %v7138, 0.0
    %v7304 = vmax.f32 %v5210, 0.0
    %v7305 = vmax.f32 %v5212, 0.0
    %v7306 = vmax.f32 %v5854, 0.0
    %v7307 = vmax.f32 %v5856, 0.0
    %v7308 = vmax.f32 %v6498, 0.0
    %v7309 = vmax.f32 %v6500, 0.0
    %v7310 = vmax.f32 %v7142, 0.0
    %v7311 = vmax.f32 %v7144, 0.0
    %v7312 = vmax.f32 %v5214, 0.0
    %v7313 = vmax.f32 %v5216, 0.0
    %v7314 = vmax.f32 %v5858, 0.0
    %v7315 = vmax.f32 %v5860, 0.0
    %v7316 = vmax.f32 %v6502, 0.0
    %v7317 = vmax.f32 %v6504, 0.0
    %v7318 = vmax.f32 %v7146, 0.0
    %v7319 = vmax.f32 %v7148, 0.0
    %v7320 = vmax.f32 %v5220, 0.0
    %v7321 = vmax.f32 %v5222, 0.0
    %v7322 = vmax.f32 %v5864, 0.0
    %v7323 = vmax.f32 %v5866, 0.0
    %v7324 = vmax.f32 %v6508, 0.0
    %v7325 = vmax.f32 %v6510, 0.0
    %v7326 = vmax.f32 %v7152, 0.0
    %v7327 = vmax.f32 %v7154, 0.0
    %v7328 = vmax.f32 %v5224, 0.0
    %v7329 = vmax.f32 %v5226, 0.0
    %v7330 = vmax.f32 %v5868, 0.0
    %v7331 = vmax.f32 %v5870, 0.0
    %v7332 = vmax.f32 %v6512, 0.0
    %v7333 = vmax.f32 %v6514, 0.0
    %v7334 = vmax.f32 %v7156, 0.0
    %v7335 = vmax.f32 %v7158, 0.0
    %v7336 = vmax.f32 %v5230, 0.0
    %v7337 = vmax.f32 %v5232, 0.0
    %v7338 = vmax.f32 %v5874, 0.0
    %v7339 = vmax.f32 %v5876, 0.0
    %v7340 = vmax.f32 %v6518, 0.0
    %v7341 = vmax.f32 %v6520, 0.0
    %v7342 = vmax.f32 %v7162, 0.0
    %v7343 = vmax.f32 %v7164, 0.0
    %v7344 = vmax.f32 %v5234, 0.0
    %v7345 = vmax.f32 %v5236, 0.0
    %v7346 = vmax.f32 %v5878, 0.0
    %v7347 = vmax.f32 %v5880, 0.0
    %v7348 = vmax.f32 %v6522, 0.0
    %v7349 = vmax.f32 %v6524, 0.0
    %v7350 = vmax.f32 %v7166, 0.0
    %v7351 = vmax.f32 %v7168, 0.0
    %v7352 = vmax.f32 %v5240, 0.0
    %v7353 = vmax.f32 %v5242, 0.0
    %v7354 = vmax.f32 %v5884, 0.0
    %v7355 = vmax.f32 %v5886, 0.0
    %v7356 = vmax.f32 %v6528, 0.0
    %v7357 = vmax.f32 %v6530, 0.0
    %v7358 = vmax.f32 %v7172, 0.0
    %v7359 = vmax.f32 %v7174, 0.0
    %v7360 = vmax.f32 %v5244, 0.0
    %v7361 = vmax.f32 %v5246, 0.0
    %v7362 = vmax.f32 %v5888, 0.0
    %v7363 = vmax.f32 %v5890, 0.0
    %v7364 = vmax.f32 %v6532, 0.0
    %v7365 = vmax.f32 %v6534, 0.0
    %v7366 = vmax.f32 %v7176, 0.0
    %v7367 = vmax.f32 %v7178, 0.0
    %v7368 = vmax.f32 %v5250, 0.0
    %v7369 = vmax.f32 %v5252, 0.0
    %v7370 = vmax.f32 %v5894, 0.0
    %v7371 = vmax.f32 %v5896, 0.0
    %v7372 = vmax.f32 %v6538, 0.0
    %v7373 = vmax.f32 %v6540, 0.0
    %v7374 = vmax.f32 %v7182, 0.0
    %v7375 = vmax.f32 %v7184, 0.0
    %v7376 = vmax.f32 %v5254, 0.0
    %v7377 = vmax.f32 %v5256, 0.0
    %v7378 = vmax.f32 %v5898, 0.0
    %v7379 = vmax.f32 %v5900, 0.0
    %v7380 = vmax.f32 %v6542, 0.0
    %v7381 = vmax.f32 %v6544, 0.0
    %v7382 = vmax.f32 %v7186, 0.0
    %v7383 = vmax.f32 %v7188, 0.0
    %v7384 = vmax.f32 %v5260, 0.0
    %v7385 = vmax.f32 %v5262, 0.0
    %v7386 = vmax.f32 %v5904, 0.0
    %v7387 = vmax.f32 %v5906, 0.0
    %v7388 = vmax.f32 %v6548, 0.0
    %v7389 = vmax.f32 %v6550, 0.0
    %v7390 = vmax.f32 %v7192, 0.0
    %v7391 = vmax.f32 %v7194, 0.0
    %v7392 = vmax.f32 %v5264, 0.0
    %v7393 = vmax.f32 %v5266, 0.0
    %v7394 = vmax.f32 %v5908, 0.0
    %v7395 = vmax.f32 %v5910, 0.0
    %v7396 = vmax.f32 %v6552, 0.0
    %v7397 = vmax.f32 %v6554, 0.0
    %v7398 = vmax.f32 %v7196, 0.0
    %v7399 = vmax.f32 %v7198, 0.0
    %v7400 = vmax.f32 %v5270, 0.0
    %v7401 = vmax.f32 %v5272, 0.0
    %v7402 = vmax.f32 %v5914, 0.0
    %v7403 = vmax.f32 %v5916, 0.0
    %v7404 = vmax.f32 %v6558, 0.0
    %v7405 = vmax.f32 %v6560, 0.0
    %v7406 = vmax.f32 %v7202, 0.0
    %v7407 = vmax.f32 %v7204, 0.0
    %v7408 = vld [vmem:[#allocation12] sm:$0xff]
    %v7409 = vpack.c.bf16 %v7216, %v7208
    %v7410 = vpack.c.bf16 %v7217, %v7209
    %v7411 = vpack.c.bf16 %v7218, %v7210
    %v7412 = vpack.c.bf16 %v7219, %v7211
    %v7413 = vpack.c.bf16 %v7220, %v7212
    %v7414 = vpack.c.bf16 %v7221, %v7213
    %v7415 = vpack.c.bf16 %v7222, %v7214
    %v7416 = vpack.c.bf16 %v7223, %v7215
    %v7417 = vpack.c.bf16 %v7232, %v7224
    %v7418 = vpack.c.bf16 %v7233, %v7225
    %v7419 = vpack.c.bf16 %v7234, %v7226
    %v7420 = vpack.c.bf16 %v7235, %v7227
    %v7421 = vpack.c.bf16 %v7236, %v7228
    %v7422 = vpack.c.bf16 %v7237, %v7229
    %v7423 = vpack.c.bf16 %v7238, %v7230
    %v7424 = vpack.c.bf16 %v7239, %v7231
    %v7425 = vpack.c.bf16 %v7248, %v7240
    %v7426 = vpack.c.bf16 %v7249, %v7241
    %v7427 = vpack.c.bf16 %v7250, %v7242
    %v7428 = vpack.c.bf16 %v7251, %v7243
    %v7429 = vpack.c.bf16 %v7252, %v7244
    %v7430 = vpack.c.bf16 %v7253, %v7245
    %v7431 = vpack.c.bf16 %v7254, %v7246
    %v7432 = vpack.c.bf16 %v7255, %v7247
    %v7433 = vpack.c.bf16 %v7264, %v7256
    %v7434 = vpack.c.bf16 %v7265, %v7257
    %v7435 = vpack.c.bf16 %v7266, %v7258
    %v7436 = vpack.c.bf16 %v7267, %v7259
    %v7437 = vpack.c.bf16 %v7268, %v7260
    %v7438 = vpack.c.bf16 %v7269, %v7261
    %v7439 = vpack.c.bf16 %v7270, %v7262
    %v7440 = vpack.c.bf16 %v7271, %v7263
    %v7441 = vpack.c.bf16 %v7280, %v7272
    %v7442 = vpack.c.bf16 %v7281, %v7273
    %v7443 = vpack.c.bf16 %v7282, %v7274
    %v7444 = vpack.c.bf16 %v7283, %v7275
    %v7445 = vpack.c.bf16 %v7284, %v7276
    %v7446 = vpack.c.bf16 %v7285, %v7277
    %v7447 = vpack.c.bf16 %v7286, %v7278
    %v7448 = vpack.c.bf16 %v7287, %v7279
    %v7449 = vpack.c.bf16 %v7296, %v7288
    %v7450 = vpack.c.bf16 %v7297, %v7289
    %v7451 = vpack.c.bf16 %v7298, %v7290
    %v7452 = vpack.c.bf16 %v7299, %v7291
    %v7453 = vpack.c.bf16 %v7300, %v7292
    %v7454 = vpack.c.bf16 %v7301, %v7293
    %v7455 = vpack.c.bf16 %v7302, %v7294
    %v7456 = vpack.c.bf16 %v7303, %v7295
    %v7457 = vpack.c.bf16 %v7312, %v7304
    %v7458 = vpack.c.bf16 %v7313, %v7305
    %v7459 = vpack.c.bf16 %v7314, %v7306
    %v7460 = vpack.c.bf16 %v7315, %v7307
    %v7461 = vpack.c.bf16 %v7316, %v7308
    %v7462 = vpack.c.bf16 %v7317, %v7309
    %v7463 = vpack.c.bf16 %v7318, %v7310
    %v7464 = vpack.c.bf16 %v7319, %v7311
    %v7465 = vpack.c.bf16 %v7328, %v7320
    %v7466 = vpack.c.bf16 %v7329, %v7321
    %v7467 = vpack.c.bf16 %v7330, %v7322
    %v7468 = vpack.c.bf16 %v7331, %v7323
    %v7469 = vpack.c.bf16 %v7332, %v7324
    %v7470 = vpack.c.bf16 %v7333, %v7325
    %v7471 = vpack.c.bf16 %v7334, %v7326
    %v7472 = vpack.c.bf16 %v7335, %v7327
    %v7473 = vpack.c.bf16 %v7344, %v7336
    %v7474 = vpack.c.bf16 %v7345, %v7337
    %v7475 = vpack.c.bf16 %v7346, %v7338
    %v7476 = vpack.c.bf16 %v7347, %v7339
    %v7477 = vpack.c.bf16 %v7348, %v7340
    %v7478 = vpack.c.bf16 %v7349, %v7341
    %v7479 = vpack.c.bf16 %v7350, %v7342
    %v7480 = vpack.c.bf16 %v7351, %v7343
    %v7481 = vpack.c.bf16 %v7360, %v7352
    %v7482 = vpack.c.bf16 %v7361, %v7353
    %v7483 = vpack.c.bf16 %v7362, %v7354
    %v7484 = vpack.c.bf16 %v7363, %v7355
    %v7485 = vpack.c.bf16 %v7364, %v7356
    %v7486 = vpack.c.bf16 %v7365, %v7357
    %v7487 = vpack.c.bf16 %v7366, %v7358
    %v7488 = vpack.c.bf16 %v7367, %v7359
    %v7489 = vpack.c.bf16 %v7376, %v7368
    %v7490 = vpack.c.bf16 %v7377, %v7369
    %v7491 = vpack.c.bf16 %v7378, %v7370
    %v7492 = vpack.c.bf16 %v7379, %v7371
    %v7493 = vpack.c.bf16 %v7380, %v7372
    %v7494 = vpack.c.bf16 %v7381, %v7373
    %v7495 = vpack.c.bf16 %v7382, %v7374
    %v7496 = vpack.c.bf16 %v7383, %v7375
    %v7497 = vpack.c.bf16 %v7392, %v7384
    %v7498 = vpack.c.bf16 %v7393, %v7385
    %v7499 = vpack.c.bf16 %v7394, %v7386
    %v7500 = vpack.c.bf16 %v7395, %v7387
    %v7501 = vpack.c.bf16 %v7396, %v7388
    %v7502 = vpack.c.bf16 %v7397, %v7389
    %v7503 = vpack.c.bf16 %v7398, %v7390
    %v7504 = vpack.c.bf16 %v7399, %v7391
    %v7505 = vpack.c.bf16 %v7400, %v7400
    %v7506 = vpack.c.bf16 %v7401, %v7401
    %v7507 = vpack.c.bf16 %v7402, %v7402
    %v7508 = vpack.c.bf16 %v7403, %v7403
    %v7509 = vpack.c.bf16 %v7404, %v7404
    %v7510 = vpack.c.bf16 %v7405, %v7405
    %v7511 = vpack.c.bf16 %v7406, %v7406
    %v7512 = vpack.c.bf16 %v7407, %v7407
    %v7513 = vld [vmem:[#allocation2] sm:$0x1]
    %7515 = vset.pattern.permute.xlu0 0
    %7516 = vperm.xlu0 %7515, %v7513
    %v7517 = vpop.permute.xlu0 %7516
    %v7519 = vlaneseq
    %v7520 = vshrl.u32 %v7519, 7
    %v7521 = vsub.s32 0, %v7520
    %v7522 = vrot.slane %v7517, %v7521
    %v7524 = vcombine.high %v7408, %v7408
    %v7526 = vunpack.c.l.s4 1966171168
    %v7527 = vunpack.c.0.s8 %v7526
    %v7528 = vlaneseq
    %v7529 = vshrl.u32 %v7528, 7
    %v7530 = vsub.s32 %v7527, %v7529
    %v7531 = vrot.slane %v7408, %v7530
    %v7533 = vunpack.c.l.s4 1966171168
    %v7534 = vunpack.c.0.s8 %v7533
    %v7535 = vlaneseq
    %v7536 = vshrl.u32 %v7535, 7
    %v7537 = vsub.s32 %v7534, %v7536
    %v7538 = vrot.slane %v7524, %v7537
    %v7539 = vcombine.high %v7531, %v7531
    %v7540 = vcombine.high %v7538, %v7538
    %v7542 = vunpack.c.l.s4 1966171168
    %v7543 = vunpack.c.0.s8 %v7542
    %v7544 = vlaneseq
    %v7545 = vshrl.u32 %v7544, 7
    %v7546 = vsub.s32 %v7543, %v7545
    %v7547 = vrot.slane %v7531, %v7546
    %v7549 = vunpack.c.l.s4 1966171168
    %v7550 = vunpack.c.0.s8 %v7549
    %v7551 = vlaneseq
    %v7552 = vshrl.u32 %v7551, 7
    %v7553 = vsub.s32 %v7550, %v7552
    %v7554 = vrot.slane %v7538, %v7553
    %v7556 = vunpack.c.l.s4 1966171168
    %v7557 = vunpack.c.0.s8 %v7556
    %v7558 = vlaneseq
    %v7559 = vshrl.u32 %v7558, 7
    %v7560 = vsub.s32 %v7557, %v7559
    %v7561 = vrot.slane %v7539, %v7560
    %v7563 = vunpack.c.l.s4 1966171168
    %v7564 = vunpack.c.0.s8 %v7563
    %v7565 = vlaneseq
    %v7566 = vshrl.u32 %v7565, 7
    %v7567 = vsub.s32 %v7564, %v7566
    %v7568 = vrot.slane %v7540, %v7567
    %v7569 = vcombine.high %v7547, %v7547
    %v7570 = vcombine.high %v7554, %v7554
    %v7571 = vcombine.high %v7561, %v7561
    %v7572 = vcombine.high %v7568, %v7568
    %7581 = vmatprep.subr.bf16.mxu0 %v7410
    %7582 = vmatpush1.bf16.xpose.msra.mxu0 %v7409
    %7583 = vmatprep.subr.bf16.mxu0 %v7418
    %7584 = vmatpush1.bf16.xpose.msra.mxu0 %v7417
    %7585 = vmatprep.subr.bf16.mxu0 %v7426
    %7586 = vmatpush1.bf16.xpose.msra.mxu0 %v7425
    %7587 = vmatprep.subr.bf16.mxu0 %v7434
    %7588 = vmatpush1.bf16.xpose.msra.mxu0 %v7433
    %7589 = vmatprep.subr.bf16.mxu0 %v7442
    %7590 = vmatpush1.bf16.xpose.msra.mxu0 %v7441
    %7591 = vmatprep.subr.bf16.mxu0 %v7450
    %7592 = vmatpush1.bf16.xpose.msra.mxu0 %v7449
    %7593 = vmatprep.subr.bf16.mxu0 %v7458
    %7594 = vmatpush1.bf16.xpose.msra.mxu0 %v7457
    %7595 = vmatprep.subr.bf16.mxu0 %v7466
    %7596 = vmatpush1.bf16.xpose.msra.mxu0 %v7465
    %7597 = vmatprep.subr.bf16.mxu0 %v7474
    %7598 = vmatpush1.bf16.xpose.msra.mxu0 %v7473
    %7599 = vmatprep.subr.bf16.mxu0 %v7482
    %7600 = vmatpush1.bf16.xpose.msra.mxu0 %v7481
    %7601 = vmatprep.subr.bf16.mxu0 %v7490
    %7602 = vmatpush1.bf16.xpose.msra.mxu0 %v7489
    %7603 = vmatprep.subr.bf16.mxu0 %v7498
    %7604 = vmatpush1.bf16.xpose.msra.mxu0 %v7497
    %7605 = vmatprep.subr.bf16.mxu0 %v7506
    %7606 = vmatpush1.bf16.xpose.msra.mxu0 %v7505
    %7607 = vmatprep.subr.bf16.mxu0 0
    %7608 = vmatpush1.bf16.xpose.msra.mxu0 0
    %7609 = vmatprep.subr.bf16.mxu0 0
    %7610 = vmatpush1.bf16.xpose.msra.mxu0 0
    %7611 = vmatprep.subr.bf16.mxu0 0
    %7612 = vmatpush1.bf16.xpose.msra.mxu0 0
    %7613 = vmatprep.mubr.bf16.mxu0 %v7561
    %7614 = vmatmul.mubr.bf16.gmra.mrb[0].mxu0 %v7547
    %v7615 = vpop.f32.mrb[0].mxu0
    %v7616 = vadd.f32 %v7522, %v7615
    %v7617 = vpop.f32.mrb[0].mxu0
    %v7618 = vadd.f32 %v7522, %v7617
    %v7619 = vpop.f32.mrb[0].mxu0
    %v7620 = vpop.f32.mrb[0].mxu0
    %7621 = vdwg.mxu0
    %7622 = vmatprep.subr.bf16.mxu0 %v7412
    %7623 = vmatpush1.bf16.xpose.msra.mxu0 %v7411
    %7624 = vmatprep.subr.bf16.mxu0 %v7420
    %7625 = vmatpush1.bf16.xpose.msra.mxu0 %v7419
    %7626 = vmatprep.subr.bf16.mxu0 %v7428
    %7627 = vmatpush1.bf16.xpose.msra.mxu0 %v7427
    %7628 = vmatprep.subr.bf16.mxu0 %v7436
    %7629 = vmatpush1.bf16.xpose.msra.mxu0 %v7435
    %7630 = vmatprep.subr.bf16.mxu0 %v7444
    %7631 = vmatpush1.bf16.xpose.msra.mxu0 %v7443
    %7632 = vmatprep.subr.bf16.mxu0 %v7452
    %7633 = vmatpush1.bf16.xpose.msra.mxu0 %v7451
    %7634 = vmatprep.subr.bf16.mxu0 %v7460
    %7635 = vmatpush1.bf16.xpose.msra.mxu0 %v7459
    %7636 = vmatprep.subr.bf16.mxu0 %v7468
    %7637 = vmatpush1.bf16.xpose.msra.mxu0 %v7467
    %7638 = vmatprep.subr.bf16.mxu0 %v7476
    %7639 = vmatpush1.bf16.xpose.msra.mxu0 %v7475
    %7640 = vmatprep.subr.bf16.mxu0 %v7484
    %7641 = vmatpush1.bf16.xpose.msra.mxu0 %v7483
    %7642 = vmatprep.subr.bf16.mxu0 %v7492
    %7643 = vmatpush1.bf16.xpose.msra.mxu0 %v7491
    %7644 = vmatprep.subr.bf16.mxu0 %v7500
    %7645 = vmatpush1.bf16.xpose.msra.mxu0 %v7499
    %7646 = vmatprep.subr.bf16.mxu0 %v7508
    %7647 = vmatpush1.bf16.xpose.msra.mxu0 %v7507
    %7648 = vmatprep.subr.bf16.mxu0 0
    %7649 = vmatpush1.bf16.xpose.msra.mxu0 0
    %7650 = vmatprep.subr.bf16.mxu0 0
    %7651 = vmatpush1.bf16.xpose.msra.mxu0 0
    %7652 = vmatprep.subr.bf16.mxu0 0
    %7653 = vmatpush1.bf16.xpose.msra.mxu0 0
    %7654 = vmatprep.mubr.bf16.mxu0 %v7571
    %7655 = vmatmul.mubr.bf16.gmra.mrb[0].mxu0 %v7569
    %v7656 = vpop.f32.mrb[0].mxu0
    %v7657 = vadd.f32 %v7616, %v7656
    %v7658 = vpop.f32.mrb[0].mxu0
    %v7659 = vadd.f32 %v7618, %v7658
    %v7660 = vpop.f32.mrb[0].mxu0
    %v7661 = vpop.f32.mrb[0].mxu0
    %7662 = vdwg.mxu0
    %7663 = vmatprep.subr.bf16.mxu0 %v7414
    %7664 = vmatpush1.bf16.xpose.msra.mxu0 %v7413
    %7665 = vmatprep.subr.bf16.mxu0 %v7422
    %7666 = vmatpush1.bf16.xpose.msra.mxu0 %v7421
    %7667 = vmatprep.subr.bf16.mxu0 %v7430
    %7668 = vmatpush1.bf16.xpose.msra.mxu0 %v7429
    %7669 = vmatprep.subr.bf16.mxu0 %v7438
    %7670 = vmatpush1.bf16.xpose.msra.mxu0 %v7437
    %7671 = vmatprep.subr.bf16.mxu0 %v7446
    %7672 = vmatpush1.bf16.xpose.msra.mxu0 %v7445
    %7673 = vmatprep.subr.bf16.mxu0 %v7454
    %7674 = vmatpush1.bf16.xpose.msra.mxu0 %v7453
    %7675 = vmatprep.subr.bf16.mxu0 %v7462
    %7676 = vmatpush1.bf16.xpose.msra.mxu0 %v7461
    %7677 = vmatprep.subr.bf16.mxu0 %v7470
    %7678 = vmatpush1.bf16.xpose.msra.mxu0 %v7469
    %7679 = vmatprep.subr.bf16.mxu0 %v7478
    %7680 = vmatpush1.bf16.xpose.msra.mxu0 %v7477
    %7681 = vmatprep.subr.bf16.mxu0 %v7486
    %7682 = vmatpush1.bf16.xpose.msra.mxu0 %v7485
    %7683 = vmatprep.subr.bf16.mxu0 %v7494
    %7684 = vmatpush1.bf16.xpose.msra.mxu0 %v7493
    %7685 = vmatprep.subr.bf16.mxu0 %v7502
    %7686 = vmatpush1.bf16.xpose.msra.mxu0 %v7501
    %7687 = vmatprep.subr.bf16.mxu0 %v7510
    %7688 = vmatpush1.bf16.xpose.msra.mxu0 %v7509
    %7689 = vmatprep.subr.bf16.mxu0 0
    %7690 = vmatpush1.bf16.xpose.msra.mxu0 0
    %7691 = vmatprep.subr.bf16.mxu0 0
    %7692 = vmatpush1.bf16.xpose.msra.mxu0 0
    %7693 = vmatprep.subr.bf16.mxu0 0
    %7694 = vmatpush1.bf16.xpose.msra.mxu0 0
    %7695 = vmatprep.mubr.bf16.mxu0 %v7568
    %7696 = vmatmul.mubr.bf16.gmra.mrb[0].mxu0 %v7554
    %v7697 = vpop.f32.mrb[0].mxu0
    %v7698 = vadd.f32 %v7657, %v7697
    %v7699 = vpop.f32.mrb[0].mxu0
    %v7700 = vadd.f32 %v7659, %v7699
    %v7701 = vpop.f32.mrb[0].mxu0
    %v7702 = vpop.f32.mrb[0].mxu0
    %7703 = vdwg.mxu0
    %7704 = vmatprep.subr.bf16.mxu0 %v7416
    %7705 = vmatpush1.bf16.xpose.msra.mxu0 %v7415
    %7706 = vmatprep.subr.bf16.mxu0 %v7424
    %7707 = vmatpush1.bf16.xpose.msra.mxu0 %v7423
    %7708 = vmatprep.subr.bf16.mxu0 %v7432
    %7709 = vmatpush1.bf16.xpose.msra.mxu0 %v7431
    %7710 = vmatprep.subr.bf16.mxu0 %v7440
    %7711 = vmatpush1.bf16.xpose.msra.mxu0 %v7439
    %7712 = vmatprep.subr.bf16.mxu0 %v7448
    %7713 = vmatpush1.bf16.xpose.msra.mxu0 %v7447
    %7714 = vmatprep.subr.bf16.mxu0 %v7456
    %7715 = vmatpush1.bf16.xpose.msra.mxu0 %v7455
    %7716 = vmatprep.subr.bf16.mxu0 %v7464
    %7717 = vmatpush1.bf16.xpose.msra.mxu0 %v7463
    %7718 = vmatprep.subr.bf16.mxu0 %v7472
    %7719 = vmatpush1.bf16.xpose.msra.mxu0 %v7471
    %7720 = vmatprep.subr.bf16.mxu0 %v7480
    %7721 = vmatpush1.bf16.xpose.msra.mxu0 %v7479
    %7722 = vmatprep.subr.bf16.mxu0 %v7488
    %7723 = vmatpush1.bf16.xpose.msra.mxu0 %v7487
    %7724 = vmatprep.subr.bf16.mxu0 %v7496
    %7725 = vmatpush1.bf16.xpose.msra.mxu0 %v7495
    %7726 = vmatprep.subr.bf16.mxu0 %v7504
    %7727 = vmatpush1.bf16.xpose.msra.mxu0 %v7503
    %7728 = vmatprep.subr.bf16.mxu0 %v7512
    %7729 = vmatpush1.bf16.xpose.msra.mxu0 %v7511
    %7730 = vmatprep.subr.bf16.mxu0 0
    %7731 = vmatpush1.bf16.xpose.msra.mxu0 0
    %7732 = vmatprep.subr.bf16.mxu0 0
    %7733 = vmatpush1.bf16.xpose.msra.mxu0 0
    %7734 = vmatprep.subr.bf16.mxu0 0
    %7735 = vmatpush1.bf16.xpose.msra.mxu0 0
    %7736 = vmatprep.mubr.bf16.mxu0 %v7572
    %7737 = vmatmul.mubr.bf16.gmra.mrb[0].mxu0 %v7570
    %v7738 = vpop.f32.mrb[0].mxu0
    %v7739 = vadd.f32 %v7698, %v7738
    %v7740 = vpop.f32.mrb[0].mxu0
    %v7741 = vadd.f32 %v7700, %v7740
    %v7742 = vpop.f32.mrb[0].mxu0
    %v7743 = vpop.f32.mrb[0].mxu0
    %7744 = vdwg.mxu0
    %v7747 = vcombine.low %v7739, %v7741
    %v7749 = vunpack.c.l.s4 1966171168
    %v7750 = vunpack.c.0.s8 %v7749
    %v7751 = vlaneseq
    %v7752 = vshrl.u32 %v7751, 7
    %v7753 = vsub.s32 %v7750, %v7752
    %v7754 = vrot.slane %v7747, %v7753
    %v7756 = vunpack.c.l.s4 1966171168
    %v7757 = vunpack.c.0.s8 %v7756
    %v7758 = vlaneseq
    %v7759 = vshrl.u32 %v7758, 7
    %v7760 = vsub.s32 %v7757, %v7759
    %v7761 = vrot.slane %v7754, %v7760
    %v7763 = vlaneseq
    %vm7764 = vcmp.ge.s32.totalorder %v7763, 0
    %vm7765 = vcmp.lt.s32.totalorder %v7763, 200
    %vm7766 = vmand %vm7764, %vm7765
    %7767 = vst.msk [vmem:[#allocation14] sm:$0x3] %vm7766, %v7761
    // Predicated region
    $region54: #{da_ins_head_forward.1} parent=1 // pred_check
      _
    $region55: #{da_ins_head_forward.1} parent=1 // pred_check_branch
      %7769 = sbr.rel (0) target = $region57
    $region56: #{da_ins_head_forward.1} parent=1 // pred_region
      %s7771 = ssub.s32 32, 32
      %7772 = vsyncadd [#allocation5], %s7771
      %s7774 = sshll.u32 [#allocation14], 4
      %s7775 = int_to_ptr.vmem [resolvable:$true] %s7774
      %7777 = dma.vmem_to_hbm [thread:$0]  %s7775, 32, %s7, [#allocation5]
    $region57: #{da_ins_head_forward.1} parent=1 // pred_fallthru
      _
    // Predicated region
    $region58: #{da_ins_head_forward.1} parent=1 // pred_check
      _
    $region59: #{da_ins_head_forward.1} parent=1 // pred_check_branch
      %7779 = sbr.rel (0) target = $region61
    $region60: #{da_ins_head_forward.1} parent=1 // pred_region
      %7780 = dma.done [#allocation5], 32
    $region61: #{da_ins_head_forward.1} parent=1 // pred_fallthru
      _
    %7781 = vsyncpa [#allocation4], 1
    %7782 = vsyncpa [#allocation7], 1
    %7783 = vsyncpa [#allocation10], 1
    %7784 = vsyncpa [#allocation13], 1
    %7785 = vsyncpa [#allocation5], 1

</llo_original>
